<compile_context>
chip_gen: v7x
topology: tpu7x:2x2x1
jax: 0.10.0
libtpu: 0.0.40
codegen_flags: <defaults>
</compile_context>

<pallas_src>
import numpy as np
import jax
import jax.numpy as jnp
from jax import lax
from jax.experimental import pallas as pl
from jax.experimental.pallas import tpu as pltpu

# ---------------- model config (matches the PyTorch module defaults) ----------------
HORIZON = 10
INPUT_DIM = 16
LATENT_DIM = 16
COND_DIM = 36
OUTPUT_DIM = 36
H_CHANNELS = [32, 64, 128]
MID_DIMS = [128, 128]
EPS_NORM = 1e-5

TB = 256          # batch-tile rows (MXU M dim; >=256 keeps the v6e/v7x MXU fully utilized)
COND_PAD = 48     # cond lanes padded to a bf16-sublane multiple (matches packed weight rows)
OUT_PAD = 128     # lane-dense output tile (OUTPUT_DIM=36 zero-padded to 128)


def _round_up(n, m):
    return -(-n // m) * m


def _conv_out_len(L):
    return (L + 2 - 3) // 2 + 1  # k=3, s=2, p=1


CONV_LENS = [HORIZON]
for _ in H_CHANNELS:
    CONV_LENS.append(_conv_out_len(CONV_LENS[-1]))                 # [10, 5, 3, 2]
X_DIM = INPUT_DIM * HORIZON                                        # 160
ENC_DIMS = [H_CHANNELS[i] * CONV_LENS[i + 1] for i in range(3)]    # [160, 192, 256]
FEAT_DIM = ENC_DIMS[-1]                                            # 256

# ---------------- packed bf16 weight slab (small matmul weights), 128 lanes wide -------
OFFW = {
    "wmvf": 0,                                                     # (256, 32) fc feat part
    "wmvc": FEAT_DIM,                                              # (36->48, 32) fc cond part
    "wd0": FEAT_DIM + COND_PAD,                                    # (16, 128) dec0
    "wd1": FEAT_DIM + COND_PAD + LATENT_DIM,                       # (128, 128) dec1
    "wfin": FEAT_DIM + COND_PAD + LATENT_DIM + MID_DIMS[0],        # (128, 36->128) final
}
WSLAB_ROWS = OFFW["wfin"] + MID_DIMS[1]                            # 576 (all offsets %16==0)

# ---------------- packed f32 bias/affine slab (one row, 128-lane aligned entries) ------
_SLAB_ENTRIES = []
for _i in range(3):
    _SLAB_ENTRIES += [(f"b{_i}", ENC_DIMS[_i]), (f"g{_i}", ENC_DIMS[_i]),
                      (f"be{_i}", ENC_DIMS[_i])]
_SLAB_ENTRIES += [("bmv", OUT_PAD)]                 # fc_mu_b ++ fc_var_b in lanes 0:32
for _i in range(2):
    _SLAB_ENTRIES += [(f"bd{_i}", MID_DIMS[_i]), (f"gl{_i}", MID_DIMS[_i]),
                      (f"bl{_i}", MID_DIMS[_i])]
_SLAB_ENTRIES += [("bfin", OUT_PAD)]                # final bias in lanes 0:36

OFF, SLAB_W = {}, {}
_o = 0
for _name, _n in _SLAB_ENTRIES:
    OFF[_name] = _o
    SLAB_W[_name] = _n
    _o += _round_up(_n, 128)
SLAB_LEN = _o


# ---------------- Pallas kernel ----------------
def autoencoder_kernel(x_ref, cond_ref, eps_ref,
                       w1_ref, w2_ref, w3_ref, wslab_ref, bslab_ref, out_ref):
    def vec(name):
        off = OFF[name]
        return bslab_ref[:, off:off + SLAB_W[name]]                # (1, n) f32

    def mish(v):
        # mish(v) = v * tanh(softplus(v)) = v * (t^2-1)/(t^2+1), t = 1+exp(v).
        # Clamp at 20: mish(v) == v there to f32 precision, avoids exp overflow.
        t = 1.0 + jnp.exp(jnp.minimum(v, 20.0))
        tt = t * t
        return v * (tt - 1.0) * pl.reciprocal(tt + 1.0, approx=True)

    def norm_mish(y, g, b):
        # GroupNorm(num_groups=1) and LayerNorm both reduce over the lane axis here
        # (per-sample statistics); affine vectors are pre-expanded to lane layout. f32.
        m = jnp.mean(y, axis=-1, keepdims=True)
        d = y - m
        var = jnp.mean(d * d, axis=-1, keepdims=True)
        return mish(d * lax.rsqrt(var + EPS_NORM) * vec(g) + vec(b))

    def bdot(a, w):
        # bf16 MXU inputs, f32 accumulation.
        return jnp.dot(a.astype(jnp.bfloat16), w, preferred_element_type=jnp.float32)

    # static, 16-row-aligned views into the VMEM-resident packed bf16 weight slab
    wmvf = wslab_ref[OFFW["wmvf"]:OFFW["wmvf"] + FEAT_DIM, :]
    wmvc = wslab_ref[OFFW["wmvc"]:OFFW["wmvc"] + COND_PAD, :]
    wd0 = wslab_ref[OFFW["wd0"]:OFFW["wd0"] + LATENT_DIM, :]
    wd1 = wslab_ref[OFFW["wd1"]:OFFW["wd1"] + MID_DIMS[0], :]
    wfin = wslab_ref[OFFW["wfin"]:OFFW["wfin"] + MID_DIMS[1], :]

    x = x_ref[...]                                                 # (TB, 160) f32

    # ----- encoder: each Conv1d(k3,s2,p1)+GroupNorm(1)+Mish as one matmul + lane-norm -----
    h = norm_mish(bdot(x, w1_ref[...]) + vec("b0"), "g0", "be0")   # (TB, 160)
    h = norm_mish(bdot(h, w2_ref[...]) + vec("b1"), "g1", "be1")   # (TB, 192)
    h = norm_mish(bdot(h, w3_ref[...]) + vec("b2"), "g2", "be2")   # (TB, 256) == flatten order

    # ----- fused fc_mu / fc_var (+ cond), reparameterized sample -----
    y = bdot(h, wmvf) + bdot(cond_ref[...], wmvc) + vec("bmv")     # (TB, 128); lanes 0:32 live
    mu = y[:, :LATENT_DIM]
    logv = y[:, LATENT_DIM:2 * LATENT_DIM]
    z = mu + jnp.exp(logv) * eps_ref[...]                          # sigma = exp(fc_var(x))

    # ----- decoder MLP: 2x [Linear + LayerNorm + Mish] + final Linear (lane-padded to 128) --
    d = norm_mish(bdot(z, wd0) + vec("bd0"), "gl0", "bl0")
    d = norm_mish(bdot(d, wd1) + vec("bd1"), "gl1", "bl1")
    out_ref[...] = (bdot(d, wfin) + vec("bfin")).astype(out_ref.dtype)


# ---------------- host-side parameter packing (call ONCE per parameter set) ------------
def _conv_to_toeplitz(w, L_in, L_out):
    """(C_out, C_in, 3) conv weight -> dense (C_in*L_in, C_out*L_out) matmul weight,
    stride 2, padding 1, lane order c*L + t (PyTorch flatten order)."""
    w = np.asarray(w, np.float32)
    C_out, C_in, K = w.shape
    W = np.zeros((C_in, L_in, C_out, L_out), np.float32)
    for t in range(L_out):
        for k in range(K):
            src = 2 * t + k - 1
            if 0 <= src < L_in:
                W[:, src, :, t] = w[:, :, k].T                     # (C_in, C_out)
    return W.reshape(C_in * L_in, C_out * L_out)


def pack_params(p):
    """Toeplitz expansion + slab packing + bf16 casts. Runs once; result is reused."""
    w1 = _conv_to_toeplitz(p["conv0_w"], CONV_LENS[0], CONV_LENS[1])      # (160, 160)
    w2 = _conv_to_toeplitz(p["conv1_w"], CONV_LENS[1], CONV_LENS[2])      # (160, 192)
    w3 = _conv_to_toeplitz(p["conv2_w"], CONV_LENS[2], CONV_LENS[3])      # (192, 256)

    # one bf16 slab for the five small matmul weights
    wslab = np.zeros((WSLAB_ROWS, 128), np.float32)
    w_mv = np.concatenate([np.asarray(p["fc_mu_w"], np.float32),
                           np.asarray(p["fc_var_w"], np.float32)], axis=0)  # (32, 292)
    wslab[OFFW["wmvf"]:OFFW["wmvf"] + FEAT_DIM, :2 * LATENT_DIM] = w_mv[:, :FEAT_DIM].T
    wslab[OFFW["wmvc"]:OFFW["wmvc"] + COND_DIM, :2 * LATENT_DIM] = w_mv[:, FEAT_DIM:].T
    wslab[OFFW["wd0"]:OFFW["wd0"] + LATENT_DIM, :MID_DIMS[0]] = \
        np.asarray(p["dec0_w"], np.float32).T
    wslab[OFFW["wd1"]:OFFW["wd1"] + MID_DIMS[0], :MID_DIMS[1]] = \
        np.asarray(p["dec1_w"], np.float32).T
    wslab[OFFW["wfin"]:OFFW["wfin"] + MID_DIMS[1], :OUTPUT_DIM] = \
        np.asarray(p["fin_w"], np.float32).T

    # one f32 slab for all biases / norm affines (pre-expanded to lane layout)
    data = {}
    for i in range(3):
        L_out = CONV_LENS[i + 1]
        data[f"b{i}"] = np.repeat(np.asarray(p[f"conv{i}_b"], np.float32), L_out)
        data[f"g{i}"] = np.repeat(np.asarray(p[f"gn{i}_g"], np.float32), L_out)
        data[f"be{i}"] = np.repeat(np.asarray(p[f"gn{i}_b"], np.float32), L_out)
    data["bmv"] = np.concatenate([np.asarray(p["fc_mu_b"], np.float32),
                                  np.asarray(p["fc_var_b"], np.float32)])
    for i in range(2):
        data[f"bd{i}"] = np.asarray(p[f"dec{i}_b"], np.float32)
        data[f"gl{i}"] = np.asarray(p[f"ln{i}_g"], np.float32)
        data[f"bl{i}"] = np.asarray(p[f"ln{i}_b"], np.float32)
    data["bfin"] = np.asarray(p["fin_b"], np.float32)

    bslab = np.zeros((1, SLAB_LEN), np.float32)
    for name, _ in _SLAB_ENTRIES:
        v = data[name]
        bslab[0, OFF[name]:OFF[name] + v.shape[0]] = v

    return {"w1": jnp.asarray(w1, jnp.bfloat16),
            "w2": jnp.asarray(w2, jnp.bfloat16),
            "w3": jnp.asarray(w3, jnp.bfloat16),
            "wslab": jnp.asarray(wslab, jnp.bfloat16),
            "bslab": jnp.asarray(bslab, jnp.float32)}


# ---------------- jitted forward: only x / cond / eps move per call --------------------
@jax.jit
def autoencoder_forward(x, cond, eps, packed):
    """x: (B, INPUT_DIM, HORIZON) NCL, cond: (B, COND_DIM), eps: (B, LATENT_DIM)."""
    B = x.shape[0]
    B_pad = _round_up(B, TB)
    pad = B_pad - B

    x_flat = jnp.pad(x.reshape(B, -1).astype(jnp.float32), ((0, pad), (0, 0)))
    cond_p = jnp.pad(cond.astype(jnp.float32), ((0, pad), (0, COND_PAD - COND_DIM)))
    eps_p = jnp.pad(eps.astype(jnp.float32), ((0, pad), (0, 0)))

    grid_spec = pltpu.PrefetchScalarGridSpec(
        num_scalar_prefetch=0,
        grid=(B_pad // TB,),
        in_specs=[
            pl.BlockSpec((TB, X_DIM), lambda i: (i, 0)),            # x tile
            pl.BlockSpec((TB, COND_PAD), lambda i: (i, 0)),         # cond tile
            pl.BlockSpec((TB, LATENT_DIM), lambda i: (i, 0)),       # eps tile
            pl.BlockSpec((X_DIM, ENC_DIMS[0]), lambda i: (0, 0)),   # conv0 Toeplitz (resident)
            pl.BlockSpec((ENC_DIMS[0], ENC_DIMS[1]), lambda i: (0, 0)),
            pl.BlockSpec((ENC_DIMS[1], ENC_DIMS[2]), lambda i: (0, 0)),
            pl.BlockSpec((WSLAB_ROWS, 128), lambda i: (0, 0)),      # packed bf16 weights
            pl.BlockSpec((1, SLAB_LEN), lambda i: (0, 0)),          # packed f32 biases/affines
        ],
        out_specs=pl.BlockSpec((TB, OUT_PAD), lambda i: (i, 0)),
    )
    out_pad = pl.pallas_call(
        autoencoder_kernel,
        out_shape=jax.ShapeDtypeStruct((B_pad, OUT_PAD), jnp.float32),
        grid_spec=grid_spec,
        compiler_params=pltpu.CompilerParams(
            dimension_semantics=("parallel",)),     # batch axis -> both TCs on v7x
    )(x_flat, cond_p, eps_p,
      packed["w1"], packed["w2"], packed["w3"], packed["wslab"], packed["bslab"])
    return out_pad[:B, :OUTPUT_DIM]


# ---------------- parameter construction (canonical PyTorch shapes) ----------------
def make_params(key):
    ks = list(jax.random.split(key, 64))
    ki = iter(ks)

    def w(shape, scale=0.05):
        return scale * jax.random.normal(next(ki), shape, jnp.float32)

    params = {}
    chans = [INPUT_DIM] + H_CHANNELS
    for i in range(3):
        params[f"conv{i}_w"] = w((chans[i + 1], chans[i], 3))          # (C_out, C_in, K)
        params[f"conv{i}_b"] = w((chans[i + 1],), 0.1)
        params[f"gn{i}_g"] = 1.0 + w((chans[i + 1],), 0.1)
        params[f"gn{i}_b"] = w((chans[i + 1],), 0.1)

    params["fc_mu_w"] = w((LATENT_DIM, FEAT_DIM + COND_DIM), 0.02)
    params["fc_mu_b"] = w((LATENT_DIM,), 0.02)
    params["fc_var_w"] = w((LATENT_DIM, FEAT_DIM + COND_DIM), 0.02)
    params["fc_var_b"] = w((LATENT_DIM,), 0.02)

    dims = [LATENT_DIM] + MID_DIMS
    for i in range(2):
        params[f"dec{i}_w"] = w((dims[i + 1], dims[i]))
        params[f"dec{i}_b"] = w((dims[i + 1],), 0.1)
        params[f"ln{i}_g"] = 1.0 + w((dims[i + 1],), 0.1)
        params[f"ln{i}_b"] = w((dims[i + 1],), 0.1)
    params["fin_w"] = w((OUTPUT_DIM, MID_DIMS[-1]))
    params["fin_b"] = w((OUTPUT_DIM,), 0.1)
    return params


# ---------------- plain-JAX reference (canonical PyTorch math, f32) ----------------
def reference_forward(x, cond, eps, p):
    def mish(v):
        return v * jnp.tanh(jax.nn.softplus(v))

    h = x
    for i in range(3):
        h = lax.conv_general_dilated(
            h, p[f"conv{i}_w"], window_strides=(2,), padding=((1, 1),),
            dimension_numbers=("NCH", "OIH", "NCH"))
        h = h + p[f"conv{i}_b"][None, :, None]
        mean = h.mean(axis=(1, 2), keepdims=True)
        var = ((h - mean) ** 2).mean(axis=(1, 2), keepdims=True)
        h = (h - mean) / jnp.sqrt(var + EPS_NORM)
        h = h * p[f"gn{i}_g"][None, :, None] + p[f"gn{i}_b"][None, :, None]
        h = mish(h)
    flat = h.reshape(h.shape[0], -1)
    feat = jnp.concatenate([flat, cond], axis=-1)
    mu = feat @ p["fc_mu_w"].T + p["fc_mu_b"]
    sigma = jnp.exp(feat @ p["fc_var_w"].T + p["fc_var_b"])
    z = mu + sigma * eps

    def ln_mish(v, g, b):
        m = v.mean(-1, keepdims=True)
        var = ((v - m) ** 2).mean(-1, keepdims=True)
        return mish((v - m) / jnp.sqrt(var + EPS_NORM) * g + b)

    d = ln_mish(z @ p["dec0_w"].T + p["dec0_b"], p["ln0_g"], p["ln0_b"])
    d = ln_mish(d @ p["dec1_w"].T + p["dec1_b"], p["ln1_g"], p["ln1_b"])
    return d @ p["fin_w"].T + p["fin_b"]


if __name__ == "__main__":
    key = jax.random.PRNGKey(0)
    kp, kx, kc, ke = jax.random.split(key, 4)

    B = 2
    params = make_params(kp)
    x = jax.random.normal(kx, (B, INPUT_DIM, HORIZON), jnp.float32)   # PyTorch NCL
    cond = jax.random.normal(kc, (B, COND_DIM), jnp.float32)
    eps = jax.random.normal(ke, (B, LATENT_DIM), jnp.float32)         # Normal(0,1) sample

    packed = pack_params(params)            # host packing + weight upload: once per param set
    out = autoencoder_forward(x, cond, eps, packed)
    out = jax.block_until_ready(out)

    ref = jax.block_until_ready(reference_forward(x, cond, eps, params))

    assert out.shape == (B, OUTPUT_DIM), out.shape
    assert bool(jnp.all(jnp.isfinite(out)))
    assert bool(jnp.allclose(out, ref, rtol=5e-2, atol=5e-2)), (
        float(jnp.max(jnp.abs(out - ref))))
    print("KERNEL_OK")
</pallas_src>

<mosaic_0001>
module attributes {stable_mosaic.version = 11 : i64} {
  func.func @autoencoder_kernel(%arg0: i32, %arg1: memref<256x160xf32, #tpu.memory_space<vmem>>, %arg2: memref<256x48xf32, #tpu.memory_space<vmem>>, %arg3: memref<256x16xf32, #tpu.memory_space<vmem>>, %arg4: memref<160x160xbf16, #tpu.memory_space<vmem>>, %arg5: memref<160x192xbf16, #tpu.memory_space<vmem>>, %arg6: memref<192x256xbf16, #tpu.memory_space<vmem>>, %arg7: memref<576x128xbf16, #tpu.memory_space<vmem>>, %arg8: memref<1x3328xf32, #tpu.memory_space<vmem>>, %arg9: memref<256x128xf32, #tpu.memory_space<vmem>>) attributes {dimension_semantics = [#tpu.dimension_semantics<parallel>], iteration_bounds = array<i64: 1>, scalar_prefetch = 0 : i64, scratch_operands = 0 : i64, tpu.core_type = #tpu.core_type<tc>, window_params = [{transform_indices = @transform_0, window_bounds = array<i64: 256, 160>}, {transform_indices = @transform_1, window_bounds = array<i64: 256, 48>}, {transform_indices = @transform_2, window_bounds = array<i64: 256, 16>}, {pipeline_mode = #tpu.pipeline_mode<synchronous>, transform_indices = @transform_3, window_bounds = array<i64: 160, 160>}, {pipeline_mode = #tpu.pipeline_mode<synchronous>, transform_indices = @transform_4, window_bounds = array<i64: 160, 192>}, {pipeline_mode = #tpu.pipeline_mode<synchronous>, transform_indices = @transform_5, window_bounds = array<i64: 192, 256>}, {pipeline_mode = #tpu.pipeline_mode<synchronous>, transform_indices = @transform_6, window_bounds = array<i64: 576, 128>}, {pipeline_mode = #tpu.pipeline_mode<synchronous>, transform_indices = @transform_7, window_bounds = array<i64: 1, 3328>}, {transform_indices = @transform_8, window_bounds = array<i64: 256, 128>}]} {
    %c0 = arith.constant 0 : index
    %c0_0 = arith.constant 0 : index
    %0 = vector.load %arg7[%c0, %c0_0] : memref<576x128xbf16, #tpu.memory_space<vmem>>, vector<256x128xbf16>
    %c256 = arith.constant 256 : index
    %c0_1 = arith.constant 0 : index
    %1 = vector.load %arg7[%c256, %c0_1] : memref<576x128xbf16, #tpu.memory_space<vmem>>, vector<48x128xbf16>
    %c304 = arith.constant 304 : index
    %c0_2 = arith.constant 0 : index
    %2 = vector.load %arg7[%c304, %c0_2] : memref<576x128xbf16, #tpu.memory_space<vmem>>, vector<16x128xbf16>
    %c320 = arith.constant 320 : index
    %c0_3 = arith.constant 0 : index
    %3 = vector.load %arg7[%c320, %c0_3] : memref<576x128xbf16, #tpu.memory_space<vmem>>, vector<128x128xbf16>
    %c448 = arith.constant 448 : index
    %c0_4 = arith.constant 0 : index
    %4 = vector.load %arg7[%c448, %c0_4] : memref<576x128xbf16, #tpu.memory_space<vmem>>, vector<128x128xbf16>
    %c0_5 = arith.constant 0 : index
    %c0_6 = arith.constant 0 : index
    %5 = vector.load %arg1[%c0_5, %c0_6] : memref<256x160xf32, #tpu.memory_space<vmem>>, vector<256x160xf32>
    %c0_7 = arith.constant 0 : index
    %c0_8 = arith.constant 0 : index
    %6 = vector.load %arg4[%c0_7, %c0_8] : memref<160x160xbf16, #tpu.memory_space<vmem>>, vector<160x160xbf16>
    %7 = arith.truncf %5 : vector<256x160xf32> to vector<256x160xbf16>
    %cst = arith.constant dense<0.000000e+00> : vector<256x160xf32>
    %8 = tpu.matmul %7, %6, %cst {dimension_numbers = #tpu.dot_dimension_numbers<[1], [0], [0], [1], [0, 0, 1, 1], [], []>} : vector<256x160xbf16>, vector<160x160xbf16>, vector<256x160xf32> -> vector<256x160xf32>
    %c0_9 = arith.constant 0 : index
    %c0_10 = arith.constant 0 : index
    %9 = vector.load %arg8[%c0_9, %c0_10] : memref<1x3328xf32, #tpu.memory_space<vmem>>, vector<1x160xf32>
    %10 = vector.broadcast %9 : vector<1x160xf32> to vector<256x160xf32>
    %11 = arith.addf %8, %10 : vector<256x160xf32>
    %cst_11 = arith.constant dense<0.000000e+00> : vector<256xf32>
    %12 = vector.multi_reduction <add>, %11, %cst_11 [1] : vector<256x160xf32> to vector<256xf32>
    %13 = vector.shape_cast %12 : vector<256xf32> to vector<256x1xf32>
    %cst_12 = arith.constant 1.600000e+02 : f32
    %14 = vector.broadcast %cst_12 : f32 to vector<256x1xf32>
    %15 = arith.divf %13, %14 : vector<256x1xf32>
    %16 = vector.broadcast %15 : vector<256x1xf32> to vector<256x160xf32>
    %17 = arith.subf %11, %16 : vector<256x160xf32>
    %18 = arith.mulf %17, %17 : vector<256x160xf32>
    %cst_13 = arith.constant dense<0.000000e+00> : vector<256xf32>
    %19 = vector.multi_reduction <add>, %18, %cst_13 [1] : vector<256x160xf32> to vector<256xf32>
    %20 = vector.shape_cast %19 : vector<256xf32> to vector<256x1xf32>
    %cst_14 = arith.constant 1.600000e+02 : f32
    %21 = vector.broadcast %cst_14 : f32 to vector<256x1xf32>
    %22 = arith.divf %20, %21 : vector<256x1xf32>
    %cst_15 = arith.constant 9.99999974E-6 : f32
    %23 = vector.broadcast %cst_15 : f32 to vector<256x1xf32>
    %24 = arith.addf %22, %23 : vector<256x1xf32>
    %25 = math.rsqrt %24 : vector<256x1xf32>
    %26 = vector.broadcast %25 : vector<256x1xf32> to vector<256x160xf32>
    %27 = arith.mulf %17, %26 : vector<256x160xf32>
    %c0_16 = arith.constant 0 : index
    %c256_17 = arith.constant 256 : index
    %28 = vector.load %arg8[%c0_16, %c256_17] : memref<1x3328xf32, #tpu.memory_space<vmem>>, vector<1x160xf32>
    %29 = vector.broadcast %28 : vector<1x160xf32> to vector<256x160xf32>
    %30 = arith.mulf %27, %29 : vector<256x160xf32>
    %c0_18 = arith.constant 0 : index
    %c512 = arith.constant 512 : index
    %31 = vector.load %arg8[%c0_18, %c512] : memref<1x3328xf32, #tpu.memory_space<vmem>>, vector<1x160xf32>
    %32 = vector.broadcast %31 : vector<1x160xf32> to vector<256x160xf32>
    %33 = arith.addf %30, %32 : vector<256x160xf32>
    %cst_19 = arith.constant 2.000000e+01 : f32
    %34 = vector.broadcast %cst_19 : f32 to vector<256x160xf32>
    %35 = arith.minimumf %33, %34 : vector<256x160xf32>
    %36 = math.exp %35 : vector<256x160xf32>
    %cst_20 = arith.constant 1.000000e+00 : f32
    %37 = vector.broadcast %cst_20 : f32 to vector<256x160xf32>
    %38 = arith.addf %37, %36 : vector<256x160xf32>
    %39 = arith.mulf %38, %38 : vector<256x160xf32>
    %cst_21 = arith.constant 1.000000e+00 : f32
    %40 = vector.broadcast %cst_21 : f32 to vector<256x160xf32>
    %41 = arith.subf %39, %40 : vector<256x160xf32>
    %42 = arith.mulf %33, %41 : vector<256x160xf32>
    %cst_22 = arith.constant 1.000000e+00 : f32
    %43 = vector.broadcast %cst_22 : f32 to vector<256x160xf32>
    %44 = arith.addf %39, %43 : vector<256x160xf32>
    %45 = tpu.reciprocal %44 {approx = true} : vector<256x160xf32> -> vector<256x160xf32>
    %46 = arith.mulf %42, %45 : vector<256x160xf32>
    %c0_23 = arith.constant 0 : index
    %c0_24 = arith.constant 0 : index
    %47 = vector.load %arg5[%c0_23, %c0_24] : memref<160x192xbf16, #tpu.memory_space<vmem>>, vector<160x192xbf16>
    %48 = arith.truncf %46 : vector<256x160xf32> to vector<256x160xbf16>
    %cst_25 = arith.constant dense<0.000000e+00> : vector<256x192xf32>
    %49 = tpu.matmul %48, %47, %cst_25 {dimension_numbers = #tpu.dot_dimension_numbers<[1], [0], [0], [1], [0, 0, 1, 1], [], []>} : vector<256x160xbf16>, vector<160x192xbf16>, vector<256x192xf32> -> vector<256x192xf32>
    %c0_26 = arith.constant 0 : index
    %c768 = arith.constant 768 : index
    %50 = vector.load %arg8[%c0_26, %c768] : memref<1x3328xf32, #tpu.memory_space<vmem>>, vector<1x192xf32>
    %51 = vector.broadcast %50 : vector<1x192xf32> to vector<256x192xf32>
    %52 = arith.addf %49, %51 : vector<256x192xf32>
    %cst_27 = arith.constant dense<0.000000e+00> : vector<256xf32>
    %53 = vector.multi_reduction <add>, %52, %cst_27 [1] : vector<256x192xf32> to vector<256xf32>
    %54 = vector.shape_cast %53 : vector<256xf32> to vector<256x1xf32>
    %cst_28 = arith.constant 1.920000e+02 : f32
    %55 = vector.broadcast %cst_28 : f32 to vector<256x1xf32>
    %56 = arith.divf %54, %55 : vector<256x1xf32>
    %57 = vector.broadcast %56 : vector<256x1xf32> to vector<256x192xf32>
    %58 = arith.subf %52, %57 : vector<256x192xf32>
    %59 = arith.mulf %58, %58 : vector<256x192xf32>
    %cst_29 = arith.constant dense<0.000000e+00> : vector<256xf32>
    %60 = vector.multi_reduction <add>, %59, %cst_29 [1] : vector<256x192xf32> to vector<256xf32>
    %61 = vector.shape_cast %60 : vector<256xf32> to vector<256x1xf32>
    %cst_30 = arith.constant 1.920000e+02 : f32
    %62 = vector.broadcast %cst_30 : f32 to vector<256x1xf32>
    %63 = arith.divf %61, %62 : vector<256x1xf32>
    %cst_31 = arith.constant 9.99999974E-6 : f32
    %64 = vector.broadcast %cst_31 : f32 to vector<256x1xf32>
    %65 = arith.addf %63, %64 : vector<256x1xf32>
    %66 = math.rsqrt %65 : vector<256x1xf32>
    %67 = vector.broadcast %66 : vector<256x1xf32> to vector<256x192xf32>
    %68 = arith.mulf %58, %67 : vector<256x192xf32>
    %c0_32 = arith.constant 0 : index
    %c1024 = arith.constant 1024 : index
    %69 = vector.load %arg8[%c0_32, %c1024] : memref<1x3328xf32, #tpu.memory_space<vmem>>, vector<1x192xf32>
    %70 = vector.broadcast %69 : vector<1x192xf32> to vector<256x192xf32>
    %71 = arith.mulf %68, %70 : vector<256x192xf32>
    %c0_33 = arith.constant 0 : index
    %c1280 = arith.constant 1280 : index
    %72 = vector.load %arg8[%c0_33, %c1280] : memref<1x3328xf32, #tpu.memory_space<vmem>>, vector<1x192xf32>
    %73 = vector.broadcast %72 : vector<1x192xf32> to vector<256x192xf32>
    %74 = arith.addf %71, %73 : vector<256x192xf32>
    %cst_34 = arith.constant 2.000000e+01 : f32
    %75 = vector.broadcast %cst_34 : f32 to vector<256x192xf32>
    %76 = arith.minimumf %74, %75 : vector<256x192xf32>
    %77 = math.exp %76 : vector<256x192xf32>
    %cst_35 = arith.constant 1.000000e+00 : f32
    %78 = vector.broadcast %cst_35 : f32 to vector<256x192xf32>
    %79 = arith.addf %78, %77 : vector<256x192xf32>
    %80 = arith.mulf %79, %79 : vector<256x192xf32>
    %cst_36 = arith.constant 1.000000e+00 : f32
    %81 = vector.broadcast %cst_36 : f32 to vector<256x192xf32>
    %82 = arith.subf %80, %81 : vector<256x192xf32>
    %83 = arith.mulf %74, %82 : vector<256x192xf32>
    %cst_37 = arith.constant 1.000000e+00 : f32
    %84 = vector.broadcast %cst_37 : f32 to vector<256x192xf32>
    %85 = arith.addf %80, %84 : vector<256x192xf32>
    %86 = tpu.reciprocal %85 {approx = true} : vector<256x192xf32> -> vector<256x192xf32>
    %87 = arith.mulf %83, %86 : vector<256x192xf32>
    %c0_38 = arith.constant 0 : index
    %c0_39 = arith.constant 0 : index
    %88 = vector.load %arg6[%c0_38, %c0_39] : memref<192x256xbf16, #tpu.memory_space<vmem>>, vector<192x256xbf16>
    %89 = arith.truncf %87 : vector<256x192xf32> to vector<256x192xbf16>
    %cst_40 = arith.constant dense<0.000000e+00> : vector<256x256xf32>
    %90 = tpu.matmul %89, %88, %cst_40 {dimension_numbers = #tpu.dot_dimension_numbers<[1], [0], [0], [1], [0, 0, 1, 1], [], []>} : vector<256x192xbf16>, vector<192x256xbf16>, vector<256x256xf32> -> vector<256x256xf32>
    %c0_41 = arith.constant 0 : index
    %c1536 = arith.constant 1536 : index
    %91 = vector.load %arg8[%c0_41, %c1536] : memref<1x3328xf32, #tpu.memory_space<vmem>>, vector<1x256xf32>
    %92 = vector.broadcast %91 : vector<1x256xf32> to vector<256x256xf32>
    %93 = arith.addf %90, %92 : vector<256x256xf32>
    %cst_42 = arith.constant dense<0.000000e+00> : vector<256xf32>
    %94 = vector.multi_reduction <add>, %93, %cst_42 [1] : vector<256x256xf32> to vector<256xf32>
    %95 = vector.shape_cast %94 : vector<256xf32> to vector<256x1xf32>
    %cst_43 = arith.constant 2.560000e+02 : f32
    %96 = vector.broadcast %cst_43 : f32 to vector<256x1xf32>
    %97 = arith.divf %95, %96 : vector<256x1xf32>
    %98 = vector.broadcast %97 : vector<256x1xf32> to vector<256x256xf32>
    %99 = arith.subf %93, %98 : vector<256x256xf32>
    %100 = arith.mulf %99, %99 : vector<256x256xf32>
    %cst_44 = arith.constant dense<0.000000e+00> : vector<256xf32>
    %101 = vector.multi_reduction <add>, %100, %cst_44 [1] : vector<256x256xf32> to vector<256xf32>
    %102 = vector.shape_cast %101 : vector<256xf32> to vector<256x1xf32>
    %cst_45 = arith.constant 2.560000e+02 : f32
    %103 = vector.broadcast %cst_45 : f32 to vector<256x1xf32>
    %104 = arith.divf %102, %103 : vector<256x1xf32>
    %cst_46 = arith.constant 9.99999974E-6 : f32
    %105 = vector.broadcast %cst_46 : f32 to vector<256x1xf32>
    %106 = arith.addf %104, %105 : vector<256x1xf32>
    %107 = math.rsqrt %106 : vector<256x1xf32>
    %108 = vector.broadcast %107 : vector<256x1xf32> to vector<256x256xf32>
    %109 = arith.mulf %99, %108 : vector<256x256xf32>
    %c0_47 = arith.constant 0 : index
    %c1792 = arith.constant 1792 : index
    %110 = vector.load %arg8[%c0_47, %c1792] : memref<1x3328xf32, #tpu.memory_space<vmem>>, vector<1x256xf32>
    %111 = vector.broadcast %110 : vector<1x256xf32> to vector<256x256xf32>
    %112 = arith.mulf %109, %111 : vector<256x256xf32>
    %c0_48 = arith.constant 0 : index
    %c2048 = arith.constant 2048 : index
    %113 = vector.load %arg8[%c0_48, %c2048] : memref<1x3328xf32, #tpu.memory_space<vmem>>, vector<1x256xf32>
    %114 = vector.broadcast %113 : vector<1x256xf32> to vector<256x256xf32>
    %115 = arith.addf %112, %114 : vector<256x256xf32>
    %cst_49 = arith.constant 2.000000e+01 : f32
    %116 = vector.broadcast %cst_49 : f32 to vector<256x256xf32>
    %117 = arith.minimumf %115, %116 : vector<256x256xf32>
    %118 = math.exp %117 : vector<256x256xf32>
    %cst_50 = arith.constant 1.000000e+00 : f32
    %119 = vector.broadcast %cst_50 : f32 to vector<256x256xf32>
    %120 = arith.addf %119, %118 : vector<256x256xf32>
    %121 = arith.mulf %120, %120 : vector<256x256xf32>
    %cst_51 = arith.constant 1.000000e+00 : f32
    %122 = vector.broadcast %cst_51 : f32 to vector<256x256xf32>
    %123 = arith.subf %121, %122 : vector<256x256xf32>
    %124 = arith.mulf %115, %123 : vector<256x256xf32>
    %cst_52 = arith.constant 1.000000e+00 : f32
    %125 = vector.broadcast %cst_52 : f32 to vector<256x256xf32>
    %126 = arith.addf %121, %125 : vector<256x256xf32>
    %127 = tpu.reciprocal %126 {approx = true} : vector<256x256xf32> -> vector<256x256xf32>
    %128 = arith.mulf %124, %127 : vector<256x256xf32>
    %129 = arith.truncf %128 : vector<256x256xf32> to vector<256x256xbf16>
    %cst_53 = arith.constant dense<0.000000e+00> : vector<256x128xf32>
    %130 = tpu.matmul %129, %0, %cst_53 {dimension_numbers = #tpu.dot_dimension_numbers<[1], [0], [0], [1], [0, 0, 1, 1], [], []>} : vector<256x256xbf16>, vector<256x128xbf16>, vector<256x128xf32> -> vector<256x128xf32>
    %c0_54 = arith.constant 0 : index
    %c0_55 = arith.constant 0 : index
    %131 = vector.load %arg2[%c0_54, %c0_55] : memref<256x48xf32, #tpu.memory_space<vmem>>, vector<256x48xf32>
    %132 = arith.truncf %131 : vector<256x48xf32> to vector<256x48xbf16>
    %cst_56 = arith.constant dense<0.000000e+00> : vector<256x128xf32>
    %133 = tpu.matmul %132, %1, %cst_56 {dimension_numbers = #tpu.dot_dimension_numbers<[1], [0], [0], [1], [0, 0, 1, 1], [], []>} : vector<256x48xbf16>, vector<48x128xbf16>, vector<256x128xf32> -> vector<256x128xf32>
    %134 = arith.addf %130, %133 : vector<256x128xf32>
    %c0_57 = arith.constant 0 : index
    %c2304 = arith.constant 2304 : index
    %135 = vector.load %arg8[%c0_57, %c2304] : memref<1x3328xf32, #tpu.memory_space<vmem>>, vector<1x128xf32>
    %136 = vector.broadcast %135 : vector<1x128xf32> to vector<256x128xf32>
    %137 = arith.addf %134, %136 : vector<256x128xf32>
    %138 = vector.extract_strided_slice %137 {offsets = [0, 0], sizes = [256, 16], strides = [1, 1]} : vector<256x128xf32> to vector<256x16xf32>
    %139 = vector.extract_strided_slice %137 {offsets = [0, 16], sizes = [256, 16], strides = [1, 1]} : vector<256x128xf32> to vector<256x16xf32>
    %140 = math.exp %139 : vector<256x16xf32>
    %c0_58 = arith.constant 0 : index
    %c0_59 = arith.constant 0 : index
    %141 = vector.load %arg3[%c0_58, %c0_59] : memref<256x16xf32, #tpu.memory_space<vmem>>, vector<256x16xf32>
    %142 = arith.mulf %140, %141 : vector<256x16xf32>
    %143 = arith.addf %138, %142 : vector<256x16xf32>
    %144 = arith.truncf %143 : vector<256x16xf32> to vector<256x16xbf16>
    %cst_60 = arith.constant dense<0.000000e+00> : vector<256x128xf32>
    %145 = tpu.matmul %144, %2, %cst_60 {dimension_numbers = #tpu.dot_dimension_numbers<[1], [0], [0], [1], [0, 0, 1, 1], [], []>} : vector<256x16xbf16>, vector<16x128xbf16>, vector<256x128xf32> -> vector<256x128xf32>
    %c0_61 = arith.constant 0 : index
    %c2432 = arith.constant 2432 : index
    %146 = vector.load %arg8[%c0_61, %c2432] : memref<1x3328xf32, #tpu.memory_space<vmem>>, vector<1x128xf32>
    %147 = vector.broadcast %146 : vector<1x128xf32> to vector<256x128xf32>
    %148 = arith.addf %145, %147 : vector<256x128xf32>
    %cst_62 = arith.constant dense<0.000000e+00> : vector<256xf32>
    %149 = vector.multi_reduction <add>, %148, %cst_62 [1] : vector<256x128xf32> to vector<256xf32>
    %150 = vector.shape_cast %149 : vector<256xf32> to vector<256x1xf32>
    %cst_63 = arith.constant 1.280000e+02 : f32
    %151 = vector.broadcast %cst_63 : f32 to vector<256x1xf32>
    %152 = arith.divf %150, %151 : vector<256x1xf32>
    %153 = vector.broadcast %152 : vector<256x1xf32> to vector<256x128xf32>
    %154 = arith.subf %148, %153 : vector<256x128xf32>
    %155 = arith.mulf %154, %154 : vector<256x128xf32>
    %cst_64 = arith.constant dense<0.000000e+00> : vector<256xf32>
    %156 = vector.multi_reduction <add>, %155, %cst_64 [1] : vector<256x128xf32> to vector<256xf32>
    %157 = vector.shape_cast %156 : vector<256xf32> to vector<256x1xf32>
    %cst_65 = arith.constant 1.280000e+02 : f32
    %158 = vector.broadcast %cst_65 : f32 to vector<256x1xf32>
    %159 = arith.divf %157, %158 : vector<256x1xf32>
    %cst_66 = arith.constant 9.99999974E-6 : f32
    %160 = vector.broadcast %cst_66 : f32 to vector<256x1xf32>
    %161 = arith.addf %159, %160 : vector<256x1xf32>
    %162 = math.rsqrt %161 : vector<256x1xf32>
    %163 = vector.broadcast %162 : vector<256x1xf32> to vector<256x128xf32>
    %164 = arith.mulf %154, %163 : vector<256x128xf32>
    %c0_67 = arith.constant 0 : index
    %c2560 = arith.constant 2560 : index
    %165 = vector.load %arg8[%c0_67, %c2560] : memref<1x3328xf32, #tpu.memory_space<vmem>>, vector<1x128xf32>
    %166 = vector.broadcast %165 : vector<1x128xf32> to vector<256x128xf32>
    %167 = arith.mulf %164, %166 : vector<256x128xf32>
    %c0_68 = arith.constant 0 : index
    %c2688 = arith.constant 2688 : index
    %168 = vector.load %arg8[%c0_68, %c2688] : memref<1x3328xf32, #tpu.memory_space<vmem>>, vector<1x128xf32>
    %169 = vector.broadcast %168 : vector<1x128xf32> to vector<256x128xf32>
    %170 = arith.addf %167, %169 : vector<256x128xf32>
    %cst_69 = arith.constant 2.000000e+01 : f32
    %171 = vector.broadcast %cst_69 : f32 to vector<256x128xf32>
    %172 = arith.minimumf %170, %171 : vector<256x128xf32>
    %173 = math.exp %172 : vector<256x128xf32>
    %cst_70 = arith.constant 1.000000e+00 : f32
    %174 = vector.broadcast %cst_70 : f32 to vector<256x128xf32>
    %175 = arith.addf %174, %173 : vector<256x128xf32>
    %176 = arith.mulf %175, %175 : vector<256x128xf32>
    %cst_71 = arith.constant 1.000000e+00 : f32
    %177 = vector.broadcast %cst_71 : f32 to vector<256x128xf32>
    %178 = arith.subf %176, %177 : vector<256x128xf32>
    %179 = arith.mulf %170, %178 : vector<256x128xf32>
    %cst_72 = arith.constant 1.000000e+00 : f32
    %180 = vector.broadcast %cst_72 : f32 to vector<256x128xf32>
    %181 = arith.addf %176, %180 : vector<256x128xf32>
    %182 = tpu.reciprocal %181 {approx = true} : vector<256x128xf32> -> vector<256x128xf32>
    %183 = arith.mulf %179, %182 : vector<256x128xf32>
    %184 = arith.truncf %183 : vector<256x128xf32> to vector<256x128xbf16>
    %cst_73 = arith.constant dense<0.000000e+00> : vector<256x128xf32>
    %185 = tpu.matmul %184, %3, %cst_73 {dimension_numbers = #tpu.dot_dimension_numbers<[1], [0], [0], [1], [0, 0, 1, 1], [], []>} : vector<256x128xbf16>, vector<128x128xbf16>, vector<256x128xf32> -> vector<256x128xf32>
    %c0_74 = arith.constant 0 : index
    %c2816 = arith.constant 2816 : index
    %186 = vector.load %arg8[%c0_74, %c2816] : memref<1x3328xf32, #tpu.memory_space<vmem>>, vector<1x128xf32>
    %187 = vector.broadcast %186 : vector<1x128xf32> to vector<256x128xf32>
    %188 = arith.addf %185, %187 : vector<256x128xf32>
    %cst_75 = arith.constant dense<0.000000e+00> : vector<256xf32>
    %189 = vector.multi_reduction <add>, %188, %cst_75 [1] : vector<256x128xf32> to vector<256xf32>
    %190 = vector.shape_cast %189 : vector<256xf32> to vector<256x1xf32>
    %cst_76 = arith.constant 1.280000e+02 : f32
    %191 = vector.broadcast %cst_76 : f32 to vector<256x1xf32>
    %192 = arith.divf %190, %191 : vector<256x1xf32>
    %193 = vector.broadcast %192 : vector<256x1xf32> to vector<256x128xf32>
    %194 = arith.subf %188, %193 : vector<256x128xf32>
    %195 = arith.mulf %194, %194 : vector<256x128xf32>
    %cst_77 = arith.constant dense<0.000000e+00> : vector<256xf32>
    %196 = vector.multi_reduction <add>, %195, %cst_77 [1] : vector<256x128xf32> to vector<256xf32>
    %197 = vector.shape_cast %196 : vector<256xf32> to vector<256x1xf32>
    %cst_78 = arith.constant 1.280000e+02 : f32
    %198 = vector.broadcast %cst_78 : f32 to vector<256x1xf32>
    %199 = arith.divf %197, %198 : vector<256x1xf32>
    %cst_79 = arith.constant 9.99999974E-6 : f32
    %200 = vector.broadcast %cst_79 : f32 to vector<256x1xf32>
    %201 = arith.addf %199, %200 : vector<256x1xf32>
    %202 = math.rsqrt %201 : vector<256x1xf32>
    %203 = vector.broadcast %202 : vector<256x1xf32> to vector<256x128xf32>
    %204 = arith.mulf %194, %203 : vector<256x128xf32>
    %c0_80 = arith.constant 0 : index
    %c2944 = arith.constant 2944 : index
    %205 = vector.load %arg8[%c0_80, %c2944] : memref<1x3328xf32, #tpu.memory_space<vmem>>, vector<1x128xf32>
    %206 = vector.broadcast %205 : vector<1x128xf32> to vector<256x128xf32>
    %207 = arith.mulf %204, %206 : vector<256x128xf32>
    %c0_81 = arith.constant 0 : index
    %c3072 = arith.constant 3072 : index
    %208 = vector.load %arg8[%c0_81, %c3072] : memref<1x3328xf32, #tpu.memory_space<vmem>>, vector<1x128xf32>
    %209 = vector.broadcast %208 : vector<1x128xf32> to vector<256x128xf32>
    %210 = arith.addf %207, %209 : vector<256x128xf32>
    %cst_82 = arith.constant 2.000000e+01 : f32
    %211 = vector.broadcast %cst_82 : f32 to vector<256x128xf32>
    %212 = arith.minimumf %210, %211 : vector<256x128xf32>
    %213 = math.exp %212 : vector<256x128xf32>
    %cst_83 = arith.constant 1.000000e+00 : f32
    %214 = vector.broadcast %cst_83 : f32 to vector<256x128xf32>
    %215 = arith.addf %214, %213 : vector<256x128xf32>
    %216 = arith.mulf %215, %215 : vector<256x128xf32>
    %cst_84 = arith.constant 1.000000e+00 : f32
    %217 = vector.broadcast %cst_84 : f32 to vector<256x128xf32>
    %218 = arith.subf %216, %217 : vector<256x128xf32>
    %219 = arith.mulf %210, %218 : vector<256x128xf32>
    %cst_85 = arith.constant 1.000000e+00 : f32
    %220 = vector.broadcast %cst_85 : f32 to vector<256x128xf32>
    %221 = arith.addf %216, %220 : vector<256x128xf32>
    %222 = tpu.reciprocal %221 {approx = true} : vector<256x128xf32> -> vector<256x128xf32>
    %223 = arith.mulf %219, %222 : vector<256x128xf32>
    %224 = arith.truncf %223 : vector<256x128xf32> to vector<256x128xbf16>
    %cst_86 = arith.constant dense<0.000000e+00> : vector<256x128xf32>
    %225 = tpu.matmul %224, %4, %cst_86 {dimension_numbers = #tpu.dot_dimension_numbers<[1], [0], [0], [1], [0, 0, 1, 1], [], []>} : vector<256x128xbf16>, vector<128x128xbf16>, vector<256x128xf32> -> vector<256x128xf32>
    %c0_87 = arith.constant 0 : index
    %c3200 = arith.constant 3200 : index
    %226 = vector.load %arg8[%c0_87, %c3200] : memref<1x3328xf32, #tpu.memory_space<vmem>>, vector<1x128xf32>
    %227 = vector.broadcast %226 : vector<1x128xf32> to vector<256x128xf32>
    %228 = arith.addf %225, %227 : vector<256x128xf32>
    %c0_88 = arith.constant 0 : index
    %c0_89 = arith.constant 0 : index
    %229 = vector.load %arg9[%c0_88, %c0_89] : memref<256x128xf32, #tpu.memory_space<vmem>>, vector<256x128xf32>
    tpu.vector_store %arg9[%c0_88, %c0_89], %228 {strides = array<i32>} : memref<256x128xf32, #tpu.memory_space<vmem>>, vector<256x128xf32>,
    return
  }
  func.func @transform_0(%arg0: i32) -> (i32, i32) {
    %c0_i32 = arith.constant 0 : i32
    %c0_i32_0 = arith.constant 0 : i32
    return %arg0, %c0_i32 : i32, i32
  }
  func.func @transform_1(%arg0: i32) -> (i32, i32) {
    %c0_i32 = arith.constant 0 : i32
    %c0_i32_0 = arith.constant 0 : i32
    return %arg0, %c0_i32 : i32, i32
  }
  func.func @transform_2(%arg0: i32) -> (i32, i32) {
    %c0_i32 = arith.constant 0 : i32
    %c0_i32_0 = arith.constant 0 : i32
    return %arg0, %c0_i32 : i32, i32
  }
  func.func @transform_3(%arg0: i32) -> (i32, i32) {
    %c0_i32 = arith.constant 0 : i32
    %c0_i32_0 = arith.constant 0 : i32
    %c0_i32_1 = arith.constant 0 : i32
    return %c0_i32, %c0_i32_0 : i32, i32
  }
  func.func @transform_4(%arg0: i32) -> (i32, i32) {
    %c0_i32 = arith.constant 0 : i32
    %c0_i32_0 = arith.constant 0 : i32
    %c0_i32_1 = arith.constant 0 : i32
    return %c0_i32, %c0_i32_0 : i32, i32
  }
  func.func @transform_5(%arg0: i32) -> (i32, i32) {
    %c0_i32 = arith.constant 0 : i32
    %c0_i32_0 = arith.constant 0 : i32
    %c0_i32_1 = arith.constant 0 : i32
    return %c0_i32, %c0_i32_0 : i32, i32
  }
  func.func @transform_6(%arg0: i32) -> (i32, i32) {
    %c0_i32 = arith.constant 0 : i32
    %c0_i32_0 = arith.constant 0 : i32
    %c0_i32_1 = arith.constant 0 : i32
    return %c0_i32, %c0_i32_0 : i32, i32
  }
  func.func @transform_7(%arg0: i32) -> (i32, i32) {
    %c0_i32 = arith.constant 0 : i32
    %c0_i32_0 = arith.constant 0 : i32
    %c0_i32_1 = arith.constant 0 : i32
    return %c0_i32, %c0_i32_0 : i32, i32
  }
  func.func @transform_8(%arg0: i32) -> (i32, i32) {
    %c0_i32 = arith.constant 0 : i32
    %c0_i32_0 = arith.constant 0 : i32
    return %arg0, %c0_i32 : i32, i32
  }
}

</mosaic_0001>

<llo_original>
// kernel: autoencoder_forward.1
$region0: #{autoencoder_forward.1}
  #allocation0 [shape = 'u32[]', space=smem, size = 0x4, offset = 0x4, fixed_abs, tag = 'smem constant byte address 0x4 - core index']
  #allocation1 [shape = 'u32[144,128]{1,0:T(1,128)}', space=vmem, size = 0x12000, scoped, tag = 'internal scratch']
  %s0 = inlined_call_operand.vmem [shape: f32[256,160], index: 0, kind: input, shape index: {}]
  %s1 = inlined_call_operand.vmem [shape: f32[256,48], index: 1, kind: input, shape index: {}]
  %s2 = inlined_call_operand.vmem [shape: f32[256,16], index: 2, kind: input, shape index: {}]
  %s3 = inlined_call_operand.vmem [shape: bf16[160,160], index: 3, kind: input, shape index: {}]
  %s4 = inlined_call_operand.vmem [shape: bf16[160,192], index: 4, kind: input, shape index: {}]
  %s5 = inlined_call_operand.vmem [shape: bf16[192,256], index: 5, kind: input, shape index: {}]
  %s6 = inlined_call_operand.vmem [shape: bf16[576,128], index: 6, kind: input, shape index: {}]
  %s7 = inlined_call_operand.vmem [shape: f32[1,3328], index: 7, kind: input, shape index: {}]
  %s8 = inlined_call_operand.vmem [shape: f32[256,128], index: 8, kind: output, shape index: {}]
  %s9 = sld [smem:[#allocation0]]
  $region42: #{autoencoder_forward.1} parent=0
    _
  %s11 = ssub.s32 1, %s9
  %s12 = scalar_select 0, %s11, %s9
  // Predicated region
  $region2: #{autoencoder_forward.1} parent=0 // pred_check
    _
  $region3: #{autoencoder_forward.1} parent=0 // pred_check_branch
    %14 = sbr.rel (0) target = $region5
  $region4: #{autoencoder_forward.1} parent=0 // pred_region
    _
  $region5: #{autoencoder_forward.1} parent=0 // pred_fallthru
    _
  // Predicated region
  $region6: #{autoencoder_forward.1} parent=0 // pred_check
    _
  $region7: #{autoencoder_forward.1} parent=0 // pred_check_branch
    %16 = sbr.rel (0) target = $region9
  $region8: #{autoencoder_forward.1} parent=0 // pred_region
    _
  $region9: #{autoencoder_forward.1} parent=0 // pred_fallthru
    _
  // Predicated region
  $region10: #{autoencoder_forward.1} parent=0 // pred_check
    _
  $region11: #{autoencoder_forward.1} parent=0 // pred_check_branch
    %18 = sbr.rel (0) target = $region13
  $region12: #{autoencoder_forward.1} parent=0 // pred_region
    _
  $region13: #{autoencoder_forward.1} parent=0 // pred_fallthru
    _
  // Predicated region
  $region14: #{autoencoder_forward.1} parent=0 // pred_check
    _
  $region15: #{autoencoder_forward.1} parent=0 // pred_check_branch
    %20 = sbr.rel (0) target = $region17
  $region16: #{autoencoder_forward.1} parent=0 // pred_region
    _
  $region17: #{autoencoder_forward.1} parent=0 // pred_fallthru
    _
  // Predicated region
  $region18: #{autoencoder_forward.1} parent=0 // pred_check
    _
  $region19: #{autoencoder_forward.1} parent=0 // pred_check_branch
    %22 = sbr.rel (0) target = $region21
  $region20: #{autoencoder_forward.1} parent=0 // pred_region
    _
  $region21: #{autoencoder_forward.1} parent=0 // pred_fallthru
    _
  // Predicated region
  $region22: #{autoencoder_forward.1} parent=0 // pred_check
    _
  $region23: #{autoencoder_forward.1} parent=0 // pred_check_branch
    %24 = sbr.rel (0) target = $region25
  $region24: #{autoencoder_forward.1} parent=0 // pred_region
    _
  $region25: #{autoencoder_forward.1} parent=0 // pred_fallthru
    _
  // Predicated region
  $region26: #{autoencoder_forward.1} parent=0 // pred_check
    _
  $region27: #{autoencoder_forward.1} parent=0 // pred_check_branch
    %26 = sbr.rel (0) target = $region29
  $region28: #{autoencoder_forward.1} parent=0 // pred_region
    _
  $region29: #{autoencoder_forward.1} parent=0 // pred_fallthru
    _
  // Predicated region
  $region30: #{autoencoder_forward.1} parent=0 // pred_check
    _
  $region31: #{autoencoder_forward.1} parent=0 // pred_check_branch
    %28 = sbr.rel (0) target = $region33
  $region32: #{autoencoder_forward.1} parent=0 // pred_region
    _
  $region33: #{autoencoder_forward.1} parent=0 // pred_fallthru
    _
  %v30 = vld [vmem:[%s6] sm:$0xf]
  %v31 = vld [vmem:[%s6 + $0x4] sm:$0xf]
  %v32 = vld [vmem:[%s6 + $0x8] sm:$0xf]
  %v33 = vld [vmem:[%s6 + $0xc] sm:$0xf]
  %v34 = vld [vmem:[%s6 + $0x10] sm:$0xf]
  %v35 = vld [vmem:[%s6 + $0x14] sm:$0xf]
  %v36 = vld [vmem:[%s6 + $0x18] sm:$0xf]
  %v37 = vld [vmem:[%s6 + $0x1c] sm:$0xf]
  %v38 = vld [vmem:[%s6 + $0x20] sm:$0xf]
  %v39 = vld [vmem:[%s6 + $0x24] sm:$0xf]
  %v40 = vld [vmem:[%s6 + $0x28] sm:$0xf]
  %v41 = vld [vmem:[%s6 + $0x2c] sm:$0xf]
  %v42 = vld [vmem:[%s6 + $0x30] sm:$0xf]
  %v43 = vld [vmem:[%s6 + $0x34] sm:$0xf]
  %v44 = vld [vmem:[%s6 + $0x38] sm:$0xf]
  %v45 = vld [vmem:[%s6 + $0x3c] sm:$0xf]
  %v46 = vld [vmem:[%s6 + $0x40] sm:$0xf]
  %v47 = vld [vmem:[%s6 + $0x44] sm:$0xf]
  %v48 = vld [vmem:[%s6 + $0x48] sm:$0xf]
  %v49 = vld [vmem:[%s6 + $0x4c] sm:$0xf]
  %v50 = vld [vmem:[%s6 + $0x50] sm:$0xf]
  %v51 = vld [vmem:[%s6 + $0x54] sm:$0xf]
  %v52 = vld [vmem:[%s6 + $0x58] sm:$0xf]
  %v53 = vld [vmem:[%s6 + $0x5c] sm:$0xf]
  %v54 = vld [vmem:[%s6 + $0x60] sm:$0xf]
  %v55 = vld [vmem:[%s6 + $0x64] sm:$0xf]
  %v56 = vld [vmem:[%s6 + $0x68] sm:$0xf]
  %v57 = vld [vmem:[%s6 + $0x6c] sm:$0xf]
  %v58 = vld [vmem:[%s6 + $0x70] sm:$0xf]
  %v59 = vld [vmem:[%s6 + $0x74] sm:$0xf]
  %v60 = vld [vmem:[%s6 + $0x78] sm:$0xf]
  %v61 = vld [vmem:[%s6 + $0x7c] sm:$0xf]
  %v62 = vld [vmem:[%s6 + $0x80] sm:$0xf]
  %v63 = vld [vmem:[%s6 + $0x84] sm:$0xf]
  %v64 = vld [vmem:[%s6 + $0x88] sm:$0xf]
  %v65 = vld [vmem:[%s6 + $0x8c] sm:$0xf]
  %v66 = vld [vmem:[%s6 + $0x90] sm:$0xf]
  %v67 = vld [vmem:[%s6 + $0x94] sm:$0xf]
  %v68 = vld [vmem:[%s6 + $0x98] sm:$0xf]
  %v69 = vld [vmem:[%s6 + $0x9c] sm:$0xf]
  %v70 = vld [vmem:[%s6 + $0xa0] sm:$0xf]
  %v71 = vld [vmem:[%s6 + $0xa4] sm:$0xf]
  %v72 = vld [vmem:[%s6 + $0xa8] sm:$0xf]
  %v73 = vld [vmem:[%s6 + $0xac] sm:$0xf]
  %v74 = vld [vmem:[%s6 + $0xb0] sm:$0xf]
  %v75 = vld [vmem:[%s6 + $0xb4] sm:$0xf]
  %v76 = vld [vmem:[%s6 + $0xb8] sm:$0xf]
  %v77 = vld [vmem:[%s6 + $0xbc] sm:$0xf]
  %v78 = vld [vmem:[%s6 + $0xc0] sm:$0xf]
  %v79 = vld [vmem:[%s6 + $0xc4] sm:$0xf]
  %v80 = vld [vmem:[%s6 + $0xc8] sm:$0xf]
  %v81 = vld [vmem:[%s6 + $0xcc] sm:$0xf]
  %v82 = vld [vmem:[%s6 + $0xd0] sm:$0xf]
  %v83 = vld [vmem:[%s6 + $0xd4] sm:$0xf]
  %v84 = vld [vmem:[%s6 + $0xd8] sm:$0xf]
  %v85 = vld [vmem:[%s6 + $0xdc] sm:$0xf]
  %v86 = vld [vmem:[%s6 + $0xe0] sm:$0xf]
  %v87 = vld [vmem:[%s6 + $0xe4] sm:$0xf]
  %v88 = vld [vmem:[%s6 + $0xe8] sm:$0xf]
  %v89 = vld [vmem:[%s6 + $0xec] sm:$0xf]
  %v90 = vld [vmem:[%s6 + $0xf0] sm:$0xf]
  %v91 = vld [vmem:[%s6 + $0xf4] sm:$0xf]
  %v92 = vld [vmem:[%s6 + $0xf8] sm:$0xf]
  %v93 = vld [vmem:[%s6 + $0xfc] sm:$0xf]
  %v94 = vld [vmem:[%s6 + $0x100] sm:$0xf]
  %v95 = vld [vmem:[%s6 + $0x104] sm:$0xf]
  %v96 = vld [vmem:[%s6 + $0x108] sm:$0xf]
  %v97 = vld [vmem:[%s6 + $0x10c] sm:$0xf]
  %v98 = vld [vmem:[%s6 + $0x110] sm:$0xf]
  %v99 = vld [vmem:[%s6 + $0x114] sm:$0xf]
  %v100 = vld [vmem:[%s6 + $0x118] sm:$0xf]
  %v101 = vld [vmem:[%s6 + $0x11c] sm:$0xf]
  %v102 = vld [vmem:[%s0] sm:$0xff]
  %v103 = vld [vmem:[%s0 + $0x8] sm:$0xff]
  %v104 = vld [vmem:[%s0 + $0x10] sm:$0xff]
  %v105 = vld [vmem:[%s0 + $0x18] sm:$0xff]
  %v106 = vld [vmem:[%s0 + $0x20] sm:$0xff]
  %v107 = vld [vmem:[%s0 + $0x28] sm:$0xff]
  %v108 = vld [vmem:[%s0 + $0x30] sm:$0xff]
  %v109 = vld [vmem:[%s0 + $0x38] sm:$0xff]
  %v110 = vld [vmem:[%s0 + $0x40] sm:$0xff]
  %v111 = vld [vmem:[%s0 + $0x48] sm:$0xff]
  %v112 = vld [vmem:[%s0 + $0x50] sm:$0xff]
  %v113 = vld [vmem:[%s0 + $0x58] sm:$0xff]
  %v114 = vld [vmem:[%s0 + $0x60] sm:$0xff]
  %v115 = vld [vmem:[%s0 + $0x68] sm:$0xff]
  %v116 = vld [vmem:[%s0 + $0x70] sm:$0xff]
  %v117 = vld [vmem:[%s0 + $0x78] sm:$0xff]
  %v118 = vld [vmem:[%s0 + $0x80] sm:$0xff]
  %v119 = vld [vmem:[%s0 + $0x88] sm:$0xff]
  %v120 = vld [vmem:[%s0 + $0x90] sm:$0xff]
  %v121 = vld [vmem:[%s0 + $0x98] sm:$0xff]
  %v122 = vld [vmem:[%s0 + $0xa0] sm:$0xff]
  %v123 = vld [vmem:[%s0 + $0xa8] sm:$0xff]
  %v124 = vld [vmem:[%s0 + $0xb0] sm:$0xff]
  %v125 = vld [vmem:[%s0 + $0xb8] sm:$0xff]
  %v126 = vld [vmem:[%s0 + $0xc0] sm:$0xff]
  %v127 = vld [vmem:[%s0 + $0xc8] sm:$0xff]
  %v128 = vld [vmem:[%s0 + $0xd0] sm:$0xff]
  %v129 = vld [vmem:[%s0 + $0xd8] sm:$0xff]
  %v130 = vld [vmem:[%s0 + $0xe0] sm:$0xff]
  %v131 = vld [vmem:[%s0 + $0xe8] sm:$0xff]
  %v132 = vld [vmem:[%s0 + $0xf0] sm:$0xff]
  %v133 = vld [vmem:[%s0 + $0xf8] sm:$0xff]
  %v134 = vld [vmem:[%s0 + $0x100] sm:$0xff]
  %v135 = vld [vmem:[%s0 + $0x108] sm:$0xff]
  %v136 = vld [vmem:[%s0 + $0x110] sm:$0xff]
  %v137 = vld [vmem:[%s0 + $0x118] sm:$0xff]
  %v138 = vld [vmem:[%s0 + $0x120] sm:$0xff]
  %v139 = vld [vmem:[%s0 + $0x128] sm:$0xff]
  %v140 = vld [vmem:[%s0 + $0x130] sm:$0xff]
  %v141 = vld [vmem:[%s0 + $0x138] sm:$0xff]
  %v142 = vld [vmem:[%s0 + $0x140] sm:$0xff]
  %v143 = vld [vmem:[%s0 + $0x148] sm:$0xff]
  %v144 = vld [vmem:[%s0 + $0x150] sm:$0xff]
  %v145 = vld [vmem:[%s0 + $0x158] sm:$0xff]
  %v146 = vld [vmem:[%s0 + $0x160] sm:$0xff]
  %v147 = vld [vmem:[%s0 + $0x168] sm:$0xff]
  %v148 = vld [vmem:[%s0 + $0x170] sm:$0xff]
  %v149 = vld [vmem:[%s0 + $0x178] sm:$0xff]
  %v150 = vld [vmem:[%s0 + $0x180] sm:$0xff]
  %v151 = vld [vmem:[%s0 + $0x188] sm:$0xff]
  %v152 = vld [vmem:[%s0 + $0x190] sm:$0xff]
  %v153 = vld [vmem:[%s0 + $0x198] sm:$0xff]
  %v154 = vld [vmem:[%s0 + $0x1a0] sm:$0xff]
  %v155 = vld [vmem:[%s0 + $0x1a8] sm:$0xff]
  %v156 = vld [vmem:[%s0 + $0x1b0] sm:$0xff]
  %v157 = vld [vmem:[%s0 + $0x1b8] sm:$0xff]
  %v158 = vld [vmem:[%s0 + $0x1c0] sm:$0xff]
  %v159 = vld [vmem:[%s0 + $0x1c8] sm:$0xff]
  %v160 = vld [vmem:[%s0 + $0x1d0] sm:$0xff]
  %v161 = vld [vmem:[%s0 + $0x1d8] sm:$0xff]
  %v162 = vld [vmem:[%s0 + $0x1e0] sm:$0xff]
  %v163 = vld [vmem:[%s0 + $0x1e8] sm:$0xff]
  %v164 = vld [vmem:[%s0 + $0x1f0] sm:$0xff]
  %v165 = vld [vmem:[%s0 + $0x1f8] sm:$0xff]
  %v166 = vld [vmem:[%s3] sm:$0xff]
  %v167 = vld [vmem:[%s3 + $0x8] sm:$0xff]
  %v168 = vld [vmem:[%s3 + $0x10] sm:$0xff]
  %v169 = vld [vmem:[%s3 + $0x18] sm:$0xff]
  %v170 = vld [vmem:[%s3 + $0x20] sm:$0xff]
  %v171 = vld [vmem:[%s3 + $0x28] sm:$0xff]
  %v172 = vld [vmem:[%s3 + $0x30] sm:$0xff]
  %v173 = vld [vmem:[%s3 + $0x38] sm:$0xff]
  %v174 = vld [vmem:[%s3 + $0x40] sm:$0xff]
  %v175 = vld [vmem:[%s3 + $0x48] sm:$0xff]
  %v176 = vld [vmem:[%s3 + $0x50] sm:$0xff]
  %v177 = vld [vmem:[%s3 + $0x58] sm:$0xff]
  %v178 = vld [vmem:[%s3 + $0x60] sm:$0xff]
  %v179 = vld [vmem:[%s3 + $0x68] sm:$0xff]
  %v180 = vld [vmem:[%s3 + $0x70] sm:$0xff]
  %v181 = vld [vmem:[%s3 + $0x78] sm:$0xff]
  %v182 = vld [vmem:[%s3 + $0x80] sm:$0xff]
  %v183 = vld [vmem:[%s3 + $0x88] sm:$0xff]
  %v184 = vld [vmem:[%s3 + $0x90] sm:$0xff]
  %v185 = vld [vmem:[%s3 + $0x98] sm:$0xff]
  %v186 = vpack.c.bf16 %v104, %v102
  %v187 = vpack.c.bf16 %v105, %v103
  %v188 = vpack.c.bf16 %v108, %v106
  %v189 = vpack.c.bf16 %v109, %v107
  %v190 = vpack.c.bf16 %v112, %v110
  %v191 = vpack.c.bf16 %v113, %v111
  %v192 = vpack.c.bf16 %v116, %v114
  %v193 = vpack.c.bf16 %v117, %v115
  %v194 = vpack.c.bf16 %v120, %v118
  %v195 = vpack.c.bf16 %v121, %v119
  %v196 = vpack.c.bf16 %v124, %v122
  %v197 = vpack.c.bf16 %v125, %v123
  %v198 = vpack.c.bf16 %v128, %v126
  %v199 = vpack.c.bf16 %v129, %v127
  %v200 = vpack.c.bf16 %v132, %v130
  %v201 = vpack.c.bf16 %v133, %v131
  %v202 = vpack.c.bf16 %v136, %v134
  %v203 = vpack.c.bf16 %v137, %v135
  %v204 = vpack.c.bf16 %v140, %v138
  %v205 = vpack.c.bf16 %v141, %v139
  %v206 = vpack.c.bf16 %v144, %v142
  %v207 = vpack.c.bf16 %v145, %v143
  %v208 = vpack.c.bf16 %v148, %v146
  %v209 = vpack.c.bf16 %v149, %v147
  %v210 = vpack.c.bf16 %v152, %v150
  %v211 = vpack.c.bf16 %v153, %v151
  %v212 = vpack.c.bf16 %v156, %v154
  %v213 = vpack.c.bf16 %v157, %v155
  %v214 = vpack.c.bf16 %v160, %v158
  %v215 = vpack.c.bf16 %v161, %v159
  %v216 = vpack.c.bf16 %v164, %v162
  %v217 = vpack.c.bf16 %v165, %v163
  %v218 = vld [vmem:[%s7] sm:$0x3]
  %v220 = vlaneseq
  %v221 = vshrl.u32 %v220, 7
  %v222 = vsub.s32 0, %v221
  %v223 = vrot.slane %v218, %v222
  %v224 = vlaneseq
  %v225 = vshrl.u32 %v224, 7
  %v226 = vsub.s32 1, %v225
  %v227 = vrot.slane %v218, %v226
  %v250 = vunpack.c.l.b16 %v166
  %v251 = vunpack.c.h.b16 %v166
  %v252 = vunpack.c.l.b16 %v167
  %v253 = vunpack.c.h.b16 %v167
  %v254 = vunpack.c.l.b16 %v168
  %v255 = vunpack.c.h.b16 %v168
  %v256 = vunpack.c.l.b16 %v169
  %v257 = vunpack.c.h.b16 %v169
  %v258 = vunpack.c.l.b16 %v170
  %v259 = vunpack.c.h.b16 %v170
  %v260 = vunpack.c.l.b16 %v171
  %v261 = vunpack.c.h.b16 %v171
  %v262 = vunpack.c.l.b16 %v172
  %v263 = vunpack.c.h.b16 %v172
  %v264 = vunpack.c.l.b16 %v173
  %v265 = vunpack.c.h.b16 %v173
  %v266 = vunpack.c.l.b16 %v174
  %v267 = vunpack.c.h.b16 %v174
  %v268 = vunpack.c.l.b16 %v175
  %v269 = vunpack.c.h.b16 %v175
  %v270 = vunpack.c.l.b16 %v176
  %v271 = vunpack.c.h.b16 %v176
  %v272 = vunpack.c.l.b16 %v177
  %v273 = vunpack.c.h.b16 %v177
  %v274 = vunpack.c.l.b16 %v178
  %v275 = vunpack.c.h.b16 %v178
  %v276 = vunpack.c.l.b16 %v179
  %v277 = vunpack.c.h.b16 %v179
  %v278 = vunpack.c.l.b16 %v180
  %v279 = vunpack.c.h.b16 %v180
  %v280 = vunpack.c.l.b16 %v181
  %v281 = vunpack.c.h.b16 %v181
  %v282 = vunpack.c.l.b16 %v182
  %v283 = vunpack.c.h.b16 %v182
  %v284 = vunpack.c.l.b16 %v183
  %v285 = vunpack.c.h.b16 %v183
  %v286 = vunpack.c.l.b16 %v184
  %v287 = vunpack.c.h.b16 %v184
  %v288 = vunpack.c.l.b16 %v185
  %v289 = vunpack.c.h.b16 %v185
  %v290 = vpack.c.b16 %v252, %v250
  %v291 = vpack.c.b16 %v253, %v251
  %v292 = vpack.c.b16 %v256, %v254
  %v293 = vpack.c.b16 %v257, %v255
  %v294 = vpack.c.b16 %v260, %v258
  %v295 = vpack.c.b16 %v261, %v259
  %v296 = vpack.c.b16 %v264, %v262
  %v297 = vpack.c.b16 %v265, %v263
  %v298 = vpack.c.b16 %v268, %v266
  %v299 = vpack.c.b16 %v269, %v267
  %v300 = vpack.c.b16 %v272, %v270
  %v301 = vpack.c.b16 %v273, %v271
  %v302 = vpack.c.b16 %v276, %v274
  %v303 = vpack.c.b16 %v277, %v275
  %v304 = vpack.c.b16 %v280, %v278
  %v305 = vpack.c.b16 %v281, %v279
  %v306 = vpack.c.b16 %v284, %v282
  %v307 = vpack.c.b16 %v285, %v283
  %v308 = vpack.c.b16 %v288, %v286
  %v309 = vpack.c.b16 %v289, %v287
  %vm330 = vcmask 261120
  %v332 = vsel %vm330, %v187, 0
  %v335 = vsel %vm330, %v189, 0
  %v338 = vsel %vm330, %v191, 0
  %v341 = vsel %vm330, %v193, 0
  %v344 = vsel %vm330, %v195, 0
  %v347 = vsel %vm330, %v197, 0
  %v350 = vsel %vm330, %v199, 0
  %v353 = vsel %vm330, %v201, 0
  %v356 = vsel %vm330, %v203, 0
  %v359 = vsel %vm330, %v205, 0
  %v362 = vsel %vm330, %v207, 0
  %v365 = vsel %vm330, %v209, 0
  %v368 = vsel %vm330, %v211, 0
  %v371 = vsel %vm330, %v213, 0
  %v374 = vsel %vm330, %v215, 0
  %v377 = vsel %vm330, %v217, 0
  %379 = vmatprep.subr.bf16.mxu0 %v291
  %380 = vmatpush1.bf16.msra.mxu0 %v290
  %381 = vmatprep.subr.bf16.mxu0 %v293
  %382 = vmatpush1.bf16.msra.mxu0 %v292
  %383 = vmatprep.subr.bf16.mxu0 %v295
  %384 = vmatpush1.bf16.msra.mxu0 %v294
  %385 = vmatprep.subr.bf16.mxu0 %v297
  %386 = vmatpush1.bf16.msra.mxu0 %v296
  %387 = vmatprep.subr.bf16.mxu0 %v299
  %388 = vmatpush1.bf16.msra.mxu0 %v298
  %389 = vmatprep.subr.bf16.mxu0 %v301
  %390 = vmatpush1.bf16.msra.mxu0 %v300
  %391 = vmatprep.subr.bf16.mxu0 %v303
  %392 = vmatpush1.bf16.msra.mxu0 %v302
  %393 = vmatprep.subr.bf16.mxu0 %v305
  %394 = vmatpush1.bf16.msra.mxu0 %v304
  %395 = vmatprep.subr.bf16.mxu0 %v307
  %396 = vmatpush1.bf16.msra.mxu0 %v306
  %397 = vmatprep.subr.bf16.mxu0 %v309
  %398 = vmatpush1.bf16.msra.mxu0 %v308
  %399 = vmatprep.subr.bf16.mxu0 0
  %400 = vmatpush1.bf16.msra.mxu0 0
  %401 = vmatprep.subr.bf16.mxu0 0
  %402 = vmatpush1.bf16.msra.mxu0 0
  %403 = vmatprep.subr.bf16.mxu0 0
  %404 = vmatpush1.bf16.msra.mxu0 0
  %405 = vmatprep.subr.bf16.mxu0 0
  %406 = vmatpush1.bf16.msra.mxu0 0
  %407 = vmatprep.subr.bf16.mxu0 0
  %408 = vmatpush1.bf16.msra.mxu0 0
  %409 = vmatprep.subr.bf16.mxu0 0
  %410 = vmatpush1.bf16.msra.mxu0 0
  %411 = vmatprep.mubr.bf16.mxu0 %v332
  %412 = vmatmul.mubr.bf16.gmra.mrb[0].mxu0 %v186
  %v413 = vpop.f32.mrb[0].mxu0
  %v414 = vadd.f32 %v223, %v413
  %v415 = vpop.f32.mrb[0].mxu0
  %v416 = vadd.f32 %v227, %v415
  %v417 = vpop.f32.mrb[0].mxu0
  %v418 = vadd.f32 %v223, %v417
  %v419 = vpop.f32.mrb[0].mxu0
  %v420 = vadd.f32 %v227, %v419
  %421 = vmatprep.mubr.bf16.mxu0 %v335
  %422 = vmatmul.mubr.bf16.gmra.mrb[0].mxu0 %v188
  %v423 = vpop.f32.mrb[0].mxu0
  %v424 = vadd.f32 %v223, %v423
  %v425 = vpop.f32.mrb[0].mxu0
  %v426 = vadd.f32 %v227, %v425
  %v427 = vpop.f32.mrb[0].mxu0
  %v428 = vadd.f32 %v223, %v427
  %v429 = vpop.f32.mrb[0].mxu0
  %v430 = vadd.f32 %v227, %v429
  %431 = vmatprep.mubr.bf16.mxu0 %v338
  %432 = vmatmul.mubr.bf16.gmra.mrb[0].mxu0 %v190
  %v433 = vpop.f32.mrb[0].mxu0
  %v434 = vadd.f32 %v223, %v433
  %v435 = vpop.f32.mrb[0].mxu0
  %v436 = vadd.f32 %v227, %v435
  %v437 = vpop.f32.mrb[0].mxu0
  %v438 = vadd.f32 %v223, %v437
  %v439 = vpop.f32.mrb[0].mxu0
  %v440 = vadd.f32 %v227, %v439
  %441 = vmatprep.mubr.bf16.mxu0 %v341
  %442 = vmatmul.mubr.bf16.gmra.mrb[0].mxu0 %v192
  %v443 = vpop.f32.mrb[0].mxu0
  %v444 = vadd.f32 %v223, %v443
  %v445 = vpop.f32.mrb[0].mxu0
  %v446 = vadd.f32 %v227, %v445
  %v447 = vpop.f32.mrb[0].mxu0
  %v448 = vadd.f32 %v223, %v447
  %v449 = vpop.f32.mrb[0].mxu0
  %v450 = vadd.f32 %v227, %v449
  %451 = vmatprep.mubr.bf16.mxu0 %v344
  %452 = vmatmul.mubr.bf16.gmra.mrb[0].mxu0 %v194
  %v453 = vpop.f32.mrb[0].mxu0
  %v454 = vadd.f32 %v223, %v453
  %v455 = vpop.f32.mrb[0].mxu0
  %v456 = vadd.f32 %v227, %v455
  %v457 = vpop.f32.mrb[0].mxu0
  %v458 = vadd.f32 %v223, %v457
  %v459 = vpop.f32.mrb[0].mxu0
  %v460 = vadd.f32 %v227, %v459
  %461 = vmatprep.mubr.bf16.mxu0 %v347
  %462 = vmatmul.mubr.bf16.gmra.mrb[0].mxu0 %v196
  %v463 = vpop.f32.mrb[0].mxu0
  %v464 = vadd.f32 %v223, %v463
  %v465 = vpop.f32.mrb[0].mxu0
  %v466 = vadd.f32 %v227, %v465
  %v467 = vpop.f32.mrb[0].mxu0
  %v468 = vadd.f32 %v223, %v467
  %v469 = vpop.f32.mrb[0].mxu0
  %v470 = vadd.f32 %v227, %v469
  %471 = vmatprep.mubr.bf16.mxu0 %v350
  %472 = vmatmul.mubr.bf16.gmra.mrb[0].mxu0 %v198
  %v473 = vpop.f32.mrb[0].mxu0
  %v474 = vadd.f32 %v223, %v473
  %v475 = vpop.f32.mrb[0].mxu0
  %v476 = vadd.f32 %v227, %v475
  %v477 = vpop.f32.mrb[0].mxu0
  %v478 = vadd.f32 %v223, %v477
  %v479 = vpop.f32.mrb[0].mxu0
  %v480 = vadd.f32 %v227, %v479
  %481 = vmatprep.mubr.bf16.mxu0 %v353
  %482 = vmatmul.mubr.bf16.gmra.mrb[0].mxu0 %v200
  %v483 = vpop.f32.mrb[0].mxu0
  %v484 = vadd.f32 %v223, %v483
  %v485 = vpop.f32.mrb[0].mxu0
  %v486 = vadd.f32 %v227, %v485
  %v487 = vpop.f32.mrb[0].mxu0
  %v488 = vadd.f32 %v223, %v487
  %v489 = vpop.f32.mrb[0].mxu0
  %v490 = vadd.f32 %v227, %v489
  %491 = vmatprep.mubr.bf16.mxu0 %v356
  %492 = vmatmul.mubr.bf16.gmra.mrb[0].mxu0 %v202
  %v493 = vpop.f32.mrb[0].mxu0
  %v494 = vadd.f32 %v223, %v493
  %v495 = vpop.f32.mrb[0].mxu0
  %v496 = vadd.f32 %v227, %v495
  %v497 = vpop.f32.mrb[0].mxu0
  %v498 = vadd.f32 %v223, %v497
  %v499 = vpop.f32.mrb[0].mxu0
  %v500 = vadd.f32 %v227, %v499
  %501 = vmatprep.mubr.bf16.mxu0 %v359
  %502 = vmatmul.mubr.bf16.gmra.mrb[0].mxu0 %v204
  %v503 = vpop.f32.mrb[0].mxu0
  %v504 = vadd.f32 %v223, %v503
  %v505 = vpop.f32.mrb[0].mxu0
  %v506 = vadd.f32 %v227, %v505
  %v507 = vpop.f32.mrb[0].mxu0
  %v508 = vadd.f32 %v223, %v507
  %v509 = vpop.f32.mrb[0].mxu0
  %v510 = vadd.f32 %v227, %v509
  %511 = vmatprep.mubr.bf16.mxu0 %v362
  %512 = vmatmul.mubr.bf16.gmra.mrb[0].mxu0 %v206
  %v513 = vpop.f32.mrb[0].mxu0
  %v514 = vadd.f32 %v223, %v513
  %v515 = vpop.f32.mrb[0].mxu0
  %v516 = vadd.f32 %v227, %v515
  %v517 = vpop.f32.mrb[0].mxu0
  %v518 = vadd.f32 %v223, %v517
  %v519 = vpop.f32.mrb[0].mxu0
  %v520 = vadd.f32 %v227, %v519
  %521 = vmatprep.mubr.bf16.mxu0 %v365
  %522 = vmatmul.mubr.bf16.gmra.mrb[0].mxu0 %v208
  %v523 = vpop.f32.mrb[0].mxu0
  %v524 = vadd.f32 %v223, %v523
  %v525 = vpop.f32.mrb[0].mxu0
  %v526 = vadd.f32 %v227, %v525
  %v527 = vpop.f32.mrb[0].mxu0
  %v528 = vadd.f32 %v223, %v527
  %v529 = vpop.f32.mrb[0].mxu0
  %v530 = vadd.f32 %v227, %v529
  %531 = vmatprep.mubr.bf16.mxu0 %v368
  %532 = vmatmul.mubr.bf16.gmra.mrb[0].mxu0 %v210
  %v533 = vpop.f32.mrb[0].mxu0
  %v534 = vadd.f32 %v223, %v533
  %v535 = vpop.f32.mrb[0].mxu0
  %v536 = vadd.f32 %v227, %v535
  %v537 = vpop.f32.mrb[0].mxu0
  %v538 = vadd.f32 %v223, %v537
  %v539 = vpop.f32.mrb[0].mxu0
  %v540 = vadd.f32 %v227, %v539
  %541 = vmatprep.mubr.bf16.mxu0 %v371
  %542 = vmatmul.mubr.bf16.gmra.mrb[0].mxu0 %v212
  %v543 = vpop.f32.mrb[0].mxu0
  %v544 = vadd.f32 %v223, %v543
  %v545 = vpop.f32.mrb[0].mxu0
  %v546 = vadd.f32 %v227, %v545
  %v547 = vpop.f32.mrb[0].mxu0
  %v548 = vadd.f32 %v223, %v547
  %v549 = vpop.f32.mrb[0].mxu0
  %v550 = vadd.f32 %v227, %v549
  %551 = vmatprep.mubr.bf16.mxu0 %v374
  %552 = vmatmul.mubr.bf16.gmra.mrb[0].mxu0 %v214
  %v553 = vpop.f32.mrb[0].mxu0
  %v554 = vadd.f32 %v223, %v553
  %v555 = vpop.f32.mrb[0].mxu0
  %v556 = vadd.f32 %v227, %v555
  %v557 = vpop.f32.mrb[0].mxu0
  %v558 = vadd.f32 %v223, %v557
  %v559 = vpop.f32.mrb[0].mxu0
  %v560 = vadd.f32 %v227, %v559
  %561 = vmatprep.mubr.bf16.mxu0 %v377
  %562 = vmatmul.mubr.bf16.gmra.mrb[0].mxu0 %v216
  %v563 = vpop.f32.mrb[0].mxu0
  %v564 = vadd.f32 %v223, %v563
  %v565 = vpop.f32.mrb[0].mxu0
  %v566 = vadd.f32 %v227, %v565
  %v567 = vpop.f32.mrb[0].mxu0
  %v568 = vadd.f32 %v223, %v567
  %v569 = vpop.f32.mrb[0].mxu0
  %v570 = vadd.f32 %v227, %v569
  %571 = vdwg.mxu0
  %v572 = vsel %vm330, %v416, 0.0
  %v573 = vadd.f32 %v414, %v572
  %574 = vadd.xlane.f32.xlu0 %v573
  %v575 = vpop.xlane.xlu0 %574
  %v576 = vsel %vm330, %v420, 0.0
  %v577 = vadd.f32 %v418, %v576
  %578 = vadd.xlane.f32.xlu0 %v577
  %v579 = vpop.xlane.xlu0 %578
  %v580 = vsel %vm330, %v426, 0.0
  %v581 = vadd.f32 %v424, %v580
  %582 = vadd.xlane.f32.xlu0 %v581
  %v583 = vpop.xlane.xlu0 %582
  %v584 = vsel %vm330, %v430, 0.0
  %v585 = vadd.f32 %v428, %v584
  %586 = vadd.xlane.f32.xlu0 %v585
  %v587 = vpop.xlane.xlu0 %586
  %v588 = vsel %vm330, %v436, 0.0
  %v589 = vadd.f32 %v434, %v588
  %590 = vadd.xlane.f32.xlu0 %v589
  %v591 = vpop.xlane.xlu0 %590
  %v592 = vsel %vm330, %v440, 0.0
  %v593 = vadd.f32 %v438, %v592
  %594 = vadd.xlane.f32.xlu0 %v593
  %v595 = vpop.xlane.xlu0 %594
  %v596 = vsel %vm330, %v446, 0.0
  %v597 = vadd.f32 %v444, %v596
  %598 = vadd.xlane.f32.xlu0 %v597
  %v599 = vpop.xlane.xlu0 %598
  %v600 = vsel %vm330, %v450, 0.0
  %v601 = vadd.f32 %v448, %v600
  %602 = vadd.xlane.f32.xlu0 %v601
  %v603 = vpop.xlane.xlu0 %602
  %v604 = vsel %vm330, %v456, 0.0
  %v605 = vadd.f32 %v454, %v604
  %606 = vadd.xlane.f32.xlu0 %v605
  %v607 = vpop.xlane.xlu0 %606
  %v608 = vsel %vm330, %v460, 0.0
  %v609 = vadd.f32 %v458, %v608
  %610 = vadd.xlane.f32.xlu0 %v609
  %v611 = vpop.xlane.xlu0 %610
  %v612 = vsel %vm330, %v466, 0.0
  %v613 = vadd.f32 %v464, %v612
  %614 = vadd.xlane.f32.xlu0 %v613
  %v615 = vpop.xlane.xlu0 %614
  %v616 = vsel %vm330, %v470, 0.0
  %v617 = vadd.f32 %v468, %v616
  %618 = vadd.xlane.f32.xlu0 %v617
  %v619 = vpop.xlane.xlu0 %618
  %v620 = vsel %vm330, %v476, 0.0
  %v621 = vadd.f32 %v474, %v620
  %622 = vadd.xlane.f32.xlu0 %v621
  %v623 = vpop.xlane.xlu0 %622
  %v624 = vsel %vm330, %v480, 0.0
  %v625 = vadd.f32 %v478, %v624
  %626 = vadd.xlane.f32.xlu0 %v625
  %v627 = vpop.xlane.xlu0 %626
  %v628 = vsel %vm330, %v486, 0.0
  %v629 = vadd.f32 %v484, %v628
  %630 = vadd.xlane.f32.xlu0 %v629
  %v631 = vpop.xlane.xlu0 %630
  %v632 = vsel %vm330, %v490, 0.0
  %v633 = vadd.f32 %v488, %v632
  %634 = vadd.xlane.f32.xlu0 %v633
  %v635 = vpop.xlane.xlu0 %634
  %v636 = vsel %vm330, %v496, 0.0
  %v637 = vadd.f32 %v494, %v636
  %638 = vadd.xlane.f32.xlu0 %v637
  %v639 = vpop.xlane.xlu0 %638
  %v640 = vsel %vm330, %v500, 0.0
  %v641 = vadd.f32 %v498, %v640
  %642 = vadd.xlane.f32.xlu0 %v641
  %v643 = vpop.xlane.xlu0 %642
  %v644 = vsel %vm330, %v506, 0.0
  %v645 = vadd.f32 %v504, %v644
  %646 = vadd.xlane.f32.xlu0 %v645
  %v647 = vpop.xlane.xlu0 %646
  %v648 = vsel %vm330, %v510, 0.0
  %v649 = vadd.f32 %v508, %v648
  %650 = vadd.xlane.f32.xlu0 %v649
  %v651 = vpop.xlane.xlu0 %650
  %v652 = vsel %vm330, %v516, 0.0
  %v653 = vadd.f32 %v514, %v652
  %654 = vadd.xlane.f32.xlu0 %v653
  %v655 = vpop.xlane.xlu0 %654
  %v656 = vsel %vm330, %v520, 0.0
  %v657 = vadd.f32 %v518, %v656
  %658 = vadd.xlane.f32.xlu0 %v657
  %v659 = vpop.xlane.xlu0 %658
  %v660 = vsel %vm330, %v526, 0.0
  %v661 = vadd.f32 %v524, %v660
  %662 = vadd.xlane.f32.xlu0 %v661
  %v663 = vpop.xlane.xlu0 %662
  %v664 = vsel %vm330, %v530, 0.0
  %v665 = vadd.f32 %v528, %v664
  %666 = vadd.xlane.f32.xlu0 %v665
  %v667 = vpop.xlane.xlu0 %666
  %v668 = vsel %vm330, %v536, 0.0
  %v669 = vadd.f32 %v534, %v668
  %670 = vadd.xlane.f32.xlu0 %v669
  %v671 = vpop.xlane.xlu0 %670
  %v672 = vsel %vm330, %v540, 0.0
  %v673 = vadd.f32 %v538, %v672
  %674 = vadd.xlane.f32.xlu0 %v673
  %v675 = vpop.xlane.xlu0 %674
  %v676 = vsel %vm330, %v546, 0.0
  %v677 = vadd.f32 %v544, %v676
  %678 = vadd.xlane.f32.xlu0 %v677
  %v679 = vpop.xlane.xlu0 %678
  %v680 = vsel %vm330, %v550, 0.0
  %v681 = vadd.f32 %v548, %v680
  %682 = vadd.xlane.f32.xlu0 %v681
  %v683 = vpop.xlane.xlu0 %682
  %v684 = vsel %vm330, %v556, 0.0
  %v685 = vadd.f32 %v554, %v684
  %686 = vadd.xlane.f32.xlu0 %v685
  %v687 = vpop.xlane.xlu0 %686
  %v688 = vsel %vm330, %v560, 0.0
  %v689 = vadd.f32 %v558, %v688
  %690 = vadd.xlane.f32.xlu0 %v689
  %v691 = vpop.xlane.xlu0 %690
  %v692 = vsel %vm330, %v566, 0.0
  %v693 = vadd.f32 %v564, %v692
  %694 = vadd.xlane.f32.xlu0 %v693
  %v695 = vpop.xlane.xlu0 %694
  %v696 = vsel %vm330, %v570, 0.0
  %v697 = vadd.f32 %v568, %v696
  %698 = vadd.xlane.f32.xlu0 %v697
  %v699 = vpop.xlane.xlu0 %698
  %v700 = vrcp.pop 160.0
  %v701 = vmul.f32 %v575, %v700
  %v702 = vmul.f32 %v579, %v700
  %v703 = vmul.f32 %v583, %v700
  %v704 = vmul.f32 %v587, %v700
  %v705 = vmul.f32 %v591, %v700
  %v706 = vmul.f32 %v595, %v700
  %v707 = vmul.f32 %v599, %v700
  %v708 = vmul.f32 %v603, %v700
  %v709 = vmul.f32 %v607, %v700
  %v710 = vmul.f32 %v611, %v700
  %v711 = vmul.f32 %v615, %v700
  %v712 = vmul.f32 %v619, %v700
  %v713 = vmul.f32 %v623, %v700
  %v714 = vmul.f32 %v627, %v700
  %v715 = vmul.f32 %v631, %v700
  %v716 = vmul.f32 %v635, %v700
  %v717 = vmul.f32 %v639, %v700
  %v718 = vmul.f32 %v643, %v700
  %v719 = vmul.f32 %v647, %v700
  %v720 = vmul.f32 %v651, %v700
  %v721 = vmul.f32 %v655, %v700
  %v722 = vmul.f32 %v659, %v700
  %v723 = vmul.f32 %v663, %v700
  %v724 = vmul.f32 %v667, %v700
  %v725 = vmul.f32 %v671, %v700
  %v726 = vmul.f32 %v675, %v700
  %v727 = vmul.f32 %v679, %v700
  %v728 = vmul.f32 %v683, %v700
  %v729 = vmul.f32 %v687, %v700
  %v730 = vmul.f32 %v691, %v700
  %v731 = vmul.f32 %v695, %v700
  %v732 = vmul.f32 %v699, %v700
  %v733 = vsub.f32 %v414, %v701
  %v734 = vsub.f32 %v416, %v701
  %v735 = vsub.f32 %v418, %v702
  %v736 = vsub.f32 %v420, %v702
  %v737 = vsub.f32 %v424, %v703
  %v738 = vsub.f32 %v426, %v703
  %v739 = vsub.f32 %v428, %v704
  %v740 = vsub.f32 %v430, %v704
  %v741 = vsub.f32 %v434, %v705
  %v742 = vsub.f32 %v436, %v705
  %v743 = vsub.f32 %v438, %v706
  %v744 = vsub.f32 %v440, %v706
  %v745 = vsub.f32 %v444, %v707
  %v746 = vsub.f32 %v446, %v707
  %v747 = vsub.f32 %v448, %v708
  %v748 = vsub.f32 %v450, %v708
  %v749 = vsub.f32 %v454, %v709
  %v750 = vsub.f32 %v456, %v709
  %v751 = vsub.f32 %v458, %v710
  %v752 = vsub.f32 %v460, %v710
  %v753 = vsub.f32 %v464, %v711
  %v754 = vsub.f32 %v466, %v711
  %v755 = vsub.f32 %v468, %v712
  %v756 = vsub.f32 %v470, %v712
  %v757 = vsub.f32 %v474, %v713
  %v758 = vsub.f32 %v476, %v713
  %v759 = vsub.f32 %v478, %v714
  %v760 = vsub.f32 %v480, %v714
  %v761 = vsub.f32 %v484, %v715
  %v762 = vsub.f32 %v486, %v715
  %v763 = vsub.f32 %v488, %v716
  %v764 = vsub.f32 %v490, %v716
  %v765 = vsub.f32 %v494, %v717
  %v766 = vsub.f32 %v496, %v717
  %v767 = vsub.f32 %v498, %v718
  %v768 = vsub.f32 %v500, %v718
  %v769 = vsub.f32 %v504, %v719
  %v770 = vsub.f32 %v506, %v719
  %v771 = vsub.f32 %v508, %v720
  %v772 = vsub.f32 %v510, %v720
  %v773 = vsub.f32 %v514, %v721
  %v774 = vsub.f32 %v516, %v721
  %v775 = vsub.f32 %v518, %v722
  %v776 = vsub.f32 %v520, %v722
  %v777 = vsub.f32 %v524, %v723
  %v778 = vsub.f32 %v526, %v723
  %v779 = vsub.f32 %v528, %v724
  %v780 = vsub.f32 %v530, %v724
  %v781 = vsub.f32 %v534, %v725
  %v782 = vsub.f32 %v536, %v725
  %v783 = vsub.f32 %v538, %v726
  %v784 = vsub.f32 %v540, %v726
  %v785 = vsub.f32 %v544, %v727
  %v786 = vsub.f32 %v546, %v727
  %v787 = vsub.f32 %v548, %v728
  %v788 = vsub.f32 %v550, %v728
  %v789 = vsub.f32 %v554, %v729
  %v790 = vsub.f32 %v556, %v729
  %v791 = vsub.f32 %v558, %v730
  %v792 = vsub.f32 %v560, %v730
  %v793 = vsub.f32 %v564, %v731
  %v794 = vsub.f32 %v566, %v731
  %v795 = vsub.f32 %v568, %v732
  %v796 = vsub.f32 %v570, %v732
  %v797 = vmul.f32 %v733, %v733
  %v798 = vmul.f32 %v734, %v734
  %v799 = vmul.f32 %v735, %v735
  %v800 = vmul.f32 %v736, %v736
  %v801 = vmul.f32 %v737, %v737
  %v802 = vmul.f32 %v738, %v738
  %v803 = vmul.f32 %v739, %v739
  %v804 = vmul.f32 %v740, %v740
  %v805 = vmul.f32 %v741, %v741
  %v806 = vmul.f32 %v742, %v742
  %v807 = vmul.f32 %v743, %v743
  %v808 = vmul.f32 %v744, %v744
  %v809 = vmul.f32 %v745, %v745
  %v810 = vmul.f32 %v746, %v746
  %v811 = vmul.f32 %v747, %v747
  %v812 = vmul.f32 %v748, %v748
  %v813 = vmul.f32 %v749, %v749
  %v814 = vmul.f32 %v750, %v750
  %v815 = vmul.f32 %v751, %v751
  %v816 = vmul.f32 %v752, %v752
  %v817 = vmul.f32 %v753, %v753
  %v818 = vmul.f32 %v754, %v754
  %v819 = vmul.f32 %v755, %v755
  %v820 = vmul.f32 %v756, %v756
  %v821 = vmul.f32 %v757, %v757
  %v822 = vmul.f32 %v758, %v758
  %v823 = vmul.f32 %v759, %v759
  %v824 = vmul.f32 %v760, %v760
  %v825 = vmul.f32 %v761, %v761
  %v826 = vmul.f32 %v762, %v762
  %v827 = vmul.f32 %v763, %v763
  %v828 = vmul.f32 %v764, %v764
  %v829 = vmul.f32 %v765, %v765
  %v830 = vmul.f32 %v766, %v766
  %v831 = vmul.f32 %v767, %v767
  %v832 = vmul.f32 %v768, %v768
  %v833 = vmul.f32 %v769, %v769
  %v834 = vmul.f32 %v770, %v770
  %v835 = vmul.f32 %v771, %v771
  %v836 = vmul.f32 %v772, %v772
  %v837 = vmul.f32 %v773, %v773
  %v838 = vmul.f32 %v774, %v774
  %v839 = vmul.f32 %v775, %v775
  %v840 = vmul.f32 %v776, %v776
  %v841 = vmul.f32 %v777, %v777
  %v842 = vmul.f32 %v778, %v778
  %v843 = vmul.f32 %v779, %v779
  %v844 = vmul.f32 %v780, %v780
  %v845 = vmul.f32 %v781, %v781
  %v846 = vmul.f32 %v782, %v782
  %v847 = vmul.f32 %v783, %v783
  %v848 = vmul.f32 %v784, %v784
  %v849 = vmul.f32 %v785, %v785
  %v850 = vmul.f32 %v786, %v786
  %v851 = vmul.f32 %v787, %v787
  %v852 = vmul.f32 %v788, %v788
  %v853 = vmul.f32 %v789, %v789
  %v854 = vmul.f32 %v790, %v790
  %v855 = vmul.f32 %v791, %v791
  %v856 = vmul.f32 %v792, %v792
  %v857 = vmul.f32 %v793, %v793
  %v858 = vmul.f32 %v794, %v794
  %v859 = vmul.f32 %v795, %v795
  %v860 = vmul.f32 %v796, %v796
  %v861 = vsel %vm330, %v798, 0.0
  %v862 = vadd.f32 %v797, %v861
  %863 = vadd.xlane.f32.xlu0 %v862
  %v864 = vpop.xlane.xlu0 %863
  %v865 = vsel %vm330, %v800, 0.0
  %v866 = vadd.f32 %v799, %v865
  %867 = vadd.xlane.f32.xlu0 %v866
  %v868 = vpop.xlane.xlu0 %867
  %v869 = vsel %vm330, %v802, 0.0
  %v870 = vadd.f32 %v801, %v869
  %871 = vadd.xlane.f32.xlu0 %v870
  %v872 = vpop.xlane.xlu0 %871
  %v873 = vsel %vm330, %v804, 0.0
  %v874 = vadd.f32 %v803, %v873
  %875 = vadd.xlane.f32.xlu0 %v874
  %v876 = vpop.xlane.xlu0 %875
  %v877 = vsel %vm330, %v806, 0.0
  %v878 = vadd.f32 %v805, %v877
  %879 = vadd.xlane.f32.xlu0 %v878
  %v880 = vpop.xlane.xlu0 %879
  %v881 = vsel %vm330, %v808, 0.0
  %v882 = vadd.f32 %v807, %v881
  %883 = vadd.xlane.f32.xlu0 %v882
  %v884 = vpop.xlane.xlu0 %883
  %v885 = vsel %vm330, %v810, 0.0
  %v886 = vadd.f32 %v809, %v885
  %887 = vadd.xlane.f32.xlu0 %v886
  %v888 = vpop.xlane.xlu0 %887
  %v889 = vsel %vm330, %v812, 0.0
  %v890 = vadd.f32 %v811, %v889
  %891 = vadd.xlane.f32.xlu0 %v890
  %v892 = vpop.xlane.xlu0 %891
  %v893 = vsel %vm330, %v814, 0.0
  %v894 = vadd.f32 %v813, %v893
  %895 = vadd.xlane.f32.xlu0 %v894
  %v896 = vpop.xlane.xlu0 %895
  %v897 = vsel %vm330, %v816, 0.0
  %v898 = vadd.f32 %v815, %v897
  %899 = vadd.xlane.f32.xlu0 %v898
  %v900 = vpop.xlane.xlu0 %899
  %v901 = vsel %vm330, %v818, 0.0
  %v902 = vadd.f32 %v817, %v901
  %903 = vadd.xlane.f32.xlu0 %v902
  %v904 = vpop.xlane.xlu0 %903
  %v905 = vsel %vm330, %v820, 0.0
  %v906 = vadd.f32 %v819, %v905
  %907 = vadd.xlane.f32.xlu0 %v906
  %v908 = vpop.xlane.xlu0 %907
  %v909 = vsel %vm330, %v822, 0.0
  %v910 = vadd.f32 %v821, %v909
  %911 = vadd.xlane.f32.xlu0 %v910
  %v912 = vpop.xlane.xlu0 %911
  %v913 = vsel %vm330, %v824, 0.0
  %v914 = vadd.f32 %v823, %v913
  %915 = vadd.xlane.f32.xlu0 %v914
  %v916 = vpop.xlane.xlu0 %915
  %v917 = vsel %vm330, %v826, 0.0
  %v918 = vadd.f32 %v825, %v917
  %919 = vadd.xlane.f32.xlu0 %v918
  %v920 = vpop.xlane.xlu0 %919
  %v921 = vsel %vm330, %v828, 0.0
  %v922 = vadd.f32 %v827, %v921
  %923 = vadd.xlane.f32.xlu0 %v922
  %v924 = vpop.xlane.xlu0 %923
  %v925 = vsel %vm330, %v830, 0.0
  %v926 = vadd.f32 %v829, %v925
  %927 = vadd.xlane.f32.xlu0 %v926
  %v928 = vpop.xlane.xlu0 %927
  %v929 = vsel %vm330, %v832, 0.0
  %v930 = vadd.f32 %v831, %v929
  %931 = vadd.xlane.f32.xlu0 %v930
  %v932 = vpop.xlane.xlu0 %931
  %v933 = vsel %vm330, %v834, 0.0
  %v934 = vadd.f32 %v833, %v933
  %935 = vadd.xlane.f32.xlu0 %v934
  %v936 = vpop.xlane.xlu0 %935
  %v937 = vsel %vm330, %v836, 0.0
  %v938 = vadd.f32 %v835, %v937
  %939 = vadd.xlane.f32.xlu0 %v938
  %v940 = vpop.xlane.xlu0 %939
  %v941 = vsel %vm330, %v838, 0.0
  %v942 = vadd.f32 %v837, %v941
  %943 = vadd.xlane.f32.xlu0 %v942
  %v944 = vpop.xlane.xlu0 %943
  %v945 = vsel %vm330, %v840, 0.0
  %v946 = vadd.f32 %v839, %v945
  %947 = vadd.xlane.f32.xlu0 %v946
  %v948 = vpop.xlane.xlu0 %947
  %v949 = vsel %vm330, %v842, 0.0
  %v950 = vadd.f32 %v841, %v949
  %951 = vadd.xlane.f32.xlu0 %v950
  %v952 = vpop.xlane.xlu0 %951
  %v953 = vsel %vm330, %v844, 0.0
  %v954 = vadd.f32 %v843, %v953
  %955 = vadd.xlane.f32.xlu0 %v954
  %v956 = vpop.xlane.xlu0 %955
  %v957 = vsel %vm330, %v846, 0.0
  %v958 = vadd.f32 %v845, %v957
  %959 = vadd.xlane.f32.xlu0 %v958
  %v960 = vpop.xlane.xlu0 %959
  %v961 = vsel %vm330, %v848, 0.0
  %v962 = vadd.f32 %v847, %v961
  %963 = vadd.xlane.f32.xlu0 %v962
  %v964 = vpop.xlane.xlu0 %963
  %v965 = vsel %vm330, %v850, 0.0
  %v966 = vadd.f32 %v849, %v965
  %967 = vadd.xlane.f32.xlu0 %v966
  %v968 = vpop.xlane.xlu0 %967
  %v969 = vsel %vm330, %v852, 0.0
  %v970 = vadd.f32 %v851, %v969
  %971 = vadd.xlane.f32.xlu0 %v970
  %v972 = vpop.xlane.xlu0 %971
  %v973 = vsel %vm330, %v854, 0.0
  %v974 = vadd.f32 %v853, %v973
  %975 = vadd.xlane.f32.xlu0 %v974
  %v976 = vpop.xlane.xlu0 %975
  %v977 = vsel %vm330, %v856, 0.0
  %v978 = vadd.f32 %v855, %v977
  %979 = vadd.xlane.f32.xlu0 %v978
  %v980 = vpop.xlane.xlu0 %979
  %v981 = vsel %vm330, %v858, 0.0
  %v982 = vadd.f32 %v857, %v981
  %983 = vadd.xlane.f32.xlu0 %v982
  %v984 = vpop.xlane.xlu0 %983
  %v985 = vsel %vm330, %v860, 0.0
  %v986 = vadd.f32 %v859, %v985
  %987 = vadd.xlane.f32.xlu0 %v986
  %v988 = vpop.xlane.xlu0 %987
  %v989 = vmul.f32 %v864, %v700
  %v990 = vmul.f32 %v868, %v700
  %v991 = vmul.f32 %v872, %v700
  %v992 = vmul.f32 %v876, %v700
  %v993 = vmul.f32 %v880, %v700
  %v994 = vmul.f32 %v884, %v700
  %v995 = vmul.f32 %v888, %v700
  %v996 = vmul.f32 %v892, %v700
  %v997 = vmul.f32 %v896, %v700
  %v998 = vmul.f32 %v900, %v700
  %v999 = vmul.f32 %v904, %v700
  %v1000 = vmul.f32 %v908, %v700
  %v1001 = vmul.f32 %v912, %v700
  %v1002 = vmul.f32 %v916, %v700
  %v1003 = vmul.f32 %v920, %v700
  %v1004 = vmul.f32 %v924, %v700
  %v1005 = vmul.f32 %v928, %v700
  %v1006 = vmul.f32 %v932, %v700
  %v1007 = vmul.f32 %v936, %v700
  %v1008 = vmul.f32 %v940, %v700
  %v1009 = vmul.f32 %v944, %v700
  %v1010 = vmul.f32 %v948, %v700
  %v1011 = vmul.f32 %v952, %v700
  %v1012 = vmul.f32 %v956, %v700
  %v1013 = vmul.f32 %v960, %v700
  %v1014 = vmul.f32 %v964, %v700
  %v1015 = vmul.f32 %v968, %v700
  %v1016 = vmul.f32 %v972, %v700
  %v1017 = vmul.f32 %v976, %v700
  %v1018 = vmul.f32 %v980, %v700
  %v1019 = vmul.f32 %v984, %v700
  %v1020 = vmul.f32 %v988, %v700
  %v1021 = vadd.f32 %v989, 1e-05
  %v1022 = vadd.f32 %v990, 1e-05
  %v1023 = vadd.f32 %v991, 1e-05
  %v1024 = vadd.f32 %v992, 1e-05
  %v1025 = vadd.f32 %v993, 1e-05
  %v1026 = vadd.f32 %v994, 1e-05
  %v1027 = vadd.f32 %v995, 1e-05
  %v1028 = vadd.f32 %v996, 1e-05
  %v1029 = vadd.f32 %v997, 1e-05
  %v1030 = vadd.f32 %v998, 1e-05
  %v1031 = vadd.f32 %v999, 1e-05
  %v1032 = vadd.f32 %v1000, 1e-05
  %v1033 = vadd.f32 %v1001, 1e-05
  %v1034 = vadd.f32 %v1002, 1e-05
  %v1035 = vadd.f32 %v1003, 1e-05
  %v1036 = vadd.f32 %v1004, 1e-05
  %v1037 = vadd.f32 %v1005, 1e-05
  %v1038 = vadd.f32 %v1006, 1e-05
  %v1039 = vadd.f32 %v1007, 1e-05
  %v1040 = vadd.f32 %v1008, 1e-05
  %v1041 = vadd.f32 %v1009, 1e-05
  %v1042 = vadd.f32 %v1010, 1e-05
  %v1043 = vadd.f32 %v1011, 1e-05
  %v1044 = vadd.f32 %v1012, 1e-05
  %v1045 = vadd.f32 %v1013, 1e-05
  %v1046 = vadd.f32 %v1014, 1e-05
  %v1047 = vadd.f32 %v1015, 1e-05
  %v1048 = vadd.f32 %v1016, 1e-05
  %v1049 = vadd.f32 %v1017, 1e-05
  %v1050 = vadd.f32 %v1018, 1e-05
  %v1051 = vadd.f32 %v1019, 1e-05
  %v1052 = vadd.f32 %v1020, 1e-05
  %v1053 = vrsqrt.pop %v1021
  %v1054 = vrsqrt.pop %v1022
  %v1055 = vrsqrt.pop %v1023
  %v1056 = vrsqrt.pop %v1024
  %v1057 = vrsqrt.pop %v1025
  %v1058 = vrsqrt.pop %v1026
  %v1059 = vrsqrt.pop %v1027
  %v1060 = vrsqrt.pop %v1028
  %v1061 = vrsqrt.pop %v1029
  %v1062 = vrsqrt.pop %v1030
  %v1063 = vrsqrt.pop %v1031
  %v1064 = vrsqrt.pop %v1032
  %v1065 = vrsqrt.pop %v1033
  %v1066 = vrsqrt.pop %v1034
  %v1067 = vrsqrt.pop %v1035
  %v1068 = vrsqrt.pop %v1036
  %v1069 = vrsqrt.pop %v1037
  %v1070 = vrsqrt.pop %v1038
  %v1071 = vrsqrt.pop %v1039
  %v1072 = vrsqrt.pop %v1040
  %v1073 = vrsqrt.pop %v1041
  %v1074 = vrsqrt.pop %v1042
  %v1075 = vrsqrt.pop %v1043
  %v1076 = vrsqrt.pop %v1044
  %v1077 = vrsqrt.pop %v1045
  %v1078 = vrsqrt.pop %v1046
  %v1079 = vrsqrt.pop %v1047
  %v1080 = vrsqrt.pop %v1048
  %v1081 = vrsqrt.pop %v1049
  %v1082 = vrsqrt.pop %v1050
  %v1083 = vrsqrt.pop %v1051
  %v1084 = vrsqrt.pop %v1052
  %v1085 = vmul.f32 %v733, %v1053
  %v1086 = vmul.f32 %v734, %v1053
  %v1087 = vmul.f32 %v735, %v1054
  %v1088 = vmul.f32 %v736, %v1054
  %v1089 = vmul.f32 %v737, %v1055
  %v1090 = vmul.f32 %v738, %v1055
  %v1091 = vmul.f32 %v739, %v1056
  %v1092 = vmul.f32 %v740, %v1056
  %v1093 = vmul.f32 %v741, %v1057
  %v1094 = vmul.f32 %v742, %v1057
  %v1095 = vmul.f32 %v743, %v1058
  %v1096 = vmul.f32 %v744, %v1058
  %v1097 = vmul.f32 %v745, %v1059
  %v1098 = vmul.f32 %v746, %v1059
  %v1099 = vmul.f32 %v747, %v1060
  %v1100 = vmul.f32 %v748, %v1060
  %v1101 = vmul.f32 %v749, %v1061
  %v1102 = vmul.f32 %v750, %v1061
  %v1103 = vmul.f32 %v751, %v1062
  %v1104 = vmul.f32 %v752, %v1062
  %v1105 = vmul.f32 %v753, %v1063
  %v1106 = vmul.f32 %v754, %v1063
  %v1107 = vmul.f32 %v755, %v1064
  %v1108 = vmul.f32 %v756, %v1064
  %v1109 = vmul.f32 %v757, %v1065
  %v1110 = vmul.f32 %v758, %v1065
  %v1111 = vmul.f32 %v759, %v1066
  %v1112 = vmul.f32 %v760, %v1066
  %v1113 = vmul.f32 %v761, %v1067
  %v1114 = vmul.f32 %v762, %v1067
  %v1115 = vmul.f32 %v763, %v1068
  %v1116 = vmul.f32 %v764, %v1068
  %v1117 = vmul.f32 %v765, %v1069
  %v1118 = vmul.f32 %v766, %v1069
  %v1119 = vmul.f32 %v767, %v1070
  %v1120 = vmul.f32 %v768, %v1070
  %v1121 = vmul.f32 %v769, %v1071
  %v1122 = vmul.f32 %v770, %v1071
  %v1123 = vmul.f32 %v771, %v1072
  %v1124 = vmul.f32 %v772, %v1072
  %v1125 = vmul.f32 %v773, %v1073
  %v1126 = vmul.f32 %v774, %v1073
  %v1127 = vmul.f32 %v775, %v1074
  %v1128 = vmul.f32 %v776, %v1074
  %v1129 = vmul.f32 %v777, %v1075
  %v1130 = vmul.f32 %v778, %v1075
  %v1131 = vmul.f32 %v779, %v1076
  %v1132 = vmul.f32 %v780, %v1076
  %v1133 = vmul.f32 %v781, %v1077
  %v1134 = vmul.f32 %v782, %v1077
  %v1135 = vmul.f32 %v783, %v1078
  %v1136 = vmul.f32 %v784, %v1078
  %v1137 = vmul.f32 %v785, %v1079
  %v1138 = vmul.f32 %v786, %v1079
  %v1139 = vmul.f32 %v787, %v1080
  %v1140 = vmul.f32 %v788, %v1080
  %v1141 = vmul.f32 %v789, %v1081
  %v1142 = vmul.f32 %v790, %v1081
  %v1143 = vmul.f32 %v791, %v1082
  %v1144 = vmul.f32 %v792, %v1082
  %v1145 = vmul.f32 %v793, %v1083
  %v1146 = vmul.f32 %v794, %v1083
  %v1147 = vmul.f32 %v795, %v1084
  %v1148 = vmul.f32 %v796, %v1084
  %v1149 = vld [vmem:[%s7 + $0x2] sm:$0x3]
  %v1151 = vlaneseq
  %v1152 = vshrl.u32 %v1151, 7
  %v1153 = vsub.s32 0, %v1152
  %v1154 = vrot.slane %v1149, %v1153
  %v1155 = vlaneseq
  %v1156 = vshrl.u32 %v1155, 7
  %v1157 = vsub.s32 1, %v1156
  %v1158 = vrot.slane %v1149, %v1157
  %v1161 = vmul.f32 %v1085, %v1154
  %v1162 = vmul.f32 %v1086, %v1158
  %v1163 = vmul.f32 %v1087, %v1154
  %v1164 = vmul.f32 %v1088, %v1158
  %v1165 = vmul.f32 %v1089, %v1154
  %v1166 = vmul.f32 %v1090, %v1158
  %v1167 = vmul.f32 %v1091, %v1154
  %v1168 = vmul.f32 %v1092, %v1158
  %v1169 = vmul.f32 %v1093, %v1154
  %v1170 = vmul.f32 %v1094, %v1158
  %v1171 = vmul.f32 %v1095, %v1154
  %v1172 = vmul.f32 %v1096, %v1158
  %v1173 = vmul.f32 %v1097, %v1154
  %v1174 = vmul.f32 %v1098, %v1158
  %v1175 = vmul.f32 %v1099, %v1154
  %v1176 = vmul.f32 %v1100, %v1158
  %v1177 = vmul.f32 %v1101, %v1154
  %v1178 = vmul.f32 %v1102, %v1158
  %v1179 = vmul.f32 %v1103, %v1154
  %v1180 = vmul.f32 %v1104, %v1158
  %v1181 = vmul.f32 %v1105, %v1154
  %v1182 = vmul.f32 %v1106, %v1158
  %v1183 = vmul.f32 %v1107, %v1154
  %v1184 = vmul.f32 %v1108, %v1158
  %v1185 = vmul.f32 %v1109, %v1154
  %v1186 = vmul.f32 %v1110, %v1158
  %v1187 = vmul.f32 %v1111, %v1154
  %v1188 = vmul.f32 %v1112, %v1158
  %v1189 = vmul.f32 %v1113, %v1154
  %v1190 = vmul.f32 %v1114, %v1158
  %v1191 = vmul.f32 %v1115, %v1154
  %v1192 = vmul.f32 %v1116, %v1158
  %v1193 = vmul.f32 %v1117, %v1154
  %v1194 = vmul.f32 %v1118, %v1158
  %v1195 = vmul.f32 %v1119, %v1154
  %v1196 = vmul.f32 %v1120, %v1158
  %v1197 = vmul.f32 %v1121, %v1154
  %v1198 = vmul.f32 %v1122, %v1158
  %v1199 = vmul.f32 %v1123, %v1154
  %v1200 = vmul.f32 %v1124, %v1158
  %v1201 = vmul.f32 %v1125, %v1154
  %v1202 = vmul.f32 %v1126, %v1158
  %v1203 = vmul.f32 %v1127, %v1154
  %v1204 = vmul.f32 %v1128, %v1158
  %v1205 = vmul.f32 %v1129, %v1154
  %v1206 = vmul.f32 %v1130, %v1158
  %v1207 = vmul.f32 %v1131, %v1154
  %v1208 = vmul.f32 %v1132, %v1158
  %v1209 = vmul.f32 %v1133, %v1154
  %v1210 = vmul.f32 %v1134, %v1158
  %v1211 = vmul.f32 %v1135, %v1154
  %v1212 = vmul.f32 %v1136, %v1158
  %v1213 = vmul.f32 %v1137, %v1154
  %v1214 = vmul.f32 %v1138, %v1158
  %v1215 = vmul.f32 %v1139, %v1154
  %v1216 = vmul.f32 %v1140, %v1158
  %v1217 = vmul.f32 %v1141, %v1154
  %v1218 = vmul.f32 %v1142, %v1158
  %v1219 = vmul.f32 %v1143, %v1154
  %v1220 = vmul.f32 %v1144, %v1158
  %v1221 = vmul.f32 %v1145, %v1154
  %v1222 = vmul.f32 %v1146, %v1158
  %v1223 = vmul.f32 %v1147, %v1154
  %v1224 = vmul.f32 %v1148, %v1158
  %v1225 = vld [vmem:[%s7 + $0x4] sm:$0x3]
  %v1227 = vlaneseq
  %v1228 = vshrl.u32 %v1227, 7
  %v1229 = vsub.s32 0, %v1228
  %v1230 = vrot.slane %v1225, %v1229
  %v1231 = vlaneseq
  %v1232 = vshrl.u32 %v1231, 7
  %v1233 = vsub.s32 1, %v1232
  %v1234 = vrot.slane %v1225, %v1233
  %v1237 = vadd.f32 %v1161, %v1230
  %v1238 = vadd.f32 %v1162, %v1234
  %v1239 = vadd.f32 %v1163, %v1230
  %v1240 = vadd.f32 %v1164, %v1234
  %v1241 = vadd.f32 %v1165, %v1230
  %v1242 = vadd.f32 %v1166, %v1234
  %v1243 = vadd.f32 %v1167, %v1230
  %v1244 = vadd.f32 %v1168, %v1234
  %v1245 = vadd.f32 %v1169, %v1230
  %v1246 = vadd.f32 %v1170, %v1234
  %v1247 = vadd.f32 %v1171, %v1230
  %v1248 = vadd.f32 %v1172, %v1234
  %v1249 = vadd.f32 %v1173, %v1230
  %v1250 = vadd.f32 %v1174, %v1234
  %v1251 = vadd.f32 %v1175, %v1230
  %v1252 = vadd.f32 %v1176, %v1234
  %v1253 = vadd.f32 %v1177, %v1230
  %v1254 = vadd.f32 %v1178, %v1234
  %v1255 = vadd.f32 %v1179, %v1230
  %v1256 = vadd.f32 %v1180, %v1234
  %v1257 = vadd.f32 %v1181, %v1230
  %v1258 = vadd.f32 %v1182, %v1234
  %v1259 = vadd.f32 %v1183, %v1230
  %v1260 = vadd.f32 %v1184, %v1234
  %v1261 = vadd.f32 %v1185, %v1230
  %v1262 = vadd.f32 %v1186, %v1234
  %v1263 = vadd.f32 %v1187, %v1230
  %v1264 = vadd.f32 %v1188, %v1234
  %v1265 = vadd.f32 %v1189, %v1230
  %v1266 = vadd.f32 %v1190, %v1234
  %v1267 = vadd.f32 %v1191, %v1230
  %v1268 = vadd.f32 %v1192, %v1234
  %v1269 = vadd.f32 %v1193, %v1230
  %v1270 = vadd.f32 %v1194, %v1234
  %v1271 = vadd.f32 %v1195, %v1230
  %v1272 = vadd.f32 %v1196, %v1234
  %v1273 = vadd.f32 %v1197, %v1230
  %v1274 = vadd.f32 %v1198, %v1234
  %v1275 = vadd.f32 %v1199, %v1230
  %v1276 = vadd.f32 %v1200, %v1234
  %v1277 = vadd.f32 %v1201, %v1230
  %v1278 = vadd.f32 %v1202, %v1234
  %v1279 = vadd.f32 %v1203, %v1230
  %v1280 = vadd.f32 %v1204, %v1234
  %v1281 = vadd.f32 %v1205, %v1230
  %v1282 = vadd.f32 %v1206, %v1234
  %v1283 = vadd.f32 %v1207, %v1230
  %v1284 = vadd.f32 %v1208, %v1234
  %v1285 = vadd.f32 %v1209, %v1230
  %v1286 = vadd.f32 %v1210, %v1234
  %v1287 = vadd.f32 %v1211, %v1230
  %v1288 = vadd.f32 %v1212, %v1234
  %v1289 = vadd.f32 %v1213, %v1230
  %v1290 = vadd.f32 %v1214, %v1234
  %v1291 = vadd.f32 %v1215, %v1230
  %v1292 = vadd.f32 %v1216, %v1234
  %v1293 = vadd.f32 %v1217, %v1230
  %v1294 = vadd.f32 %v1218, %v1234
  %v1295 = vadd.f32 %v1219, %v1230
  %v1296 = vadd.f32 %v1220, %v1234
  %v1297 = vadd.f32 %v1221, %v1230
  %v1298 = vadd.f32 %v1222, %v1234
  %v1299 = vadd.f32 %v1223, %v1230
  %v1300 = vadd.f32 %v1224, %v1234
  %v1301 = vmin.f32 %v1237, 20.0
  %v1302 = vmin.f32 %v1238, 20.0
  %v1303 = vmin.f32 %v1239, 20.0
  %v1304 = vmin.f32 %v1240, 20.0
  %v1305 = vmin.f32 %v1241, 20.0
  %v1306 = vmin.f32 %v1242, 20.0
  %v1307 = vmin.f32 %v1243, 20.0
  %v1308 = vmin.f32 %v1244, 20.0
  %v1309 = vmin.f32 %v1245, 20.0
  %v1310 = vmin.f32 %v1246, 20.0
  %v1311 = vmin.f32 %v1247, 20.0
  %v1312 = vmin.f32 %v1248, 20.0
  %v1313 = vmin.f32 %v1249, 20.0
  %v1314 = vmin.f32 %v1250, 20.0
  %v1315 = vmin.f32 %v1251, 20.0
  %v1316 = vmin.f32 %v1252, 20.0
  %v1317 = vmin.f32 %v1253, 20.0
  %v1318 = vmin.f32 %v1254, 20.0
  %v1319 = vmin.f32 %v1255, 20.0
  %v1320 = vmin.f32 %v1256, 20.0
  %v1321 = vmin.f32 %v1257, 20.0
  %v1322 = vmin.f32 %v1258, 20.0
  %v1323 = vmin.f32 %v1259, 20.0
  %v1324 = vmin.f32 %v1260, 20.0
  %v1325 = vmin.f32 %v1261, 20.0
  %v1326 = vmin.f32 %v1262, 20.0
  %v1327 = vmin.f32 %v1263, 20.0
  %v1328 = vmin.f32 %v1264, 20.0
  %v1329 = vmin.f32 %v1265, 20.0
  %v1330 = vmin.f32 %v1266, 20.0
  %v1331 = vmin.f32 %v1267, 20.0
  %v1332 = vmin.f32 %v1268, 20.0
  %v1333 = vmin.f32 %v1269, 20.0
  %v1334 = vmin.f32 %v1270, 20.0
  %v1335 = vmin.f32 %v1271, 20.0
  %v1336 = vmin.f32 %v1272, 20.0
  %v1337 = vmin.f32 %v1273, 20.0
  %v1338 = vmin.f32 %v1274, 20.0
  %v1339 = vmin.f32 %v1275, 20.0
  %v1340 = vmin.f32 %v1276, 20.0
  %v1341 = vmin.f32 %v1277, 20.0
  %v1342 = vmin.f32 %v1278, 20.0
  %v1343 = vmin.f32 %v1279, 20.0
  %v1344 = vmin.f32 %v1280, 20.0
  %v1345 = vmin.f32 %v1281, 20.0
  %v1346 = vmin.f32 %v1282, 20.0
  %v1347 = vmin.f32 %v1283, 20.0
  %v1348 = vmin.f32 %v1284, 20.0
  %v1349 = vmin.f32 %v1285, 20.0
  %v1350 = vmin.f32 %v1286, 20.0
  %v1351 = vmin.f32 %v1287, 20.0
  %v1352 = vmin.f32 %v1288, 20.0
  %v1353 = vmin.f32 %v1289, 20.0
  %v1354 = vmin.f32 %v1290, 20.0
  %v1355 = vmin.f32 %v1291, 20.0
  %v1356 = vmin.f32 %v1292, 20.0
  %v1357 = vmin.f32 %v1293, 20.0
  %v1358 = vmin.f32 %v1294, 20.0
  %v1359 = vmin.f32 %v1295, 20.0
  %v1360 = vmin.f32 %v1296, 20.0
  %v1361 = vmin.f32 %v1297, 20.0
  %v1362 = vmin.f32 %v1298, 20.0
  %v1363 = vmin.f32 %v1299, 20.0
  %v1364 = vmin.f32 %v1300, 20.0
  %v1365 = vmul.f32 %v1301, 1.442695
  %v1366 = vpow.pop %v1365
  %v1367 = vmul.f32 %v1302, 1.442695
  %v1368 = vpow.pop %v1367
  %v1369 = vmul.f32 %v1303, 1.442695
  %v1370 = vpow.pop %v1369
  %v1371 = vmul.f32 %v1304, 1.442695
  %v1372 = vpow.pop %v1371
  %v1373 = vmul.f32 %v1305, 1.442695
  %v1374 = vpow.pop %v1373
  %v1375 = vmul.f32 %v1306, 1.442695
  %v1376 = vpow.pop %v1375
  %v1377 = vmul.f32 %v1307, 1.442695
  %v1378 = vpow.pop %v1377
  %v1379 = vmul.f32 %v1308, 1.442695
  %v1380 = vpow.pop %v1379
  %v1381 = vmul.f32 %v1309, 1.442695
  %v1382 = vpow.pop %v1381
  %v1383 = vmul.f32 %v1310, 1.442695
  %v1384 = vpow.pop %v1383
  %v1385 = vmul.f32 %v1311, 1.442695
  %v1386 = vpow.pop %v1385
  %v1387 = vmul.f32 %v1312, 1.442695
  %v1388 = vpow.pop %v1387
  %v1389 = vmul.f32 %v1313, 1.442695
  %v1390 = vpow.pop %v1389
  %v1391 = vmul.f32 %v1314, 1.442695
  %v1392 = vpow.pop %v1391
  %v1393 = vmul.f32 %v1315, 1.442695
  %v1394 = vpow.pop %v1393
  %v1395 = vmul.f32 %v1316, 1.442695
  %v1396 = vpow.pop %v1395
  %v1397 = vmul.f32 %v1317, 1.442695
  %v1398 = vpow.pop %v1397
  %v1399 = vmul.f32 %v1318, 1.442695
  %v1400 = vpow.pop %v1399
  %v1401 = vmul.f32 %v1319, 1.442695
  %v1402 = vpow.pop %v1401
  %v1403 = vmul.f32 %v1320, 1.442695
  %v1404 = vpow.pop %v1403
  %v1405 = vmul.f32 %v1321, 1.442695
  %v1406 = vpow.pop %v1405
  %v1407 = vmul.f32 %v1322, 1.442695
  %v1408 = vpow.pop %v1407
  %v1409 = vmul.f32 %v1323, 1.442695
  %v1410 = vpow.pop %v1409
  %v1411 = vmul.f32 %v1324, 1.442695
  %v1412 = vpow.pop %v1411
  %v1413 = vmul.f32 %v1325, 1.442695
  %v1414 = vpow.pop %v1413
  %v1415 = vmul.f32 %v1326, 1.442695
  %v1416 = vpow.pop %v1415
  %v1417 = vmul.f32 %v1327, 1.442695
  %v1418 = vpow.pop %v1417
  %v1419 = vmul.f32 %v1328, 1.442695
  %v1420 = vpow.pop %v1419
  %v1421 = vmul.f32 %v1329, 1.442695
  %v1422 = vpow.pop %v1421
  %v1423 = vmul.f32 %v1330, 1.442695
  %v1424 = vpow.pop %v1423
  %v1425 = vmul.f32 %v1331, 1.442695
  %v1426 = vpow.pop %v1425
  %v1427 = vmul.f32 %v1332, 1.442695
  %v1428 = vpow.pop %v1427
  %v1429 = vmul.f32 %v1333, 1.442695
  %v1430 = vpow.pop %v1429
  %v1431 = vmul.f32 %v1334, 1.442695
  %v1432 = vpow.pop %v1431
  %v1433 = vmul.f32 %v1335, 1.442695
  %v1434 = vpow.pop %v1433
  %v1435 = vmul.f32 %v1336, 1.442695
  %v1436 = vpow.pop %v1435
  %v1437 = vmul.f32 %v1337, 1.442695
  %v1438 = vpow.pop %v1437
  %v1439 = vmul.f32 %v1338, 1.442695
  %v1440 = vpow.pop %v1439
  %v1441 = vmul.f32 %v1339, 1.442695
  %v1442 = vpow.pop %v1441
  %v1443 = vmul.f32 %v1340, 1.442695
  %v1444 = vpow.pop %v1443
  %v1445 = vmul.f32 %v1341, 1.442695
  %v1446 = vpow.pop %v1445
  %v1447 = vmul.f32 %v1342, 1.442695
  %v1448 = vpow.pop %v1447
  %v1449 = vmul.f32 %v1343, 1.442695
  %v1450 = vpow.pop %v1449
  %v1451 = vmul.f32 %v1344, 1.442695
  %v1452 = vpow.pop %v1451
  %v1453 = vmul.f32 %v1345, 1.442695
  %v1454 = vpow.pop %v1453
  %v1455 = vmul.f32 %v1346, 1.442695
  %v1456 = vpow.pop %v1455
  %v1457 = vmul.f32 %v1347, 1.442695
  %v1458 = vpow.pop %v1457
  %v1459 = vmul.f32 %v1348, 1.442695
  %v1460 = vpow.pop %v1459
  %v1461 = vmul.f32 %v1349, 1.442695
  %v1462 = vpow.pop %v1461
  %v1463 = vmul.f32 %v1350, 1.442695
  %v1464 = vpow.pop %v1463
  %v1465 = vmul.f32 %v1351, 1.442695
  %v1466 = vpow.pop %v1465
  %v1467 = vmul.f32 %v1352, 1.442695
  %v1468 = vpow.pop %v1467
  %v1469 = vmul.f32 %v1353, 1.442695
  %v1470 = vpow.pop %v1469
  %v1471 = vmul.f32 %v1354, 1.442695
  %v1472 = vpow.pop %v1471
  %v1473 = vmul.f32 %v1355, 1.442695
  %v1474 = vpow.pop %v1473
  %v1475 = vmul.f32 %v1356, 1.442695
  %v1476 = vpow.pop %v1475
  %v1477 = vmul.f32 %v1357, 1.442695
  %v1478 = vpow.pop %v1477
  %v1479 = vmul.f32 %v1358, 1.442695
  %v1480 = vpow.pop %v1479
  %v1481 = vmul.f32 %v1359, 1.442695
  %v1482 = vpow.pop %v1481
  %v1483 = vmul.f32 %v1360, 1.442695
  %v1484 = vpow.pop %v1483
  %v1485 = vmul.f32 %v1361, 1.442695
  %v1486 = vpow.pop %v1485
  %v1487 = vmul.f32 %v1362, 1.442695
  %v1488 = vpow.pop %v1487
  %v1489 = vmul.f32 %v1363, 1.442695
  %v1490 = vpow.pop %v1489
  %v1491 = vmul.f32 %v1364, 1.442695
  %v1492 = vpow.pop %v1491
  %v1493 = vadd.f32 %v1366, 1.0
  %v1494 = vadd.f32 %v1368, 1.0
  %v1495 = vadd.f32 %v1370, 1.0
  %v1496 = vadd.f32 %v1372, 1.0
  %v1497 = vadd.f32 %v1374, 1.0
  %v1498 = vadd.f32 %v1376, 1.0
  %v1499 = vadd.f32 %v1378, 1.0
  %v1500 = vadd.f32 %v1380, 1.0
  %v1501 = vadd.f32 %v1382, 1.0
  %v1502 = vadd.f32 %v1384, 1.0
  %v1503 = vadd.f32 %v1386, 1.0
  %v1504 = vadd.f32 %v1388, 1.0
  %v1505 = vadd.f32 %v1390, 1.0
  %v1506 = vadd.f32 %v1392, 1.0
  %v1507 = vadd.f32 %v1394, 1.0
  %v1508 = vadd.f32 %v1396, 1.0
  %v1509 = vadd.f32 %v1398, 1.0
  %v1510 = vadd.f32 %v1400, 1.0
  %v1511 = vadd.f32 %v1402, 1.0
  %v1512 = vadd.f32 %v1404, 1.0
  %v1513 = vadd.f32 %v1406, 1.0
  %v1514 = vadd.f32 %v1408, 1.0
  %v1515 = vadd.f32 %v1410, 1.0
  %v1516 = vadd.f32 %v1412, 1.0
  %v1517 = vadd.f32 %v1414, 1.0
  %v1518 = vadd.f32 %v1416, 1.0
  %v1519 = vadd.f32 %v1418, 1.0
  %v1520 = vadd.f32 %v1420, 1.0
  %v1521 = vadd.f32 %v1422, 1.0
  %v1522 = vadd.f32 %v1424, 1.0
  %v1523 = vadd.f32 %v1426, 1.0
  %v1524 = vadd.f32 %v1428, 1.0
  %v1525 = vadd.f32 %v1430, 1.0
  %v1526 = vadd.f32 %v1432, 1.0
  %v1527 = vadd.f32 %v1434, 1.0
  %v1528 = vadd.f32 %v1436, 1.0
  %v1529 = vadd.f32 %v1438, 1.0
  %v1530 = vadd.f32 %v1440, 1.0
  %v1531 = vadd.f32 %v1442, 1.0
  %v1532 = vadd.f32 %v1444, 1.0
  %v1533 = vadd.f32 %v1446, 1.0
  %v1534 = vadd.f32 %v1448, 1.0
  %v1535 = vadd.f32 %v1450, 1.0
  %v1536 = vadd.f32 %v1452, 1.0
  %v1537 = vadd.f32 %v1454, 1.0
  %v1538 = vadd.f32 %v1456, 1.0
  %v1539 = vadd.f32 %v1458, 1.0
  %v1540 = vadd.f32 %v1460, 1.0
  %v1541 = vadd.f32 %v1462, 1.0
  %v1542 = vadd.f32 %v1464, 1.0
  %v1543 = vadd.f32 %v1466, 1.0
  %v1544 = vadd.f32 %v1468, 1.0
  %v1545 = vadd.f32 %v1470, 1.0
  %v1546 = vadd.f32 %v1472, 1.0
  %v1547 = vadd.f32 %v1474, 1.0
  %v1548 = vadd.f32 %v1476, 1.0
  %v1549 = vadd.f32 %v1478, 1.0
  %v1550 = vadd.f32 %v1480, 1.0
  %v1551 = vadd.f32 %v1482, 1.0
  %v1552 = vadd.f32 %v1484, 1.0
  %v1553 = vadd.f32 %v1486, 1.0
  %v1554 = vadd.f32 %v1488, 1.0
  %v1555 = vadd.f32 %v1490, 1.0
  %v1556 = vadd.f32 %v1492, 1.0
  %v1557 = vmul.f32 %v1493, %v1493
  %v1558 = vmul.f32 %v1494, %v1494
  %v1559 = vmul.f32 %v1495, %v1495
  %v1560 = vmul.f32 %v1496, %v1496
  %v1561 = vmul.f32 %v1497, %v1497
  %v1562 = vmul.f32 %v1498, %v1498
  %v1563 = vmul.f32 %v1499, %v1499
  %v1564 = vmul.f32 %v1500, %v1500
  %v1565 = vmul.f32 %v1501, %v1501
  %v1566 = vmul.f32 %v1502, %v1502
  %v1567 = vmul.f32 %v1503, %v1503
  %v1568 = vmul.f32 %v1504, %v1504
  %v1569 = vmul.f32 %v1505, %v1505
  %v1570 = vmul.f32 %v1506, %v1506
  %v1571 = vmul.f32 %v1507, %v1507
  %v1572 = vmul.f32 %v1508, %v1508
  %v1573 = vmul.f32 %v1509, %v1509
  %v1574 = vmul.f32 %v1510, %v1510
  %v1575 = vmul.f32 %v1511, %v1511
  %v1576 = vmul.f32 %v1512, %v1512
  %v1577 = vmul.f32 %v1513, %v1513
  %v1578 = vmul.f32 %v1514, %v1514
  %v1579 = vmul.f32 %v1515, %v1515
  %v1580 = vmul.f32 %v1516, %v1516
  %v1581 = vmul.f32 %v1517, %v1517
  %v1582 = vmul.f32 %v1518, %v1518
  %v1583 = vmul.f32 %v1519, %v1519
  %v1584 = vmul.f32 %v1520, %v1520
  %v1585 = vmul.f32 %v1521, %v1521
  %v1586 = vmul.f32 %v1522, %v1522
  %v1587 = vmul.f32 %v1523, %v1523
  %v1588 = vmul.f32 %v1524, %v1524
  %v1589 = vmul.f32 %v1525, %v1525
  %v1590 = vmul.f32 %v1526, %v1526
  %v1591 = vmul.f32 %v1527, %v1527
  %v1592 = vmul.f32 %v1528, %v1528
  %v1593 = vmul.f32 %v1529, %v1529
  %v1594 = vmul.f32 %v1530, %v1530
  %v1595 = vmul.f32 %v1531, %v1531
  %v1596 = vmul.f32 %v1532, %v1532
  %v1597 = vmul.f32 %v1533, %v1533
  %v1598 = vmul.f32 %v1534, %v1534
  %v1599 = vmul.f32 %v1535, %v1535
  %v1600 = vmul.f32 %v1536, %v1536
  %v1601 = vmul.f32 %v1537, %v1537
  %v1602 = vmul.f32 %v1538, %v1538
  %v1603 = vmul.f32 %v1539, %v1539
  %v1604 = vmul.f32 %v1540, %v1540
  %v1605 = vmul.f32 %v1541, %v1541
  %v1606 = vmul.f32 %v1542, %v1542
  %v1607 = vmul.f32 %v1543, %v1543
  %v1608 = vmul.f32 %v1544, %v1544
  %v1609 = vmul.f32 %v1545, %v1545
  %v1610 = vmul.f32 %v1546, %v1546
  %v1611 = vmul.f32 %v1547, %v1547
  %v1612 = vmul.f32 %v1548, %v1548
  %v1613 = vmul.f32 %v1549, %v1549
  %v1614 = vmul.f32 %v1550, %v1550
  %v1615 = vmul.f32 %v1551, %v1551
  %v1616 = vmul.f32 %v1552, %v1552
  %v1617 = vmul.f32 %v1553, %v1553
  %v1618 = vmul.f32 %v1554, %v1554
  %v1619 = vmul.f32 %v1555, %v1555
  %v1620 = vmul.f32 %v1556, %v1556
  %v1621 = vsub.f32 %v1557, 1.0
  %v1622 = vsub.f32 %v1558, 1.0
  %v1623 = vsub.f32 %v1559, 1.0
  %v1624 = vsub.f32 %v1560, 1.0
  %v1625 = vsub.f32 %v1561, 1.0
  %v1626 = vsub.f32 %v1562, 1.0
  %v1627 = vsub.f32 %v1563, 1.0
  %v1628 = vsub.f32 %v1564, 1.0
  %v1629 = vsub.f32 %v1565, 1.0
  %v1630 = vsub.f32 %v1566, 1.0
  %v1631 = vsub.f32 %v1567, 1.0
  %v1632 = vsub.f32 %v1568, 1.0
  %v1633 = vsub.f32 %v1569, 1.0
  %v1634 = vsub.f32 %v1570, 1.0
  %v1635 = vsub.f32 %v1571, 1.0
  %v1636 = vsub.f32 %v1572, 1.0
  %v1637 = vsub.f32 %v1573, 1.0
  %v1638 = vsub.f32 %v1574, 1.0
  %v1639 = vsub.f32 %v1575, 1.0
  %v1640 = vsub.f32 %v1576, 1.0
  %v1641 = vsub.f32 %v1577, 1.0
  %v1642 = vsub.f32 %v1578, 1.0
  %v1643 = vsub.f32 %v1579, 1.0
  %v1644 = vsub.f32 %v1580, 1.0
  %v1645 = vsub.f32 %v1581, 1.0
  %v1646 = vsub.f32 %v1582, 1.0
  %v1647 = vsub.f32 %v1583, 1.0
  %v1648 = vsub.f32 %v1584, 1.0
  %v1649 = vsub.f32 %v1585, 1.0
  %v1650 = vsub.f32 %v1586, 1.0
  %v1651 = vsub.f32 %v1587, 1.0
  %v1652 = vsub.f32 %v1588, 1.0
  %v1653 = vsub.f32 %v1589, 1.0
  %v1654 = vsub.f32 %v1590, 1.0
  %v1655 = vsub.f32 %v1591, 1.0
  %v1656 = vsub.f32 %v1592, 1.0
  %v1657 = vsub.f32 %v1593, 1.0
  %v1658 = vsub.f32 %v1594, 1.0
  %v1659 = vsub.f32 %v1595, 1.0
  %v1660 = vsub.f32 %v1596, 1.0
  %v1661 = vsub.f32 %v1597, 1.0
  %v1662 = vsub.f32 %v1598, 1.0
  %v1663 = vsub.f32 %v1599, 1.0
  %v1664 = vsub.f32 %v1600, 1.0
  %v1665 = vsub.f32 %v1601, 1.0
  %v1666 = vsub.f32 %v1602, 1.0
  %v1667 = vsub.f32 %v1603, 1.0
  %v1668 = vsub.f32 %v1604, 1.0
  %v1669 = vsub.f32 %v1605, 1.0
  %v1670 = vsub.f32 %v1606, 1.0
  %v1671 = vsub.f32 %v1607, 1.0
  %v1672 = vsub.f32 %v1608, 1.0
  %v1673 = vsub.f32 %v1609, 1.0
  %v1674 = vsub.f32 %v1610, 1.0
  %v1675 = vsub.f32 %v1611, 1.0
  %v1676 = vsub.f32 %v1612, 1.0
  %v1677 = vsub.f32 %v1613, 1.0
  %v1678 = vsub.f32 %v1614, 1.0
  %v1679 = vsub.f32 %v1615, 1.0
  %v1680 = vsub.f32 %v1616, 1.0
  %v1681 = vsub.f32 %v1617, 1.0
  %v1682 = vsub.f32 %v1618, 1.0
  %v1683 = vsub.f32 %v1619, 1.0
  %v1684 = vsub.f32 %v1620, 1.0
  %v1685 = vmul.f32 %v1237, %v1621
  %v1686 = vmul.f32 %v1238, %v1622
  %v1687 = vmul.f32 %v1239, %v1623
  %v1688 = vmul.f32 %v1240, %v1624
  %v1689 = vmul.f32 %v1241, %v1625
  %v1690 = vmul.f32 %v1242, %v1626
  %v1691 = vmul.f32 %v1243, %v1627
  %v1692 = vmul.f32 %v1244, %v1628
  %v1693 = vmul.f32 %v1245, %v1629
  %v1694 = vmul.f32 %v1246, %v1630
  %v1695 = vmul.f32 %v1247, %v1631
  %v1696 = vmul.f32 %v1248, %v1632
  %v1697 = vmul.f32 %v1249, %v1633
  %v1698 = vmul.f32 %v1250, %v1634
  %v1699 = vmul.f32 %v1251, %v1635
  %v1700 = vmul.f32 %v1252, %v1636
  %v1701 = vmul.f32 %v1253, %v1637
  %v1702 = vmul.f32 %v1254, %v1638
  %v1703 = vmul.f32 %v1255, %v1639
  %v1704 = vmul.f32 %v1256, %v1640
  %v1705 = vmul.f32 %v1257, %v1641
  %v1706 = vmul.f32 %v1258, %v1642
  %v1707 = vmul.f32 %v1259, %v1643
  %v1708 = vmul.f32 %v1260, %v1644
  %v1709 = vmul.f32 %v1261, %v1645
  %v1710 = vmul.f32 %v1262, %v1646
  %v1711 = vmul.f32 %v1263, %v1647
  %v1712 = vmul.f32 %v1264, %v1648
  %v1713 = vmul.f32 %v1265, %v1649
  %v1714 = vmul.f32 %v1266, %v1650
  %v1715 = vmul.f32 %v1267, %v1651
  %v1716 = vmul.f32 %v1268, %v1652
  %v1717 = vmul.f32 %v1269, %v1653
  %v1718 = vmul.f32 %v1270, %v1654
  %v1719 = vmul.f32 %v1271, %v1655
  %v1720 = vmul.f32 %v1272, %v1656
  %v1721 = vmul.f32 %v1273, %v1657
  %v1722 = vmul.f32 %v1274, %v1658
  %v1723 = vmul.f32 %v1275, %v1659
  %v1724 = vmul.f32 %v1276, %v1660
  %v1725 = vmul.f32 %v1277, %v1661
  %v1726 = vmul.f32 %v1278, %v1662
  %v1727 = vmul.f32 %v1279, %v1663
  %v1728 = vmul.f32 %v1280, %v1664
  %v1729 = vmul.f32 %v1281, %v1665
  %v1730 = vmul.f32 %v1282, %v1666
  %v1731 = vmul.f32 %v1283, %v1667
  %v1732 = vmul.f32 %v1284, %v1668
  %v1733 = vmul.f32 %v1285, %v1669
  %v1734 = vmul.f32 %v1286, %v1670
  %v1735 = vmul.f32 %v1287, %v1671
  %v1736 = vmul.f32 %v1288, %v1672
  %v1737 = vmul.f32 %v1289, %v1673
  %v1738 = vmul.f32 %v1290, %v1674
  %v1739 = vmul.f32 %v1291, %v1675
  %v1740 = vmul.f32 %v1292, %v1676
  %v1741 = vmul.f32 %v1293, %v1677
  %v1742 = vmul.f32 %v1294, %v1678
  %v1743 = vmul.f32 %v1295, %v1679
  %v1744 = vmul.f32 %v1296, %v1680
  %v1745 = vmul.f32 %v1297, %v1681
  %v1746 = vmul.f32 %v1298, %v1682
  %v1747 = vmul.f32 %v1299, %v1683
  %v1748 = vmul.f32 %v1300, %v1684
  %v1749 = vadd.f32 %v1557, 1.0
  %v1750 = vadd.f32 %v1558, 1.0
  %v1751 = vadd.f32 %v1559, 1.0
  %v1752 = vadd.f32 %v1560, 1.0
  %v1753 = vadd.f32 %v1561, 1.0
  %v1754 = vadd.f32 %v1562, 1.0
  %v1755 = vadd.f32 %v1563, 1.0
  %v1756 = vadd.f32 %v1564, 1.0
  %v1757 = vadd.f32 %v1565, 1.0
  %v1758 = vadd.f32 %v1566, 1.0
  %v1759 = vadd.f32 %v1567, 1.0
  %v1760 = vadd.f32 %v1568, 1.0
  %v1761 = vadd.f32 %v1569, 1.0
  %v1762 = vadd.f32 %v1570, 1.0
  %v1763 = vadd.f32 %v1571, 1.0
  %v1764 = vadd.f32 %v1572, 1.0
  %v1765 = vadd.f32 %v1573, 1.0
  %v1766 = vadd.f32 %v1574, 1.0
  %v1767 = vadd.f32 %v1575, 1.0
  %v1768 = vadd.f32 %v1576, 1.0
  %v1769 = vadd.f32 %v1577, 1.0
  %v1770 = vadd.f32 %v1578, 1.0
  %v1771 = vadd.f32 %v1579, 1.0
  %v1772 = vadd.f32 %v1580, 1.0
  %v1773 = vadd.f32 %v1581, 1.0
  %v1774 = vadd.f32 %v1582, 1.0
  %v1775 = vadd.f32 %v1583, 1.0
  %v1776 = vadd.f32 %v1584, 1.0
  %v1777 = vadd.f32 %v1585, 1.0
  %v1778 = vadd.f32 %v1586, 1.0
  %v1779 = vadd.f32 %v1587, 1.0
  %v1780 = vadd.f32 %v1588, 1.0
  %v1781 = vadd.f32 %v1589, 1.0
  %v1782 = vadd.f32 %v1590, 1.0
  %v1783 = vadd.f32 %v1591, 1.0
  %v1784 = vadd.f32 %v1592, 1.0
  %v1785 = vadd.f32 %v1593, 1.0
  %v1786 = vadd.f32 %v1594, 1.0
  %v1787 = vadd.f32 %v1595, 1.0
  %v1788 = vadd.f32 %v1596, 1.0
  %v1789 = vadd.f32 %v1597, 1.0
  %v1790 = vadd.f32 %v1598, 1.0
  %v1791 = vadd.f32 %v1599, 1.0
  %v1792 = vadd.f32 %v1600, 1.0
  %v1793 = vadd.f32 %v1601, 1.0
  %v1794 = vadd.f32 %v1602, 1.0
  %v1795 = vadd.f32 %v1603, 1.0
  %v1796 = vadd.f32 %v1604, 1.0
  %v1797 = vadd.f32 %v1605, 1.0
  %v1798 = vadd.f32 %v1606, 1.0
  %v1799 = vadd.f32 %v1607, 1.0
  %v1800 = vadd.f32 %v1608, 1.0
  %v1801 = vadd.f32 %v1609, 1.0
  %v1802 = vadd.f32 %v1610, 1.0
  %v1803 = vadd.f32 %v1611, 1.0
  %v1804 = vadd.f32 %v1612, 1.0
  %v1805 = vadd.f32 %v1613, 1.0
  %v1806 = vadd.f32 %v1614, 1.0
  %v1807 = vadd.f32 %v1615, 1.0
  %v1808 = vadd.f32 %v1616, 1.0
  %v1809 = vadd.f32 %v1617, 1.0
  %v1810 = vadd.f32 %v1618, 1.0
  %v1811 = vadd.f32 %v1619, 1.0
  %v1812 = vadd.f32 %v1620, 1.0
  %v1813 = vrcp.pop %v1749
  %v1814 = vrcp.pop %v1750
  %v1815 = vrcp.pop %v1751
  %v1816 = vrcp.pop %v1752
  %v1817 = vrcp.pop %v1753
  %v1818 = vrcp.pop %v1754
  %v1819 = vrcp.pop %v1755
  %v1820 = vrcp.pop %v1756
  %v1821 = vrcp.pop %v1757
  %v1822 = vrcp.pop %v1758
  %v1823 = vrcp.pop %v1759
  %v1824 = vrcp.pop %v1760
  %v1825 = vrcp.pop %v1761
  %v1826 = vrcp.pop %v1762
  %v1827 = vrcp.pop %v1763
  %v1828 = vrcp.pop %v1764
  %v1829 = vrcp.pop %v1765
  %v1830 = vrcp.pop %v1766
  %v1831 = vrcp.pop %v1767
  %v1832 = vrcp.pop %v1768
  %v1833 = vrcp.pop %v1769
  %v1834 = vrcp.pop %v1770
  %v1835 = vrcp.pop %v1771
  %v1836 = vrcp.pop %v1772
  %v1837 = vrcp.pop %v1773
  %v1838 = vrcp.pop %v1774
  %v1839 = vrcp.pop %v1775
  %v1840 = vrcp.pop %v1776
  %v1841 = vrcp.pop %v1777
  %v1842 = vrcp.pop %v1778
  %v1843 = vrcp.pop %v1779
  %v1844 = vrcp.pop %v1780
  %v1845 = vrcp.pop %v1781
  %v1846 = vrcp.pop %v1782
  %v1847 = vrcp.pop %v1783
  %v1848 = vrcp.pop %v1784
  %v1849 = vrcp.pop %v1785
  %v1850 = vrcp.pop %v1786
  %v1851 = vrcp.pop %v1787
  %v1852 = vrcp.pop %v1788
  %v1853 = vrcp.pop %v1789
  %v1854 = vrcp.pop %v1790
  %v1855 = vrcp.pop %v1791
  %v1856 = vrcp.pop %v1792
  %v1857 = vrcp.pop %v1793
  %v1858 = vrcp.pop %v1794
  %v1859 = vrcp.pop %v1795
  %v1860 = vrcp.pop %v1796
  %v1861 = vrcp.pop %v1797
  %v1862 = vrcp.pop %v1798
  %v1863 = vrcp.pop %v1799
  %v1864 = vrcp.pop %v1800
  %v1865 = vrcp.pop %v1801
  %v1866 = vrcp.pop %v1802
  %v1867 = vrcp.pop %v1803
  %v1868 = vrcp.pop %v1804
  %v1869 = vrcp.pop %v1805
  %v1870 = vrcp.pop %v1806
  %v1871 = vrcp.pop %v1807
  %v1872 = vrcp.pop %v1808
  %v1873 = vrcp.pop %v1809
  %v1874 = vrcp.pop %v1810
  %v1875 = vrcp.pop %v1811
  %v1876 = vrcp.pop %v1812
  %v1877 = vmul.f32 %v1685, %v1813
  %v1878 = vmul.f32 %v1686, %v1814
  %v1879 = vmul.f32 %v1687, %v1815
  %v1880 = vmul.f32 %v1688, %v1816
  %v1881 = vmul.f32 %v1689, %v1817
  %v1882 = vmul.f32 %v1690, %v1818
  %v1883 = vmul.f32 %v1691, %v1819
  %v1884 = vmul.f32 %v1692, %v1820
  %v1885 = vmul.f32 %v1693, %v1821
  %v1886 = vmul.f32 %v1694, %v1822
  %v1887 = vmul.f32 %v1695, %v1823
  %v1888 = vmul.f32 %v1696, %v1824
  %v1889 = vmul.f32 %v1697, %v1825
  %v1890 = vmul.f32 %v1698, %v1826
  %v1891 = vmul.f32 %v1699, %v1827
  %v1892 = vmul.f32 %v1700, %v1828
  %v1893 = vmul.f32 %v1701, %v1829
  %v1894 = vmul.f32 %v1702, %v1830
  %v1895 = vmul.f32 %v1703, %v1831
  %v1896 = vmul.f32 %v1704, %v1832
  %v1897 = vmul.f32 %v1705, %v1833
  %v1898 = vmul.f32 %v1706, %v1834
  %v1899 = vmul.f32 %v1707, %v1835
  %v1900 = vmul.f32 %v1708, %v1836
  %v1901 = vmul.f32 %v1709, %v1837
  %v1902 = vmul.f32 %v1710, %v1838
  %v1903 = vmul.f32 %v1711, %v1839
  %v1904 = vmul.f32 %v1712, %v1840
  %v1905 = vmul.f32 %v1713, %v1841
  %v1906 = vmul.f32 %v1714, %v1842
  %v1907 = vmul.f32 %v1715, %v1843
  %v1908 = vmul.f32 %v1716, %v1844
  %v1909 = vmul.f32 %v1717, %v1845
  %v1910 = vmul.f32 %v1718, %v1846
  %v1911 = vmul.f32 %v1719, %v1847
  %v1912 = vmul.f32 %v1720, %v1848
  %v1913 = vmul.f32 %v1721, %v1849
  %v1914 = vmul.f32 %v1722, %v1850
  %v1915 = vmul.f32 %v1723, %v1851
  %v1916 = vmul.f32 %v1724, %v1852
  %v1917 = vmul.f32 %v1725, %v1853
  %v1918 = vmul.f32 %v1726, %v1854
  %v1919 = vmul.f32 %v1727, %v1855
  %v1920 = vmul.f32 %v1728, %v1856
  %v1921 = vmul.f32 %v1729, %v1857
  %v1922 = vmul.f32 %v1730, %v1858
  %v1923 = vmul.f32 %v1731, %v1859
  %v1924 = vmul.f32 %v1732, %v1860
  %v1925 = vmul.f32 %v1733, %v1861
  %v1926 = vmul.f32 %v1734, %v1862
  %v1927 = vmul.f32 %v1735, %v1863
  %v1928 = vmul.f32 %v1736, %v1864
  %v1929 = vmul.f32 %v1737, %v1865
  %v1930 = vmul.f32 %v1738, %v1866
  %v1931 = vmul.f32 %v1739, %v1867
  %v1932 = vmul.f32 %v1740, %v1868
  %v1933 = vmul.f32 %v1741, %v1869
  %v1934 = vmul.f32 %v1742, %v1870
  %v1935 = vmul.f32 %v1743, %v1871
  %v1936 = vmul.f32 %v1744, %v1872
  %v1937 = vmul.f32 %v1745, %v1873
  %v1938 = vmul.f32 %v1746, %v1874
  %v1939 = vmul.f32 %v1747, %v1875
  %v1940 = vmul.f32 %v1748, %v1876
  %v1941 = vld [vmem:[%s4] sm:$0xff]
  %v1942 = vld [vmem:[%s4 + $0x8] sm:$0xff]
  %v1943 = vld [vmem:[%s4 + $0x10] sm:$0xff]
  %v1944 = vld [vmem:[%s4 + $0x18] sm:$0xff]
  %v1945 = vld [vmem:[%s4 + $0x20] sm:$0xff]
  %v1946 = vld [vmem:[%s4 + $0x28] sm:$0xff]
  %v1947 = vld [vmem:[%s4 + $0x30] sm:$0xff]
  %v1948 = vld [vmem:[%s4 + $0x38] sm:$0xff]
  %v1949 = vld [vmem:[%s4 + $0x40] sm:$0xff]
  %v1950 = vld [vmem:[%s4 + $0x48] sm:$0xff]
  %v1951 = vld [vmem:[%s4 + $0x50] sm:$0xff]
  %v1952 = vld [vmem:[%s4 + $0x58] sm:$0xff]
  %v1953 = vld [vmem:[%s4 + $0x60] sm:$0xff]
  %v1954 = vld [vmem:[%s4 + $0x68] sm:$0xff]
  %v1955 = vld [vmem:[%s4 + $0x70] sm:$0xff]
  %v1956 = vld [vmem:[%s4 + $0x78] sm:$0xff]
  %v1957 = vld [vmem:[%s4 + $0x80] sm:$0xff]
  %v1958 = vld [vmem:[%s4 + $0x88] sm:$0xff]
  %v1959 = vld [vmem:[%s4 + $0x90] sm:$0xff]
  %v1960 = vld [vmem:[%s4 + $0x98] sm:$0xff]
  %v1961 = vpack.c.bf16 %v1879, %v1877
  %v1962 = vpack.c.bf16 %v1880, %v1878
  %v1963 = vpack.c.bf16 %v1883, %v1881
  %v1964 = vpack.c.bf16 %v1884, %v1882
  %v1965 = vpack.c.bf16 %v1887, %v1885
  %v1966 = vpack.c.bf16 %v1888, %v1886
  %v1967 = vpack.c.bf16 %v1891, %v1889
  %v1968 = vpack.c.bf16 %v1892, %v1890
  %v1969 = vpack.c.bf16 %v1895, %v1893
  %v1970 = vpack.c.bf16 %v1896, %v1894
  %v1971 = vpack.c.bf16 %v1899, %v1897
  %v1972 = vpack.c.bf16 %v1900, %v1898
  %v1973 = vpack.c.bf16 %v1903, %v1901
  %v1974 = vpack.c.bf16 %v1904, %v1902
  %v1975 = vpack.c.bf16 %v1907, %v1905
  %v1976 = vpack.c.bf16 %v1908, %v1906
  %v1977 = vpack.c.bf16 %v1911, %v1909
  %v1978 = vpack.c.bf16 %v1912, %v1910
  %v1979 = vpack.c.bf16 %v1915, %v1913
  %v1980 = vpack.c.bf16 %v1916, %v1914
  %v1981 = vpack.c.bf16 %v1919, %v1917
  %v1982 = vpack.c.bf16 %v1920, %v1918
  %v1983 = vpack.c.bf16 %v1923, %v1921
  %v1984 = vpack.c.bf16 %v1924, %v1922
  %v1985 = vpack.c.bf16 %v1927, %v1925
  %v1986 = vpack.c.bf16 %v1928, %v1926
  %v1987 = vpack.c.bf16 %v1931, %v1929
  %v1988 = vpack.c.bf16 %v1932, %v1930
  %v1989 = vpack.c.bf16 %v1935, %v1933
  %v1990 = vpack.c.bf16 %v1936, %v1934
  %v1991 = vpack.c.bf16 %v1939, %v1937
  %v1992 = vpack.c.bf16 %v1940, %v1938
  %v1993 = vld [vmem:[%s7 + $0x6] sm:$0x3]
  %v1995 = vlaneseq
  %v1996 = vshrl.u32 %v1995, 7
  %v1997 = vsub.s32 0, %v1996
  %v1998 = vrot.slane %v1993, %v1997
  %v1999 = vlaneseq
  %v2000 = vshrl.u32 %v1999, 7
  %v2001 = vsub.s32 1, %v2000
  %v2002 = vrot.slane %v1993, %v2001
  %v2025 = vunpack.c.l.b16 %v1941
  %v2026 = vunpack.c.h.b16 %v1941
  %v2027 = vunpack.c.l.b16 %v1942
  %v2028 = vunpack.c.h.b16 %v1942
  %v2029 = vunpack.c.l.b16 %v1943
  %v2030 = vunpack.c.h.b16 %v1943
  %v2031 = vunpack.c.l.b16 %v1944
  %v2032 = vunpack.c.h.b16 %v1944
  %v2033 = vunpack.c.l.b16 %v1945
  %v2034 = vunpack.c.h.b16 %v1945
  %v2035 = vunpack.c.l.b16 %v1946
  %v2036 = vunpack.c.h.b16 %v1946
  %v2037 = vunpack.c.l.b16 %v1947
  %v2038 = vunpack.c.h.b16 %v1947
  %v2039 = vunpack.c.l.b16 %v1948
  %v2040 = vunpack.c.h.b16 %v1948
  %v2041 = vunpack.c.l.b16 %v1949
  %v2042 = vunpack.c.h.b16 %v1949
  %v2043 = vunpack.c.l.b16 %v1950
  %v2044 = vunpack.c.h.b16 %v1950
  %v2045 = vunpack.c.l.b16 %v1951
  %v2046 = vunpack.c.h.b16 %v1951
  %v2047 = vunpack.c.l.b16 %v1952
  %v2048 = vunpack.c.h.b16 %v1952
  %v2049 = vunpack.c.l.b16 %v1953
  %v2050 = vunpack.c.h.b16 %v1953
  %v2051 = vunpack.c.l.b16 %v1954
  %v2052 = vunpack.c.h.b16 %v1954
  %v2053 = vunpack.c.l.b16 %v1955
  %v2054 = vunpack.c.h.b16 %v1955
  %v2055 = vunpack.c.l.b16 %v1956
  %v2056 = vunpack.c.h.b16 %v1956
  %v2057 = vunpack.c.l.b16 %v1957
  %v2058 = vunpack.c.h.b16 %v1957
  %v2059 = vunpack.c.l.b16 %v1958
  %v2060 = vunpack.c.h.b16 %v1958
  %v2061 = vunpack.c.l.b16 %v1959
  %v2062 = vunpack.c.h.b16 %v1959
  %v2063 = vunpack.c.l.b16 %v1960
  %v2064 = vunpack.c.h.b16 %v1960
  %v2065 = vpack.c.b16 %v2027, %v2025
  %v2066 = vpack.c.b16 %v2028, %v2026
  %v2067 = vpack.c.b16 %v2031, %v2029
  %v2068 = vpack.c.b16 %v2032, %v2030
  %v2069 = vpack.c.b16 %v2035, %v2033
  %v2070 = vpack.c.b16 %v2036, %v2034
  %v2071 = vpack.c.b16 %v2039, %v2037
  %v2072 = vpack.c.b16 %v2040, %v2038
  %v2073 = vpack.c.b16 %v2043, %v2041
  %v2074 = vpack.c.b16 %v2044, %v2042
  %v2075 = vpack.c.b16 %v2047, %v2045
  %v2076 = vpack.c.b16 %v2048, %v2046
  %v2077 = vpack.c.b16 %v2051, %v2049
  %v2078 = vpack.c.b16 %v2052, %v2050
  %v2079 = vpack.c.b16 %v2055, %v2053
  %v2080 = vpack.c.b16 %v2056, %v2054
  %v2081 = vpack.c.b16 %v2059, %v2057
  %v2082 = vpack.c.b16 %v2060, %v2058
  %v2083 = vpack.c.b16 %v2063, %v2061
  %v2084 = vpack.c.b16 %v2064, %v2062
  %v2106 = vsel %vm330, %v1962, 0
  %v2109 = vsel %vm330, %v1964, 0
  %v2112 = vsel %vm330, %v1966, 0
  %v2115 = vsel %vm330, %v1968, 0
  %v2118 = vsel %vm330, %v1970, 0
  %v2121 = vsel %vm330, %v1972, 0
  %v2124 = vsel %vm330, %v1974, 0
  %v2127 = vsel %vm330, %v1976, 0
  %v2130 = vsel %vm330, %v1978, 0
  %v2133 = vsel %vm330, %v1980, 0
  %v2136 = vsel %vm330, %v1982, 0
  %v2139 = vsel %vm330, %v1984, 0
  %v2142 = vsel %vm330, %v1986, 0
  %v2145 = vsel %vm330, %v1988, 0
  %v2148 = vsel %vm330, %v1990, 0
  %v2151 = vsel %vm330, %v1992, 0
  %2153 = vmatprep.subr.bf16.mxu0 %v2066
  %2154 = vmatpush1.bf16.msra.mxu0 %v2065
  %2155 = vmatprep.subr.bf16.mxu0 %v2068
  %2156 = vmatpush1.bf16.msra.mxu0 %v2067
  %2157 = vmatprep.subr.bf16.mxu0 %v2070
  %2158 = vmatpush1.bf16.msra.mxu0 %v2069
  %2159 = vmatprep.subr.bf16.mxu0 %v2072
  %2160 = vmatpush1.bf16.msra.mxu0 %v2071
  %2161 = vmatprep.subr.bf16.mxu0 %v2074
  %2162 = vmatpush1.bf16.msra.mxu0 %v2073
  %2163 = vmatprep.subr.bf16.mxu0 %v2076
  %2164 = vmatpush1.bf16.msra.mxu0 %v2075
  %2165 = vmatprep.subr.bf16.mxu0 %v2078
  %2166 = vmatpush1.bf16.msra.mxu0 %v2077
  %2167 = vmatprep.subr.bf16.mxu0 %v2080
  %2168 = vmatpush1.bf16.msra.mxu0 %v2079
  %2169 = vmatprep.subr.bf16.mxu0 %v2082
  %2170 = vmatpush1.bf16.msra.mxu0 %v2081
  %2171 = vmatprep.subr.bf16.mxu0 %v2084
  %2172 = vmatpush1.bf16.msra.mxu0 %v2083
  %2173 = vmatprep.subr.bf16.mxu0 0
  %2174 = vmatpush1.bf16.msra.mxu0 0
  %2175 = vmatprep.subr.bf16.mxu0 0
  %2176 = vmatpush1.bf16.msra.mxu0 0
  %2177 = vmatprep.subr.bf16.mxu0 0
  %2178 = vmatpush1.bf16.msra.mxu0 0
  %2179 = vmatprep.subr.bf16.mxu0 0
  %2180 = vmatpush1.bf16.msra.mxu0 0
  %2181 = vmatprep.subr.bf16.mxu0 0
  %2182 = vmatpush1.bf16.msra.mxu0 0
  %2183 = vmatprep.subr.bf16.mxu0 0
  %2184 = vmatpush1.bf16.msra.mxu0 0
  %2185 = vmatprep.mubr.bf16.mxu0 %v2106
  %2186 = vmatmul.mubr.bf16.gmra.mrb[0].mxu0 %v1961
  %v2187 = vpop.f32.mrb[0].mxu0
  %v2188 = vadd.f32 %v1998, %v2187
  %v2189 = vpop.f32.mrb[0].mxu0
  %v2190 = vadd.f32 %v2002, %v2189
  %v2191 = vpop.f32.mrb[0].mxu0
  %v2192 = vadd.f32 %v1998, %v2191
  %v2193 = vpop.f32.mrb[0].mxu0
  %v2194 = vadd.f32 %v2002, %v2193
  %2195 = vmatprep.mubr.bf16.mxu0 %v2109
  %2196 = vmatmul.mubr.bf16.gmra.mrb[0].mxu0 %v1963
  %v2197 = vpop.f32.mrb[0].mxu0
  %v2198 = vadd.f32 %v1998, %v2197
  %v2199 = vpop.f32.mrb[0].mxu0
  %v2200 = vadd.f32 %v2002, %v2199
  %v2201 = vpop.f32.mrb[0].mxu0
  %v2202 = vadd.f32 %v1998, %v2201
  %v2203 = vpop.f32.mrb[0].mxu0
  %v2204 = vadd.f32 %v2002, %v2203
  %2205 = vmatprep.mubr.bf16.mxu0 %v2112
  %2206 = vmatmul.mubr.bf16.gmra.mrb[0].mxu0 %v1965
  %v2207 = vpop.f32.mrb[0].mxu0
  %v2208 = vadd.f32 %v1998, %v2207
  %v2209 = vpop.f32.mrb[0].mxu0
  %v2210 = vadd.f32 %v2002, %v2209
  %v2211 = vpop.f32.mrb[0].mxu0
  %v2212 = vadd.f32 %v1998, %v2211
  %v2213 = vpop.f32.mrb[0].mxu0
  %v2214 = vadd.f32 %v2002, %v2213
  %2215 = vmatprep.mubr.bf16.mxu0 %v2115
  %2216 = vmatmul.mubr.bf16.gmra.mrb[0].mxu0 %v1967
  %v2217 = vpop.f32.mrb[0].mxu0
  %v2218 = vadd.f32 %v1998, %v2217
  %v2219 = vpop.f32.mrb[0].mxu0
  %v2220 = vadd.f32 %v2002, %v2219
  %v2221 = vpop.f32.mrb[0].mxu0
  %v2222 = vadd.f32 %v1998, %v2221
  %v2223 = vpop.f32.mrb[0].mxu0
  %v2224 = vadd.f32 %v2002, %v2223
  %2225 = vmatprep.mubr.bf16.mxu0 %v2118
  %2226 = vmatmul.mubr.bf16.gmra.mrb[0].mxu0 %v1969
  %v2227 = vpop.f32.mrb[0].mxu0
  %v2228 = vadd.f32 %v1998, %v2227
  %v2229 = vpop.f32.mrb[0].mxu0
  %v2230 = vadd.f32 %v2002, %v2229
  %v2231 = vpop.f32.mrb[0].mxu0
  %v2232 = vadd.f32 %v1998, %v2231
  %v2233 = vpop.f32.mrb[0].mxu0
  %v2234 = vadd.f32 %v2002, %v2233
  %2235 = vmatprep.mubr.bf16.mxu0 %v2121
  %2236 = vmatmul.mubr.bf16.gmra.mrb[0].mxu0 %v1971
  %v2237 = vpop.f32.mrb[0].mxu0
  %v2238 = vadd.f32 %v1998, %v2237
  %v2239 = vpop.f32.mrb[0].mxu0
  %v2240 = vadd.f32 %v2002, %v2239
  %v2241 = vpop.f32.mrb[0].mxu0
  %v2242 = vadd.f32 %v1998, %v2241
  %v2243 = vpop.f32.mrb[0].mxu0
  %v2244 = vadd.f32 %v2002, %v2243
  %2245 = vmatprep.mubr.bf16.mxu0 %v2124
  %2246 = vmatmul.mubr.bf16.gmra.mrb[0].mxu0 %v1973
  %v2247 = vpop.f32.mrb[0].mxu0
  %v2248 = vadd.f32 %v1998, %v2247
  %v2249 = vpop.f32.mrb[0].mxu0
  %v2250 = vadd.f32 %v2002, %v2249
  %v2251 = vpop.f32.mrb[0].mxu0
  %v2252 = vadd.f32 %v1998, %v2251
  %v2253 = vpop.f32.mrb[0].mxu0
  %v2254 = vadd.f32 %v2002, %v2253
  %2255 = vmatprep.mubr.bf16.mxu0 %v2127
  %2256 = vmatmul.mubr.bf16.gmra.mrb[0].mxu0 %v1975
  %v2257 = vpop.f32.mrb[0].mxu0
  %v2258 = vadd.f32 %v1998, %v2257
  %v2259 = vpop.f32.mrb[0].mxu0
  %v2260 = vadd.f32 %v2002, %v2259
  %v2261 = vpop.f32.mrb[0].mxu0
  %v2262 = vadd.f32 %v1998, %v2261
  %v2263 = vpop.f32.mrb[0].mxu0
  %v2264 = vadd.f32 %v2002, %v2263
  %2265 = vmatprep.mubr.bf16.mxu0 %v2130
  %2266 = vmatmul.mubr.bf16.gmra.mrb[0].mxu0 %v1977
  %v2267 = vpop.f32.mrb[0].mxu0
  %v2268 = vadd.f32 %v1998, %v2267
  %v2269 = vpop.f32.mrb[0].mxu0
  %v2270 = vadd.f32 %v2002, %v2269
  %v2271 = vpop.f32.mrb[0].mxu0
  %v2272 = vadd.f32 %v1998, %v2271
  %v2273 = vpop.f32.mrb[0].mxu0
  %v2274 = vadd.f32 %v2002, %v2273
  %2275 = vmatprep.mubr.bf16.mxu0 %v2133
  %2276 = vmatmul.mubr.bf16.gmra.mrb[0].mxu0 %v1979
  %v2277 = vpop.f32.mrb[0].mxu0
  %v2278 = vadd.f32 %v1998, %v2277
  %v2279 = vpop.f32.mrb[0].mxu0
  %v2280 = vadd.f32 %v2002, %v2279
  %v2281 = vpop.f32.mrb[0].mxu0
  %v2282 = vadd.f32 %v1998, %v2281
  %v2283 = vpop.f32.mrb[0].mxu0
  %v2284 = vadd.f32 %v2002, %v2283
  %2285 = vmatprep.mubr.bf16.mxu0 %v2136
  %2286 = vmatmul.mubr.bf16.gmra.mrb[0].mxu0 %v1981
  %v2287 = vpop.f32.mrb[0].mxu0
  %v2288 = vadd.f32 %v1998, %v2287
  %v2289 = vpop.f32.mrb[0].mxu0
  %v2290 = vadd.f32 %v2002, %v2289
  %v2291 = vpop.f32.mrb[0].mxu0
  %v2292 = vadd.f32 %v1998, %v2291
  %v2293 = vpop.f32.mrb[0].mxu0
  %v2294 = vadd.f32 %v2002, %v2293
  %2295 = vmatprep.mubr.bf16.mxu0 %v2139
  %2296 = vmatmul.mubr.bf16.gmra.mrb[0].mxu0 %v1983
  %v2297 = vpop.f32.mrb[0].mxu0
  %v2298 = vadd.f32 %v1998, %v2297
  %v2299 = vpop.f32.mrb[0].mxu0
  %v2300 = vadd.f32 %v2002, %v2299
  %v2301 = vpop.f32.mrb[0].mxu0
  %v2302 = vadd.f32 %v1998, %v2301
  %v2303 = vpop.f32.mrb[0].mxu0
  %v2304 = vadd.f32 %v2002, %v2303
  %2305 = vmatprep.mubr.bf16.mxu0 %v2142
  %2306 = vmatmul.mubr.bf16.gmra.mrb[0].mxu0 %v1985
  %v2307 = vpop.f32.mrb[0].mxu0
  %v2308 = vadd.f32 %v1998, %v2307
  %v2309 = vpop.f32.mrb[0].mxu0
  %v2310 = vadd.f32 %v2002, %v2309
  %v2311 = vpop.f32.mrb[0].mxu0
  %v2312 = vadd.f32 %v1998, %v2311
  %v2313 = vpop.f32.mrb[0].mxu0
  %v2314 = vadd.f32 %v2002, %v2313
  %2315 = vmatprep.mubr.bf16.mxu0 %v2145
  %2316 = vmatmul.mubr.bf16.gmra.mrb[0].mxu0 %v1987
  %v2317 = vpop.f32.mrb[0].mxu0
  %v2318 = vadd.f32 %v1998, %v2317
  %v2319 = vpop.f32.mrb[0].mxu0
  %v2320 = vadd.f32 %v2002, %v2319
  %v2321 = vpop.f32.mrb[0].mxu0
  %v2322 = vadd.f32 %v1998, %v2321
  %v2323 = vpop.f32.mrb[0].mxu0
  %v2324 = vadd.f32 %v2002, %v2323
  %2325 = vmatprep.mubr.bf16.mxu0 %v2148
  %2326 = vmatmul.mubr.bf16.gmra.mrb[0].mxu0 %v1989
  %v2327 = vpop.f32.mrb[0].mxu0
  %v2328 = vadd.f32 %v1998, %v2327
  %v2329 = vpop.f32.mrb[0].mxu0
  %v2330 = vadd.f32 %v2002, %v2329
  %v2331 = vpop.f32.mrb[0].mxu0
  %v2332 = vadd.f32 %v1998, %v2331
  %v2333 = vpop.f32.mrb[0].mxu0
  %v2334 = vadd.f32 %v2002, %v2333
  %2335 = vmatprep.mubr.bf16.mxu0 %v2151
  %2336 = vmatmul.mubr.bf16.gmra.mrb[0].mxu0 %v1991
  %v2337 = vpop.f32.mrb[0].mxu0
  %v2338 = vadd.f32 %v1998, %v2337
  %v2339 = vpop.f32.mrb[0].mxu0
  %v2340 = vadd.f32 %v2002, %v2339
  %v2341 = vpop.f32.mrb[0].mxu0
  %v2342 = vadd.f32 %v1998, %v2341
  %v2343 = vpop.f32.mrb[0].mxu0
  %v2344 = vadd.f32 %v2002, %v2343
  %2345 = vdwg.mxu0
  %vm2346 = vcmask 523264
  %v2347 = vsel %vm2346, %v2190, 0.0
  %v2348 = vadd.f32 %v2188, %v2347
  %2349 = vadd.xlane.f32.xlu0 %v2348
  %v2350 = vpop.xlane.xlu0 %2349
  %v2351 = vsel %vm2346, %v2194, 0.0
  %v2352 = vadd.f32 %v2192, %v2351
  %2353 = vadd.xlane.f32.xlu0 %v2352
  %v2354 = vpop.xlane.xlu0 %2353
  %v2355 = vsel %vm2346, %v2200, 0.0
  %v2356 = vadd.f32 %v2198, %v2355
  %2357 = vadd.xlane.f32.xlu0 %v2356
  %v2358 = vpop.xlane.xlu0 %2357
  %v2359 = vsel %vm2346, %v2204, 0.0
  %v2360 = vadd.f32 %v2202, %v2359
  %2361 = vadd.xlane.f32.xlu0 %v2360
  %v2362 = vpop.xlane.xlu0 %2361
  %v2363 = vsel %vm2346, %v2210, 0.0
  %v2364 = vadd.f32 %v2208, %v2363
  %2365 = vadd.xlane.f32.xlu0 %v2364
  %v2366 = vpop.xlane.xlu0 %2365
  %v2367 = vsel %vm2346, %v2214, 0.0
  %v2368 = vadd.f32 %v2212, %v2367
  %2369 = vadd.xlane.f32.xlu0 %v2368
  %v2370 = vpop.xlane.xlu0 %2369
  %v2371 = vsel %vm2346, %v2220, 0.0
  %v2372 = vadd.f32 %v2218, %v2371
  %2373 = vadd.xlane.f32.xlu0 %v2372
  %v2374 = vpop.xlane.xlu0 %2373
  %v2375 = vsel %vm2346, %v2224, 0.0
  %v2376 = vadd.f32 %v2222, %v2375
  %2377 = vadd.xlane.f32.xlu0 %v2376
  %v2378 = vpop.xlane.xlu0 %2377
  %v2379 = vsel %vm2346, %v2230, 0.0
  %v2380 = vadd.f32 %v2228, %v2379
  %2381 = vadd.xlane.f32.xlu0 %v2380
  %v2382 = vpop.xlane.xlu0 %2381
  %v2383 = vsel %vm2346, %v2234, 0.0
  %v2384 = vadd.f32 %v2232, %v2383
  %2385 = vadd.xlane.f32.xlu0 %v2384
  %v2386 = vpop.xlane.xlu0 %2385
  %v2387 = vsel %vm2346, %v2240, 0.0
  %v2388 = vadd.f32 %v2238, %v2387
  %2389 = vadd.xlane.f32.xlu0 %v2388
  %v2390 = vpop.xlane.xlu0 %2389
  %v2391 = vsel %vm2346, %v2244, 0.0
  %v2392 = vadd.f32 %v2242, %v2391
  %2393 = vadd.xlane.f32.xlu0 %v2392
  %v2394 = vpop.xlane.xlu0 %2393
  %v2395 = vsel %vm2346, %v2250, 0.0
  %v2396 = vadd.f32 %v2248, %v2395
  %2397 = vadd.xlane.f32.xlu0 %v2396
  %v2398 = vpop.xlane.xlu0 %2397
  %v2399 = vsel %vm2346, %v2254, 0.0
  %v2400 = vadd.f32 %v2252, %v2399
  %2401 = vadd.xlane.f32.xlu0 %v2400
  %v2402 = vpop.xlane.xlu0 %2401
  %v2403 = vsel %vm2346, %v2260, 0.0
  %v2404 = vadd.f32 %v2258, %v2403
  %2405 = vadd.xlane.f32.xlu0 %v2404
  %v2406 = vpop.xlane.xlu0 %2405
  %v2407 = vsel %vm2346, %v2264, 0.0
  %v2408 = vadd.f32 %v2262, %v2407
  %2409 = vadd.xlane.f32.xlu0 %v2408
  %v2410 = vpop.xlane.xlu0 %2409
  %v2411 = vsel %vm2346, %v2270, 0.0
  %v2412 = vadd.f32 %v2268, %v2411
  %2413 = vadd.xlane.f32.xlu0 %v2412
  %v2414 = vpop.xlane.xlu0 %2413
  %v2415 = vsel %vm2346, %v2274, 0.0
  %v2416 = vadd.f32 %v2272, %v2415
  %2417 = vadd.xlane.f32.xlu0 %v2416
  %v2418 = vpop.xlane.xlu0 %2417
  %v2419 = vsel %vm2346, %v2280, 0.0
  %v2420 = vadd.f32 %v2278, %v2419
  %2421 = vadd.xlane.f32.xlu0 %v2420
  %v2422 = vpop.xlane.xlu0 %2421
  %v2423 = vsel %vm2346, %v2284, 0.0
  %v2424 = vadd.f32 %v2282, %v2423
  %2425 = vadd.xlane.f32.xlu0 %v2424
  %v2426 = vpop.xlane.xlu0 %2425
  %v2427 = vsel %vm2346, %v2290, 0.0
  %v2428 = vadd.f32 %v2288, %v2427
  %2429 = vadd.xlane.f32.xlu0 %v2428
  %v2430 = vpop.xlane.xlu0 %2429
  %v2431 = vsel %vm2346, %v2294, 0.0
  %v2432 = vadd.f32 %v2292, %v2431
  %2433 = vadd.xlane.f32.xlu0 %v2432
  %v2434 = vpop.xlane.xlu0 %2433
  %v2435 = vsel %vm2346, %v2300, 0.0
  %v2436 = vadd.f32 %v2298, %v2435
  %2437 = vadd.xlane.f32.xlu0 %v2436
  %v2438 = vpop.xlane.xlu0 %2437
  %v2439 = vsel %vm2346, %v2304, 0.0
  %v2440 = vadd.f32 %v2302, %v2439
  %2441 = vadd.xlane.f32.xlu0 %v2440
  %v2442 = vpop.xlane.xlu0 %2441
  %v2443 = vsel %vm2346, %v2310, 0.0
  %v2444 = vadd.f32 %v2308, %v2443
  %2445 = vadd.xlane.f32.xlu0 %v2444
  %v2446 = vpop.xlane.xlu0 %2445
  %v2447 = vsel %vm2346, %v2314, 0.0
  %v2448 = vadd.f32 %v2312, %v2447
  %2449 = vadd.xlane.f32.xlu0 %v2448
  %v2450 = vpop.xlane.xlu0 %2449
  %v2451 = vsel %vm2346, %v2320, 0.0
  %v2452 = vadd.f32 %v2318, %v2451
  %2453 = vadd.xlane.f32.xlu0 %v2452
  %v2454 = vpop.xlane.xlu0 %2453
  %v2455 = vsel %vm2346, %v2324, 0.0
  %v2456 = vadd.f32 %v2322, %v2455
  %2457 = vadd.xlane.f32.xlu0 %v2456
  %v2458 = vpop.xlane.xlu0 %2457
  %v2459 = vsel %vm2346, %v2330, 0.0
  %v2460 = vadd.f32 %v2328, %v2459
  %2461 = vadd.xlane.f32.xlu0 %v2460
  %v2462 = vpop.xlane.xlu0 %2461
  %v2463 = vsel %vm2346, %v2334, 0.0
  %v2464 = vadd.f32 %v2332, %v2463
  %2465 = vadd.xlane.f32.xlu0 %v2464
  %v2466 = vpop.xlane.xlu0 %2465
  %v2467 = vsel %vm2346, %v2340, 0.0
  %v2468 = vadd.f32 %v2338, %v2467
  %2469 = vadd.xlane.f32.xlu0 %v2468
  %v2470 = vpop.xlane.xlu0 %2469
  %v2471 = vsel %vm2346, %v2344, 0.0
  %v2472 = vadd.f32 %v2342, %v2471
  %2473 = vadd.xlane.f32.xlu0 %v2472
  %v2474 = vpop.xlane.xlu0 %2473
  %v2475 = vrcp.pop 192.0
  %v2476 = vmul.f32 %v2350, %v2475
  %v2477 = vmul.f32 %v2354, %v2475
  %v2478 = vmul.f32 %v2358, %v2475
  %v2479 = vmul.f32 %v2362, %v2475
  %v2480 = vmul.f32 %v2366, %v2475
  %v2481 = vmul.f32 %v2370, %v2475
  %v2482 = vmul.f32 %v2374, %v2475
  %v2483 = vmul.f32 %v2378, %v2475
  %v2484 = vmul.f32 %v2382, %v2475
  %v2485 = vmul.f32 %v2386, %v2475
  %v2486 = vmul.f32 %v2390, %v2475
  %v2487 = vmul.f32 %v2394, %v2475
  %v2488 = vmul.f32 %v2398, %v2475
  %v2489 = vmul.f32 %v2402, %v2475
  %v2490 = vmul.f32 %v2406, %v2475
  %v2491 = vmul.f32 %v2410, %v2475
  %v2492 = vmul.f32 %v2414, %v2475
  %v2493 = vmul.f32 %v2418, %v2475
  %v2494 = vmul.f32 %v2422, %v2475
  %v2495 = vmul.f32 %v2426, %v2475
  %v2496 = vmul.f32 %v2430, %v2475
  %v2497 = vmul.f32 %v2434, %v2475
  %v2498 = vmul.f32 %v2438, %v2475
  %v2499 = vmul.f32 %v2442, %v2475
  %v2500 = vmul.f32 %v2446, %v2475
  %v2501 = vmul.f32 %v2450, %v2475
  %v2502 = vmul.f32 %v2454, %v2475
  %v2503 = vmul.f32 %v2458, %v2475
  %v2504 = vmul.f32 %v2462, %v2475
  %v2505 = vmul.f32 %v2466, %v2475
  %v2506 = vmul.f32 %v2470, %v2475
  %v2507 = vmul.f32 %v2474, %v2475
  %v2508 = vsub.f32 %v2188, %v2476
  %v2509 = vsub.f32 %v2190, %v2476
  %v2510 = vsub.f32 %v2192, %v2477
  %v2511 = vsub.f32 %v2194, %v2477
  %v2512 = vsub.f32 %v2198, %v2478
  %v2513 = vsub.f32 %v2200, %v2478
  %v2514 = vsub.f32 %v2202, %v2479
  %v2515 = vsub.f32 %v2204, %v2479
  %v2516 = vsub.f32 %v2208, %v2480
  %v2517 = vsub.f32 %v2210, %v2480
  %v2518 = vsub.f32 %v2212, %v2481
  %v2519 = vsub.f32 %v2214, %v2481
  %v2520 = vsub.f32 %v2218, %v2482
  %v2521 = vsub.f32 %v2220, %v2482
  %v2522 = vsub.f32 %v2222, %v2483
  %v2523 = vsub.f32 %v2224, %v2483
  %v2524 = vsub.f32 %v2228, %v2484
  %v2525 = vsub.f32 %v2230, %v2484
  %v2526 = vsub.f32 %v2232, %v2485
  %v2527 = vsub.f32 %v2234, %v2485
  %v2528 = vsub.f32 %v2238, %v2486
  %v2529 = vsub.f32 %v2240, %v2486
  %v2530 = vsub.f32 %v2242, %v2487
  %v2531 = vsub.f32 %v2244, %v2487
  %v2532 = vsub.f32 %v2248, %v2488
  %v2533 = vsub.f32 %v2250, %v2488
  %v2534 = vsub.f32 %v2252, %v2489
  %v2535 = vsub.f32 %v2254, %v2489
  %v2536 = vsub.f32 %v2258, %v2490
  %v2537 = vsub.f32 %v2260, %v2490
  %v2538 = vsub.f32 %v2262, %v2491
  %v2539 = vsub.f32 %v2264, %v2491
  %v2540 = vsub.f32 %v2268, %v2492
  %v2541 = vsub.f32 %v2270, %v2492
  %v2542 = vsub.f32 %v2272, %v2493
  %v2543 = vsub.f32 %v2274, %v2493
  %v2544 = vsub.f32 %v2278, %v2494
  %v2545 = vsub.f32 %v2280, %v2494
  %v2546 = vsub.f32 %v2282, %v2495
  %v2547 = vsub.f32 %v2284, %v2495
  %v2548 = vsub.f32 %v2288, %v2496
  %v2549 = vsub.f32 %v2290, %v2496
  %v2550 = vsub.f32 %v2292, %v2497
  %v2551 = vsub.f32 %v2294, %v2497
  %v2552 = vsub.f32 %v2298, %v2498
  %v2553 = vsub.f32 %v2300, %v2498
  %v2554 = vsub.f32 %v2302, %v2499
  %v2555 = vsub.f32 %v2304, %v2499
  %v2556 = vsub.f32 %v2308, %v2500
  %v2557 = vsub.f32 %v2310, %v2500
  %v2558 = vsub.f32 %v2312, %v2501
  %v2559 = vsub.f32 %v2314, %v2501
  %v2560 = vsub.f32 %v2318, %v2502
  %v2561 = vsub.f32 %v2320, %v2502
  %v2562 = vsub.f32 %v2322, %v2503
  %v2563 = vsub.f32 %v2324, %v2503
  %v2564 = vsub.f32 %v2328, %v2504
  %v2565 = vsub.f32 %v2330, %v2504
  %v2566 = vsub.f32 %v2332, %v2505
  %v2567 = vsub.f32 %v2334, %v2505
  %v2568 = vsub.f32 %v2338, %v2506
  %v2569 = vsub.f32 %v2340, %v2506
  %v2570 = vsub.f32 %v2342, %v2507
  %v2571 = vsub.f32 %v2344, %v2507
  %v2572 = vmul.f32 %v2508, %v2508
  %v2573 = vmul.f32 %v2509, %v2509
  %v2574 = vmul.f32 %v2510, %v2510
  %v2575 = vmul.f32 %v2511, %v2511
  %v2576 = vmul.f32 %v2512, %v2512
  %v2577 = vmul.f32 %v2513, %v2513
  %v2578 = vmul.f32 %v2514, %v2514
  %v2579 = vmul.f32 %v2515, %v2515
  %v2580 = vmul.f32 %v2516, %v2516
  %v2581 = vmul.f32 %v2517, %v2517
  %v2582 = vmul.f32 %v2518, %v2518
  %v2583 = vmul.f32 %v2519, %v2519
  %v2584 = vmul.f32 %v2520, %v2520
  %v2585 = vmul.f32 %v2521, %v2521
  %v2586 = vmul.f32 %v2522, %v2522
  %v2587 = vmul.f32 %v2523, %v2523
  %v2588 = vmul.f32 %v2524, %v2524
  %v2589 = vmul.f32 %v2525, %v2525
  %v2590 = vmul.f32 %v2526, %v2526
  %v2591 = vmul.f32 %v2527, %v2527
  %v2592 = vmul.f32 %v2528, %v2528
  %v2593 = vmul.f32 %v2529, %v2529
  %v2594 = vmul.f32 %v2530, %v2530
  %v2595 = vmul.f32 %v2531, %v2531
  %v2596 = vmul.f32 %v2532, %v2532
  %v2597 = vmul.f32 %v2533, %v2533
  %v2598 = vmul.f32 %v2534, %v2534
  %v2599 = vmul.f32 %v2535, %v2535
  %v2600 = vmul.f32 %v2536, %v2536
  %v2601 = vmul.f32 %v2537, %v2537
  %v2602 = vmul.f32 %v2538, %v2538
  %v2603 = vmul.f32 %v2539, %v2539
  %v2604 = vmul.f32 %v2540, %v2540
  %v2605 = vmul.f32 %v2541, %v2541
  %v2606 = vmul.f32 %v2542, %v2542
  %v2607 = vmul.f32 %v2543, %v2543
  %v2608 = vmul.f32 %v2544, %v2544
  %v2609 = vmul.f32 %v2545, %v2545
  %v2610 = vmul.f32 %v2546, %v2546
  %v2611 = vmul.f32 %v2547, %v2547
  %v2612 = vmul.f32 %v2548, %v2548
  %v2613 = vmul.f32 %v2549, %v2549
  %v2614 = vmul.f32 %v2550, %v2550
  %v2615 = vmul.f32 %v2551, %v2551
  %v2616 = vmul.f32 %v2552, %v2552
  %v2617 = vmul.f32 %v2553, %v2553
  %v2618 = vmul.f32 %v2554, %v2554
  %v2619 = vmul.f32 %v2555, %v2555
  %v2620 = vmul.f32 %v2556, %v2556
  %v2621 = vmul.f32 %v2557, %v2557
  %v2622 = vmul.f32 %v2558, %v2558
  %v2623 = vmul.f32 %v2559, %v2559
  %v2624 = vmul.f32 %v2560, %v2560
  %v2625 = vmul.f32 %v2561, %v2561
  %v2626 = vmul.f32 %v2562, %v2562
  %v2627 = vmul.f32 %v2563, %v2563
  %v2628 = vmul.f32 %v2564, %v2564
  %v2629 = vmul.f32 %v2565, %v2565
  %v2630 = vmul.f32 %v2566, %v2566
  %v2631 = vmul.f32 %v2567, %v2567
  %v2632 = vmul.f32 %v2568, %v2568
  %v2633 = vmul.f32 %v2569, %v2569
  %v2634 = vmul.f32 %v2570, %v2570
  %v2635 = vmul.f32 %v2571, %v2571
  %v2636 = vsel %vm2346, %v2573, 0.0
  %v2637 = vadd.f32 %v2572, %v2636
  %2638 = vadd.xlane.f32.xlu0 %v2637
  %v2639 = vpop.xlane.xlu0 %2638
  %v2640 = vsel %vm2346, %v2575, 0.0
  %v2641 = vadd.f32 %v2574, %v2640
  %2642 = vadd.xlane.f32.xlu0 %v2641
  %v2643 = vpop.xlane.xlu0 %2642
  %v2644 = vsel %vm2346, %v2577, 0.0
  %v2645 = vadd.f32 %v2576, %v2644
  %2646 = vadd.xlane.f32.xlu0 %v2645
  %v2647 = vpop.xlane.xlu0 %2646
  %v2648 = vsel %vm2346, %v2579, 0.0
  %v2649 = vadd.f32 %v2578, %v2648
  %2650 = vadd.xlane.f32.xlu0 %v2649
  %v2651 = vpop.xlane.xlu0 %2650
  %v2652 = vsel %vm2346, %v2581, 0.0
  %v2653 = vadd.f32 %v2580, %v2652
  %2654 = vadd.xlane.f32.xlu0 %v2653
  %v2655 = vpop.xlane.xlu0 %2654
  %v2656 = vsel %vm2346, %v2583, 0.0
  %v2657 = vadd.f32 %v2582, %v2656
  %2658 = vadd.xlane.f32.xlu0 %v2657
  %v2659 = vpop.xlane.xlu0 %2658
  %v2660 = vsel %vm2346, %v2585, 0.0
  %v2661 = vadd.f32 %v2584, %v2660
  %2662 = vadd.xlane.f32.xlu0 %v2661
  %v2663 = vpop.xlane.xlu0 %2662
  %v2664 = vsel %vm2346, %v2587, 0.0
  %v2665 = vadd.f32 %v2586, %v2664
  %2666 = vadd.xlane.f32.xlu0 %v2665
  %v2667 = vpop.xlane.xlu0 %2666
  %v2668 = vsel %vm2346, %v2589, 0.0
  %v2669 = vadd.f32 %v2588, %v2668
  %2670 = vadd.xlane.f32.xlu0 %v2669
  %v2671 = vpop.xlane.xlu0 %2670
  %v2672 = vsel %vm2346, %v2591, 0.0
  %v2673 = vadd.f32 %v2590, %v2672
  %2674 = vadd.xlane.f32.xlu0 %v2673
  %v2675 = vpop.xlane.xlu0 %2674
  %v2676 = vsel %vm2346, %v2593, 0.0
  %v2677 = vadd.f32 %v2592, %v2676
  %2678 = vadd.xlane.f32.xlu0 %v2677
  %v2679 = vpop.xlane.xlu0 %2678
  %v2680 = vsel %vm2346, %v2595, 0.0
  %v2681 = vadd.f32 %v2594, %v2680
  %2682 = vadd.xlane.f32.xlu0 %v2681
  %v2683 = vpop.xlane.xlu0 %2682
  %v2684 = vsel %vm2346, %v2597, 0.0
  %v2685 = vadd.f32 %v2596, %v2684
  %2686 = vadd.xlane.f32.xlu0 %v2685
  %v2687 = vpop.xlane.xlu0 %2686
  %v2688 = vsel %vm2346, %v2599, 0.0
  %v2689 = vadd.f32 %v2598, %v2688
  %2690 = vadd.xlane.f32.xlu0 %v2689
  %v2691 = vpop.xlane.xlu0 %2690
  %v2692 = vsel %vm2346, %v2601, 0.0
  %v2693 = vadd.f32 %v2600, %v2692
  %2694 = vadd.xlane.f32.xlu0 %v2693
  %v2695 = vpop.xlane.xlu0 %2694
  %v2696 = vsel %vm2346, %v2603, 0.0
  %v2697 = vadd.f32 %v2602, %v2696
  %2698 = vadd.xlane.f32.xlu0 %v2697
  %v2699 = vpop.xlane.xlu0 %2698
  %v2700 = vsel %vm2346, %v2605, 0.0
  %v2701 = vadd.f32 %v2604, %v2700
  %2702 = vadd.xlane.f32.xlu0 %v2701
  %v2703 = vpop.xlane.xlu0 %2702
  %v2704 = vsel %vm2346, %v2607, 0.0
  %v2705 = vadd.f32 %v2606, %v2704
  %2706 = vadd.xlane.f32.xlu0 %v2705
  %v2707 = vpop.xlane.xlu0 %2706
  %v2708 = vsel %vm2346, %v2609, 0.0
  %v2709 = vadd.f32 %v2608, %v2708
  %2710 = vadd.xlane.f32.xlu0 %v2709
  %v2711 = vpop.xlane.xlu0 %2710
  %v2712 = vsel %vm2346, %v2611, 0.0
  %v2713 = vadd.f32 %v2610, %v2712
  %2714 = vadd.xlane.f32.xlu0 %v2713
  %v2715 = vpop.xlane.xlu0 %2714
  %v2716 = vsel %vm2346, %v2613, 0.0
  %v2717 = vadd.f32 %v2612, %v2716
  %2718 = vadd.xlane.f32.xlu0 %v2717
  %v2719 = vpop.xlane.xlu0 %2718
  %v2720 = vsel %vm2346, %v2615, 0.0
  %v2721 = vadd.f32 %v2614, %v2720
  %2722 = vadd.xlane.f32.xlu0 %v2721
  %v2723 = vpop.xlane.xlu0 %2722
  %v2724 = vsel %vm2346, %v2617, 0.0
  %v2725 = vadd.f32 %v2616, %v2724
  %2726 = vadd.xlane.f32.xlu0 %v2725
  %v2727 = vpop.xlane.xlu0 %2726
  %v2728 = vsel %vm2346, %v2619, 0.0
  %v2729 = vadd.f32 %v2618, %v2728
  %2730 = vadd.xlane.f32.xlu0 %v2729
  %v2731 = vpop.xlane.xlu0 %2730
  %v2732 = vsel %vm2346, %v2621, 0.0
  %v2733 = vadd.f32 %v2620, %v2732
  %2734 = vadd.xlane.f32.xlu0 %v2733
  %v2735 = vpop.xlane.xlu0 %2734
  %v2736 = vsel %vm2346, %v2623, 0.0
  %v2737 = vadd.f32 %v2622, %v2736
  %2738 = vadd.xlane.f32.xlu0 %v2737
  %v2739 = vpop.xlane.xlu0 %2738
  %v2740 = vsel %vm2346, %v2625, 0.0
  %v2741 = vadd.f32 %v2624, %v2740
  %2742 = vadd.xlane.f32.xlu0 %v2741
  %v2743 = vpop.xlane.xlu0 %2742
  %v2744 = vsel %vm2346, %v2627, 0.0
  %v2745 = vadd.f32 %v2626, %v2744
  %2746 = vadd.xlane.f32.xlu0 %v2745
  %v2747 = vpop.xlane.xlu0 %2746
  %v2748 = vsel %vm2346, %v2629, 0.0
  %v2749 = vadd.f32 %v2628, %v2748
  %2750 = vadd.xlane.f32.xlu0 %v2749
  %v2751 = vpop.xlane.xlu0 %2750
  %v2752 = vsel %vm2346, %v2631, 0.0
  %v2753 = vadd.f32 %v2630, %v2752
  %2754 = vadd.xlane.f32.xlu0 %v2753
  %v2755 = vpop.xlane.xlu0 %2754
  %v2756 = vsel %vm2346, %v2633, 0.0
  %v2757 = vadd.f32 %v2632, %v2756
  %2758 = vadd.xlane.f32.xlu0 %v2757
  %v2759 = vpop.xlane.xlu0 %2758
  %v2760 = vsel %vm2346, %v2635, 0.0
  %v2761 = vadd.f32 %v2634, %v2760
  %2762 = vadd.xlane.f32.xlu0 %v2761
  %v2763 = vpop.xlane.xlu0 %2762
  %v2764 = vmul.f32 %v2639, %v2475
  %v2765 = vmul.f32 %v2643, %v2475
  %v2766 = vmul.f32 %v2647, %v2475
  %v2767 = vmul.f32 %v2651, %v2475
  %v2768 = vmul.f32 %v2655, %v2475
  %v2769 = vmul.f32 %v2659, %v2475
  %v2770 = vmul.f32 %v2663, %v2475
  %v2771 = vmul.f32 %v2667, %v2475
  %v2772 = vmul.f32 %v2671, %v2475
  %v2773 = vmul.f32 %v2675, %v2475
  %v2774 = vmul.f32 %v2679, %v2475
  %v2775 = vmul.f32 %v2683, %v2475
  %v2776 = vmul.f32 %v2687, %v2475
  %v2777 = vmul.f32 %v2691, %v2475
  %v2778 = vmul.f32 %v2695, %v2475
  %v2779 = vmul.f32 %v2699, %v2475
  %v2780 = vmul.f32 %v2703, %v2475
  %v2781 = vmul.f32 %v2707, %v2475
  %v2782 = vmul.f32 %v2711, %v2475
  %v2783 = vmul.f32 %v2715, %v2475
  %v2784 = vmul.f32 %v2719, %v2475
  %v2785 = vmul.f32 %v2723, %v2475
  %v2786 = vmul.f32 %v2727, %v2475
  %v2787 = vmul.f32 %v2731, %v2475
  %v2788 = vmul.f32 %v2735, %v2475
  %v2789 = vmul.f32 %v2739, %v2475
  %v2790 = vmul.f32 %v2743, %v2475
  %v2791 = vmul.f32 %v2747, %v2475
  %v2792 = vmul.f32 %v2751, %v2475
  %v2793 = vmul.f32 %v2755, %v2475
  %v2794 = vmul.f32 %v2759, %v2475
  %v2795 = vmul.f32 %v2763, %v2475
  %v2796 = vadd.f32 %v2764, 1e-05
  %v2797 = vadd.f32 %v2765, 1e-05
  %v2798 = vadd.f32 %v2766, 1e-05
  %v2799 = vadd.f32 %v2767, 1e-05
  %v2800 = vadd.f32 %v2768, 1e-05
  %v2801 = vadd.f32 %v2769, 1e-05
  %v2802 = vadd.f32 %v2770, 1e-05
  %v2803 = vadd.f32 %v2771, 1e-05
  %v2804 = vadd.f32 %v2772, 1e-05
  %v2805 = vadd.f32 %v2773, 1e-05
  %v2806 = vadd.f32 %v2774, 1e-05
  %v2807 = vadd.f32 %v2775, 1e-05
  %v2808 = vadd.f32 %v2776, 1e-05
  %v2809 = vadd.f32 %v2777, 1e-05
  %v2810 = vadd.f32 %v2778, 1e-05
  %v2811 = vadd.f32 %v2779, 1e-05
  %v2812 = vadd.f32 %v2780, 1e-05
  %v2813 = vadd.f32 %v2781, 1e-05
  %v2814 = vadd.f32 %v2782, 1e-05
  %v2815 = vadd.f32 %v2783, 1e-05
  %v2816 = vadd.f32 %v2784, 1e-05
  %v2817 = vadd.f32 %v2785, 1e-05
  %v2818 = vadd.f32 %v2786, 1e-05
  %v2819 = vadd.f32 %v2787, 1e-05
  %v2820 = vadd.f32 %v2788, 1e-05
  %v2821 = vadd.f32 %v2789, 1e-05
  %v2822 = vadd.f32 %v2790, 1e-05
  %v2823 = vadd.f32 %v2791, 1e-05
  %v2824 = vadd.f32 %v2792, 1e-05
  %v2825 = vadd.f32 %v2793, 1e-05
  %v2826 = vadd.f32 %v2794, 1e-05
  %v2827 = vadd.f32 %v2795, 1e-05
  %v2828 = vrsqrt.pop %v2796
  %v2829 = vrsqrt.pop %v2797
  %v2830 = vrsqrt.pop %v2798
  %v2831 = vrsqrt.pop %v2799
  %v2832 = vrsqrt.pop %v2800
  %v2833 = vrsqrt.pop %v2801
  %v2834 = vrsqrt.pop %v2802
  %v2835 = vrsqrt.pop %v2803
  %v2836 = vrsqrt.pop %v2804
  %v2837 = vrsqrt.pop %v2805
  %v2838 = vrsqrt.pop %v2806
  %v2839 = vrsqrt.pop %v2807
  %v2840 = vrsqrt.pop %v2808
  %v2841 = vrsqrt.pop %v2809
  %v2842 = vrsqrt.pop %v2810
  %v2843 = vrsqrt.pop %v2811
  %v2844 = vrsqrt.pop %v2812
  %v2845 = vrsqrt.pop %v2813
  %v2846 = vrsqrt.pop %v2814
  %v2847 = vrsqrt.pop %v2815
  %v2848 = vrsqrt.pop %v2816
  %v2849 = vrsqrt.pop %v2817
  %v2850 = vrsqrt.pop %v2818
  %v2851 = vrsqrt.pop %v2819
  %v2852 = vrsqrt.pop %v2820
  %v2853 = vrsqrt.pop %v2821
  %v2854 = vrsqrt.pop %v2822
  %v2855 = vrsqrt.pop %v2823
  %v2856 = vrsqrt.pop %v2824
  %v2857 = vrsqrt.pop %v2825
  %v2858 = vrsqrt.pop %v2826
  %v2859 = vrsqrt.pop %v2827
  %v2860 = vmul.f32 %v2508, %v2828
  %v2861 = vmul.f32 %v2509, %v2828
  %v2862 = vmul.f32 %v2510, %v2829
  %v2863 = vmul.f32 %v2511, %v2829
  %v2864 = vmul.f32 %v2512, %v2830
  %v2865 = vmul.f32 %v2513, %v2830
  %v2866 = vmul.f32 %v2514, %v2831
  %v2867 = vmul.f32 %v2515, %v2831
  %v2868 = vmul.f32 %v2516, %v2832
  %v2869 = vmul.f32 %v2517, %v2832
  %v2870 = vmul.f32 %v2518, %v2833
  %v2871 = vmul.f32 %v2519, %v2833
  %v2872 = vmul.f32 %v2520, %v2834
  %v2873 = vmul.f32 %v2521, %v2834
  %v2874 = vmul.f32 %v2522, %v2835
  %v2875 = vmul.f32 %v2523, %v2835
  %v2876 = vmul.f32 %v2524, %v2836
  %v2877 = vmul.f32 %v2525, %v2836
  %v2878 = vmul.f32 %v2526, %v2837
  %v2879 = vmul.f32 %v2527, %v2837
  %v2880 = vmul.f32 %v2528, %v2838
  %v2881 = vmul.f32 %v2529, %v2838
  %v2882 = vmul.f32 %v2530, %v2839
  %v2883 = vmul.f32 %v2531, %v2839
  %v2884 = vmul.f32 %v2532, %v2840
  %v2885 = vmul.f32 %v2533, %v2840
  %v2886 = vmul.f32 %v2534, %v2841
  %v2887 = vmul.f32 %v2535, %v2841
  %v2888 = vmul.f32 %v2536, %v2842
  %v2889 = vmul.f32 %v2537, %v2842
  %v2890 = vmul.f32 %v2538, %v2843
  %v2891 = vmul.f32 %v2539, %v2843
  %v2892 = vmul.f32 %v2540, %v2844
  %v2893 = vmul.f32 %v2541, %v2844
  %v2894 = vmul.f32 %v2542, %v2845
  %v2895 = vmul.f32 %v2543, %v2845
  %v2896 = vmul.f32 %v2544, %v2846
  %v2897 = vmul.f32 %v2545, %v2846
  %v2898 = vmul.f32 %v2546, %v2847
  %v2899 = vmul.f32 %v2547, %v2847
  %v2900 = vmul.f32 %v2548, %v2848
  %v2901 = vmul.f32 %v2549, %v2848
  %v2902 = vmul.f32 %v2550, %v2849
  %v2903 = vmul.f32 %v2551, %v2849
  %v2904 = vmul.f32 %v2552, %v2850
  %v2905 = vmul.f32 %v2553, %v2850
  %v2906 = vmul.f32 %v2554, %v2851
  %v2907 = vmul.f32 %v2555, %v2851
  %v2908 = vmul.f32 %v2556, %v2852
  %v2909 = vmul.f32 %v2557, %v2852
  %v2910 = vmul.f32 %v2558, %v2853
  %v2911 = vmul.f32 %v2559, %v2853
  %v2912 = vmul.f32 %v2560, %v2854
  %v2913 = vmul.f32 %v2561, %v2854
  %v2914 = vmul.f32 %v2562, %v2855
  %v2915 = vmul.f32 %v2563, %v2855
  %v2916 = vmul.f32 %v2564, %v2856
  %v2917 = vmul.f32 %v2565, %v2856
  %v2918 = vmul.f32 %v2566, %v2857
  %v2919 = vmul.f32 %v2567, %v2857
  %v2920 = vmul.f32 %v2568, %v2858
  %v2921 = vmul.f32 %v2569, %v2858
  %v2922 = vmul.f32 %v2570, %v2859
  %v2923 = vmul.f32 %v2571, %v2859
  %v2924 = vld [vmem:[%s7 + $0x8] sm:$0x3]
  %v2926 = vlaneseq
  %v2927 = vshrl.u32 %v2926, 7
  %v2928 = vsub.s32 0, %v2927
  %v2929 = vrot.slane %v2924, %v2928
  %v2930 = vlaneseq
  %v2931 = vshrl.u32 %v2930, 7
  %v2932 = vsub.s32 1, %v2931
  %v2933 = vrot.slane %v2924, %v2932
  %v2936 = vmul.f32 %v2860, %v2929
  %v2937 = vmul.f32 %v2861, %v2933
  %v2938 = vmul.f32 %v2862, %v2929
  %v2939 = vmul.f32 %v2863, %v2933
  %v2940 = vmul.f32 %v2864, %v2929
  %v2941 = vmul.f32 %v2865, %v2933
  %v2942 = vmul.f32 %v2866, %v2929
  %v2943 = vmul.f32 %v2867, %v2933
  %v2944 = vmul.f32 %v2868, %v2929
  %v2945 = vmul.f32 %v2869, %v2933
  %v2946 = vmul.f32 %v2870, %v2929
  %v2947 = vmul.f32 %v2871, %v2933
  %v2948 = vmul.f32 %v2872, %v2929
  %v2949 = vmul.f32 %v2873, %v2933
  %v2950 = vmul.f32 %v2874, %v2929
  %v2951 = vmul.f32 %v2875, %v2933
  %v2952 = vmul.f32 %v2876, %v2929
  %v2953 = vmul.f32 %v2877, %v2933
  %v2954 = vmul.f32 %v2878, %v2929
  %v2955 = vmul.f32 %v2879, %v2933
  %v2956 = vmul.f32 %v2880, %v2929
  %v2957 = vmul.f32 %v2881, %v2933
  %v2958 = vmul.f32 %v2882, %v2929
  %v2959 = vmul.f32 %v2883, %v2933
  %v2960 = vmul.f32 %v2884, %v2929
  %v2961 = vmul.f32 %v2885, %v2933
  %v2962 = vmul.f32 %v2886, %v2929
  %v2963 = vmul.f32 %v2887, %v2933
  %v2964 = vmul.f32 %v2888, %v2929
  %v2965 = vmul.f32 %v2889, %v2933
  %v2966 = vmul.f32 %v2890, %v2929
  %v2967 = vmul.f32 %v2891, %v2933
  %v2968 = vmul.f32 %v2892, %v2929
  %v2969 = vmul.f32 %v2893, %v2933
  %v2970 = vmul.f32 %v2894, %v2929
  %v2971 = vmul.f32 %v2895, %v2933
  %v2972 = vmul.f32 %v2896, %v2929
  %v2973 = vmul.f32 %v2897, %v2933
  %v2974 = vmul.f32 %v2898, %v2929
  %v2975 = vmul.f32 %v2899, %v2933
  %v2976 = vmul.f32 %v2900, %v2929
  %v2977 = vmul.f32 %v2901, %v2933
  %v2978 = vmul.f32 %v2902, %v2929
  %v2979 = vmul.f32 %v2903, %v2933
  %v2980 = vmul.f32 %v2904, %v2929
  %v2981 = vmul.f32 %v2905, %v2933
  %v2982 = vmul.f32 %v2906, %v2929
  %v2983 = vmul.f32 %v2907, %v2933
  %v2984 = vmul.f32 %v2908, %v2929
  %v2985 = vmul.f32 %v2909, %v2933
  %v2986 = vmul.f32 %v2910, %v2929
  %v2987 = vmul.f32 %v2911, %v2933
  %v2988 = vmul.f32 %v2912, %v2929
  %v2989 = vmul.f32 %v2913, %v2933
  %v2990 = vmul.f32 %v2914, %v2929
  %v2991 = vmul.f32 %v2915, %v2933
  %v2992 = vmul.f32 %v2916, %v2929
  %v2993 = vmul.f32 %v2917, %v2933
  %v2994 = vmul.f32 %v2918, %v2929
  %v2995 = vmul.f32 %v2919, %v2933
  %v2996 = vmul.f32 %v2920, %v2929
  %v2997 = vmul.f32 %v2921, %v2933
  %v2998 = vmul.f32 %v2922, %v2929
  %v2999 = vmul.f32 %v2923, %v2933
  %v3000 = vld [vmem:[%s7 + $0xa] sm:$0x3]
  %v3002 = vlaneseq
  %v3003 = vshrl.u32 %v3002, 7
  %v3004 = vsub.s32 0, %v3003
  %v3005 = vrot.slane %v3000, %v3004
  %v3006 = vlaneseq
  %v3007 = vshrl.u32 %v3006, 7
  %v3008 = vsub.s32 1, %v3007
  %v3009 = vrot.slane %v3000, %v3008
  %v3012 = vadd.f32 %v2936, %v3005
  %v3013 = vadd.f32 %v2937, %v3009
  %v3014 = vadd.f32 %v2938, %v3005
  %v3015 = vadd.f32 %v2939, %v3009
  %v3016 = vadd.f32 %v2940, %v3005
  %v3017 = vadd.f32 %v2941, %v3009
  %v3018 = vadd.f32 %v2942, %v3005
  %v3019 = vadd.f32 %v2943, %v3009
  %v3020 = vadd.f32 %v2944, %v3005
  %v3021 = vadd.f32 %v2945, %v3009
  %v3022 = vadd.f32 %v2946, %v3005
  %v3023 = vadd.f32 %v2947, %v3009
  %v3024 = vadd.f32 %v2948, %v3005
  %v3025 = vadd.f32 %v2949, %v3009
  %v3026 = vadd.f32 %v2950, %v3005
  %v3027 = vadd.f32 %v2951, %v3009
  %v3028 = vadd.f32 %v2952, %v3005
  %v3029 = vadd.f32 %v2953, %v3009
  %v3030 = vadd.f32 %v2954, %v3005
  %v3031 = vadd.f32 %v2955, %v3009
  %v3032 = vadd.f32 %v2956, %v3005
  %v3033 = vadd.f32 %v2957, %v3009
  %v3034 = vadd.f32 %v2958, %v3005
  %v3035 = vadd.f32 %v2959, %v3009
  %v3036 = vadd.f32 %v2960, %v3005
  %v3037 = vadd.f32 %v2961, %v3009
  %v3038 = vadd.f32 %v2962, %v3005
  %v3039 = vadd.f32 %v2963, %v3009
  %v3040 = vadd.f32 %v2964, %v3005
  %v3041 = vadd.f32 %v2965, %v3009
  %v3042 = vadd.f32 %v2966, %v3005
  %v3043 = vadd.f32 %v2967, %v3009
  %v3044 = vadd.f32 %v2968, %v3005
  %v3045 = vadd.f32 %v2969, %v3009
  %v3046 = vadd.f32 %v2970, %v3005
  %v3047 = vadd.f32 %v2971, %v3009
  %v3048 = vadd.f32 %v2972, %v3005
  %v3049 = vadd.f32 %v2973, %v3009
  %v3050 = vadd.f32 %v2974, %v3005
  %v3051 = vadd.f32 %v2975, %v3009
  %v3052 = vadd.f32 %v2976, %v3005
  %v3053 = vadd.f32 %v2977, %v3009
  %v3054 = vadd.f32 %v2978, %v3005
  %v3055 = vadd.f32 %v2979, %v3009
  %v3056 = vadd.f32 %v2980, %v3005
  %v3057 = vadd.f32 %v2981, %v3009
  %v3058 = vadd.f32 %v2982, %v3005
  %v3059 = vadd.f32 %v2983, %v3009
  %v3060 = vadd.f32 %v2984, %v3005
  %v3061 = vadd.f32 %v2985, %v3009
  %v3062 = vadd.f32 %v2986, %v3005
  %v3063 = vadd.f32 %v2987, %v3009
  %v3064 = vadd.f32 %v2988, %v3005
  %v3065 = vadd.f32 %v2989, %v3009
  %v3066 = vadd.f32 %v2990, %v3005
  %v3067 = vadd.f32 %v2991, %v3009
  %v3068 = vadd.f32 %v2992, %v3005
  %v3069 = vadd.f32 %v2993, %v3009
  %v3070 = vadd.f32 %v2994, %v3005
  %v3071 = vadd.f32 %v2995, %v3009
  %v3072 = vadd.f32 %v2996, %v3005
  %v3073 = vadd.f32 %v2997, %v3009
  %v3074 = vadd.f32 %v2998, %v3005
  %v3075 = vadd.f32 %v2999, %v3009
  %v3076 = vmin.f32 %v3012, 20.0
  %v3077 = vmin.f32 %v3013, 20.0
  %v3078 = vmin.f32 %v3014, 20.0
  %v3079 = vmin.f32 %v3015, 20.0
  %v3080 = vmin.f32 %v3016, 20.0
  %v3081 = vmin.f32 %v3017, 20.0
  %v3082 = vmin.f32 %v3018, 20.0
  %v3083 = vmin.f32 %v3019, 20.0
  %v3084 = vmin.f32 %v3020, 20.0
  %v3085 = vmin.f32 %v3021, 20.0
  %v3086 = vmin.f32 %v3022, 20.0
  %v3087 = vmin.f32 %v3023, 20.0
  %v3088 = vmin.f32 %v3024, 20.0
  %v3089 = vmin.f32 %v3025, 20.0
  %v3090 = vmin.f32 %v3026, 20.0
  %v3091 = vmin.f32 %v3027, 20.0
  %v3092 = vmin.f32 %v3028, 20.0
  %v3093 = vmin.f32 %v3029, 20.0
  %v3094 = vmin.f32 %v3030, 20.0
  %v3095 = vmin.f32 %v3031, 20.0
  %v3096 = vmin.f32 %v3032, 20.0
  %v3097 = vmin.f32 %v3033, 20.0
  %v3098 = vmin.f32 %v3034, 20.0
  %v3099 = vmin.f32 %v3035, 20.0
  %v3100 = vmin.f32 %v3036, 20.0
  %v3101 = vmin.f32 %v3037, 20.0
  %v3102 = vmin.f32 %v3038, 20.0
  %v3103 = vmin.f32 %v3039, 20.0
  %v3104 = vmin.f32 %v3040, 20.0
  %v3105 = vmin.f32 %v3041, 20.0
  %v3106 = vmin.f32 %v3042, 20.0
  %v3107 = vmin.f32 %v3043, 20.0
  %v3108 = vmin.f32 %v3044, 20.0
  %v3109 = vmin.f32 %v3045, 20.0
  %v3110 = vmin.f32 %v3046, 20.0
  %v3111 = vmin.f32 %v3047, 20.0
  %v3112 = vmin.f32 %v3048, 20.0
  %v3113 = vmin.f32 %v3049, 20.0
  %v3114 = vmin.f32 %v3050, 20.0
  %v3115 = vmin.f32 %v3051, 20.0
  %v3116 = vmin.f32 %v3052, 20.0
  %v3117 = vmin.f32 %v3053, 20.0
  %v3118 = vmin.f32 %v3054, 20.0
  %v3119 = vmin.f32 %v3055, 20.0
  %v3120 = vmin.f32 %v3056, 20.0
  %v3121 = vmin.f32 %v3057, 20.0
  %v3122 = vmin.f32 %v3058, 20.0
  %v3123 = vmin.f32 %v3059, 20.0
  %v3124 = vmin.f32 %v3060, 20.0
  %v3125 = vmin.f32 %v3061, 20.0
  %v3126 = vmin.f32 %v3062, 20.0
  %v3127 = vmin.f32 %v3063, 20.0
  %v3128 = vmin.f32 %v3064, 20.0
  %v3129 = vmin.f32 %v3065, 20.0
  %v3130 = vmin.f32 %v3066, 20.0
  %v3131 = vmin.f32 %v3067, 20.0
  %v3132 = vmin.f32 %v3068, 20.0
  %v3133 = vmin.f32 %v3069, 20.0
  %v3134 = vmin.f32 %v3070, 20.0
  %v3135 = vmin.f32 %v3071, 20.0
  %v3136 = vmin.f32 %v3072, 20.0
  %v3137 = vmin.f32 %v3073, 20.0
  %v3138 = vmin.f32 %v3074, 20.0
  %v3139 = vmin.f32 %v3075, 20.0
  %v3140 = vmul.f32 %v3076, 1.442695
  %v3141 = vpow.pop %v3140
  %v3142 = vmul.f32 %v3077, 1.442695
  %v3143 = vpow.pop %v3142
  %v3144 = vmul.f32 %v3078, 1.442695
  %v3145 = vpow.pop %v3144
  %v3146 = vmul.f32 %v3079, 1.442695
  %v3147 = vpow.pop %v3146
  %v3148 = vmul.f32 %v3080, 1.442695
  %v3149 = vpow.pop %v3148
  %v3150 = vmul.f32 %v3081, 1.442695
  %v3151 = vpow.pop %v3150
  %v3152 = vmul.f32 %v3082, 1.442695
  %v3153 = vpow.pop %v3152
  %v3154 = vmul.f32 %v3083, 1.442695
  %v3155 = vpow.pop %v3154
  %v3156 = vmul.f32 %v3084, 1.442695
  %v3157 = vpow.pop %v3156
  %v3158 = vmul.f32 %v3085, 1.442695
  %v3159 = vpow.pop %v3158
  %v3160 = vmul.f32 %v3086, 1.442695
  %v3161 = vpow.pop %v3160
  %v3162 = vmul.f32 %v3087, 1.442695
  %v3163 = vpow.pop %v3162
  %v3164 = vmul.f32 %v3088, 1.442695
  %v3165 = vpow.pop %v3164
  %v3166 = vmul.f32 %v3089, 1.442695
  %v3167 = vpow.pop %v3166
  %v3168 = vmul.f32 %v3090, 1.442695
  %v3169 = vpow.pop %v3168
  %v3170 = vmul.f32 %v3091, 1.442695
  %v3171 = vpow.pop %v3170
  %v3172 = vmul.f32 %v3092, 1.442695
  %v3173 = vpow.pop %v3172
  %v3174 = vmul.f32 %v3093, 1.442695
  %v3175 = vpow.pop %v3174
  %v3176 = vmul.f32 %v3094, 1.442695
  %v3177 = vpow.pop %v3176
  %v3178 = vmul.f32 %v3095, 1.442695
  %v3179 = vpow.pop %v3178
  %v3180 = vmul.f32 %v3096, 1.442695
  %v3181 = vpow.pop %v3180
  %v3182 = vmul.f32 %v3097, 1.442695
  %v3183 = vpow.pop %v3182
  %v3184 = vmul.f32 %v3098, 1.442695
  %v3185 = vpow.pop %v3184
  %v3186 = vmul.f32 %v3099, 1.442695
  %v3187 = vpow.pop %v3186
  %v3188 = vmul.f32 %v3100, 1.442695
  %v3189 = vpow.pop %v3188
  %v3190 = vmul.f32 %v3101, 1.442695
  %v3191 = vpow.pop %v3190
  %v3192 = vmul.f32 %v3102, 1.442695
  %v3193 = vpow.pop %v3192
  %v3194 = vmul.f32 %v3103, 1.442695
  %v3195 = vpow.pop %v3194
  %v3196 = vmul.f32 %v3104, 1.442695
  %v3197 = vpow.pop %v3196
  %v3198 = vmul.f32 %v3105, 1.442695
  %v3199 = vpow.pop %v3198
  %v3200 = vmul.f32 %v3106, 1.442695
  %v3201 = vpow.pop %v3200
  %v3202 = vmul.f32 %v3107, 1.442695
  %v3203 = vpow.pop %v3202
  %v3204 = vmul.f32 %v3108, 1.442695
  %v3205 = vpow.pop %v3204
  %v3206 = vmul.f32 %v3109, 1.442695
  %v3207 = vpow.pop %v3206
  %v3208 = vmul.f32 %v3110, 1.442695
  %v3209 = vpow.pop %v3208
  %v3210 = vmul.f32 %v3111, 1.442695
  %v3211 = vpow.pop %v3210
  %v3212 = vmul.f32 %v3112, 1.442695
  %v3213 = vpow.pop %v3212
  %v3214 = vmul.f32 %v3113, 1.442695
  %v3215 = vpow.pop %v3214
  %v3216 = vmul.f32 %v3114, 1.442695
  %v3217 = vpow.pop %v3216
  %v3218 = vmul.f32 %v3115, 1.442695
  %v3219 = vpow.pop %v3218
  %v3220 = vmul.f32 %v3116, 1.442695
  %v3221 = vpow.pop %v3220
  %v3222 = vmul.f32 %v3117, 1.442695
  %v3223 = vpow.pop %v3222
  %v3224 = vmul.f32 %v3118, 1.442695
  %v3225 = vpow.pop %v3224
  %v3226 = vmul.f32 %v3119, 1.442695
  %v3227 = vpow.pop %v3226
  %v3228 = vmul.f32 %v3120, 1.442695
  %v3229 = vpow.pop %v3228
  %v3230 = vmul.f32 %v3121, 1.442695
  %v3231 = vpow.pop %v3230
  %v3232 = vmul.f32 %v3122, 1.442695
  %v3233 = vpow.pop %v3232
  %v3234 = vmul.f32 %v3123, 1.442695
  %v3235 = vpow.pop %v3234
  %v3236 = vmul.f32 %v3124, 1.442695
  %v3237 = vpow.pop %v3236
  %v3238 = vmul.f32 %v3125, 1.442695
  %v3239 = vpow.pop %v3238
  %v3240 = vmul.f32 %v3126, 1.442695
  %v3241 = vpow.pop %v3240
  %v3242 = vmul.f32 %v3127, 1.442695
  %v3243 = vpow.pop %v3242
  %v3244 = vmul.f32 %v3128, 1.442695
  %v3245 = vpow.pop %v3244
  %v3246 = vmul.f32 %v3129, 1.442695
  %v3247 = vpow.pop %v3246
  %v3248 = vmul.f32 %v3130, 1.442695
  %v3249 = vpow.pop %v3248
  %v3250 = vmul.f32 %v3131, 1.442695
  %v3251 = vpow.pop %v3250
  %v3252 = vmul.f32 %v3132, 1.442695
  %v3253 = vpow.pop %v3252
  %v3254 = vmul.f32 %v3133, 1.442695
  %v3255 = vpow.pop %v3254
  %v3256 = vmul.f32 %v3134, 1.442695
  %v3257 = vpow.pop %v3256
  %v3258 = vmul.f32 %v3135, 1.442695
  %v3259 = vpow.pop %v3258
  %v3260 = vmul.f32 %v3136, 1.442695
  %v3261 = vpow.pop %v3260
  %v3262 = vmul.f32 %v3137, 1.442695
  %v3263 = vpow.pop %v3262
  %v3264 = vmul.f32 %v3138, 1.442695
  %v3265 = vpow.pop %v3264
  %v3266 = vmul.f32 %v3139, 1.442695
  %v3267 = vpow.pop %v3266
  %v3268 = vadd.f32 %v3141, 1.0
  %v3269 = vadd.f32 %v3143, 1.0
  %v3270 = vadd.f32 %v3145, 1.0
  %v3271 = vadd.f32 %v3147, 1.0
  %v3272 = vadd.f32 %v3149, 1.0
  %v3273 = vadd.f32 %v3151, 1.0
  %v3274 = vadd.f32 %v3153, 1.0
  %v3275 = vadd.f32 %v3155, 1.0
  %v3276 = vadd.f32 %v3157, 1.0
  %v3277 = vadd.f32 %v3159, 1.0
  %v3278 = vadd.f32 %v3161, 1.0
  %v3279 = vadd.f32 %v3163, 1.0
  %v3280 = vadd.f32 %v3165, 1.0
  %v3281 = vadd.f32 %v3167, 1.0
  %v3282 = vadd.f32 %v3169, 1.0
  %v3283 = vadd.f32 %v3171, 1.0
  %v3284 = vadd.f32 %v3173, 1.0
  %v3285 = vadd.f32 %v3175, 1.0
  %v3286 = vadd.f32 %v3177, 1.0
  %v3287 = vadd.f32 %v3179, 1.0
  %v3288 = vadd.f32 %v3181, 1.0
  %v3289 = vadd.f32 %v3183, 1.0
  %v3290 = vadd.f32 %v3185, 1.0
  %v3291 = vadd.f32 %v3187, 1.0
  %v3292 = vadd.f32 %v3189, 1.0
  %v3293 = vadd.f32 %v3191, 1.0
  %v3294 = vadd.f32 %v3193, 1.0
  %v3295 = vadd.f32 %v3195, 1.0
  %v3296 = vadd.f32 %v3197, 1.0
  %v3297 = vadd.f32 %v3199, 1.0
  %v3298 = vadd.f32 %v3201, 1.0
  %v3299 = vadd.f32 %v3203, 1.0
  %v3300 = vadd.f32 %v3205, 1.0
  %v3301 = vadd.f32 %v3207, 1.0
  %v3302 = vadd.f32 %v3209, 1.0
  %v3303 = vadd.f32 %v3211, 1.0
  %v3304 = vadd.f32 %v3213, 1.0
  %v3305 = vadd.f32 %v3215, 1.0
  %v3306 = vadd.f32 %v3217, 1.0
  %v3307 = vadd.f32 %v3219, 1.0
  %v3308 = vadd.f32 %v3221, 1.0
  %v3309 = vadd.f32 %v3223, 1.0
  %v3310 = vadd.f32 %v3225, 1.0
  %v3311 = vadd.f32 %v3227, 1.0
  %v3312 = vadd.f32 %v3229, 1.0
  %v3313 = vadd.f32 %v3231, 1.0
  %v3314 = vadd.f32 %v3233, 1.0
  %v3315 = vadd.f32 %v3235, 1.0
  %v3316 = vadd.f32 %v3237, 1.0
  %v3317 = vadd.f32 %v3239, 1.0
  %v3318 = vadd.f32 %v3241, 1.0
  %v3319 = vadd.f32 %v3243, 1.0
  %v3320 = vadd.f32 %v3245, 1.0
  %v3321 = vadd.f32 %v3247, 1.0
  %v3322 = vadd.f32 %v3249, 1.0
  %v3323 = vadd.f32 %v3251, 1.0
  %v3324 = vadd.f32 %v3253, 1.0
  %v3325 = vadd.f32 %v3255, 1.0
  %v3326 = vadd.f32 %v3257, 1.0
  %v3327 = vadd.f32 %v3259, 1.0
  %v3328 = vadd.f32 %v3261, 1.0
  %v3329 = vadd.f32 %v3263, 1.0
  %v3330 = vadd.f32 %v3265, 1.0
  %v3331 = vadd.f32 %v3267, 1.0
  %v3332 = vmul.f32 %v3268, %v3268
  %v3333 = vmul.f32 %v3269, %v3269
  %v3334 = vmul.f32 %v3270, %v3270
  %v3335 = vmul.f32 %v3271, %v3271
  %v3336 = vmul.f32 %v3272, %v3272
  %v3337 = vmul.f32 %v3273, %v3273
  %v3338 = vmul.f32 %v3274, %v3274
  %v3339 = vmul.f32 %v3275, %v3275
  %v3340 = vmul.f32 %v3276, %v3276
  %v3341 = vmul.f32 %v3277, %v3277
  %v3342 = vmul.f32 %v3278, %v3278
  %v3343 = vmul.f32 %v3279, %v3279
  %v3344 = vmul.f32 %v3280, %v3280
  %v3345 = vmul.f32 %v3281, %v3281
  %v3346 = vmul.f32 %v3282, %v3282
  %v3347 = vmul.f32 %v3283, %v3283
  %v3348 = vmul.f32 %v3284, %v3284
  %v3349 = vmul.f32 %v3285, %v3285
  %v3350 = vmul.f32 %v3286, %v3286
  %v3351 = vmul.f32 %v3287, %v3287
  %v3352 = vmul.f32 %v3288, %v3288
  %v3353 = vmul.f32 %v3289, %v3289
  %v3354 = vmul.f32 %v3290, %v3290
  %v3355 = vmul.f32 %v3291, %v3291
  %v3356 = vmul.f32 %v3292, %v3292
  %v3357 = vmul.f32 %v3293, %v3293
  %v3358 = vmul.f32 %v3294, %v3294
  %v3359 = vmul.f32 %v3295, %v3295
  %v3360 = vmul.f32 %v3296, %v3296
  %v3361 = vmul.f32 %v3297, %v3297
  %v3362 = vmul.f32 %v3298, %v3298
  %v3363 = vmul.f32 %v3299, %v3299
  %v3364 = vmul.f32 %v3300, %v3300
  %v3365 = vmul.f32 %v3301, %v3301
  %v3366 = vmul.f32 %v3302, %v3302
  %v3367 = vmul.f32 %v3303, %v3303
  %v3368 = vmul.f32 %v3304, %v3304
  %v3369 = vmul.f32 %v3305, %v3305
  %v3370 = vmul.f32 %v3306, %v3306
  %v3371 = vmul.f32 %v3307, %v3307
  %v3372 = vmul.f32 %v3308, %v3308
  %v3373 = vmul.f32 %v3309, %v3309
  %v3374 = vmul.f32 %v3310, %v3310
  %v3375 = vmul.f32 %v3311, %v3311
  %v3376 = vmul.f32 %v3312, %v3312
  %v3377 = vmul.f32 %v3313, %v3313
  %v3378 = vmul.f32 %v3314, %v3314
  %v3379 = vmul.f32 %v3315, %v3315
  %v3380 = vmul.f32 %v3316, %v3316
  %v3381 = vmul.f32 %v3317, %v3317
  %v3382 = vmul.f32 %v3318, %v3318
  %v3383 = vmul.f32 %v3319, %v3319
  %v3384 = vmul.f32 %v3320, %v3320
  %v3385 = vmul.f32 %v3321, %v3321
  %v3386 = vmul.f32 %v3322, %v3322
  %v3387 = vmul.f32 %v3323, %v3323
  %v3388 = vmul.f32 %v3324, %v3324
  %v3389 = vmul.f32 %v3325, %v3325
  %v3390 = vmul.f32 %v3326, %v3326
  %v3391 = vmul.f32 %v3327, %v3327
  %v3392 = vmul.f32 %v3328, %v3328
  %v3393 = vmul.f32 %v3329, %v3329
  %v3394 = vmul.f32 %v3330, %v3330
  %v3395 = vmul.f32 %v3331, %v3331
  %v3396 = vsub.f32 %v3332, 1.0
  %v3397 = vsub.f32 %v3333, 1.0
  %v3398 = vsub.f32 %v3334, 1.0
  %v3399 = vsub.f32 %v3335, 1.0
  %v3400 = vsub.f32 %v3336, 1.0
  %v3401 = vsub.f32 %v3337, 1.0
  %v3402 = vsub.f32 %v3338, 1.0
  %v3403 = vsub.f32 %v3339, 1.0
  %v3404 = vsub.f32 %v3340, 1.0
  %v3405 = vsub.f32 %v3341, 1.0
  %v3406 = vsub.f32 %v3342, 1.0
  %v3407 = vsub.f32 %v3343, 1.0
  %v3408 = vsub.f32 %v3344, 1.0
  %v3409 = vsub.f32 %v3345, 1.0
  %v3410 = vsub.f32 %v3346, 1.0
  %v3411 = vsub.f32 %v3347, 1.0
  %v3412 = vsub.f32 %v3348, 1.0
  %v3413 = vsub.f32 %v3349, 1.0
  %v3414 = vsub.f32 %v3350, 1.0
  %v3415 = vsub.f32 %v3351, 1.0
  %v3416 = vsub.f32 %v3352, 1.0
  %v3417 = vsub.f32 %v3353, 1.0
  %v3418 = vsub.f32 %v3354, 1.0
  %v3419 = vsub.f32 %v3355, 1.0
  %v3420 = vsub.f32 %v3356, 1.0
  %v3421 = vsub.f32 %v3357, 1.0
  %v3422 = vsub.f32 %v3358, 1.0
  %v3423 = vsub.f32 %v3359, 1.0
  %v3424 = vsub.f32 %v3360, 1.0
  %v3425 = vsub.f32 %v3361, 1.0
  %v3426 = vsub.f32 %v3362, 1.0
  %v3427 = vsub.f32 %v3363, 1.0
  %v3428 = vsub.f32 %v3364, 1.0
  %v3429 = vsub.f32 %v3365, 1.0
  %v3430 = vsub.f32 %v3366, 1.0
  %v3431 = vsub.f32 %v3367, 1.0
  %v3432 = vsub.f32 %v3368, 1.0
  %v3433 = vsub.f32 %v3369, 1.0
  %v3434 = vsub.f32 %v3370, 1.0
  %v3435 = vsub.f32 %v3371, 1.0
  %v3436 = vsub.f32 %v3372, 1.0
  %v3437 = vsub.f32 %v3373, 1.0
  %v3438 = vsub.f32 %v3374, 1.0
  %v3439 = vsub.f32 %v3375, 1.0
  %v3440 = vsub.f32 %v3376, 1.0
  %v3441 = vsub.f32 %v3377, 1.0
  %v3442 = vsub.f32 %v3378, 1.0
  %v3443 = vsub.f32 %v3379, 1.0
  %v3444 = vsub.f32 %v3380, 1.0
  %v3445 = vsub.f32 %v3381, 1.0
  %v3446 = vsub.f32 %v3382, 1.0
  %v3447 = vsub.f32 %v3383, 1.0
  %v3448 = vsub.f32 %v3384, 1.0
  %v3449 = vsub.f32 %v3385, 1.0
  %v3450 = vsub.f32 %v3386, 1.0
  %v3451 = vsub.f32 %v3387, 1.0
  %v3452 = vsub.f32 %v3388, 1.0
  %v3453 = vsub.f32 %v3389, 1.0
  %v3454 = vsub.f32 %v3390, 1.0
  %v3455 = vsub.f32 %v3391, 1.0
  %v3456 = vsub.f32 %v3392, 1.0
  %v3457 = vsub.f32 %v3393, 1.0
  %v3458 = vsub.f32 %v3394, 1.0
  %v3459 = vsub.f32 %v3395, 1.0
  %v3460 = vmul.f32 %v3012, %v3396
  %v3461 = vmul.f32 %v3013, %v3397
  %v3462 = vmul.f32 %v3014, %v3398
  %v3463 = vmul.f32 %v3015, %v3399
  %v3464 = vmul.f32 %v3016, %v3400
  %v3465 = vmul.f32 %v3017, %v3401
  %v3466 = vmul.f32 %v3018, %v3402
  %v3467 = vmul.f32 %v3019, %v3403
  %v3468 = vmul.f32 %v3020, %v3404
  %v3469 = vmul.f32 %v3021, %v3405
  %v3470 = vmul.f32 %v3022, %v3406
  %v3471 = vmul.f32 %v3023, %v3407
  %v3472 = vmul.f32 %v3024, %v3408
  %v3473 = vmul.f32 %v3025, %v3409
  %v3474 = vmul.f32 %v3026, %v3410
  %v3475 = vmul.f32 %v3027, %v3411
  %v3476 = vmul.f32 %v3028, %v3412
  %v3477 = vmul.f32 %v3029, %v3413
  %v3478 = vmul.f32 %v3030, %v3414
  %v3479 = vmul.f32 %v3031, %v3415
  %v3480 = vmul.f32 %v3032, %v3416
  %v3481 = vmul.f32 %v3033, %v3417
  %v3482 = vmul.f32 %v3034, %v3418
  %v3483 = vmul.f32 %v3035, %v3419
  %v3484 = vmul.f32 %v3036, %v3420
  %v3485 = vmul.f32 %v3037, %v3421
  %v3486 = vmul.f32 %v3038, %v3422
  %v3487 = vmul.f32 %v3039, %v3423
  %v3488 = vmul.f32 %v3040, %v3424
  %v3489 = vmul.f32 %v3041, %v3425
  %v3490 = vmul.f32 %v3042, %v3426
  %v3491 = vmul.f32 %v3043, %v3427
  %v3492 = vmul.f32 %v3044, %v3428
  %v3493 = vmul.f32 %v3045, %v3429
  %v3494 = vmul.f32 %v3046, %v3430
  %v3495 = vmul.f32 %v3047, %v3431
  %v3496 = vmul.f32 %v3048, %v3432
  %v3497 = vmul.f32 %v3049, %v3433
  %v3498 = vmul.f32 %v3050, %v3434
  %v3499 = vmul.f32 %v3051, %v3435
  %v3500 = vmul.f32 %v3052, %v3436
  %v3501 = vmul.f32 %v3053, %v3437
  %v3502 = vmul.f32 %v3054, %v3438
  %v3503 = vmul.f32 %v3055, %v3439
  %v3504 = vmul.f32 %v3056, %v3440
  %v3505 = vmul.f32 %v3057, %v3441
  %v3506 = vmul.f32 %v3058, %v3442
  %v3507 = vmul.f32 %v3059, %v3443
  %v3508 = vmul.f32 %v3060, %v3444
  %v3509 = vmul.f32 %v3061, %v3445
  %v3510 = vmul.f32 %v3062, %v3446
  %v3511 = vmul.f32 %v3063, %v3447
  %v3512 = vmul.f32 %v3064, %v3448
  %v3513 = vmul.f32 %v3065, %v3449
  %v3514 = vmul.f32 %v3066, %v3450
  %v3515 = vmul.f32 %v3067, %v3451
  %v3516 = vmul.f32 %v3068, %v3452
  %v3517 = vmul.f32 %v3069, %v3453
  %v3518 = vmul.f32 %v3070, %v3454
  %v3519 = vmul.f32 %v3071, %v3455
  %v3520 = vmul.f32 %v3072, %v3456
  %v3521 = vmul.f32 %v3073, %v3457
  %v3522 = vmul.f32 %v3074, %v3458
  %v3523 = vmul.f32 %v3075, %v3459
  %v3524 = vadd.f32 %v3332, 1.0
  %v3525 = vadd.f32 %v3333, 1.0
  %v3526 = vadd.f32 %v3334, 1.0
  %v3527 = vadd.f32 %v3335, 1.0
  %v3528 = vadd.f32 %v3336, 1.0
  %v3529 = vadd.f32 %v3337, 1.0
  %v3530 = vadd.f32 %v3338, 1.0
  %v3531 = vadd.f32 %v3339, 1.0
  %v3532 = vadd.f32 %v3340, 1.0
  %v3533 = vadd.f32 %v3341, 1.0
  %v3534 = vadd.f32 %v3342, 1.0
  %v3535 = vadd.f32 %v3343, 1.0
  %v3536 = vadd.f32 %v3344, 1.0
  %v3537 = vadd.f32 %v3345, 1.0
  %v3538 = vadd.f32 %v3346, 1.0
  %v3539 = vadd.f32 %v3347, 1.0
  %v3540 = vadd.f32 %v3348, 1.0
  %v3541 = vadd.f32 %v3349, 1.0
  %v3542 = vadd.f32 %v3350, 1.0
  %v3543 = vadd.f32 %v3351, 1.0
  %v3544 = vadd.f32 %v3352, 1.0
  %v3545 = vadd.f32 %v3353, 1.0
  %v3546 = vadd.f32 %v3354, 1.0
  %v3547 = vadd.f32 %v3355, 1.0
  %v3548 = vadd.f32 %v3356, 1.0
  %v3549 = vadd.f32 %v3357, 1.0
  %v3550 = vadd.f32 %v3358, 1.0
  %v3551 = vadd.f32 %v3359, 1.0
  %v3552 = vadd.f32 %v3360, 1.0
  %v3553 = vadd.f32 %v3361, 1.0
  %v3554 = vadd.f32 %v3362, 1.0
  %v3555 = vadd.f32 %v3363, 1.0
  %v3556 = vadd.f32 %v3364, 1.0
  %v3557 = vadd.f32 %v3365, 1.0
  %v3558 = vadd.f32 %v3366, 1.0
  %v3559 = vadd.f32 %v3367, 1.0
  %v3560 = vadd.f32 %v3368, 1.0
  %v3561 = vadd.f32 %v3369, 1.0
  %v3562 = vadd.f32 %v3370, 1.0
  %v3563 = vadd.f32 %v3371, 1.0
  %v3564 = vadd.f32 %v3372, 1.0
  %v3565 = vadd.f32 %v3373, 1.0
  %v3566 = vadd.f32 %v3374, 1.0
  %v3567 = vadd.f32 %v3375, 1.0
  %v3568 = vadd.f32 %v3376, 1.0
  %v3569 = vadd.f32 %v3377, 1.0
  %v3570 = vadd.f32 %v3378, 1.0
  %v3571 = vadd.f32 %v3379, 1.0
  %v3572 = vadd.f32 %v3380, 1.0
  %v3573 = vadd.f32 %v3381, 1.0
  %v3574 = vadd.f32 %v3382, 1.0
  %v3575 = vadd.f32 %v3383, 1.0
  %v3576 = vadd.f32 %v3384, 1.0
  %v3577 = vadd.f32 %v3385, 1.0
  %v3578 = vadd.f32 %v3386, 1.0
  %v3579 = vadd.f32 %v3387, 1.0
  %v3580 = vadd.f32 %v3388, 1.0
  %v3581 = vadd.f32 %v3389, 1.0
  %v3582 = vadd.f32 %v3390, 1.0
  %v3583 = vadd.f32 %v3391, 1.0
  %v3584 = vadd.f32 %v3392, 1.0
  %v3585 = vadd.f32 %v3393, 1.0
  %v3586 = vadd.f32 %v3394, 1.0
  %v3587 = vadd.f32 %v3395, 1.0
  %v3588 = vrcp.pop %v3524
  %v3589 = vrcp.pop %v3525
  %v3590 = vrcp.pop %v3526
  %v3591 = vrcp.pop %v3527
  %v3592 = vrcp.pop %v3528
  %v3593 = vrcp.pop %v3529
  %v3594 = vrcp.pop %v3530
  %v3595 = vrcp.pop %v3531
  %v3596 = vrcp.pop %v3532
  %v3597 = vrcp.pop %v3533
  %v3598 = vrcp.pop %v3534
  %v3599 = vrcp.pop %v3535
  %v3600 = vrcp.pop %v3536
  %v3601 = vrcp.pop %v3537
  %v3602 = vrcp.pop %v3538
  %v3603 = vrcp.pop %v3539
  %v3604 = vrcp.pop %v3540
  %v3605 = vrcp.pop %v3541
  %v3606 = vrcp.pop %v3542
  %v3607 = vrcp.pop %v3543
  %v3608 = vrcp.pop %v3544
  %v3609 = vrcp.pop %v3545
  %v3610 = vrcp.pop %v3546
  %v3611 = vrcp.pop %v3547
  %v3612 = vrcp.pop %v3548
  %v3613 = vrcp.pop %v3549
  %v3614 = vrcp.pop %v3550
  %v3615 = vrcp.pop %v3551
  %v3616 = vrcp.pop %v3552
  %v3617 = vrcp.pop %v3553
  %v3618 = vrcp.pop %v3554
  %v3619 = vrcp.pop %v3555
  %v3620 = vrcp.pop %v3556
  %v3621 = vrcp.pop %v3557
  %v3622 = vrcp.pop %v3558
  %v3623 = vrcp.pop %v3559
  %v3624 = vrcp.pop %v3560
  %v3625 = vrcp.pop %v3561
  %v3626 = vrcp.pop %v3562
  %v3627 = vrcp.pop %v3563
  %v3628 = vrcp.pop %v3564
  %v3629 = vrcp.pop %v3565
  %v3630 = vrcp.pop %v3566
  %v3631 = vrcp.pop %v3567
  %v3632 = vrcp.pop %v3568
  %v3633 = vrcp.pop %v3569
  %v3634 = vrcp.pop %v3570
  %v3635 = vrcp.pop %v3571
  %v3636 = vrcp.pop %v3572
  %v3637 = vrcp.pop %v3573
  %v3638 = vrcp.pop %v3574
  %v3639 = vrcp.pop %v3575
  %v3640 = vrcp.pop %v3576
  %v3641 = vrcp.pop %v3577
  %v3642 = vrcp.pop %v3578
  %v3643 = vrcp.pop %v3579
  %v3644 = vrcp.pop %v3580
  %v3645 = vrcp.pop %v3581
  %v3646 = vrcp.pop %v3582
  %v3647 = vrcp.pop %v3583
  %v3648 = vrcp.pop %v3584
  %v3649 = vrcp.pop %v3585
  %v3650 = vrcp.pop %v3586
  %v3651 = vrcp.pop %v3587
  %v3652 = vmul.f32 %v3460, %v3588
  %v3653 = vmul.f32 %v3461, %v3589
  %v3654 = vmul.f32 %v3462, %v3590
  %v3655 = vmul.f32 %v3463, %v3591
  %v3656 = vmul.f32 %v3464, %v3592
  %v3657 = vmul.f32 %v3465, %v3593
  %v3658 = vmul.f32 %v3466, %v3594
  %v3659 = vmul.f32 %v3467, %v3595
  %v3660 = vmul.f32 %v3468, %v3596
  %v3661 = vmul.f32 %v3469, %v3597
  %v3662 = vmul.f32 %v3470, %v3598
  %v3663 = vmul.f32 %v3471, %v3599
  %v3664 = vmul.f32 %v3472, %v3600
  %v3665 = vmul.f32 %v3473, %v3601
  %v3666 = vmul.f32 %v3474, %v3602
  %v3667 = vmul.f32 %v3475, %v3603
  %v3668 = vmul.f32 %v3476, %v3604
  %v3669 = vmul.f32 %v3477, %v3605
  %v3670 = vmul.f32 %v3478, %v3606
  %v3671 = vmul.f32 %v3479, %v3607
  %v3672 = vmul.f32 %v3480, %v3608
  %v3673 = vmul.f32 %v3481, %v3609
  %v3674 = vmul.f32 %v3482, %v3610
  %v3675 = vmul.f32 %v3483, %v3611
  %v3676 = vmul.f32 %v3484, %v3612
  %v3677 = vmul.f32 %v3485, %v3613
  %v3678 = vmul.f32 %v3486, %v3614
  %v3679 = vmul.f32 %v3487, %v3615
  %v3680 = vmul.f32 %v3488, %v3616
  %v3681 = vmul.f32 %v3489, %v3617
  %v3682 = vmul.f32 %v3490, %v3618
  %v3683 = vmul.f32 %v3491, %v3619
  %v3684 = vmul.f32 %v3492, %v3620
  %v3685 = vmul.f32 %v3493, %v3621
  %v3686 = vmul.f32 %v3494, %v3622
  %v3687 = vmul.f32 %v3495, %v3623
  %v3688 = vmul.f32 %v3496, %v3624
  %v3689 = vmul.f32 %v3497, %v3625
  %v3690 = vmul.f32 %v3498, %v3626
  %v3691 = vmul.f32 %v3499, %v3627
  %v3692 = vmul.f32 %v3500, %v3628
  %v3693 = vmul.f32 %v3501, %v3629
  %v3694 = vmul.f32 %v3502, %v3630
  %v3695 = vmul.f32 %v3503, %v3631
  %v3696 = vmul.f32 %v3504, %v3632
  %v3697 = vmul.f32 %v3505, %v3633
  %v3698 = vmul.f32 %v3506, %v3634
  %v3699 = vmul.f32 %v3507, %v3635
  %v3700 = vmul.f32 %v3508, %v3636
  %v3701 = vmul.f32 %v3509, %v3637
  %v3702 = vmul.f32 %v3510, %v3638
  %v3703 = vmul.f32 %v3511, %v3639
  %v3704 = vmul.f32 %v3512, %v3640
  %v3705 = vmul.f32 %v3513, %v3641
  %v3706 = vmul.f32 %v3514, %v3642
  %v3707 = vmul.f32 %v3515, %v3643
  %v3708 = vmul.f32 %v3516, %v3644
  %v3709 = vmul.f32 %v3517, %v3645
  %v3710 = vmul.f32 %v3518, %v3646
  %v3711 = vmul.f32 %v3519, %v3647
  %v3712 = vmul.f32 %v3520, %v3648
  %v3713 = vmul.f32 %v3521, %v3649
  %v3714 = vmul.f32 %v3522, %v3650
  %v3715 = vmul.f32 %v3523, %v3651
  %v3716 = vld [vmem:[%s5] sm:$0xff]
  %v3717 = vld [vmem:[%s5 + $0x8] sm:$0xff]
  %v3718 = vld [vmem:[%s5 + $0x10] sm:$0xff]
  %v3719 = vld [vmem:[%s5 + $0x18] sm:$0xff]
  %v3720 = vld [vmem:[%s5 + $0x20] sm:$0xff]
  %v3721 = vld [vmem:[%s5 + $0x28] sm:$0xff]
  %v3722 = vld [vmem:[%s5 + $0x30] sm:$0xff]
  %v3723 = vld [vmem:[%s5 + $0x38] sm:$0xff]
  %v3724 = vld [vmem:[%s5 + $0x40] sm:$0xff]
  %v3725 = vld [vmem:[%s5 + $0x48] sm:$0xff]
  %v3726 = vld [vmem:[%s5 + $0x50] sm:$0xff]
  %v3727 = vld [vmem:[%s5 + $0x58] sm:$0xff]
  %v3728 = vld [vmem:[%s5 + $0x60] sm:$0xff]
  %v3729 = vld [vmem:[%s5 + $0x68] sm:$0xff]
  %v3730 = vld [vmem:[%s5 + $0x70] sm:$0xff]
  %v3731 = vld [vmem:[%s5 + $0x78] sm:$0xff]
  %v3732 = vld [vmem:[%s5 + $0x80] sm:$0xff]
  %v3733 = vld [vmem:[%s5 + $0x88] sm:$0xff]
  %v3734 = vld [vmem:[%s5 + $0x90] sm:$0xff]
  %v3735 = vld [vmem:[%s5 + $0x98] sm:$0xff]
  %v3736 = vld [vmem:[%s5 + $0xa0] sm:$0xff]
  %v3737 = vld [vmem:[%s5 + $0xa8] sm:$0xff]
  %v3738 = vld [vmem:[%s5 + $0xb0] sm:$0xff]
  %v3739 = vld [vmem:[%s5 + $0xb8] sm:$0xff]
  %v3740 = vpack.c.bf16 %v3654, %v3652
  %v3741 = vpack.c.bf16 %v3655, %v3653
  %v3742 = vpack.c.bf16 %v3658, %v3656
  %v3743 = vpack.c.bf16 %v3659, %v3657
  %v3744 = vpack.c.bf16 %v3662, %v3660
  %v3745 = vpack.c.bf16 %v3663, %v3661
  %v3746 = vpack.c.bf16 %v3666, %v3664
  %v3747 = vpack.c.bf16 %v3667, %v3665
  %v3748 = vpack.c.bf16 %v3670, %v3668
  %v3749 = vpack.c.bf16 %v3671, %v3669
  %v3750 = vpack.c.bf16 %v3674, %v3672
  %v3751 = vpack.c.bf16 %v3675, %v3673
  %v3752 = vpack.c.bf16 %v3678, %v3676
  %v3753 = vpack.c.bf16 %v3679, %v3677
  %v3754 = vpack.c.bf16 %v3682, %v3680
  %v3755 = vpack.c.bf16 %v3683, %v3681
  %v3756 = vpack.c.bf16 %v3686, %v3684
  %v3757 = vpack.c.bf16 %v3687, %v3685
  %v3758 = vpack.c.bf16 %v3690, %v3688
  %v3759 = vpack.c.bf16 %v3691, %v3689
  %v3760 = vpack.c.bf16 %v3694, %v3692
  %v3761 = vpack.c.bf16 %v3695, %v3693
  %v3762 = vpack.c.bf16 %v3698, %v3696
  %v3763 = vpack.c.bf16 %v3699, %v3697
  %v3764 = vpack.c.bf16 %v3702, %v3700
  %v3765 = vpack.c.bf16 %v3703, %v3701
  %v3766 = vpack.c.bf16 %v3706, %v3704
  %v3767 = vpack.c.bf16 %v3707, %v3705
  %v3768 = vpack.c.bf16 %v3710, %v3708
  %v3769 = vpack.c.bf16 %v3711, %v3709
  %v3770 = vpack.c.bf16 %v3714, %v3712
  %v3771 = vpack.c.bf16 %v3715, %v3713
  %v3772 = vld [vmem:[%s7 + $0xc] sm:$0x3]
  %v3774 = vlaneseq
  %v3775 = vshrl.u32 %v3774, 7
  %v3776 = vsub.s32 0, %v3775
  %v3777 = vrot.slane %v3772, %v3776
  %v3778 = vlaneseq
  %v3779 = vshrl.u32 %v3778, 7
  %v3780 = vsub.s32 1, %v3779
  %v3781 = vrot.slane %v3772, %v3780
  %v3808 = vunpack.c.l.b16 %v3716
  %v3809 = vunpack.c.h.b16 %v3716
  %v3810 = vunpack.c.l.b16 %v3717
  %v3811 = vunpack.c.h.b16 %v3717
  %v3812 = vunpack.c.l.b16 %v3718
  %v3813 = vunpack.c.h.b16 %v3718
  %v3814 = vunpack.c.l.b16 %v3719
  %v3815 = vunpack.c.h.b16 %v3719
  %v3816 = vunpack.c.l.b16 %v3720
  %v3817 = vunpack.c.h.b16 %v3720
  %v3818 = vunpack.c.l.b16 %v3721
  %v3819 = vunpack.c.h.b16 %v3721
  %v3820 = vunpack.c.l.b16 %v3722
  %v3821 = vunpack.c.h.b16 %v3722
  %v3822 = vunpack.c.l.b16 %v3723
  %v3823 = vunpack.c.h.b16 %v3723
  %v3824 = vunpack.c.l.b16 %v3724
  %v3825 = vunpack.c.h.b16 %v3724
  %v3826 = vunpack.c.l.b16 %v3725
  %v3827 = vunpack.c.h.b16 %v3725
  %v3828 = vunpack.c.l.b16 %v3726
  %v3829 = vunpack.c.h.b16 %v3726
  %v3830 = vunpack.c.l.b16 %v3727
  %v3831 = vunpack.c.h.b16 %v3727
  %v3832 = vunpack.c.l.b16 %v3728
  %v3833 = vunpack.c.h.b16 %v3728
  %v3834 = vunpack.c.l.b16 %v3729
  %v3835 = vunpack.c.h.b16 %v3729
  %v3836 = vunpack.c.l.b16 %v3730
  %v3837 = vunpack.c.h.b16 %v3730
  %v3838 = vunpack.c.l.b16 %v3731
  %v3839 = vunpack.c.h.b16 %v3731
  %v3840 = vunpack.c.l.b16 %v3732
  %v3841 = vunpack.c.h.b16 %v3732
  %v3842 = vunpack.c.l.b16 %v3733
  %v3843 = vunpack.c.h.b16 %v3733
  %v3844 = vunpack.c.l.b16 %v3734
  %v3845 = vunpack.c.h.b16 %v3734
  %v3846 = vunpack.c.l.b16 %v3735
  %v3847 = vunpack.c.h.b16 %v3735
  %v3848 = vunpack.c.l.b16 %v3736
  %v3849 = vunpack.c.h.b16 %v3736
  %v3850 = vunpack.c.l.b16 %v3737
  %v3851 = vunpack.c.h.b16 %v3737
  %v3852 = vunpack.c.l.b16 %v3738
  %v3853 = vunpack.c.h.b16 %v3738
  %v3854 = vunpack.c.l.b16 %v3739
  %v3855 = vunpack.c.h.b16 %v3739
  %v3856 = vpack.c.b16 %v3810, %v3808
  %v3857 = vpack.c.b16 %v3811, %v3809
  %v3858 = vpack.c.b16 %v3814, %v3812
  %v3859 = vpack.c.b16 %v3815, %v3813
  %v3860 = vpack.c.b16 %v3818, %v3816
  %v3861 = vpack.c.b16 %v3819, %v3817
  %v3862 = vpack.c.b16 %v3822, %v3820
  %v3863 = vpack.c.b16 %v3823, %v3821
  %v3864 = vpack.c.b16 %v3826, %v3824
  %v3865 = vpack.c.b16 %v3827, %v3825
  %v3866 = vpack.c.b16 %v3830, %v3828
  %v3867 = vpack.c.b16 %v3831, %v3829
  %v3868 = vpack.c.b16 %v3834, %v3832
  %v3869 = vpack.c.b16 %v3835, %v3833
  %v3870 = vpack.c.b16 %v3838, %v3836
  %v3871 = vpack.c.b16 %v3839, %v3837
  %v3872 = vpack.c.b16 %v3842, %v3840
  %v3873 = vpack.c.b16 %v3843, %v3841
  %v3874 = vpack.c.b16 %v3846, %v3844
  %v3875 = vpack.c.b16 %v3847, %v3845
  %v3876 = vpack.c.b16 %v3850, %v3848
  %v3877 = vpack.c.b16 %v3851, %v3849
  %v3878 = vpack.c.b16 %v3854, %v3852
  %v3879 = vpack.c.b16 %v3855, %v3853
  %v3905 = vsel %vm2346, %v3741, 0
  %v3908 = vsel %vm2346, %v3743, 0
  %v3911 = vsel %vm2346, %v3745, 0
  %v3914 = vsel %vm2346, %v3747, 0
  %v3917 = vsel %vm2346, %v3749, 0
  %v3920 = vsel %vm2346, %v3751, 0
  %v3923 = vsel %vm2346, %v3753, 0
  %v3926 = vsel %vm2346, %v3755, 0
  %v3929 = vsel %vm2346, %v3757, 0
  %v3932 = vsel %vm2346, %v3759, 0
  %v3935 = vsel %vm2346, %v3761, 0
  %v3938 = vsel %vm2346, %v3763, 0
  %v3941 = vsel %vm2346, %v3765, 0
  %v3944 = vsel %vm2346, %v3767, 0
  %v3947 = vsel %vm2346, %v3769, 0
  %v3950 = vsel %vm2346, %v3771, 0
  %3952 = vmatprep.subr.bf16.mxu0 %v3857
  %3953 = vmatpush1.bf16.msra.mxu0 %v3856
  %3954 = vmatprep.subr.bf16.mxu0 %v3859
  %3955 = vmatpush1.bf16.msra.mxu0 %v3858
  %3956 = vmatprep.subr.bf16.mxu0 %v3861
  %3957 = vmatpush1.bf16.msra.mxu0 %v3860
  %3958 = vmatprep.subr.bf16.mxu0 %v3863
  %3959 = vmatpush1.bf16.msra.mxu0 %v3862
  %3960 = vmatprep.subr.bf16.mxu0 %v3865
  %3961 = vmatpush1.bf16.msra.mxu0 %v3864
  %3962 = vmatprep.subr.bf16.mxu0 %v3867
  %3963 = vmatpush1.bf16.msra.mxu0 %v3866
  %3964 = vmatprep.subr.bf16.mxu0 %v3869
  %3965 = vmatpush1.bf16.msra.mxu0 %v3868
  %3966 = vmatprep.subr.bf16.mxu0 %v3871
  %3967 = vmatpush1.bf16.msra.mxu0 %v3870
  %3968 = vmatprep.subr.bf16.mxu0 %v3873
  %3969 = vmatpush1.bf16.msra.mxu0 %v3872
  %3970 = vmatprep.subr.bf16.mxu0 %v3875
  %3971 = vmatpush1.bf16.msra.mxu0 %v3874
  %3972 = vmatprep.subr.bf16.mxu0 %v3877
  %3973 = vmatpush1.bf16.msra.mxu0 %v3876
  %3974 = vmatprep.subr.bf16.mxu0 %v3879
  %3975 = vmatpush1.bf16.msra.mxu0 %v3878
  %3976 = vmatprep.subr.bf16.mxu0 0
  %3977 = vmatpush1.bf16.msra.mxu0 0
  %3978 = vmatprep.subr.bf16.mxu0 0
  %3979 = vmatpush1.bf16.msra.mxu0 0
  %3980 = vmatprep.subr.bf16.mxu0 0
  %3981 = vmatpush1.bf16.msra.mxu0 0
  %3982 = vmatprep.subr.bf16.mxu0 0
  %3983 = vmatpush1.bf16.msra.mxu0 0
  %3984 = vmatprep.mubr.bf16.mxu0 %v3905
  %3985 = vmatmul.mubr.bf16.gmra.mrb[0].mxu0 %v3740
  %v3986 = vpop.f32.mrb[0].mxu0
  %v3987 = vadd.f32 %v3777, %v3986
  %v3988 = vpop.f32.mrb[0].mxu0
  %v3989 = vadd.f32 %v3781, %v3988
  %v3990 = vpop.f32.mrb[0].mxu0
  %v3991 = vadd.f32 %v3777, %v3990
  %v3992 = vpop.f32.mrb[0].mxu0
  %v3993 = vadd.f32 %v3781, %v3992
  %3994 = vmatprep.mubr.bf16.mxu0 %v3908
  %3995 = vmatmul.mubr.bf16.gmra.mrb[0].mxu0 %v3742
  %v3996 = vpop.f32.mrb[0].mxu0
  %v3997 = vadd.f32 %v3777, %v3996
  %v3998 = vpop.f32.mrb[0].mxu0
  %v3999 = vadd.f32 %v3781, %v3998
  %v4000 = vpop.f32.mrb[0].mxu0
  %v4001 = vadd.f32 %v3777, %v4000
  %v4002 = vpop.f32.mrb[0].mxu0
  %v4003 = vadd.f32 %v3781, %v4002
  %4004 = vmatprep.mubr.bf16.mxu0 %v3911
  %4005 = vmatmul.mubr.bf16.gmra.mrb[0].mxu0 %v3744
  %v4006 = vpop.f32.mrb[0].mxu0
  %v4007 = vadd.f32 %v3777, %v4006
  %v4008 = vpop.f32.mrb[0].mxu0
  %v4009 = vadd.f32 %v3781, %v4008
  %v4010 = vpop.f32.mrb[0].mxu0
  %v4011 = vadd.f32 %v3777, %v4010
  %v4012 = vpop.f32.mrb[0].mxu0
  %v4013 = vadd.f32 %v3781, %v4012
  %4014 = vmatprep.mubr.bf16.mxu0 %v3914
  %4015 = vmatmul.mubr.bf16.gmra.mrb[0].mxu0 %v3746
  %v4016 = vpop.f32.mrb[0].mxu0
  %v4017 = vadd.f32 %v3777, %v4016
  %v4018 = vpop.f32.mrb[0].mxu0
  %v4019 = vadd.f32 %v3781, %v4018
  %v4020 = vpop.f32.mrb[0].mxu0
  %v4021 = vadd.f32 %v3777, %v4020
  %v4022 = vpop.f32.mrb[0].mxu0
  %v4023 = vadd.f32 %v3781, %v4022
  %4024 = vmatprep.mubr.bf16.mxu0 %v3917
  %4025 = vmatmul.mubr.bf16.gmra.mrb[0].mxu0 %v3748
  %v4026 = vpop.f32.mrb[0].mxu0
  %v4027 = vadd.f32 %v3777, %v4026
  %v4028 = vpop.f32.mrb[0].mxu0
  %v4029 = vadd.f32 %v3781, %v4028
  %v4030 = vpop.f32.mrb[0].mxu0
  %v4031 = vadd.f32 %v3777, %v4030
  %v4032 = vpop.f32.mrb[0].mxu0
  %v4033 = vadd.f32 %v3781, %v4032
  %4034 = vmatprep.mubr.bf16.mxu0 %v3920
  %4035 = vmatmul.mubr.bf16.gmra.mrb[0].mxu0 %v3750
  %v4036 = vpop.f32.mrb[0].mxu0
  %v4037 = vadd.f32 %v3777, %v4036
  %v4038 = vpop.f32.mrb[0].mxu0
  %v4039 = vadd.f32 %v3781, %v4038
  %v4040 = vpop.f32.mrb[0].mxu0
  %v4041 = vadd.f32 %v3777, %v4040
  %v4042 = vpop.f32.mrb[0].mxu0
  %v4043 = vadd.f32 %v3781, %v4042
  %4044 = vmatprep.mubr.bf16.mxu0 %v3923
  %4045 = vmatmul.mubr.bf16.gmra.mrb[0].mxu0 %v3752
  %v4046 = vpop.f32.mrb[0].mxu0
  %v4047 = vadd.f32 %v3777, %v4046
  %v4048 = vpop.f32.mrb[0].mxu0
  %v4049 = vadd.f32 %v3781, %v4048
  %v4050 = vpop.f32.mrb[0].mxu0
  %v4051 = vadd.f32 %v3777, %v4050
  %v4052 = vpop.f32.mrb[0].mxu0
  %v4053 = vadd.f32 %v3781, %v4052
  %4054 = vmatprep.mubr.bf16.mxu0 %v3926
  %4055 = vmatmul.mubr.bf16.gmra.mrb[0].mxu0 %v3754
  %v4056 = vpop.f32.mrb[0].mxu0
  %v4057 = vadd.f32 %v3777, %v4056
  %v4058 = vpop.f32.mrb[0].mxu0
  %v4059 = vadd.f32 %v3781, %v4058
  %v4060 = vpop.f32.mrb[0].mxu0
  %v4061 = vadd.f32 %v3777, %v4060
  %v4062 = vpop.f32.mrb[0].mxu0
  %v4063 = vadd.f32 %v3781, %v4062
  %4064 = vmatprep.mubr.bf16.mxu0 %v3929
  %4065 = vmatmul.mubr.bf16.gmra.mrb[0].mxu0 %v3756
  %v4066 = vpop.f32.mrb[0].mxu0
  %v4067 = vadd.f32 %v3777, %v4066
  %v4068 = vpop.f32.mrb[0].mxu0
  %v4069 = vadd.f32 %v3781, %v4068
  %v4070 = vpop.f32.mrb[0].mxu0
  %v4071 = vadd.f32 %v3777, %v4070
  %v4072 = vpop.f32.mrb[0].mxu0
  %v4073 = vadd.f32 %v3781, %v4072
  %4074 = vmatprep.mubr.bf16.mxu0 %v3932
  %4075 = vmatmul.mubr.bf16.gmra.mrb[0].mxu0 %v3758
  %v4076 = vpop.f32.mrb[0].mxu0
  %v4077 = vadd.f32 %v3777, %v4076
  %v4078 = vpop.f32.mrb[0].mxu0
  %v4079 = vadd.f32 %v3781, %v4078
  %v4080 = vpop.f32.mrb[0].mxu0
  %v4081 = vadd.f32 %v3777, %v4080
  %v4082 = vpop.f32.mrb[0].mxu0
  %v4083 = vadd.f32 %v3781, %v4082
  %4084 = vmatprep.mubr.bf16.mxu0 %v3935
  %4085 = vmatmul.mubr.bf16.gmra.mrb[0].mxu0 %v3760
  %v4086 = vpop.f32.mrb[0].mxu0
  %v4087 = vadd.f32 %v3777, %v4086
  %v4088 = vpop.f32.mrb[0].mxu0
  %v4089 = vadd.f32 %v3781, %v4088
  %v4090 = vpop.f32.mrb[0].mxu0
  %v4091 = vadd.f32 %v3777, %v4090
  %v4092 = vpop.f32.mrb[0].mxu0
  %v4093 = vadd.f32 %v3781, %v4092
  %4094 = vmatprep.mubr.bf16.mxu0 %v3938
  %4095 = vmatmul.mubr.bf16.gmra.mrb[0].mxu0 %v3762
  %v4096 = vpop.f32.mrb[0].mxu0
  %v4097 = vadd.f32 %v3777, %v4096
  %v4098 = vpop.f32.mrb[0].mxu0
  %v4099 = vadd.f32 %v3781, %v4098
  %v4100 = vpop.f32.mrb[0].mxu0
  %v4101 = vadd.f32 %v3777, %v4100
  %v4102 = vpop.f32.mrb[0].mxu0
  %v4103 = vadd.f32 %v3781, %v4102
  %4104 = vmatprep.mubr.bf16.mxu0 %v3941
  %4105 = vmatmul.mubr.bf16.gmra.mrb[0].mxu0 %v3764
  %v4106 = vpop.f32.mrb[0].mxu0
  %v4107 = vadd.f32 %v3777, %v4106
  %v4108 = vpop.f32.mrb[0].mxu0
  %v4109 = vadd.f32 %v3781, %v4108
  %v4110 = vpop.f32.mrb[0].mxu0
  %v4111 = vadd.f32 %v3777, %v4110
  %v4112 = vpop.f32.mrb[0].mxu0
  %v4113 = vadd.f32 %v3781, %v4112
  %4114 = vmatprep.mubr.bf16.mxu0 %v3944
  %4115 = vmatmul.mubr.bf16.gmra.mrb[0].mxu0 %v3766
  %v4116 = vpop.f32.mrb[0].mxu0
  %v4117 = vadd.f32 %v3777, %v4116
  %v4118 = vpop.f32.mrb[0].mxu0
  %v4119 = vadd.f32 %v3781, %v4118
  %v4120 = vpop.f32.mrb[0].mxu0
  %v4121 = vadd.f32 %v3777, %v4120
  %v4122 = vpop.f32.mrb[0].mxu0
  %v4123 = vadd.f32 %v3781, %v4122
  %4124 = vmatprep.mubr.bf16.mxu0 %v3947
  %4125 = vmatmul.mubr.bf16.gmra.mrb[0].mxu0 %v3768
  %v4126 = vpop.f32.mrb[0].mxu0
  %v4127 = vadd.f32 %v3777, %v4126
  %v4128 = vpop.f32.mrb[0].mxu0
  %v4129 = vadd.f32 %v3781, %v4128
  %v4130 = vpop.f32.mrb[0].mxu0
  %v4131 = vadd.f32 %v3777, %v4130
  %v4132 = vpop.f32.mrb[0].mxu0
  %v4133 = vadd.f32 %v3781, %v4132
  %4134 = vmatprep.mubr.bf16.mxu0 %v3950
  %4135 = vmatmul.mubr.bf16.gmra.mrb[0].mxu0 %v3770
  %v4136 = vpop.f32.mrb[0].mxu0
  %v4137 = vadd.f32 %v3777, %v4136
  %v4138 = vpop.f32.mrb[0].mxu0
  %v4139 = vadd.f32 %v3781, %v4138
  %v4140 = vpop.f32.mrb[0].mxu0
  %v4141 = vadd.f32 %v3777, %v4140
  %v4142 = vpop.f32.mrb[0].mxu0
  %v4143 = vadd.f32 %v3781, %v4142
  %4144 = vdwg.mxu0
  %v4145 = vadd.f32 %v3987, %v3989
  %4146 = vadd.xlane.f32.xlu0 %v4145
  %v4147 = vpop.xlane.xlu0 %4146
  %v4148 = vadd.f32 %v3991, %v3993
  %4149 = vadd.xlane.f32.xlu0 %v4148
  %v4150 = vpop.xlane.xlu0 %4149
  %v4151 = vadd.f32 %v3997, %v3999
  %4152 = vadd.xlane.f32.xlu0 %v4151
  %v4153 = vpop.xlane.xlu0 %4152
  %v4154 = vadd.f32 %v4001, %v4003
  %4155 = vadd.xlane.f32.xlu0 %v4154
  %v4156 = vpop.xlane.xlu0 %4155
  %v4157 = vadd.f32 %v4007, %v4009
  %4158 = vadd.xlane.f32.xlu0 %v4157
  %v4159 = vpop.xlane.xlu0 %4158
  %v4160 = vadd.f32 %v4011, %v4013
  %4161 = vadd.xlane.f32.xlu0 %v4160
  %v4162 = vpop.xlane.xlu0 %4161
  %v4163 = vadd.f32 %v4017, %v4019
  %4164 = vadd.xlane.f32.xlu0 %v4163
  %v4165 = vpop.xlane.xlu0 %4164
  %v4166 = vadd.f32 %v4021, %v4023
  %4167 = vadd.xlane.f32.xlu0 %v4166
  %v4168 = vpop.xlane.xlu0 %4167
  %v4169 = vadd.f32 %v4027, %v4029
  %4170 = vadd.xlane.f32.xlu0 %v4169
  %v4171 = vpop.xlane.xlu0 %4170
  %v4172 = vadd.f32 %v4031, %v4033
  %4173 = vadd.xlane.f32.xlu0 %v4172
  %v4174 = vpop.xlane.xlu0 %4173
  %v4175 = vadd.f32 %v4037, %v4039
  %4176 = vadd.xlane.f32.xlu0 %v4175
  %v4177 = vpop.xlane.xlu0 %4176
  %v4178 = vadd.f32 %v4041, %v4043
  %4179 = vadd.xlane.f32.xlu0 %v4178
  %v4180 = vpop.xlane.xlu0 %4179
  %v4181 = vadd.f32 %v4047, %v4049
  %4182 = vadd.xlane.f32.xlu0 %v4181
  %v4183 = vpop.xlane.xlu0 %4182
  %v4184 = vadd.f32 %v4051, %v4053
  %4185 = vadd.xlane.f32.xlu0 %v4184
  %v4186 = vpop.xlane.xlu0 %4185
  %v4187 = vadd.f32 %v4057, %v4059
  %4188 = vadd.xlane.f32.xlu0 %v4187
  %v4189 = vpop.xlane.xlu0 %4188
  %v4190 = vadd.f32 %v4061, %v4063
  %4191 = vadd.xlane.f32.xlu0 %v4190
  %v4192 = vpop.xlane.xlu0 %4191
  %v4193 = vadd.f32 %v4067, %v4069
  %4194 = vadd.xlane.f32.xlu0 %v4193
  %v4195 = vpop.xlane.xlu0 %4194
  %v4196 = vadd.f32 %v4071, %v4073
  %4197 = vadd.xlane.f32.xlu0 %v4196
  %v4198 = vpop.xlane.xlu0 %4197
  %v4199 = vadd.f32 %v4077, %v4079
  %4200 = vadd.xlane.f32.xlu0 %v4199
  %v4201 = vpop.xlane.xlu0 %4200
  %v4202 = vadd.f32 %v4081, %v4083
  %4203 = vadd.xlane.f32.xlu0 %v4202
  %v4204 = vpop.xlane.xlu0 %4203
  %v4205 = vadd.f32 %v4087, %v4089
  %4206 = vadd.xlane.f32.xlu0 %v4205
  %v4207 = vpop.xlane.xlu0 %4206
  %v4208 = vadd.f32 %v4091, %v4093
  %4209 = vadd.xlane.f32.xlu0 %v4208
  %v4210 = vpop.xlane.xlu0 %4209
  %v4211 = vadd.f32 %v4097, %v4099
  %4212 = vadd.xlane.f32.xlu0 %v4211
  %v4213 = vpop.xlane.xlu0 %4212
  %v4214 = vadd.f32 %v4101, %v4103
  %4215 = vadd.xlane.f32.xlu0 %v4214
  %v4216 = vpop.xlane.xlu0 %4215
  %v4217 = vadd.f32 %v4107, %v4109
  %4218 = vadd.xlane.f32.xlu0 %v4217
  %v4219 = vpop.xlane.xlu0 %4218
  %v4220 = vadd.f32 %v4111, %v4113
  %4221 = vadd.xlane.f32.xlu0 %v4220
  %v4222 = vpop.xlane.xlu0 %4221
  %v4223 = vadd.f32 %v4117, %v4119
  %4224 = vadd.xlane.f32.xlu0 %v4223
  %v4225 = vpop.xlane.xlu0 %4224
  %v4226 = vadd.f32 %v4121, %v4123
  %4227 = vadd.xlane.f32.xlu0 %v4226
  %v4228 = vpop.xlane.xlu0 %4227
  %v4229 = vadd.f32 %v4127, %v4129
  %4230 = vadd.xlane.f32.xlu0 %v4229
  %v4231 = vpop.xlane.xlu0 %4230
  %v4232 = vadd.f32 %v4131, %v4133
  %4233 = vadd.xlane.f32.xlu0 %v4232
  %v4234 = vpop.xlane.xlu0 %4233
  %v4235 = vadd.f32 %v4137, %v4139
  %4236 = vadd.xlane.f32.xlu0 %v4235
  %v4237 = vpop.xlane.xlu0 %4236
  %v4238 = vadd.f32 %v4141, %v4143
  %4239 = vadd.xlane.f32.xlu0 %v4238
  %v4240 = vpop.xlane.xlu0 %4239
  %v4241 = vrcp.pop 256.0
  %v4242 = vmul.f32 %v4147, %v4241
  %v4243 = vmul.f32 %v4150, %v4241
  %v4244 = vmul.f32 %v4153, %v4241
  %v4245 = vmul.f32 %v4156, %v4241
  %v4246 = vmul.f32 %v4159, %v4241
  %v4247 = vmul.f32 %v4162, %v4241
  %v4248 = vmul.f32 %v4165, %v4241
  %v4249 = vmul.f32 %v4168, %v4241
  %v4250 = vmul.f32 %v4171, %v4241
  %v4251 = vmul.f32 %v4174, %v4241
  %v4252 = vmul.f32 %v4177, %v4241
  %v4253 = vmul.f32 %v4180, %v4241
  %v4254 = vmul.f32 %v4183, %v4241
  %v4255 = vmul.f32 %v4186, %v4241
  %v4256 = vmul.f32 %v4189, %v4241
  %v4257 = vmul.f32 %v4192, %v4241
  %v4258 = vmul.f32 %v4195, %v4241
  %v4259 = vmul.f32 %v4198, %v4241
  %v4260 = vmul.f32 %v4201, %v4241
  %v4261 = vmul.f32 %v4204, %v4241
  %v4262 = vmul.f32 %v4207, %v4241
  %v4263 = vmul.f32 %v4210, %v4241
  %v4264 = vmul.f32 %v4213, %v4241
  %v4265 = vmul.f32 %v4216, %v4241
  %v4266 = vmul.f32 %v4219, %v4241
  %v4267 = vmul.f32 %v4222, %v4241
  %v4268 = vmul.f32 %v4225, %v4241
  %v4269 = vmul.f32 %v4228, %v4241
  %v4270 = vmul.f32 %v4231, %v4241
  %v4271 = vmul.f32 %v4234, %v4241
  %v4272 = vmul.f32 %v4237, %v4241
  %v4273 = vmul.f32 %v4240, %v4241
  %v4274 = vsub.f32 %v3987, %v4242
  %v4275 = vsub.f32 %v3989, %v4242
  %v4276 = vsub.f32 %v3991, %v4243
  %v4277 = vsub.f32 %v3993, %v4243
  %v4278 = vsub.f32 %v3997, %v4244
  %v4279 = vsub.f32 %v3999, %v4244
  %v4280 = vsub.f32 %v4001, %v4245
  %v4281 = vsub.f32 %v4003, %v4245
  %v4282 = vsub.f32 %v4007, %v4246
  %v4283 = vsub.f32 %v4009, %v4246
  %v4284 = vsub.f32 %v4011, %v4247
  %v4285 = vsub.f32 %v4013, %v4247
  %v4286 = vsub.f32 %v4017, %v4248
  %v4287 = vsub.f32 %v4019, %v4248
  %v4288 = vsub.f32 %v4021, %v4249
  %v4289 = vsub.f32 %v4023, %v4249
  %v4290 = vsub.f32 %v4027, %v4250
  %v4291 = vsub.f32 %v4029, %v4250
  %v4292 = vsub.f32 %v4031, %v4251
  %v4293 = vsub.f32 %v4033, %v4251
  %v4294 = vsub.f32 %v4037, %v4252
  %v4295 = vsub.f32 %v4039, %v4252
  %v4296 = vsub.f32 %v4041, %v4253
  %v4297 = vsub.f32 %v4043, %v4253
  %v4298 = vsub.f32 %v4047, %v4254
  %v4299 = vsub.f32 %v4049, %v4254
  %v4300 = vsub.f32 %v4051, %v4255
  %v4301 = vsub.f32 %v4053, %v4255
  %v4302 = vsub.f32 %v4057, %v4256
  %v4303 = vsub.f32 %v4059, %v4256
  %v4304 = vsub.f32 %v4061, %v4257
  %v4305 = vsub.f32 %v4063, %v4257
  %v4306 = vsub.f32 %v4067, %v4258
  %v4307 = vsub.f32 %v4069, %v4258
  %v4308 = vsub.f32 %v4071, %v4259
  %v4309 = vsub.f32 %v4073, %v4259
  %v4310 = vsub.f32 %v4077, %v4260
  %v4311 = vsub.f32 %v4079, %v4260
  %v4312 = vsub.f32 %v4081, %v4261
  %v4313 = vsub.f32 %v4083, %v4261
  %v4314 = vsub.f32 %v4087, %v4262
  %v4315 = vsub.f32 %v4089, %v4262
  %v4316 = vsub.f32 %v4091, %v4263
  %v4317 = vsub.f32 %v4093, %v4263
  %v4318 = vsub.f32 %v4097, %v4264
  %v4319 = vsub.f32 %v4099, %v4264
  %v4320 = vsub.f32 %v4101, %v4265
  %v4321 = vsub.f32 %v4103, %v4265
  %v4322 = vsub.f32 %v4107, %v4266
  %v4323 = vsub.f32 %v4109, %v4266
  %v4324 = vsub.f32 %v4111, %v4267
  %v4325 = vsub.f32 %v4113, %v4267
  %v4326 = vsub.f32 %v4117, %v4268
  %v4327 = vsub.f32 %v4119, %v4268
  %v4328 = vsub.f32 %v4121, %v4269
  %v4329 = vsub.f32 %v4123, %v4269
  %v4330 = vsub.f32 %v4127, %v4270
  %v4331 = vsub.f32 %v4129, %v4270
  %v4332 = vsub.f32 %v4131, %v4271
  %v4333 = vsub.f32 %v4133, %v4271
  %v4334 = vsub.f32 %v4137, %v4272
  %v4335 = vsub.f32 %v4139, %v4272
  %v4336 = vsub.f32 %v4141, %v4273
  %v4337 = vsub.f32 %v4143, %v4273
  %v4338 = vmul.f32 %v4274, %v4274
  %v4339 = vmul.f32 %v4275, %v4275
  %v4340 = vmul.f32 %v4276, %v4276
  %v4341 = vmul.f32 %v4277, %v4277
  %v4342 = vmul.f32 %v4278, %v4278
  %v4343 = vmul.f32 %v4279, %v4279
  %v4344 = vmul.f32 %v4280, %v4280
  %v4345 = vmul.f32 %v4281, %v4281
  %v4346 = vmul.f32 %v4282, %v4282
  %v4347 = vmul.f32 %v4283, %v4283
  %v4348 = vmul.f32 %v4284, %v4284
  %v4349 = vmul.f32 %v4285, %v4285
  %v4350 = vmul.f32 %v4286, %v4286
  %v4351 = vmul.f32 %v4287, %v4287
  %v4352 = vmul.f32 %v4288, %v4288
  %v4353 = vmul.f32 %v4289, %v4289
  %v4354 = vmul.f32 %v4290, %v4290
  %v4355 = vmul.f32 %v4291, %v4291
  %v4356 = vmul.f32 %v4292, %v4292
  %v4357 = vmul.f32 %v4293, %v4293
  %v4358 = vmul.f32 %v4294, %v4294
  %v4359 = vmul.f32 %v4295, %v4295
  %v4360 = vmul.f32 %v4296, %v4296
  %v4361 = vmul.f32 %v4297, %v4297
  %v4362 = vmul.f32 %v4298, %v4298
  %v4363 = vmul.f32 %v4299, %v4299
  %v4364 = vmul.f32 %v4300, %v4300
  %v4365 = vmul.f32 %v4301, %v4301
  %v4366 = vmul.f32 %v4302, %v4302
  %v4367 = vmul.f32 %v4303, %v4303
  %v4368 = vmul.f32 %v4304, %v4304
  %v4369 = vmul.f32 %v4305, %v4305
  %v4370 = vmul.f32 %v4306, %v4306
  %v4371 = vmul.f32 %v4307, %v4307
  %v4372 = vmul.f32 %v4308, %v4308
  %v4373 = vmul.f32 %v4309, %v4309
  %v4374 = vmul.f32 %v4310, %v4310
  %v4375 = vmul.f32 %v4311, %v4311
  %v4376 = vmul.f32 %v4312, %v4312
  %v4377 = vmul.f32 %v4313, %v4313
  %v4378 = vmul.f32 %v4314, %v4314
  %v4379 = vmul.f32 %v4315, %v4315
  %v4380 = vmul.f32 %v4316, %v4316
  %v4381 = vmul.f32 %v4317, %v4317
  %v4382 = vmul.f32 %v4318, %v4318
  %v4383 = vmul.f32 %v4319, %v4319
  %v4384 = vmul.f32 %v4320, %v4320
  %v4385 = vmul.f32 %v4321, %v4321
  %v4386 = vmul.f32 %v4322, %v4322
  %v4387 = vmul.f32 %v4323, %v4323
  %v4388 = vmul.f32 %v4324, %v4324
  %v4389 = vmul.f32 %v4325, %v4325
  %v4390 = vmul.f32 %v4326, %v4326
  %v4391 = vmul.f32 %v4327, %v4327
  %v4392 = vmul.f32 %v4328, %v4328
  %v4393 = vmul.f32 %v4329, %v4329
  %v4394 = vmul.f32 %v4330, %v4330
  %v4395 = vmul.f32 %v4331, %v4331
  %v4396 = vmul.f32 %v4332, %v4332
  %v4397 = vmul.f32 %v4333, %v4333
  %v4398 = vmul.f32 %v4334, %v4334
  %v4399 = vmul.f32 %v4335, %v4335
  %v4400 = vmul.f32 %v4336, %v4336
  %v4401 = vmul.f32 %v4337, %v4337
  %v4402 = vadd.f32 %v4338, %v4339
  %4403 = vadd.xlane.f32.xlu0 %v4402
  %v4404 = vpop.xlane.xlu0 %4403
  %v4405 = vadd.f32 %v4340, %v4341
  %4406 = vadd.xlane.f32.xlu0 %v4405
  %v4407 = vpop.xlane.xlu0 %4406
  %v4408 = vadd.f32 %v4342, %v4343
  %4409 = vadd.xlane.f32.xlu0 %v4408
  %v4410 = vpop.xlane.xlu0 %4409
  %v4411 = vadd.f32 %v4344, %v4345
  %4412 = vadd.xlane.f32.xlu0 %v4411
  %v4413 = vpop.xlane.xlu0 %4412
  %v4414 = vadd.f32 %v4346, %v4347
  %4415 = vadd.xlane.f32.xlu0 %v4414
  %v4416 = vpop.xlane.xlu0 %4415
  %v4417 = vadd.f32 %v4348, %v4349
  %4418 = vadd.xlane.f32.xlu0 %v4417
  %v4419 = vpop.xlane.xlu0 %4418
  %v4420 = vadd.f32 %v4350, %v4351
  %4421 = vadd.xlane.f32.xlu0 %v4420
  %v4422 = vpop.xlane.xlu0 %4421
  %v4423 = vadd.f32 %v4352, %v4353
  %4424 = vadd.xlane.f32.xlu0 %v4423
  %v4425 = vpop.xlane.xlu0 %4424
  %v4426 = vadd.f32 %v4354, %v4355
  %4427 = vadd.xlane.f32.xlu0 %v4426
  %v4428 = vpop.xlane.xlu0 %4427
  %v4429 = vadd.f32 %v4356, %v4357
  %4430 = vadd.xlane.f32.xlu0 %v4429
  %v4431 = vpop.xlane.xlu0 %4430
  %v4432 = vadd.f32 %v4358, %v4359
  %4433 = vadd.xlane.f32.xlu0 %v4432
  %v4434 = vpop.xlane.xlu0 %4433
  %v4435 = vadd.f32 %v4360, %v4361
  %4436 = vadd.xlane.f32.xlu0 %v4435
  %v4437 = vpop.xlane.xlu0 %4436
  %v4438 = vadd.f32 %v4362, %v4363
  %4439 = vadd.xlane.f32.xlu0 %v4438
  %v4440 = vpop.xlane.xlu0 %4439
  %v4441 = vadd.f32 %v4364, %v4365
  %4442 = vadd.xlane.f32.xlu0 %v4441
  %v4443 = vpop.xlane.xlu0 %4442
  %v4444 = vadd.f32 %v4366, %v4367
  %4445 = vadd.xlane.f32.xlu0 %v4444
  %v4446 = vpop.xlane.xlu0 %4445
  %v4447 = vadd.f32 %v4368, %v4369
  %4448 = vadd.xlane.f32.xlu0 %v4447
  %v4449 = vpop.xlane.xlu0 %4448
  %v4450 = vadd.f32 %v4370, %v4371
  %4451 = vadd.xlane.f32.xlu0 %v4450
  %v4452 = vpop.xlane.xlu0 %4451
  %v4453 = vadd.f32 %v4372, %v4373
  %4454 = vadd.xlane.f32.xlu0 %v4453
  %v4455 = vpop.xlane.xlu0 %4454
  %v4456 = vadd.f32 %v4374, %v4375
  %4457 = vadd.xlane.f32.xlu0 %v4456
  %v4458 = vpop.xlane.xlu0 %4457
  %v4459 = vadd.f32 %v4376, %v4377
  %4460 = vadd.xlane.f32.xlu0 %v4459
  %v4461 = vpop.xlane.xlu0 %4460
  %v4462 = vadd.f32 %v4378, %v4379
  %4463 = vadd.xlane.f32.xlu0 %v4462
  %v4464 = vpop.xlane.xlu0 %4463
  %v4465 = vadd.f32 %v4380, %v4381
  %4466 = vadd.xlane.f32.xlu0 %v4465
  %v4467 = vpop.xlane.xlu0 %4466
  %v4468 = vadd.f32 %v4382, %v4383
  %4469 = vadd.xlane.f32.xlu0 %v4468
  %v4470 = vpop.xlane.xlu0 %4469
  %v4471 = vadd.f32 %v4384, %v4385
  %4472 = vadd.xlane.f32.xlu0 %v4471
  %v4473 = vpop.xlane.xlu0 %4472
  %v4474 = vadd.f32 %v4386, %v4387
  %4475 = vadd.xlane.f32.xlu0 %v4474
  %v4476 = vpop.xlane.xlu0 %4475
  %v4477 = vadd.f32 %v4388, %v4389
  %4478 = vadd.xlane.f32.xlu0 %v4477
  %v4479 = vpop.xlane.xlu0 %4478
  %v4480 = vadd.f32 %v4390, %v4391
  %4481 = vadd.xlane.f32.xlu0 %v4480
  %v4482 = vpop.xlane.xlu0 %4481
  %v4483 = vadd.f32 %v4392, %v4393
  %4484 = vadd.xlane.f32.xlu0 %v4483
  %v4485 = vpop.xlane.xlu0 %4484
  %v4486 = vadd.f32 %v4394, %v4395
  %4487 = vadd.xlane.f32.xlu0 %v4486
  %v4488 = vpop.xlane.xlu0 %4487
  %v4489 = vadd.f32 %v4396, %v4397
  %4490 = vadd.xlane.f32.xlu0 %v4489
  %v4491 = vpop.xlane.xlu0 %4490
  %v4492 = vadd.f32 %v4398, %v4399
  %4493 = vadd.xlane.f32.xlu0 %v4492
  %v4494 = vpop.xlane.xlu0 %4493
  %v4495 = vadd.f32 %v4400, %v4401
  %4496 = vadd.xlane.f32.xlu0 %v4495
  %v4497 = vpop.xlane.xlu0 %4496
  %v4498 = vmul.f32 %v4404, %v4241
  %v4499 = vmul.f32 %v4407, %v4241
  %v4500 = vmul.f32 %v4410, %v4241
  %v4501 = vmul.f32 %v4413, %v4241
  %v4502 = vmul.f32 %v4416, %v4241
  %v4503 = vmul.f32 %v4419, %v4241
  %v4504 = vmul.f32 %v4422, %v4241
  %v4505 = vmul.f32 %v4425, %v4241
  %v4506 = vmul.f32 %v4428, %v4241
  %v4507 = vmul.f32 %v4431, %v4241
  %v4508 = vmul.f32 %v4434, %v4241
  %v4509 = vmul.f32 %v4437, %v4241
  %v4510 = vmul.f32 %v4440, %v4241
  %v4511 = vmul.f32 %v4443, %v4241
  %v4512 = vmul.f32 %v4446, %v4241
  %v4513 = vmul.f32 %v4449, %v4241
  %v4514 = vmul.f32 %v4452, %v4241
  %v4515 = vmul.f32 %v4455, %v4241
  %v4516 = vmul.f32 %v4458, %v4241
  %v4517 = vmul.f32 %v4461, %v4241
  %v4518 = vmul.f32 %v4464, %v4241
  %v4519 = vmul.f32 %v4467, %v4241
  %v4520 = vmul.f32 %v4470, %v4241
  %v4521 = vmul.f32 %v4473, %v4241
  %v4522 = vmul.f32 %v4476, %v4241
  %v4523 = vmul.f32 %v4479, %v4241
  %v4524 = vmul.f32 %v4482, %v4241
  %v4525 = vmul.f32 %v4485, %v4241
  %v4526 = vmul.f32 %v4488, %v4241
  %v4527 = vmul.f32 %v4491, %v4241
  %v4528 = vmul.f32 %v4494, %v4241
  %v4529 = vmul.f32 %v4497, %v4241
  %v4530 = vadd.f32 %v4498, 1e-05
  %v4531 = vadd.f32 %v4499, 1e-05
  %v4532 = vadd.f32 %v4500, 1e-05
  %v4533 = vadd.f32 %v4501, 1e-05
  %v4534 = vadd.f32 %v4502, 1e-05
  %v4535 = vadd.f32 %v4503, 1e-05
  %v4536 = vadd.f32 %v4504, 1e-05
  %v4537 = vadd.f32 %v4505, 1e-05
  %v4538 = vadd.f32 %v4506, 1e-05
  %v4539 = vadd.f32 %v4507, 1e-05
  %v4540 = vadd.f32 %v4508, 1e-05
  %v4541 = vadd.f32 %v4509, 1e-05
  %v4542 = vadd.f32 %v4510, 1e-05
  %v4543 = vadd.f32 %v4511, 1e-05
  %v4544 = vadd.f32 %v4512, 1e-05
  %v4545 = vadd.f32 %v4513, 1e-05
  %v4546 = vadd.f32 %v4514, 1e-05
  %v4547 = vadd.f32 %v4515, 1e-05
  %v4548 = vadd.f32 %v4516, 1e-05
  %v4549 = vadd.f32 %v4517, 1e-05
  %v4550 = vadd.f32 %v4518, 1e-05
  %v4551 = vadd.f32 %v4519, 1e-05
  %v4552 = vadd.f32 %v4520, 1e-05
  %v4553 = vadd.f32 %v4521, 1e-05
  %v4554 = vadd.f32 %v4522, 1e-05
  %v4555 = vadd.f32 %v4523, 1e-05
  %v4556 = vadd.f32 %v4524, 1e-05
  %v4557 = vadd.f32 %v4525, 1e-05
  %v4558 = vadd.f32 %v4526, 1e-05
  %v4559 = vadd.f32 %v4527, 1e-05
  %v4560 = vadd.f32 %v4528, 1e-05
  %v4561 = vadd.f32 %v4529, 1e-05
  %v4562 = vrsqrt.pop %v4530
  %v4563 = vrsqrt.pop %v4531
  %v4564 = vrsqrt.pop %v4532
  %v4565 = vrsqrt.pop %v4533
  %v4566 = vrsqrt.pop %v4534
  %v4567 = vrsqrt.pop %v4535
  %v4568 = vrsqrt.pop %v4536
  %v4569 = vrsqrt.pop %v4537
  %v4570 = vrsqrt.pop %v4538
  %v4571 = vrsqrt.pop %v4539
  %v4572 = vrsqrt.pop %v4540
  %v4573 = vrsqrt.pop %v4541
  %v4574 = vrsqrt.pop %v4542
  %v4575 = vrsqrt.pop %v4543
  %v4576 = vrsqrt.pop %v4544
  %v4577 = vrsqrt.pop %v4545
  %v4578 = vrsqrt.pop %v4546
  %v4579 = vrsqrt.pop %v4547
  %v4580 = vrsqrt.pop %v4548
  %v4581 = vrsqrt.pop %v4549
  %v4582 = vrsqrt.pop %v4550
  %v4583 = vrsqrt.pop %v4551
  %v4584 = vrsqrt.pop %v4552
  %v4585 = vrsqrt.pop %v4553
  %v4586 = vrsqrt.pop %v4554
  %v4587 = vrsqrt.pop %v4555
  %v4588 = vrsqrt.pop %v4556
  %v4589 = vrsqrt.pop %v4557
  %v4590 = vrsqrt.pop %v4558
  %v4591 = vrsqrt.pop %v4559
  %v4592 = vrsqrt.pop %v4560
  %v4593 = vrsqrt.pop %v4561
  %v4594 = vmul.f32 %v4274, %v4562
  %v4595 = vmul.f32 %v4275, %v4562
  %v4596 = vmul.f32 %v4276, %v4563
  %v4597 = vmul.f32 %v4277, %v4563
  %v4598 = vmul.f32 %v4278, %v4564
  %v4599 = vmul.f32 %v4279, %v4564
  %v4600 = vmul.f32 %v4280, %v4565
  %v4601 = vmul.f32 %v4281, %v4565
  %v4602 = vmul.f32 %v4282, %v4566
  %v4603 = vmul.f32 %v4283, %v4566
  %v4604 = vmul.f32 %v4284, %v4567
  %v4605 = vmul.f32 %v4285, %v4567
  %v4606 = vmul.f32 %v4286, %v4568
  %v4607 = vmul.f32 %v4287, %v4568
  %v4608 = vmul.f32 %v4288, %v4569
  %v4609 = vmul.f32 %v4289, %v4569
  %v4610 = vmul.f32 %v4290, %v4570
  %v4611 = vmul.f32 %v4291, %v4570
  %v4612 = vmul.f32 %v4292, %v4571
  %v4613 = vmul.f32 %v4293, %v4571
  %v4614 = vmul.f32 %v4294, %v4572
  %v4615 = vmul.f32 %v4295, %v4572
  %v4616 = vmul.f32 %v4296, %v4573
  %v4617 = vmul.f32 %v4297, %v4573
  %v4618 = vmul.f32 %v4298, %v4574
  %v4619 = vmul.f32 %v4299, %v4574
  %v4620 = vmul.f32 %v4300, %v4575
  %v4621 = vmul.f32 %v4301, %v4575
  %v4622 = vmul.f32 %v4302, %v4576
  %v4623 = vmul.f32 %v4303, %v4576
  %v4624 = vmul.f32 %v4304, %v4577
  %v4625 = vmul.f32 %v4305, %v4577
  %v4626 = vmul.f32 %v4306, %v4578
  %v4627 = vmul.f32 %v4307, %v4578
  %v4628 = vmul.f32 %v4308, %v4579
  %v4629 = vmul.f32 %v4309, %v4579
  %v4630 = vmul.f32 %v4310, %v4580
  %v4631 = vmul.f32 %v4311, %v4580
  %v4632 = vmul.f32 %v4312, %v4581
  %v4633 = vmul.f32 %v4313, %v4581
  %v4634 = vmul.f32 %v4314, %v4582
  %v4635 = vmul.f32 %v4315, %v4582
  %v4636 = vmul.f32 %v4316, %v4583
  %v4637 = vmul.f32 %v4317, %v4583
  %v4638 = vmul.f32 %v4318, %v4584
  %v4639 = vmul.f32 %v4319, %v4584
  %v4640 = vmul.f32 %v4320, %v4585
  %v4641 = vmul.f32 %v4321, %v4585
  %v4642 = vmul.f32 %v4322, %v4586
  %v4643 = vmul.f32 %v4323, %v4586
  %v4644 = vmul.f32 %v4324, %v4587
  %v4645 = vmul.f32 %v4325, %v4587
  %v4646 = vmul.f32 %v4326, %v4588
  %v4647 = vmul.f32 %v4327, %v4588
  %v4648 = vmul.f32 %v4328, %v4589
  %v4649 = vmul.f32 %v4329, %v4589
  %v4650 = vmul.f32 %v4330, %v4590
  %v4651 = vmul.f32 %v4331, %v4590
  %v4652 = vmul.f32 %v4332, %v4591
  %v4653 = vmul.f32 %v4333, %v4591
  %v4654 = vmul.f32 %v4334, %v4592
  %v4655 = vmul.f32 %v4335, %v4592
  %v4656 = vmul.f32 %v4336, %v4593
  %v4657 = vmul.f32 %v4337, %v4593
  %v4658 = vld [vmem:[%s7 + $0xe] sm:$0x3]
  %v4660 = vlaneseq
  %v4661 = vshrl.u32 %v4660, 7
  %v4662 = vsub.s32 0, %v4661
  %v4663 = vrot.slane %v4658, %v4662
  %v4664 = vlaneseq
  %v4665 = vshrl.u32 %v4664, 7
  %v4666 = vsub.s32 1, %v4665
  %v4667 = vrot.slane %v4658, %v4666
  %v4670 = vmul.f32 %v4594, %v4663
  %v4671 = vmul.f32 %v4595, %v4667
  %v4672 = vmul.f32 %v4596, %v4663
  %v4673 = vmul.f32 %v4597, %v4667
  %v4674 = vmul.f32 %v4598, %v4663
  %v4675 = vmul.f32 %v4599, %v4667
  %v4676 = vmul.f32 %v4600, %v4663
  %v4677 = vmul.f32 %v4601, %v4667
  %v4678 = vmul.f32 %v4602, %v4663
  %v4679 = vmul.f32 %v4603, %v4667
  %v4680 = vmul.f32 %v4604, %v4663
  %v4681 = vmul.f32 %v4605, %v4667
  %v4682 = vmul.f32 %v4606, %v4663
  %v4683 = vmul.f32 %v4607, %v4667
  %v4684 = vmul.f32 %v4608, %v4663
  %v4685 = vmul.f32 %v4609, %v4667
  %v4686 = vmul.f32 %v4610, %v4663
  %v4687 = vmul.f32 %v4611, %v4667
  %v4688 = vmul.f32 %v4612, %v4663
  %v4689 = vmul.f32 %v4613, %v4667
  %v4690 = vmul.f32 %v4614, %v4663
  %v4691 = vmul.f32 %v4615, %v4667
  %v4692 = vmul.f32 %v4616, %v4663
  %v4693 = vmul.f32 %v4617, %v4667
  %v4694 = vmul.f32 %v4618, %v4663
  %v4695 = vmul.f32 %v4619, %v4667
  %v4696 = vmul.f32 %v4620, %v4663
  %v4697 = vmul.f32 %v4621, %v4667
  %v4698 = vmul.f32 %v4622, %v4663
  %v4699 = vmul.f32 %v4623, %v4667
  %v4700 = vmul.f32 %v4624, %v4663
  %v4701 = vmul.f32 %v4625, %v4667
  %v4702 = vmul.f32 %v4626, %v4663
  %v4703 = vmul.f32 %v4627, %v4667
  %v4704 = vmul.f32 %v4628, %v4663
  %v4705 = vmul.f32 %v4629, %v4667
  %v4706 = vmul.f32 %v4630, %v4663
  %v4707 = vmul.f32 %v4631, %v4667
  %v4708 = vmul.f32 %v4632, %v4663
  %v4709 = vmul.f32 %v4633, %v4667
  %v4710 = vmul.f32 %v4634, %v4663
  %v4711 = vmul.f32 %v4635, %v4667
  %v4712 = vmul.f32 %v4636, %v4663
  %v4713 = vmul.f32 %v4637, %v4667
  %v4714 = vmul.f32 %v4638, %v4663
  %v4715 = vmul.f32 %v4639, %v4667
  %v4716 = vmul.f32 %v4640, %v4663
  %v4717 = vmul.f32 %v4641, %v4667
  %v4718 = vmul.f32 %v4642, %v4663
  %v4719 = vmul.f32 %v4643, %v4667
  %v4720 = vmul.f32 %v4644, %v4663
  %v4721 = vmul.f32 %v4645, %v4667
  %v4722 = vmul.f32 %v4646, %v4663
  %v4723 = vmul.f32 %v4647, %v4667
  %v4724 = vmul.f32 %v4648, %v4663
  %v4725 = vmul.f32 %v4649, %v4667
  %v4726 = vmul.f32 %v4650, %v4663
  %v4727 = vmul.f32 %v4651, %v4667
  %v4728 = vmul.f32 %v4652, %v4663
  %v4729 = vmul.f32 %v4653, %v4667
  %v4730 = vmul.f32 %v4654, %v4663
  %v4731 = vmul.f32 %v4655, %v4667
  %v4732 = vmul.f32 %v4656, %v4663
  %v4733 = vmul.f32 %v4657, %v4667
  %v4734 = vld [vmem:[%s7 + $0x10] sm:$0x3]
  %v4736 = vlaneseq
  %v4737 = vshrl.u32 %v4736, 7
  %v4738 = vsub.s32 0, %v4737
  %v4739 = vrot.slane %v4734, %v4738
  %v4740 = vlaneseq
  %v4741 = vshrl.u32 %v4740, 7
  %v4742 = vsub.s32 1, %v4741
  %v4743 = vrot.slane %v4734, %v4742
  %v4746 = vadd.f32 %v4670, %v4739
  %v4747 = vadd.f32 %v4671, %v4743
  %v4748 = vadd.f32 %v4672, %v4739
  %v4749 = vadd.f32 %v4673, %v4743
  %v4750 = vadd.f32 %v4674, %v4739
  %v4751 = vadd.f32 %v4675, %v4743
  %v4752 = vadd.f32 %v4676, %v4739
  %v4753 = vadd.f32 %v4677, %v4743
  %v4754 = vadd.f32 %v4678, %v4739
  %v4755 = vadd.f32 %v4679, %v4743
  %v4756 = vadd.f32 %v4680, %v4739
  %v4757 = vadd.f32 %v4681, %v4743
  %v4758 = vadd.f32 %v4682, %v4739
  %v4759 = vadd.f32 %v4683, %v4743
  %v4760 = vadd.f32 %v4684, %v4739
  %v4761 = vadd.f32 %v4685, %v4743
  %v4762 = vadd.f32 %v4686, %v4739
  %v4763 = vadd.f32 %v4687, %v4743
  %v4764 = vadd.f32 %v4688, %v4739
  %v4765 = vadd.f32 %v4689, %v4743
  %v4766 = vadd.f32 %v4690, %v4739
  %v4767 = vadd.f32 %v4691, %v4743
  %v4768 = vadd.f32 %v4692, %v4739
  %v4769 = vadd.f32 %v4693, %v4743
  %v4770 = vadd.f32 %v4694, %v4739
  %v4771 = vadd.f32 %v4695, %v4743
  %v4772 = vadd.f32 %v4696, %v4739
  %v4773 = vadd.f32 %v4697, %v4743
  %v4774 = vadd.f32 %v4698, %v4739
  %v4775 = vadd.f32 %v4699, %v4743
  %v4776 = vadd.f32 %v4700, %v4739
  %v4777 = vadd.f32 %v4701, %v4743
  %v4778 = vadd.f32 %v4702, %v4739
  %v4779 = vadd.f32 %v4703, %v4743
  %v4780 = vadd.f32 %v4704, %v4739
  %v4781 = vadd.f32 %v4705, %v4743
  %v4782 = vadd.f32 %v4706, %v4739
  %v4783 = vadd.f32 %v4707, %v4743
  %v4784 = vadd.f32 %v4708, %v4739
  %v4785 = vadd.f32 %v4709, %v4743
  %v4786 = vadd.f32 %v4710, %v4739
  %v4787 = vadd.f32 %v4711, %v4743
  %v4788 = vadd.f32 %v4712, %v4739
  %v4789 = vadd.f32 %v4713, %v4743
  %v4790 = vadd.f32 %v4714, %v4739
  %v4791 = vadd.f32 %v4715, %v4743
  %v4792 = vadd.f32 %v4716, %v4739
  %v4793 = vadd.f32 %v4717, %v4743
  %v4794 = vadd.f32 %v4718, %v4739
  %v4795 = vadd.f32 %v4719, %v4743
  %v4796 = vadd.f32 %v4720, %v4739
  %v4797 = vadd.f32 %v4721, %v4743
  %v4798 = vadd.f32 %v4722, %v4739
  %v4799 = vadd.f32 %v4723, %v4743
  %v4800 = vadd.f32 %v4724, %v4739
  %v4801 = vadd.f32 %v4725, %v4743
  %v4802 = vadd.f32 %v4726, %v4739
  %v4803 = vadd.f32 %v4727, %v4743
  %v4804 = vadd.f32 %v4728, %v4739
  %v4805 = vadd.f32 %v4729, %v4743
  %v4806 = vadd.f32 %v4730, %v4739
  %v4807 = vadd.f32 %v4731, %v4743
  %v4808 = vadd.f32 %v4732, %v4739
  %v4809 = vadd.f32 %v4733, %v4743
  %v4810 = vmin.f32 %v4746, 20.0
  %v4811 = vmin.f32 %v4747, 20.0
  %v4812 = vmin.f32 %v4748, 20.0
  %v4813 = vmin.f32 %v4749, 20.0
  %v4814 = vmin.f32 %v4750, 20.0
  %v4815 = vmin.f32 %v4751, 20.0
  %v4816 = vmin.f32 %v4752, 20.0
  %v4817 = vmin.f32 %v4753, 20.0
  %v4818 = vmin.f32 %v4754, 20.0
  %v4819 = vmin.f32 %v4755, 20.0
  %v4820 = vmin.f32 %v4756, 20.0
  %v4821 = vmin.f32 %v4757, 20.0
  %v4822 = vmin.f32 %v4758, 20.0
  %v4823 = vmin.f32 %v4759, 20.0
  %v4824 = vmin.f32 %v4760, 20.0
  %v4825 = vmin.f32 %v4761, 20.0
  %v4826 = vmin.f32 %v4762, 20.0
  %v4827 = vmin.f32 %v4763, 20.0
  %v4828 = vmin.f32 %v4764, 20.0
  %v4829 = vmin.f32 %v4765, 20.0
  %v4830 = vmin.f32 %v4766, 20.0
  %v4831 = vmin.f32 %v4767, 20.0
  %v4832 = vmin.f32 %v4768, 20.0
  %v4833 = vmin.f32 %v4769, 20.0
  %v4834 = vmin.f32 %v4770, 20.0
  %v4835 = vmin.f32 %v4771, 20.0
  %v4836 = vmin.f32 %v4772, 20.0
  %v4837 = vmin.f32 %v4773, 20.0
  %v4838 = vmin.f32 %v4774, 20.0
  %v4839 = vmin.f32 %v4775, 20.0
  %v4840 = vmin.f32 %v4776, 20.0
  %v4841 = vmin.f32 %v4777, 20.0
  %v4842 = vmin.f32 %v4778, 20.0
  %v4843 = vmin.f32 %v4779, 20.0
  %v4844 = vmin.f32 %v4780, 20.0
  %v4845 = vmin.f32 %v4781, 20.0
  %v4846 = vmin.f32 %v4782, 20.0
  %v4847 = vmin.f32 %v4783, 20.0
  %v4848 = vmin.f32 %v4784, 20.0
  %v4849 = vmin.f32 %v4785, 20.0
  %v4850 = vmin.f32 %v4786, 20.0
  %v4851 = vmin.f32 %v4787, 20.0
  %v4852 = vmin.f32 %v4788, 20.0
  %v4853 = vmin.f32 %v4789, 20.0
  %v4854 = vmin.f32 %v4790, 20.0
  %v4855 = vmin.f32 %v4791, 20.0
  %v4856 = vmin.f32 %v4792, 20.0
  %v4857 = vmin.f32 %v4793, 20.0
  %v4858 = vmin.f32 %v4794, 20.0
  %v4859 = vmin.f32 %v4795, 20.0
  %v4860 = vmin.f32 %v4796, 20.0
  %v4861 = vmin.f32 %v4797, 20.0
  %v4862 = vmin.f32 %v4798, 20.0
  %v4863 = vmin.f32 %v4799, 20.0
  %v4864 = vmin.f32 %v4800, 20.0
  %v4865 = vmin.f32 %v4801, 20.0
  %v4866 = vmin.f32 %v4802, 20.0
  %v4867 = vmin.f32 %v4803, 20.0
  %v4868 = vmin.f32 %v4804, 20.0
  %v4869 = vmin.f32 %v4805, 20.0
  %v4870 = vmin.f32 %v4806, 20.0
  %v4871 = vmin.f32 %v4807, 20.0
  %v4872 = vmin.f32 %v4808, 20.0
  %v4873 = vmin.f32 %v4809, 20.0
  %v4874 = vmul.f32 %v4810, 1.442695
  %v4875 = vpow.pop %v4874
  %v4876 = vmul.f32 %v4811, 1.442695
  %v4877 = vpow.pop %v4876
  %v4878 = vmul.f32 %v4812, 1.442695
  %v4879 = vpow.pop %v4878
  %v4880 = vmul.f32 %v4813, 1.442695
  %v4881 = vpow.pop %v4880
  %v4882 = vmul.f32 %v4814, 1.442695
  %v4883 = vpow.pop %v4882
  %v4884 = vmul.f32 %v4815, 1.442695
  %v4885 = vpow.pop %v4884
  %v4886 = vmul.f32 %v4816, 1.442695
  %v4887 = vpow.pop %v4886
  %v4888 = vmul.f32 %v4817, 1.442695
  %v4889 = vpow.pop %v4888
  %v4890 = vmul.f32 %v4818, 1.442695
  %v4891 = vpow.pop %v4890
  %v4892 = vmul.f32 %v4819, 1.442695
  %v4893 = vpow.pop %v4892
  %v4894 = vmul.f32 %v4820, 1.442695
  %v4895 = vpow.pop %v4894
  %v4896 = vmul.f32 %v4821, 1.442695
  %v4897 = vpow.pop %v4896
  %v4898 = vmul.f32 %v4822, 1.442695
  %v4899 = vpow.pop %v4898
  %v4900 = vmul.f32 %v4823, 1.442695
  %v4901 = vpow.pop %v4900
  %v4902 = vmul.f32 %v4824, 1.442695
  %v4903 = vpow.pop %v4902
  %v4904 = vmul.f32 %v4825, 1.442695
  %v4905 = vpow.pop %v4904
  %v4906 = vmul.f32 %v4826, 1.442695
  %v4907 = vpow.pop %v4906
  %v4908 = vmul.f32 %v4827, 1.442695
  %v4909 = vpow.pop %v4908
  %v4910 = vmul.f32 %v4828, 1.442695
  %v4911 = vpow.pop %v4910
  %v4912 = vmul.f32 %v4829, 1.442695
  %v4913 = vpow.pop %v4912
  %v4914 = vmul.f32 %v4830, 1.442695
  %v4915 = vpow.pop %v4914
  %v4916 = vmul.f32 %v4831, 1.442695
  %v4917 = vpow.pop %v4916
  %v4918 = vmul.f32 %v4832, 1.442695
  %v4919 = vpow.pop %v4918
  %v4920 = vmul.f32 %v4833, 1.442695
  %v4921 = vpow.pop %v4920
  %v4922 = vmul.f32 %v4834, 1.442695
  %v4923 = vpow.pop %v4922
  %v4924 = vmul.f32 %v4835, 1.442695
  %v4925 = vpow.pop %v4924
  %v4926 = vmul.f32 %v4836, 1.442695
  %v4927 = vpow.pop %v4926
  %v4928 = vmul.f32 %v4837, 1.442695
  %v4929 = vpow.pop %v4928
  %v4930 = vmul.f32 %v4838, 1.442695
  %v4931 = vpow.pop %v4930
  %v4932 = vmul.f32 %v4839, 1.442695
  %v4933 = vpow.pop %v4932
  %v4934 = vmul.f32 %v4840, 1.442695
  %v4935 = vpow.pop %v4934
  %v4936 = vmul.f32 %v4841, 1.442695
  %v4937 = vpow.pop %v4936
  %v4938 = vmul.f32 %v4842, 1.442695
  %v4939 = vpow.pop %v4938
  %v4940 = vmul.f32 %v4843, 1.442695
  %v4941 = vpow.pop %v4940
  %v4942 = vmul.f32 %v4844, 1.442695
  %v4943 = vpow.pop %v4942
  %v4944 = vmul.f32 %v4845, 1.442695
  %v4945 = vpow.pop %v4944
  %v4946 = vmul.f32 %v4846, 1.442695
  %v4947 = vpow.pop %v4946
  %v4948 = vmul.f32 %v4847, 1.442695
  %v4949 = vpow.pop %v4948
  %v4950 = vmul.f32 %v4848, 1.442695
  %v4951 = vpow.pop %v4950
  %v4952 = vmul.f32 %v4849, 1.442695
  %v4953 = vpow.pop %v4952
  %v4954 = vmul.f32 %v4850, 1.442695
  %v4955 = vpow.pop %v4954
  %v4956 = vmul.f32 %v4851, 1.442695
  %v4957 = vpow.pop %v4956
  %v4958 = vmul.f32 %v4852, 1.442695
  %v4959 = vpow.pop %v4958
  %v4960 = vmul.f32 %v4853, 1.442695
  %v4961 = vpow.pop %v4960
  %v4962 = vmul.f32 %v4854, 1.442695
  %v4963 = vpow.pop %v4962
  %v4964 = vmul.f32 %v4855, 1.442695
  %v4965 = vpow.pop %v4964
  %v4966 = vmul.f32 %v4856, 1.442695
  %v4967 = vpow.pop %v4966
  %v4968 = vmul.f32 %v4857, 1.442695
  %v4969 = vpow.pop %v4968
  %v4970 = vmul.f32 %v4858, 1.442695
  %v4971 = vpow.pop %v4970
  %v4972 = vmul.f32 %v4859, 1.442695
  %v4973 = vpow.pop %v4972
  %v4974 = vmul.f32 %v4860, 1.442695
  %v4975 = vpow.pop %v4974
  %v4976 = vmul.f32 %v4861, 1.442695
  %v4977 = vpow.pop %v4976
  %v4978 = vmul.f32 %v4862, 1.442695
  %v4979 = vpow.pop %v4978
  %v4980 = vmul.f32 %v4863, 1.442695
  %v4981 = vpow.pop %v4980
  %v4982 = vmul.f32 %v4864, 1.442695
  %v4983 = vpow.pop %v4982
  %v4984 = vmul.f32 %v4865, 1.442695
  %v4985 = vpow.pop %v4984
  %v4986 = vmul.f32 %v4866, 1.442695
  %v4987 = vpow.pop %v4986
  %v4988 = vmul.f32 %v4867, 1.442695
  %v4989 = vpow.pop %v4988
  %v4990 = vmul.f32 %v4868, 1.442695
  %v4991 = vpow.pop %v4990
  %v4992 = vmul.f32 %v4869, 1.442695
  %v4993 = vpow.pop %v4992
  %v4994 = vmul.f32 %v4870, 1.442695
  %v4995 = vpow.pop %v4994
  %v4996 = vmul.f32 %v4871, 1.442695
  %v4997 = vpow.pop %v4996
  %v4998 = vmul.f32 %v4872, 1.442695
  %v4999 = vpow.pop %v4998
  %v5000 = vmul.f32 %v4873, 1.442695
  %v5001 = vpow.pop %v5000
  %v5002 = vadd.f32 %v4875, 1.0
  %v5003 = vadd.f32 %v4877, 1.0
  %v5004 = vadd.f32 %v4879, 1.0
  %v5005 = vadd.f32 %v4881, 1.0
  %v5006 = vadd.f32 %v4883, 1.0
  %v5007 = vadd.f32 %v4885, 1.0
  %v5008 = vadd.f32 %v4887, 1.0
  %v5009 = vadd.f32 %v4889, 1.0
  %v5010 = vadd.f32 %v4891, 1.0
  %v5011 = vadd.f32 %v4893, 1.0
  %v5012 = vadd.f32 %v4895, 1.0
  %v5013 = vadd.f32 %v4897, 1.0
  %v5014 = vadd.f32 %v4899, 1.0
  %v5015 = vadd.f32 %v4901, 1.0
  %v5016 = vadd.f32 %v4903, 1.0
  %v5017 = vadd.f32 %v4905, 1.0
  %v5018 = vadd.f32 %v4907, 1.0
  %v5019 = vadd.f32 %v4909, 1.0
  %v5020 = vadd.f32 %v4911, 1.0
  %v5021 = vadd.f32 %v4913, 1.0
  %v5022 = vadd.f32 %v4915, 1.0
  %v5023 = vadd.f32 %v4917, 1.0
  %v5024 = vadd.f32 %v4919, 1.0
  %v5025 = vadd.f32 %v4921, 1.0
  %v5026 = vadd.f32 %v4923, 1.0
  %v5027 = vadd.f32 %v4925, 1.0
  %v5028 = vadd.f32 %v4927, 1.0
  %v5029 = vadd.f32 %v4929, 1.0
  %v5030 = vadd.f32 %v4931, 1.0
  %v5031 = vadd.f32 %v4933, 1.0
  %v5032 = vadd.f32 %v4935, 1.0
  %v5033 = vadd.f32 %v4937, 1.0
  %v5034 = vadd.f32 %v4939, 1.0
  %v5035 = vadd.f32 %v4941, 1.0
  %v5036 = vadd.f32 %v4943, 1.0
  %v5037 = vadd.f32 %v4945, 1.0
  %v5038 = vadd.f32 %v4947, 1.0
  %v5039 = vadd.f32 %v4949, 1.0
  %v5040 = vadd.f32 %v4951, 1.0
  %v5041 = vadd.f32 %v4953, 1.0
  %v5042 = vadd.f32 %v4955, 1.0
  %v5043 = vadd.f32 %v4957, 1.0
  %v5044 = vadd.f32 %v4959, 1.0
  %v5045 = vadd.f32 %v4961, 1.0
  %v5046 = vadd.f32 %v4963, 1.0
  %v5047 = vadd.f32 %v4965, 1.0
  %v5048 = vadd.f32 %v4967, 1.0
  %v5049 = vadd.f32 %v4969, 1.0
  %v5050 = vadd.f32 %v4971, 1.0
  %v5051 = vadd.f32 %v4973, 1.0
  %v5052 = vadd.f32 %v4975, 1.0
  %v5053 = vadd.f32 %v4977, 1.0
  %v5054 = vadd.f32 %v4979, 1.0
  %v5055 = vadd.f32 %v4981, 1.0
  %v5056 = vadd.f32 %v4983, 1.0
  %v5057 = vadd.f32 %v4985, 1.0
  %v5058 = vadd.f32 %v4987, 1.0
  %v5059 = vadd.f32 %v4989, 1.0
  %v5060 = vadd.f32 %v4991, 1.0
  %v5061 = vadd.f32 %v4993, 1.0
  %v5062 = vadd.f32 %v4995, 1.0
  %v5063 = vadd.f32 %v4997, 1.0
  %v5064 = vadd.f32 %v4999, 1.0
  %v5065 = vadd.f32 %v5001, 1.0
  %v5066 = vmul.f32 %v5002, %v5002
  %v5067 = vmul.f32 %v5003, %v5003
  %v5068 = vmul.f32 %v5004, %v5004
  %v5069 = vmul.f32 %v5005, %v5005
  %v5070 = vmul.f32 %v5006, %v5006
  %v5071 = vmul.f32 %v5007, %v5007
  %v5072 = vmul.f32 %v5008, %v5008
  %v5073 = vmul.f32 %v5009, %v5009
  %v5074 = vmul.f32 %v5010, %v5010
  %v5075 = vmul.f32 %v5011, %v5011
  %v5076 = vmul.f32 %v5012, %v5012
  %v5077 = vmul.f32 %v5013, %v5013
  %v5078 = vmul.f32 %v5014, %v5014
  %v5079 = vmul.f32 %v5015, %v5015
  %v5080 = vmul.f32 %v5016, %v5016
  %v5081 = vmul.f32 %v5017, %v5017
  %v5082 = vmul.f32 %v5018, %v5018
  %v5083 = vmul.f32 %v5019, %v5019
  %v5084 = vmul.f32 %v5020, %v5020
  %v5085 = vmul.f32 %v5021, %v5021
  %v5086 = vmul.f32 %v5022, %v5022
  %v5087 = vmul.f32 %v5023, %v5023
  %v5088 = vmul.f32 %v5024, %v5024
  %v5089 = vmul.f32 %v5025, %v5025
  %v5090 = vmul.f32 %v5026, %v5026
  %v5091 = vmul.f32 %v5027, %v5027
  %v5092 = vmul.f32 %v5028, %v5028
  %v5093 = vmul.f32 %v5029, %v5029
  %v5094 = vmul.f32 %v5030, %v5030
  %v5095 = vmul.f32 %v5031, %v5031
  %v5096 = vmul.f32 %v5032, %v5032
  %v5097 = vmul.f32 %v5033, %v5033
  %v5098 = vmul.f32 %v5034, %v5034
  %v5099 = vmul.f32 %v5035, %v5035
  %v5100 = vmul.f32 %v5036, %v5036
  %v5101 = vmul.f32 %v5037, %v5037
  %v5102 = vmul.f32 %v5038, %v5038
  %v5103 = vmul.f32 %v5039, %v5039
  %v5104 = vmul.f32 %v5040, %v5040
  %v5105 = vmul.f32 %v5041, %v5041
  %v5106 = vmul.f32 %v5042, %v5042
  %v5107 = vmul.f32 %v5043, %v5043
  %v5108 = vmul.f32 %v5044, %v5044
  %v5109 = vmul.f32 %v5045, %v5045
  %v5110 = vmul.f32 %v5046, %v5046
  %v5111 = vmul.f32 %v5047, %v5047
  %v5112 = vmul.f32 %v5048, %v5048
  %v5113 = vmul.f32 %v5049, %v5049
  %v5114 = vmul.f32 %v5050, %v5050
  %v5115 = vmul.f32 %v5051, %v5051
  %v5116 = vmul.f32 %v5052, %v5052
  %v5117 = vmul.f32 %v5053, %v5053
  %v5118 = vmul.f32 %v5054, %v5054
  %v5119 = vmul.f32 %v5055, %v5055
  %v5120 = vmul.f32 %v5056, %v5056
  %v5121 = vmul.f32 %v5057, %v5057
  %v5122 = vmul.f32 %v5058, %v5058
  %v5123 = vmul.f32 %v5059, %v5059
  %v5124 = vmul.f32 %v5060, %v5060
  %v5125 = vmul.f32 %v5061, %v5061
  %v5126 = vmul.f32 %v5062, %v5062
  %v5127 = vmul.f32 %v5063, %v5063
  %v5128 = vmul.f32 %v5064, %v5064
  %v5129 = vmul.f32 %v5065, %v5065
  %v5130 = vsub.f32 %v5066, 1.0
  %v5131 = vsub.f32 %v5067, 1.0
  %v5132 = vsub.f32 %v5068, 1.0
  %v5133 = vsub.f32 %v5069, 1.0
  %v5134 = vsub.f32 %v5070, 1.0
  %v5135 = vsub.f32 %v5071, 1.0
  %v5136 = vsub.f32 %v5072, 1.0
  %v5137 = vsub.f32 %v5073, 1.0
  %v5138 = vsub.f32 %v5074, 1.0
  %v5139 = vsub.f32 %v5075, 1.0
  %v5140 = vsub.f32 %v5076, 1.0
  %v5141 = vsub.f32 %v5077, 1.0
  %v5142 = vsub.f32 %v5078, 1.0
  %v5143 = vsub.f32 %v5079, 1.0
  %v5144 = vsub.f32 %v5080, 1.0
  %v5145 = vsub.f32 %v5081, 1.0
  %v5146 = vsub.f32 %v5082, 1.0
  %v5147 = vsub.f32 %v5083, 1.0
  %v5148 = vsub.f32 %v5084, 1.0
  %v5149 = vsub.f32 %v5085, 1.0
  %v5150 = vsub.f32 %v5086, 1.0
  %v5151 = vsub.f32 %v5087, 1.0
  %v5152 = vsub.f32 %v5088, 1.0
  %v5153 = vsub.f32 %v5089, 1.0
  %v5154 = vsub.f32 %v5090, 1.0
  %v5155 = vsub.f32 %v5091, 1.0
  %v5156 = vsub.f32 %v5092, 1.0
  %v5157 = vsub.f32 %v5093, 1.0
  %v5158 = vsub.f32 %v5094, 1.0
  %v5159 = vsub.f32 %v5095, 1.0
  %v5160 = vsub.f32 %v5096, 1.0
  %v5161 = vsub.f32 %v5097, 1.0
  %v5162 = vsub.f32 %v5098, 1.0
  %v5163 = vsub.f32 %v5099, 1.0
  %v5164 = vsub.f32 %v5100, 1.0
  %v5165 = vsub.f32 %v5101, 1.0
  %v5166 = vsub.f32 %v5102, 1.0
  %v5167 = vsub.f32 %v5103, 1.0
  %v5168 = vsub.f32 %v5104, 1.0
  %v5169 = vsub.f32 %v5105, 1.0
  %v5170 = vsub.f32 %v5106, 1.0
  %v5171 = vsub.f32 %v5107, 1.0
  %v5172 = vsub.f32 %v5108, 1.0
  %v5173 = vsub.f32 %v5109, 1.0
  %v5174 = vsub.f32 %v5110, 1.0
  %v5175 = vsub.f32 %v5111, 1.0
  %v5176 = vsub.f32 %v5112, 1.0
  %v5177 = vsub.f32 %v5113, 1.0
  %v5178 = vsub.f32 %v5114, 1.0
  %v5179 = vsub.f32 %v5115, 1.0
  %v5180 = vsub.f32 %v5116, 1.0
  %v5181 = vsub.f32 %v5117, 1.0
  %v5182 = vsub.f32 %v5118, 1.0
  %v5183 = vsub.f32 %v5119, 1.0
  %v5184 = vsub.f32 %v5120, 1.0
  %v5185 = vsub.f32 %v5121, 1.0
  %v5186 = vsub.f32 %v5122, 1.0
  %v5187 = vsub.f32 %v5123, 1.0
  %v5188 = vsub.f32 %v5124, 1.0
  %v5189 = vsub.f32 %v5125, 1.0
  %v5190 = vsub.f32 %v5126, 1.0
  %v5191 = vsub.f32 %v5127, 1.0
  %v5192 = vsub.f32 %v5128, 1.0
  %v5193 = vsub.f32 %v5129, 1.0
  %v5194 = vmul.f32 %v4746, %v5130
  %v5195 = vmul.f32 %v4747, %v5131
  %v5196 = vmul.f32 %v4748, %v5132
  %v5197 = vmul.f32 %v4749, %v5133
  %v5198 = vmul.f32 %v4750, %v5134
  %v5199 = vmul.f32 %v4751, %v5135
  %v5200 = vmul.f32 %v4752, %v5136
  %v5201 = vmul.f32 %v4753, %v5137
  %v5202 = vmul.f32 %v4754, %v5138
  %v5203 = vmul.f32 %v4755, %v5139
  %v5204 = vmul.f32 %v4756, %v5140
  %v5205 = vmul.f32 %v4757, %v5141
  %v5206 = vmul.f32 %v4758, %v5142
  %v5207 = vmul.f32 %v4759, %v5143
  %v5208 = vmul.f32 %v4760, %v5144
  %v5209 = vmul.f32 %v4761, %v5145
  %v5210 = vmul.f32 %v4762, %v5146
  %v5211 = vmul.f32 %v4763, %v5147
  %v5212 = vmul.f32 %v4764, %v5148
  %v5213 = vmul.f32 %v4765, %v5149
  %v5214 = vmul.f32 %v4766, %v5150
  %v5215 = vmul.f32 %v4767, %v5151
  %v5216 = vmul.f32 %v4768, %v5152
  %v5217 = vmul.f32 %v4769, %v5153
  %v5218 = vmul.f32 %v4770, %v5154
  %v5219 = vmul.f32 %v4771, %v5155
  %v5220 = vmul.f32 %v4772, %v5156
  %v5221 = vmul.f32 %v4773, %v5157
  %v5222 = vmul.f32 %v4774, %v5158
  %v5223 = vmul.f32 %v4775, %v5159
  %v5224 = vmul.f32 %v4776, %v5160
  %v5225 = vmul.f32 %v4777, %v5161
  %v5226 = vmul.f32 %v4778, %v5162
  %v5227 = vmul.f32 %v4779, %v5163
  %v5228 = vmul.f32 %v4780, %v5164
  %v5229 = vmul.f32 %v4781, %v5165
  %v5230 = vmul.f32 %v4782, %v5166
  %v5231 = vmul.f32 %v4783, %v5167
  %v5232 = vmul.f32 %v4784, %v5168
  %v5233 = vmul.f32 %v4785, %v5169
  %v5234 = vmul.f32 %v4786, %v5170
  %v5235 = vmul.f32 %v4787, %v5171
  %v5236 = vmul.f32 %v4788, %v5172
  %v5237 = vmul.f32 %v4789, %v5173
  %v5238 = vmul.f32 %v4790, %v5174
  %v5239 = vmul.f32 %v4791, %v5175
  %v5240 = vmul.f32 %v4792, %v5176
  %v5241 = vmul.f32 %v4793, %v5177
  %v5242 = vmul.f32 %v4794, %v5178
  %v5243 = vmul.f32 %v4795, %v5179
  %v5244 = vmul.f32 %v4796, %v5180
  %v5245 = vmul.f32 %v4797, %v5181
  %v5246 = vmul.f32 %v4798, %v5182
  %v5247 = vmul.f32 %v4799, %v5183
  %v5248 = vmul.f32 %v4800, %v5184
  %v5249 = vmul.f32 %v4801, %v5185
  %v5250 = vmul.f32 %v4802, %v5186
  %v5251 = vmul.f32 %v4803, %v5187
  %v5252 = vmul.f32 %v4804, %v5188
  %v5253 = vmul.f32 %v4805, %v5189
  %v5254 = vmul.f32 %v4806, %v5190
  %v5255 = vmul.f32 %v4807, %v5191
  %v5256 = vmul.f32 %v4808, %v5192
  %v5257 = vmul.f32 %v4809, %v5193
  %v5258 = vadd.f32 %v5066, 1.0
  %v5259 = vadd.f32 %v5067, 1.0
  %v5260 = vadd.f32 %v5068, 1.0
  %v5261 = vadd.f32 %v5069, 1.0
  %v5262 = vadd.f32 %v5070, 1.0
  %v5263 = vadd.f32 %v5071, 1.0
  %v5264 = vadd.f32 %v5072, 1.0
  %v5265 = vadd.f32 %v5073, 1.0
  %v5266 = vadd.f32 %v5074, 1.0
  %v5267 = vadd.f32 %v5075, 1.0
  %v5268 = vadd.f32 %v5076, 1.0
  %v5269 = vadd.f32 %v5077, 1.0
  %v5270 = vadd.f32 %v5078, 1.0
  %v5271 = vadd.f32 %v5079, 1.0
  %v5272 = vadd.f32 %v5080, 1.0
  %v5273 = vadd.f32 %v5081, 1.0
  %v5274 = vadd.f32 %v5082, 1.0
  %v5275 = vadd.f32 %v5083, 1.0
  %v5276 = vadd.f32 %v5084, 1.0
  %v5277 = vadd.f32 %v5085, 1.0
  %v5278 = vadd.f32 %v5086, 1.0
  %v5279 = vadd.f32 %v5087, 1.0
  %v5280 = vadd.f32 %v5088, 1.0
  %v5281 = vadd.f32 %v5089, 1.0
  %v5282 = vadd.f32 %v5090, 1.0
  %v5283 = vadd.f32 %v5091, 1.0
  %v5284 = vadd.f32 %v5092, 1.0
  %v5285 = vadd.f32 %v5093, 1.0
  %v5286 = vadd.f32 %v5094, 1.0
  %v5287 = vadd.f32 %v5095, 1.0
  %v5288 = vadd.f32 %v5096, 1.0
  %v5289 = vadd.f32 %v5097, 1.0
  %v5290 = vadd.f32 %v5098, 1.0
  %v5291 = vadd.f32 %v5099, 1.0
  %v5292 = vadd.f32 %v5100, 1.0
  %v5293 = vadd.f32 %v5101, 1.0
  %v5294 = vadd.f32 %v5102, 1.0
  %v5295 = vadd.f32 %v5103, 1.0
  %v5296 = vadd.f32 %v5104, 1.0
  %v5297 = vadd.f32 %v5105, 1.0
  %v5298 = vadd.f32 %v5106, 1.0
  %v5299 = vadd.f32 %v5107, 1.0
  %v5300 = vadd.f32 %v5108, 1.0
  %v5301 = vadd.f32 %v5109, 1.0
  %v5302 = vadd.f32 %v5110, 1.0
  %v5303 = vadd.f32 %v5111, 1.0
  %v5304 = vadd.f32 %v5112, 1.0
  %v5305 = vadd.f32 %v5113, 1.0
  %v5306 = vadd.f32 %v5114, 1.0
  %v5307 = vadd.f32 %v5115, 1.0
  %v5308 = vadd.f32 %v5116, 1.0
  %v5309 = vadd.f32 %v5117, 1.0
  %v5310 = vadd.f32 %v5118, 1.0
  %v5311 = vadd.f32 %v5119, 1.0
  %v5312 = vadd.f32 %v5120, 1.0
  %v5313 = vadd.f32 %v5121, 1.0
  %v5314 = vadd.f32 %v5122, 1.0
  %v5315 = vadd.f32 %v5123, 1.0
  %v5316 = vadd.f32 %v5124, 1.0
  %v5317 = vadd.f32 %v5125, 1.0
  %v5318 = vadd.f32 %v5126, 1.0
  %v5319 = vadd.f32 %v5127, 1.0
  %v5320 = vadd.f32 %v5128, 1.0
  %v5321 = vadd.f32 %v5129, 1.0
  %v5322 = vrcp.pop %v5258
  %v5323 = vrcp.pop %v5259
  %v5324 = vrcp.pop %v5260
  %v5325 = vrcp.pop %v5261
  %v5326 = vrcp.pop %v5262
  %v5327 = vrcp.pop %v5263
  %v5328 = vrcp.pop %v5264
  %v5329 = vrcp.pop %v5265
  %v5330 = vrcp.pop %v5266
  %v5331 = vrcp.pop %v5267
  %v5332 = vrcp.pop %v5268
  %v5333 = vrcp.pop %v5269
  %v5334 = vrcp.pop %v5270
  %v5335 = vrcp.pop %v5271
  %v5336 = vrcp.pop %v5272
  %v5337 = vrcp.pop %v5273
  %v5338 = vrcp.pop %v5274
  %v5339 = vrcp.pop %v5275
  %v5340 = vrcp.pop %v5276
  %v5341 = vrcp.pop %v5277
  %v5342 = vrcp.pop %v5278
  %v5343 = vrcp.pop %v5279
  %v5344 = vrcp.pop %v5280
  %v5345 = vrcp.pop %v5281
  %v5346 = vrcp.pop %v5282
  %v5347 = vrcp.pop %v5283
  %v5348 = vrcp.pop %v5284
  %v5349 = vrcp.pop %v5285
  %v5350 = vrcp.pop %v5286
  %v5351 = vrcp.pop %v5287
  %v5352 = vrcp.pop %v5288
  %v5353 = vrcp.pop %v5289
  %v5354 = vrcp.pop %v5290
  %v5355 = vrcp.pop %v5291
  %v5356 = vrcp.pop %v5292
  %v5357 = vrcp.pop %v5293
  %v5358 = vrcp.pop %v5294
  %v5359 = vrcp.pop %v5295
  %v5360 = vrcp.pop %v5296
  %v5361 = vrcp.pop %v5297
  %v5362 = vrcp.pop %v5298
  %v5363 = vrcp.pop %v5299
  %v5364 = vrcp.pop %v5300
  %v5365 = vrcp.pop %v5301
  %v5366 = vrcp.pop %v5302
  %v5367 = vrcp.pop %v5303
  %v5368 = vrcp.pop %v5304
  %v5369 = vrcp.pop %v5305
  %v5370 = vrcp.pop %v5306
  %v5371 = vrcp.pop %v5307
  %v5372 = vrcp.pop %v5308
  %v5373 = vrcp.pop %v5309
  %v5374 = vrcp.pop %v5310
  %v5375 = vrcp.pop %v5311
  %v5376 = vrcp.pop %v5312
  %v5377 = vrcp.pop %v5313
  %v5378 = vrcp.pop %v5314
  %v5379 = vrcp.pop %v5315
  %v5380 = vrcp.pop %v5316
  %v5381 = vrcp.pop %v5317
  %v5382 = vrcp.pop %v5318
  %v5383 = vrcp.pop %v5319
  %v5384 = vrcp.pop %v5320
  %v5385 = vrcp.pop %v5321
  %v5386 = vmul.f32 %v5194, %v5322
  %v5387 = vmul.f32 %v5195, %v5323
  %v5388 = vmul.f32 %v5196, %v5324
  %v5389 = vmul.f32 %v5197, %v5325
  %v5390 = vmul.f32 %v5198, %v5326
  %v5391 = vmul.f32 %v5199, %v5327
  %v5392 = vmul.f32 %v5200, %v5328
  %v5393 = vmul.f32 %v5201, %v5329
  %v5394 = vmul.f32 %v5202, %v5330
  %v5395 = vmul.f32 %v5203, %v5331
  %v5396 = vmul.f32 %v5204, %v5332
  %v5397 = vmul.f32 %v5205, %v5333
  %v5398 = vmul.f32 %v5206, %v5334
  %v5399 = vmul.f32 %v5207, %v5335
  %v5400 = vmul.f32 %v5208, %v5336
  %v5401 = vmul.f32 %v5209, %v5337
  %v5402 = vmul.f32 %v5210, %v5338
  %v5403 = vmul.f32 %v5211, %v5339
  %v5404 = vmul.f32 %v5212, %v5340
  %v5405 = vmul.f32 %v5213, %v5341
  %v5406 = vmul.f32 %v5214, %v5342
  %v5407 = vmul.f32 %v5215, %v5343
  %v5408 = vmul.f32 %v5216, %v5344
  %v5409 = vmul.f32 %v5217, %v5345
  %v5410 = vmul.f32 %v5218, %v5346
  %v5411 = vmul.f32 %v5219, %v5347
  %v5412 = vmul.f32 %v5220, %v5348
  %v5413 = vmul.f32 %v5221, %v5349
  %v5414 = vmul.f32 %v5222, %v5350
  %v5415 = vmul.f32 %v5223, %v5351
  %v5416 = vmul.f32 %v5224, %v5352
  %v5417 = vmul.f32 %v5225, %v5353
  %v5418 = vmul.f32 %v5226, %v5354
  %v5419 = vmul.f32 %v5227, %v5355
  %v5420 = vmul.f32 %v5228, %v5356
  %v5421 = vmul.f32 %v5229, %v5357
  %v5422 = vmul.f32 %v5230, %v5358
  %v5423 = vmul.f32 %v5231, %v5359
  %v5424 = vmul.f32 %v5232, %v5360
  %v5425 = vmul.f32 %v5233, %v5361
  %v5426 = vmul.f32 %v5234, %v5362
  %v5427 = vmul.f32 %v5235, %v5363
  %v5428 = vmul.f32 %v5236, %v5364
  %v5429 = vmul.f32 %v5237, %v5365
  %v5430 = vmul.f32 %v5238, %v5366
  %v5431 = vmul.f32 %v5239, %v5367
  %v5432 = vmul.f32 %v5240, %v5368
  %v5433 = vmul.f32 %v5241, %v5369
  %v5434 = vmul.f32 %v5242, %v5370
  %v5435 = vmul.f32 %v5243, %v5371
  %v5436 = vmul.f32 %v5244, %v5372
  %v5437 = vmul.f32 %v5245, %v5373
  %v5438 = vmul.f32 %v5246, %v5374
  %v5439 = vmul.f32 %v5247, %v5375
  %v5440 = vmul.f32 %v5248, %v5376
  %v5441 = vmul.f32 %v5249, %v5377
  %v5442 = vmul.f32 %v5250, %v5378
  %v5443 = vmul.f32 %v5251, %v5379
  %v5444 = vmul.f32 %v5252, %v5380
  %v5445 = vmul.f32 %v5253, %v5381
  %v5446 = vmul.f32 %v5254, %v5382
  %v5447 = vmul.f32 %v5255, %v5383
  %v5448 = vmul.f32 %v5256, %v5384
  %v5449 = vmul.f32 %v5257, %v5385
  %v5450 = vpack.c.bf16 %v5388, %v5386
  %v5451 = vpack.c.bf16 %v5389, %v5387
  %v5452 = vpack.c.bf16 %v5392, %v5390
  %v5453 = vpack.c.bf16 %v5393, %v5391
  %v5454 = vpack.c.bf16 %v5396, %v5394
  %v5455 = vpack.c.bf16 %v5397, %v5395
  %v5456 = vpack.c.bf16 %v5400, %v5398
  %v5457 = vpack.c.bf16 %v5401, %v5399
  %v5458 = vpack.c.bf16 %v5404, %v5402
  %v5459 = vpack.c.bf16 %v5405, %v5403
  %v5460 = vpack.c.bf16 %v5408, %v5406
  %v5461 = vpack.c.bf16 %v5409, %v5407
  %v5462 = vpack.c.bf16 %v5412, %v5410
  %v5463 = vpack.c.bf16 %v5413, %v5411
  %v5464 = vpack.c.bf16 %v5416, %v5414
  %v5465 = vpack.c.bf16 %v5417, %v5415
  %v5466 = vpack.c.bf16 %v5420, %v5418
  %v5467 = vpack.c.bf16 %v5421, %v5419
  %v5468 = vpack.c.bf16 %v5424, %v5422
  %v5469 = vpack.c.bf16 %v5425, %v5423
  %v5470 = vpack.c.bf16 %v5428, %v5426
  %v5471 = vpack.c.bf16 %v5429, %v5427
  %v5472 = vpack.c.bf16 %v5432, %v5430
  %v5473 = vpack.c.bf16 %v5433, %v5431
  %v5474 = vpack.c.bf16 %v5436, %v5434
  %v5475 = vpack.c.bf16 %v5437, %v5435
  %v5476 = vpack.c.bf16 %v5440, %v5438
  %v5477 = vpack.c.bf16 %v5441, %v5439
  %v5478 = vpack.c.bf16 %v5444, %v5442
  %v5479 = vpack.c.bf16 %v5445, %v5443
  %v5480 = vpack.c.bf16 %v5448, %v5446
  %v5481 = vpack.c.bf16 %v5449, %v5447
  %v5482 = vld [vmem:[%s1] sm:$0xff]
  %v5483 = vld [vmem:[%s1 + $0x8] sm:$0xff]
  %v5484 = vld [vmem:[%s1 + $0x10] sm:$0xff]
  %v5485 = vld [vmem:[%s1 + $0x18] sm:$0xff]
  %v5486 = vld [vmem:[%s1 + $0x20] sm:$0xff]
  %v5487 = vld [vmem:[%s1 + $0x28] sm:$0xff]
  %v5488 = vld [vmem:[%s1 + $0x30] sm:$0xff]
  %v5489 = vld [vmem:[%s1 + $0x38] sm:$0xff]
  %v5490 = vld [vmem:[%s1 + $0x40] sm:$0xff]
  %v5491 = vld [vmem:[%s1 + $0x48] sm:$0xff]
  %v5492 = vld [vmem:[%s1 + $0x50] sm:$0xff]
  %v5493 = vld [vmem:[%s1 + $0x58] sm:$0xff]
  %v5494 = vld [vmem:[%s1 + $0x60] sm:$0xff]
  %v5495 = vld [vmem:[%s1 + $0x68] sm:$0xff]
  %v5496 = vld [vmem:[%s1 + $0x70] sm:$0xff]
  %v5497 = vld [vmem:[%s1 + $0x78] sm:$0xff]
  %v5498 = vld [vmem:[%s1 + $0x80] sm:$0xff]
  %v5499 = vld [vmem:[%s1 + $0x88] sm:$0xff]
  %v5500 = vld [vmem:[%s1 + $0x90] sm:$0xff]
  %v5501 = vld [vmem:[%s1 + $0x98] sm:$0xff]
  %v5502 = vld [vmem:[%s1 + $0xa0] sm:$0xff]
  %v5503 = vld [vmem:[%s1 + $0xa8] sm:$0xff]
  %v5504 = vld [vmem:[%s1 + $0xb0] sm:$0xff]
  %v5505 = vld [vmem:[%s1 + $0xb8] sm:$0xff]
  %v5506 = vld [vmem:[%s1 + $0xc0] sm:$0xff]
  %v5507 = vld [vmem:[%s1 + $0xc8] sm:$0xff]
  %v5508 = vld [vmem:[%s1 + $0xd0] sm:$0xff]
  %v5509 = vld [vmem:[%s1 + $0xd8] sm:$0xff]
  %v5510 = vld [vmem:[%s1 + $0xe0] sm:$0xff]
  %v5511 = vld [vmem:[%s1 + $0xe8] sm:$0xff]
  %v5512 = vld [vmem:[%s1 + $0xf0] sm:$0xff]
  %v5513 = vld [vmem:[%s1 + $0xf8] sm:$0xff]
  %v5514 = vpack.c.bf16 %v5483, %v5482
  %v5515 = vpack.c.bf16 %v5485, %v5484
  %v5516 = vpack.c.bf16 %v5487, %v5486
  %v5517 = vpack.c.bf16 %v5489, %v5488
  %v5518 = vpack.c.bf16 %v5491, %v5490
  %v5519 = vpack.c.bf16 %v5493, %v5492
  %v5520 = vpack.c.bf16 %v5495, %v5494
  %v5521 = vpack.c.bf16 %v5497, %v5496
  %v5522 = vpack.c.bf16 %v5499, %v5498
  %v5523 = vpack.c.bf16 %v5501, %v5500
  %v5524 = vpack.c.bf16 %v5503, %v5502
  %v5525 = vpack.c.bf16 %v5505, %v5504
  %v5526 = vpack.c.bf16 %v5507, %v5506
  %v5527 = vpack.c.bf16 %v5509, %v5508
  %v5528 = vpack.c.bf16 %v5511, %v5510
  %v5529 = vpack.c.bf16 %v5513, %v5512
  %v5536 = vunpack.c.l.b16 %v62
  %v5537 = vunpack.c.l.b16 %v63
  %v5538 = vunpack.c.l.b16 %v64
  %v5539 = vunpack.c.l.b16 %v65
  %v5540 = vunpack.c.l.b16 %v66
  %v5541 = vunpack.c.l.b16 %v67
  %v5542 = vpack.c.b16 %v5537, %v5536
  %v5543 = vpack.c.b16 %v5539, %v5538
  %v5544 = vpack.c.b16 %v5541, %v5540
  %vm5548 = vcmask 392192
  %v5550 = vsel %vm5548, %v5514, 0
  %v5553 = vsel %vm5548, %v5515, 0
  %v5556 = vsel %vm5548, %v5516, 0
  %v5559 = vsel %vm5548, %v5517, 0
  %v5562 = vsel %vm5548, %v5518, 0
  %v5565 = vsel %vm5548, %v5519, 0
  %v5568 = vsel %vm5548, %v5520, 0
  %v5571 = vsel %vm5548, %v5521, 0
  %v5574 = vsel %vm5548, %v5522, 0
  %v5577 = vsel %vm5548, %v5523, 0
  %v5580 = vsel %vm5548, %v5524, 0
  %v5583 = vsel %vm5548, %v5525, 0
  %v5586 = vsel %vm5548, %v5526, 0
  %v5589 = vsel %vm5548, %v5527, 0
  %v5592 = vsel %vm5548, %v5528, 0
  %v5595 = vsel %vm5548, %v5529, 0
  %5597 = vmatprep.subr.bf16.mxu0 0
  %5598 = vmatpush1.bf16.msra.mxu0 %v5542
  %5599 = vmatprep.subr.bf16.mxu0 0
  %5600 = vmatpush1.bf16.msra.mxu0 %v5543
  %5601 = vmatprep.subr.bf16.mxu0 0
  %5602 = vmatpush1.bf16.msra.mxu0 %v5544
  %5603 = vmatprep.subr.bf16.mxu0 0
  %5604 = vmatpush1.bf16.msra.mxu0 0
  %5605 = vmatprep.subr.bf16.mxu0 0
  %5606 = vmatpush1.bf16.msra.mxu0 0
  %5607 = vmatprep.subr.bf16.mxu0 0
  %5608 = vmatpush1.bf16.msra.mxu0 0
  %5609 = vmatprep.subr.bf16.mxu0 0
  %5610 = vmatpush1.bf16.msra.mxu0 0
  %5611 = vmatprep.subr.bf16.mxu0 0
  %5612 = vmatpush1.bf16.msra.mxu0 0
  %5613 = vmatprep.subr.bf16.mxu0 0
  %5614 = vmatpush1.bf16.msra.mxu0 0
  %5615 = vmatprep.subr.bf16.mxu0 0
  %5616 = vmatpush1.bf16.msra.mxu0 0
  %5617 = vmatprep.subr.bf16.mxu0 0
  %5618 = vmatpush1.bf16.msra.mxu0 0
  %5619 = vmatprep.subr.bf16.mxu0 0
  %5620 = vmatpush1.bf16.msra.mxu0 0
  %5621 = vmatprep.subr.bf16.mxu0 0
  %5622 = vmatpush1.bf16.msra.mxu0 0
  %5623 = vmatprep.subr.bf16.mxu0 0
  %5624 = vmatpush1.bf16.msra.mxu0 0
  %5625 = vmatprep.subr.bf16.mxu0 0
  %5626 = vmatpush1.bf16.msra.mxu0 0
  %5627 = vmatprep.subr.bf16.mxu0 0
  %5628 = vmatpush1.bf16.msra.mxu0 0
  %5629 = vmatprep.mubr.bf16.mxu0 0
  %5630 = vmatmul.mubr.bf16.gmra.mrb[0].mxu0 %v5550
  %v5631 = vpop.f32.mrb[0].mxu0
  %v5632 = vadd.f32 0.0, %v5631
  %v5633 = vpop.f32.mrb[0].mxu0
  %v5634 = vpop.f32.mrb[0].mxu0
  %v5635 = vadd.f32 0.0, %v5634
  %v5636 = vpop.f32.mrb[0].mxu0
  %5637 = vmatprep.mubr.bf16.mxu0 0
  %5638 = vmatmul.mubr.bf16.gmra.mrb[0].mxu0 %v5553
  %v5639 = vpop.f32.mrb[0].mxu0
  %v5640 = vadd.f32 0.0, %v5639
  %v5641 = vpop.f32.mrb[0].mxu0
  %v5642 = vpop.f32.mrb[0].mxu0
  %v5643 = vadd.f32 0.0, %v5642
  %v5644 = vpop.f32.mrb[0].mxu0
  %5645 = vmatprep.mubr.bf16.mxu0 0
  %5646 = vmatmul.mubr.bf16.gmra.mrb[0].mxu0 %v5556
  %v5647 = vpop.f32.mrb[0].mxu0
  %v5648 = vadd.f32 0.0, %v5647
  %v5649 = vpop.f32.mrb[0].mxu0
  %v5650 = vpop.f32.mrb[0].mxu0
  %v5651 = vadd.f32 0.0, %v5650
  %v5652 = vpop.f32.mrb[0].mxu0
  %5653 = vmatprep.mubr.bf16.mxu0 0
  %5654 = vmatmul.mubr.bf16.gmra.mrb[0].mxu0 %v5559
  %v5655 = vpop.f32.mrb[0].mxu0
  %v5656 = vadd.f32 0.0, %v5655
  %v5657 = vpop.f32.mrb[0].mxu0
  %v5658 = vpop.f32.mrb[0].mxu0
  %v5659 = vadd.f32 0.0, %v5658
  %v5660 = vpop.f32.mrb[0].mxu0
  %5661 = vmatprep.mubr.bf16.mxu0 0
  %5662 = vmatmul.mubr.bf16.gmra.mrb[0].mxu0 %v5562
  %v5663 = vpop.f32.mrb[0].mxu0
  %v5664 = vadd.f32 0.0, %v5663
  %v5665 = vpop.f32.mrb[0].mxu0
  %v5666 = vpop.f32.mrb[0].mxu0
  %v5667 = vadd.f32 0.0, %v5666
  %v5668 = vpop.f32.mrb[0].mxu0
  %5669 = vmatprep.mubr.bf16.mxu0 0
  %5670 = vmatmul.mubr.bf16.gmra.mrb[0].mxu0 %v5565
  %v5671 = vpop.f32.mrb[0].mxu0
  %v5672 = vadd.f32 0.0, %v5671
  %v5673 = vpop.f32.mrb[0].mxu0
  %v5674 = vpop.f32.mrb[0].mxu0
  %v5675 = vadd.f32 0.0, %v5674
  %v5676 = vpop.f32.mrb[0].mxu0
  %5677 = vmatprep.mubr.bf16.mxu0 0
  %5678 = vmatmul.mubr.bf16.gmra.mrb[0].mxu0 %v5568
  %v5679 = vpop.f32.mrb[0].mxu0
  %v5680 = vadd.f32 0.0, %v5679
  %v5681 = vpop.f32.mrb[0].mxu0
  %v5682 = vpop.f32.mrb[0].mxu0
  %v5683 = vadd.f32 0.0, %v5682
  %v5684 = vpop.f32.mrb[0].mxu0
  %5685 = vmatprep.mubr.bf16.mxu0 0
  %5686 = vmatmul.mubr.bf16.gmra.mrb[0].mxu0 %v5571
  %v5687 = vpop.f32.mrb[0].mxu0
  %v5688 = vadd.f32 0.0, %v5687
  %v5689 = vpop.f32.mrb[0].mxu0
  %v5690 = vpop.f32.mrb[0].mxu0
  %v5691 = vadd.f32 0.0, %v5690
  %v5692 = vpop.f32.mrb[0].mxu0
  %5693 = vmatprep.mubr.bf16.mxu0 0
  %5694 = vmatmul.mubr.bf16.gmra.mrb[0].mxu0 %v5574
  %v5695 = vpop.f32.mrb[0].mxu0
  %v5696 = vadd.f32 0.0, %v5695
  %v5697 = vpop.f32.mrb[0].mxu0
  %v5698 = vpop.f32.mrb[0].mxu0
  %v5699 = vadd.f32 0.0, %v5698
  %v5700 = vpop.f32.mrb[0].mxu0
  %5701 = vmatprep.mubr.bf16.mxu0 0
  %5702 = vmatmul.mubr.bf16.gmra.mrb[0].mxu0 %v5577
  %v5703 = vpop.f32.mrb[0].mxu0
  %v5704 = vadd.f32 0.0, %v5703
  %v5705 = vpop.f32.mrb[0].mxu0
  %v5706 = vpop.f32.mrb[0].mxu0
  %v5707 = vadd.f32 0.0, %v5706
  %v5708 = vpop.f32.mrb[0].mxu0
  %5709 = vmatprep.mubr.bf16.mxu0 0
  %5710 = vmatmul.mubr.bf16.gmra.mrb[0].mxu0 %v5580
  %v5711 = vpop.f32.mrb[0].mxu0
  %v5712 = vadd.f32 0.0, %v5711
  %v5713 = vpop.f32.mrb[0].mxu0
  %v5714 = vpop.f32.mrb[0].mxu0
  %v5715 = vadd.f32 0.0, %v5714
  %v5716 = vpop.f32.mrb[0].mxu0
  %5717 = vmatprep.mubr.bf16.mxu0 0
  %5718 = vmatmul.mubr.bf16.gmra.mrb[0].mxu0 %v5583
  %v5719 = vpop.f32.mrb[0].mxu0
  %v5720 = vadd.f32 0.0, %v5719
  %v5721 = vpop.f32.mrb[0].mxu0
  %v5722 = vpop.f32.mrb[0].mxu0
  %v5723 = vadd.f32 0.0, %v5722
  %v5724 = vpop.f32.mrb[0].mxu0
  %5725 = vmatprep.mubr.bf16.mxu0 0
  %5726 = vmatmul.mubr.bf16.gmra.mrb[0].mxu0 %v5586
  %v5727 = vpop.f32.mrb[0].mxu0
  %v5728 = vadd.f32 0.0, %v5727
  %v5729 = vpop.f32.mrb[0].mxu0
  %v5730 = vpop.f32.mrb[0].mxu0
  %v5731 = vadd.f32 0.0, %v5730
  %v5732 = vpop.f32.mrb[0].mxu0
  %5733 = vmatprep.mubr.bf16.mxu0 0
  %5734 = vmatmul.mubr.bf16.gmra.mrb[0].mxu0 %v5589
  %v5735 = vpop.f32.mrb[0].mxu0
  %v5736 = vadd.f32 0.0, %v5735
  %v5737 = vpop.f32.mrb[0].mxu0
  %v5738 = vpop.f32.mrb[0].mxu0
  %v5739 = vadd.f32 0.0, %v5738
  %v5740 = vpop.f32.mrb[0].mxu0
  %5741 = vmatprep.mubr.bf16.mxu0 0
  %5742 = vmatmul.mubr.bf16.gmra.mrb[0].mxu0 %v5592
  %v5743 = vpop.f32.mrb[0].mxu0
  %v5744 = vadd.f32 0.0, %v5743
  %v5745 = vpop.f32.mrb[0].mxu0
  %v5746 = vpop.f32.mrb[0].mxu0
  %v5747 = vadd.f32 0.0, %v5746
  %v5748 = vpop.f32.mrb[0].mxu0
  %5749 = vmatprep.mubr.bf16.mxu0 0
  %5750 = vmatmul.mubr.bf16.gmra.mrb[0].mxu0 %v5595
  %v5751 = vpop.f32.mrb[0].mxu0
  %v5752 = vadd.f32 0.0, %v5751
  %v5753 = vpop.f32.mrb[0].mxu0
  %v5754 = vpop.f32.mrb[0].mxu0
  %v5755 = vadd.f32 0.0, %v5754
  %v5756 = vpop.f32.mrb[0].mxu0
  %5757 = vdwg.mxu0
  %v5790 = vunpack.c.l.b16 %v30
  %v5791 = vunpack.c.l.b16 %v31
  %v5792 = vunpack.c.l.b16 %v32
  %v5793 = vunpack.c.l.b16 %v33
  %v5794 = vunpack.c.l.b16 %v34
  %v5795 = vunpack.c.l.b16 %v35
  %v5796 = vunpack.c.l.b16 %v36
  %v5797 = vunpack.c.l.b16 %v37
  %v5798 = vunpack.c.l.b16 %v38
  %v5799 = vunpack.c.l.b16 %v39
  %v5800 = vunpack.c.l.b16 %v40
  %v5801 = vunpack.c.l.b16 %v41
  %v5802 = vunpack.c.l.b16 %v42
  %v5803 = vunpack.c.l.b16 %v43
  %v5804 = vunpack.c.l.b16 %v44
  %v5805 = vunpack.c.l.b16 %v45
  %v5806 = vunpack.c.l.b16 %v46
  %v5807 = vunpack.c.l.b16 %v47
  %v5808 = vunpack.c.l.b16 %v48
  %v5809 = vunpack.c.l.b16 %v49
  %v5810 = vunpack.c.l.b16 %v50
  %v5811 = vunpack.c.l.b16 %v51
  %v5812 = vunpack.c.l.b16 %v52
  %v5813 = vunpack.c.l.b16 %v53
  %v5814 = vunpack.c.l.b16 %v54
  %v5815 = vunpack.c.l.b16 %v55
  %v5816 = vunpack.c.l.b16 %v56
  %v5817 = vunpack.c.l.b16 %v57
  %v5818 = vunpack.c.l.b16 %v58
  %v5819 = vunpack.c.l.b16 %v59
  %v5820 = vunpack.c.l.b16 %v60
  %v5821 = vunpack.c.l.b16 %v61
  %v5822 = vpack.c.b16 %v5791, %v5790
  %v5823 = vpack.c.b16 %v5793, %v5792
  %v5824 = vpack.c.b16 %v5795, %v5794
  %v5825 = vpack.c.b16 %v5797, %v5796
  %v5826 = vpack.c.b16 %v5799, %v5798
  %v5827 = vpack.c.b16 %v5801, %v5800
  %v5828 = vpack.c.b16 %v5803, %v5802
  %v5829 = vpack.c.b16 %v5805, %v5804
  %v5830 = vpack.c.b16 %v5807, %v5806
  %v5831 = vpack.c.b16 %v5809, %v5808
  %v5832 = vpack.c.b16 %v5811, %v5810
  %v5833 = vpack.c.b16 %v5813, %v5812
  %v5834 = vpack.c.b16 %v5815, %v5814
  %v5835 = vpack.c.b16 %v5817, %v5816
  %v5836 = vpack.c.b16 %v5819, %v5818
  %v5837 = vpack.c.b16 %v5821, %v5820
  %5854 = vmatprep.subr.bf16.mxu0 0
  %5855 = vmatpush1.bf16.msra.mxu0 %v5822
  %5856 = vmatprep.subr.bf16.mxu0 0
  %5857 = vmatpush1.bf16.msra.mxu0 %v5823
  %5858 = vmatprep.subr.bf16.mxu0 0
  %5859 = vmatpush1.bf16.msra.mxu0 %v5824
  %5860 = vmatprep.subr.bf16.mxu0 0
  %5861 = vmatpush1.bf16.msra.mxu0 %v5825
  %5862 = vmatprep.subr.bf16.mxu0 0
  %5863 = vmatpush1.bf16.msra.mxu0 %v5826
  %5864 = vmatprep.subr.bf16.mxu0 0
  %5865 = vmatpush1.bf16.msra.mxu0 %v5827
  %5866 = vmatprep.subr.bf16.mxu0 0
  %5867 = vmatpush1.bf16.msra.mxu0 %v5828
  %5868 = vmatprep.subr.bf16.mxu0 0
  %5869 = vmatpush1.bf16.msra.mxu0 %v5829
  %5870 = vmatprep.subr.bf16.mxu0 0
  %5871 = vmatpush1.bf16.msra.mxu0 %v5830
  %5872 = vmatprep.subr.bf16.mxu0 0
  %5873 = vmatpush1.bf16.msra.mxu0 %v5831
  %5874 = vmatprep.subr.bf16.mxu0 0
  %5875 = vmatpush1.bf16.msra.mxu0 %v5832
  %5876 = vmatprep.subr.bf16.mxu0 0
  %5877 = vmatpush1.bf16.msra.mxu0 %v5833
  %5878 = vmatprep.subr.bf16.mxu0 0
  %5879 = vmatpush1.bf16.msra.mxu0 %v5834
  %5880 = vmatprep.subr.bf16.mxu0 0
  %5881 = vmatpush1.bf16.msra.mxu0 %v5835
  %5882 = vmatprep.subr.bf16.mxu0 0
  %5883 = vmatpush1.bf16.msra.mxu0 %v5836
  %5884 = vmatprep.subr.bf16.mxu0 0
  %5885 = vmatpush1.bf16.msra.mxu0 %v5837
  %5886 = vmatprep.mubr.bf16.mxu0 %v5451
  %5887 = vmatmul.mubr.bf16.gmra.mrb[0].mxu0 %v5450
  %v5888 = vpop.f32.mrb[0].mxu0
  %v5889 = vadd.f32 %v5632, %v5888
  %v5890 = vpop.f32.mrb[0].mxu0
  %v5891 = vpop.f32.mrb[0].mxu0
  %v5892 = vadd.f32 %v5635, %v5891
  %v5893 = vpop.f32.mrb[0].mxu0
  %5894 = vmatprep.mubr.bf16.mxu0 %v5453
  %5895 = vmatmul.mubr.bf16.gmra.mrb[0].mxu0 %v5452
  %v5896 = vpop.f32.mrb[0].mxu0
  %v5897 = vadd.f32 %v5640, %v5896
  %v5898 = vpop.f32.mrb[0].mxu0
  %v5899 = vpop.f32.mrb[0].mxu0
  %v5900 = vadd.f32 %v5643, %v5899
  %v5901 = vpop.f32.mrb[0].mxu0
  %5902 = vmatprep.mubr.bf16.mxu0 %v5455
  %5903 = vmatmul.mubr.bf16.gmra.mrb[0].mxu0 %v5454
  %v5904 = vpop.f32.mrb[0].mxu0
  %v5905 = vadd.f32 %v5648, %v5904
  %v5906 = vpop.f32.mrb[0].mxu0
  %v5907 = vpop.f32.mrb[0].mxu0
  %v5908 = vadd.f32 %v5651, %v5907
  %v5909 = vpop.f32.mrb[0].mxu0
  %5910 = vmatprep.mubr.bf16.mxu0 %v5457
  %5911 = vmatmul.mubr.bf16.gmra.mrb[0].mxu0 %v5456
  %v5912 = vpop.f32.mrb[0].mxu0
  %v5913 = vadd.f32 %v5656, %v5912
  %v5914 = vpop.f32.mrb[0].mxu0
  %v5915 = vpop.f32.mrb[0].mxu0
  %v5916 = vadd.f32 %v5659, %v5915
  %v5917 = vpop.f32.mrb[0].mxu0
  %5918 = vmatprep.mubr.bf16.mxu0 %v5459
  %5919 = vmatmul.mubr.bf16.gmra.mrb[0].mxu0 %v5458
  %v5920 = vpop.f32.mrb[0].mxu0
  %v5921 = vadd.f32 %v5664, %v5920
  %v5922 = vpop.f32.mrb[0].mxu0
  %v5923 = vpop.f32.mrb[0].mxu0
  %v5924 = vadd.f32 %v5667, %v5923
  %v5925 = vpop.f32.mrb[0].mxu0
  %5926 = vmatprep.mubr.bf16.mxu0 %v5461
  %5927 = vmatmul.mubr.bf16.gmra.mrb[0].mxu0 %v5460
  %v5928 = vpop.f32.mrb[0].mxu0
  %v5929 = vadd.f32 %v5672, %v5928
  %v5930 = vpop.f32.mrb[0].mxu0
  %v5931 = vpop.f32.mrb[0].mxu0
  %v5932 = vadd.f32 %v5675, %v5931
  %v5933 = vpop.f32.mrb[0].mxu0
  %5934 = vmatprep.mubr.bf16.mxu0 %v5463
  %5935 = vmatmul.mubr.bf16.gmra.mrb[0].mxu0 %v5462
  %v5936 = vpop.f32.mrb[0].mxu0
  %v5937 = vadd.f32 %v5680, %v5936
  %v5938 = vpop.f32.mrb[0].mxu0
  %v5939 = vpop.f32.mrb[0].mxu0
  %v5940 = vadd.f32 %v5683, %v5939
  %v5941 = vpop.f32.mrb[0].mxu0
  %5942 = vmatprep.mubr.bf16.mxu0 %v5465
  %5943 = vmatmul.mubr.bf16.gmra.mrb[0].mxu0 %v5464
  %v5944 = vpop.f32.mrb[0].mxu0
  %v5945 = vadd.f32 %v5688, %v5944
  %v5946 = vpop.f32.mrb[0].mxu0
  %v5947 = vpop.f32.mrb[0].mxu0
  %v5948 = vadd.f32 %v5691, %v5947
  %v5949 = vpop.f32.mrb[0].mxu0
  %5950 = vmatprep.mubr.bf16.mxu0 %v5467
  %5951 = vmatmul.mubr.bf16.gmra.mrb[0].mxu0 %v5466
  %v5952 = vpop.f32.mrb[0].mxu0
  %v5953 = vadd.f32 %v5696, %v5952
  %v5954 = vpop.f32.mrb[0].mxu0
  %v5955 = vpop.f32.mrb[0].mxu0
  %v5956 = vadd.f32 %v5699, %v5955
  %v5957 = vpop.f32.mrb[0].mxu0
  %5958 = vmatprep.mubr.bf16.mxu0 %v5469
  %5959 = vmatmul.mubr.bf16.gmra.mrb[0].mxu0 %v5468
  %v5960 = vpop.f32.mrb[0].mxu0
  %v5961 = vadd.f32 %v5704, %v5960
  %v5962 = vpop.f32.mrb[0].mxu0
  %v5963 = vpop.f32.mrb[0].mxu0
  %v5964 = vadd.f32 %v5707, %v5963
  %v5965 = vpop.f32.mrb[0].mxu0
  %5966 = vmatprep.mubr.bf16.mxu0 %v5471
  %5967 = vmatmul.mubr.bf16.gmra.mrb[0].mxu0 %v5470
  %v5968 = vpop.f32.mrb[0].mxu0
  %v5969 = vadd.f32 %v5712, %v5968
  %v5970 = vpop.f32.mrb[0].mxu0
  %v5971 = vpop.f32.mrb[0].mxu0
  %v5972 = vadd.f32 %v5715, %v5971
  %v5973 = vpop.f32.mrb[0].mxu0
  %5974 = vmatprep.mubr.bf16.mxu0 %v5473
  %5975 = vmatmul.mubr.bf16.gmra.mrb[0].mxu0 %v5472
  %v5976 = vpop.f32.mrb[0].mxu0
  %v5977 = vadd.f32 %v5720, %v5976
  %v5978 = vpop.f32.mrb[0].mxu0
  %v5979 = vpop.f32.mrb[0].mxu0
  %v5980 = vadd.f32 %v5723, %v5979
  %v5981 = vpop.f32.mrb[0].mxu0
  %5982 = vmatprep.mubr.bf16.mxu0 %v5475
  %5983 = vmatmul.mubr.bf16.gmra.mrb[0].mxu0 %v5474
  %v5984 = vpop.f32.mrb[0].mxu0
  %v5985 = vadd.f32 %v5728, %v5984
  %v5986 = vpop.f32.mrb[0].mxu0
  %v5987 = vpop.f32.mrb[0].mxu0
  %v5988 = vadd.f32 %v5731, %v5987
  %v5989 = vpop.f32.mrb[0].mxu0
  %5990 = vmatprep.mubr.bf16.mxu0 %v5477
  %5991 = vmatmul.mubr.bf16.gmra.mrb[0].mxu0 %v5476
  %v5992 = vpop.f32.mrb[0].mxu0
  %v5993 = vadd.f32 %v5736, %v5992
  %v5994 = vpop.f32.mrb[0].mxu0
  %v5995 = vpop.f32.mrb[0].mxu0
  %v5996 = vadd.f32 %v5739, %v5995
  %v5997 = vpop.f32.mrb[0].mxu0
  %5998 = vmatprep.mubr.bf16.mxu0 %v5479
  %5999 = vmatmul.mubr.bf16.gmra.mrb[0].mxu0 %v5478
  %v6000 = vpop.f32.mrb[0].mxu0
  %v6001 = vadd.f32 %v5744, %v6000
  %v6002 = vpop.f32.mrb[0].mxu0
  %v6003 = vpop.f32.mrb[0].mxu0
  %v6004 = vadd.f32 %v5747, %v6003
  %v6005 = vpop.f32.mrb[0].mxu0
  %6006 = vmatprep.mubr.bf16.mxu0 %v5481
  %6007 = vmatmul.mubr.bf16.gmra.mrb[0].mxu0 %v5480
  %v6008 = vpop.f32.mrb[0].mxu0
  %v6009 = vadd.f32 %v5752, %v6008
  %v6010 = vpop.f32.mrb[0].mxu0
  %v6011 = vpop.f32.mrb[0].mxu0
  %v6012 = vadd.f32 %v5755, %v6011
  %v6013 = vpop.f32.mrb[0].mxu0
  %6014 = vdwg.mxu0
  %v6015 = vld [vmem:[%s7 + $0x12] sm:$0x1]
  %v6017 = vlaneseq
  %v6018 = vshrl.u32 %v6017, 7
  %v6019 = vsub.s32 0, %v6018
  %v6020 = vrot.slane %v6015, %v6019
  %v6022 = vadd.f32 %v5889, %v6020
  %v6023 = vadd.f32 %v5892, %v6020
  %v6024 = vadd.f32 %v5897, %v6020
  %v6025 = vadd.f32 %v5900, %v6020
  %v6026 = vadd.f32 %v5905, %v6020
  %v6027 = vadd.f32 %v5908, %v6020
  %v6028 = vadd.f32 %v5913, %v6020
  %v6029 = vadd.f32 %v5916, %v6020
  %v6030 = vadd.f32 %v5921, %v6020
  %v6031 = vadd.f32 %v5924, %v6020
  %v6032 = vadd.f32 %v5929, %v6020
  %v6033 = vadd.f32 %v5932, %v6020
  %v6034 = vadd.f32 %v5937, %v6020
  %v6035 = vadd.f32 %v5940, %v6020
  %v6036 = vadd.f32 %v5945, %v6020
  %v6037 = vadd.f32 %v5948, %v6020
  %v6038 = vadd.f32 %v5953, %v6020
  %v6039 = vadd.f32 %v5956, %v6020
  %v6040 = vadd.f32 %v5961, %v6020
  %v6041 = vadd.f32 %v5964, %v6020
  %v6042 = vadd.f32 %v5969, %v6020
  %v6043 = vadd.f32 %v5972, %v6020
  %v6044 = vadd.f32 %v5977, %v6020
  %v6045 = vadd.f32 %v5980, %v6020
  %v6046 = vadd.f32 %v5985, %v6020
  %v6047 = vadd.f32 %v5988, %v6020
  %v6048 = vadd.f32 %v5993, %v6020
  %v6049 = vadd.f32 %v5996, %v6020
  %v6050 = vadd.f32 %v6001, %v6020
  %v6051 = vadd.f32 %v6004, %v6020
  %v6052 = vadd.f32 %v6009, %v6020
  %v6053 = vadd.f32 %v6012, %v6020
  %v6054 = vmul.f32 %v6022, 1.442695
  %v6055 = vpow.pop %v6054
  %v6056 = vmul.f32 %v6023, 1.442695
  %v6057 = vpow.pop %v6056
  %v6058 = vmul.f32 %v6024, 1.442695
  %v6059 = vpow.pop %v6058
  %v6060 = vmul.f32 %v6025, 1.442695
  %v6061 = vpow.pop %v6060
  %v6062 = vmul.f32 %v6026, 1.442695
  %v6063 = vpow.pop %v6062
  %v6064 = vmul.f32 %v6027, 1.442695
  %v6065 = vpow.pop %v6064
  %v6066 = vmul.f32 %v6028, 1.442695
  %v6067 = vpow.pop %v6066
  %v6068 = vmul.f32 %v6029, 1.442695
  %v6069 = vpow.pop %v6068
  %v6070 = vmul.f32 %v6030, 1.442695
  %v6071 = vpow.pop %v6070
  %v6072 = vmul.f32 %v6031, 1.442695
  %v6073 = vpow.pop %v6072
  %v6074 = vmul.f32 %v6032, 1.442695
  %v6075 = vpow.pop %v6074
  %v6076 = vmul.f32 %v6033, 1.442695
  %v6077 = vpow.pop %v6076
  %v6078 = vmul.f32 %v6034, 1.442695
  %v6079 = vpow.pop %v6078
  %v6080 = vmul.f32 %v6035, 1.442695
  %v6081 = vpow.pop %v6080
  %v6082 = vmul.f32 %v6036, 1.442695
  %v6083 = vpow.pop %v6082
  %v6084 = vmul.f32 %v6037, 1.442695
  %v6085 = vpow.pop %v6084
  %v6086 = vmul.f32 %v6038, 1.442695
  %v6087 = vpow.pop %v6086
  %v6088 = vmul.f32 %v6039, 1.442695
  %v6089 = vpow.pop %v6088
  %v6090 = vmul.f32 %v6040, 1.442695
  %v6091 = vpow.pop %v6090
  %v6092 = vmul.f32 %v6041, 1.442695
  %v6093 = vpow.pop %v6092
  %v6094 = vmul.f32 %v6042, 1.442695
  %v6095 = vpow.pop %v6094
  %v6096 = vmul.f32 %v6043, 1.442695
  %v6097 = vpow.pop %v6096
  %v6098 = vmul.f32 %v6044, 1.442695
  %v6099 = vpow.pop %v6098
  %v6100 = vmul.f32 %v6045, 1.442695
  %v6101 = vpow.pop %v6100
  %v6102 = vmul.f32 %v6046, 1.442695
  %v6103 = vpow.pop %v6102
  %v6104 = vmul.f32 %v6047, 1.442695
  %v6105 = vpow.pop %v6104
  %v6106 = vmul.f32 %v6048, 1.442695
  %v6107 = vpow.pop %v6106
  %v6108 = vmul.f32 %v6049, 1.442695
  %v6109 = vpow.pop %v6108
  %v6110 = vmul.f32 %v6050, 1.442695
  %v6111 = vpow.pop %v6110
  %v6112 = vmul.f32 %v6051, 1.442695
  %v6113 = vpow.pop %v6112
  %v6114 = vmul.f32 %v6052, 1.442695
  %v6115 = vpow.pop %v6114
  %v6116 = vmul.f32 %v6053, 1.442695
  %v6117 = vpow.pop %v6116
  %v6118 = vld [vmem:[%s2] sm:$0xff]
  %v6119 = vld [vmem:[%s2 + $0x8] sm:$0xff]
  %v6120 = vld [vmem:[%s2 + $0x10] sm:$0xff]
  %v6121 = vld [vmem:[%s2 + $0x18] sm:$0xff]
  %v6122 = vld [vmem:[%s2 + $0x20] sm:$0xff]
  %v6123 = vld [vmem:[%s2 + $0x28] sm:$0xff]
  %v6124 = vld [vmem:[%s2 + $0x30] sm:$0xff]
  %v6125 = vld [vmem:[%s2 + $0x38] sm:$0xff]
  %v6126 = vld [vmem:[%s2 + $0x40] sm:$0xff]
  %v6127 = vld [vmem:[%s2 + $0x48] sm:$0xff]
  %v6128 = vld [vmem:[%s2 + $0x50] sm:$0xff]
  %v6129 = vld [vmem:[%s2 + $0x58] sm:$0xff]
  %v6130 = vld [vmem:[%s2 + $0x60] sm:$0xff]
  %v6131 = vld [vmem:[%s2 + $0x68] sm:$0xff]
  %v6132 = vld [vmem:[%s2 + $0x70] sm:$0xff]
  %v6133 = vld [vmem:[%s2 + $0x78] sm:$0xff]
  %v6134 = vld [vmem:[%s2 + $0x80] sm:$0xff]
  %v6135 = vld [vmem:[%s2 + $0x88] sm:$0xff]
  %v6136 = vld [vmem:[%s2 + $0x90] sm:$0xff]
  %v6137 = vld [vmem:[%s2 + $0x98] sm:$0xff]
  %v6138 = vld [vmem:[%s2 + $0xa0] sm:$0xff]
  %v6139 = vld [vmem:[%s2 + $0xa8] sm:$0xff]
  %v6140 = vld [vmem:[%s2 + $0xb0] sm:$0xff]
  %v6141 = vld [vmem:[%s2 + $0xb8] sm:$0xff]
  %v6142 = vld [vmem:[%s2 + $0xc0] sm:$0xff]
  %v6143 = vld [vmem:[%s2 + $0xc8] sm:$0xff]
  %v6144 = vld [vmem:[%s2 + $0xd0] sm:$0xff]
  %v6145 = vld [vmem:[%s2 + $0xd8] sm:$0xff]
  %v6146 = vld [vmem:[%s2 + $0xe0] sm:$0xff]
  %v6147 = vld [vmem:[%s2 + $0xe8] sm:$0xff]
  %v6148 = vld [vmem:[%s2 + $0xf0] sm:$0xff]
  %v6149 = vld [vmem:[%s2 + $0xf8] sm:$0xff]
  %6182 = vrot.lane.b32.xlu0 %v6118, 16
  %v6183 = vpop.permute.xlu0 %6182
  %6184 = vrot.lane.b32.xlu0 %v6119, 16
  %v6185 = vpop.permute.xlu0 %6184
  %6186 = vrot.lane.b32.xlu0 %v6120, 16
  %v6187 = vpop.permute.xlu0 %6186
  %6188 = vrot.lane.b32.xlu0 %v6121, 16
  %v6189 = vpop.permute.xlu0 %6188
  %6190 = vrot.lane.b32.xlu0 %v6122, 16
  %v6191 = vpop.permute.xlu0 %6190
  %6192 = vrot.lane.b32.xlu0 %v6123, 16
  %v6193 = vpop.permute.xlu0 %6192
  %6194 = vrot.lane.b32.xlu0 %v6124, 16
  %v6195 = vpop.permute.xlu0 %6194
  %6196 = vrot.lane.b32.xlu0 %v6125, 16
  %v6197 = vpop.permute.xlu0 %6196
  %6198 = vrot.lane.b32.xlu0 %v6126, 16
  %v6199 = vpop.permute.xlu0 %6198
  %6200 = vrot.lane.b32.xlu0 %v6127, 16
  %v6201 = vpop.permute.xlu0 %6200
  %6202 = vrot.lane.b32.xlu0 %v6128, 16
  %v6203 = vpop.permute.xlu0 %6202
  %6204 = vrot.lane.b32.xlu0 %v6129, 16
  %v6205 = vpop.permute.xlu0 %6204
  %6206 = vrot.lane.b32.xlu0 %v6130, 16
  %v6207 = vpop.permute.xlu0 %6206
  %6208 = vrot.lane.b32.xlu0 %v6131, 16
  %v6209 = vpop.permute.xlu0 %6208
  %6210 = vrot.lane.b32.xlu0 %v6132, 16
  %v6211 = vpop.permute.xlu0 %6210
  %6212 = vrot.lane.b32.xlu0 %v6133, 16
  %v6213 = vpop.permute.xlu0 %6212
  %6214 = vrot.lane.b32.xlu0 %v6134, 16
  %v6215 = vpop.permute.xlu0 %6214
  %6216 = vrot.lane.b32.xlu0 %v6135, 16
  %v6217 = vpop.permute.xlu0 %6216
  %6218 = vrot.lane.b32.xlu0 %v6136, 16
  %v6219 = vpop.permute.xlu0 %6218
  %6220 = vrot.lane.b32.xlu0 %v6137, 16
  %v6221 = vpop.permute.xlu0 %6220
  %6222 = vrot.lane.b32.xlu0 %v6138, 16
  %v6223 = vpop.permute.xlu0 %6222
  %6224 = vrot.lane.b32.xlu0 %v6139, 16
  %v6225 = vpop.permute.xlu0 %6224
  %6226 = vrot.lane.b32.xlu0 %v6140, 16
  %v6227 = vpop.permute.xlu0 %6226
  %6228 = vrot.lane.b32.xlu0 %v6141, 16
  %v6229 = vpop.permute.xlu0 %6228
  %6230 = vrot.lane.b32.xlu0 %v6142, 16
  %v6231 = vpop.permute.xlu0 %6230
  %6232 = vrot.lane.b32.xlu0 %v6143, 16
  %v6233 = vpop.permute.xlu0 %6232
  %6234 = vrot.lane.b32.xlu0 %v6144, 16
  %v6235 = vpop.permute.xlu0 %6234
  %6236 = vrot.lane.b32.xlu0 %v6145, 16
  %v6237 = vpop.permute.xlu0 %6236
  %6238 = vrot.lane.b32.xlu0 %v6146, 16
  %v6239 = vpop.permute.xlu0 %6238
  %6240 = vrot.lane.b32.xlu0 %v6147, 16
  %v6241 = vpop.permute.xlu0 %6240
  %6242 = vrot.lane.b32.xlu0 %v6148, 16
  %v6243 = vpop.permute.xlu0 %6242
  %6244 = vrot.lane.b32.xlu0 %v6149, 16
  %v6245 = vpop.permute.xlu0 %6244
  %v6278 = vmul.f32 %v6055, %v6183
  %v6279 = vmul.f32 %v6057, %v6185
  %v6280 = vmul.f32 %v6059, %v6187
  %v6281 = vmul.f32 %v6061, %v6189
  %v6282 = vmul.f32 %v6063, %v6191
  %v6283 = vmul.f32 %v6065, %v6193
  %v6284 = vmul.f32 %v6067, %v6195
  %v6285 = vmul.f32 %v6069, %v6197
  %v6286 = vmul.f32 %v6071, %v6199
  %v6287 = vmul.f32 %v6073, %v6201
  %v6288 = vmul.f32 %v6075, %v6203
  %v6289 = vmul.f32 %v6077, %v6205
  %v6290 = vmul.f32 %v6079, %v6207
  %v6291 = vmul.f32 %v6081, %v6209
  %v6292 = vmul.f32 %v6083, %v6211
  %v6293 = vmul.f32 %v6085, %v6213
  %v6294 = vmul.f32 %v6087, %v6215
  %v6295 = vmul.f32 %v6089, %v6217
  %v6296 = vmul.f32 %v6091, %v6219
  %v6297 = vmul.f32 %v6093, %v6221
  %v6298 = vmul.f32 %v6095, %v6223
  %v6299 = vmul.f32 %v6097, %v6225
  %v6300 = vmul.f32 %v6099, %v6227
  %v6301 = vmul.f32 %v6101, %v6229
  %v6302 = vmul.f32 %v6103, %v6231
  %v6303 = vmul.f32 %v6105, %v6233
  %v6304 = vmul.f32 %v6107, %v6235
  %v6305 = vmul.f32 %v6109, %v6237
  %v6306 = vmul.f32 %v6111, %v6239
  %v6307 = vmul.f32 %v6113, %v6241
  %v6308 = vmul.f32 %v6115, %v6243
  %v6309 = vmul.f32 %v6117, %v6245
  %6342 = vrot.lane.b32.xlu0 %v6278, 112
  %v6343 = vpop.permute.xlu0 %6342
  %6344 = vrot.lane.b32.xlu0 %v6279, 112
  %v6345 = vpop.permute.xlu0 %6344
  %6346 = vrot.lane.b32.xlu0 %v6280, 112
  %v6347 = vpop.permute.xlu0 %6346
  %6348 = vrot.lane.b32.xlu0 %v6281, 112
  %v6349 = vpop.permute.xlu0 %6348
  %6350 = vrot.lane.b32.xlu0 %v6282, 112
  %v6351 = vpop.permute.xlu0 %6350
  %6352 = vrot.lane.b32.xlu0 %v6283, 112
  %v6353 = vpop.permute.xlu0 %6352
  %6354 = vrot.lane.b32.xlu0 %v6284, 112
  %v6355 = vpop.permute.xlu0 %6354
  %6356 = vrot.lane.b32.xlu0 %v6285, 112
  %v6357 = vpop.permute.xlu0 %6356
  %6358 = vrot.lane.b32.xlu0 %v6286, 112
  %v6359 = vpop.permute.xlu0 %6358
  %6360 = vrot.lane.b32.xlu0 %v6287, 112
  %v6361 = vpop.permute.xlu0 %6360
  %6362 = vrot.lane.b32.xlu0 %v6288, 112
  %v6363 = vpop.permute.xlu0 %6362
  %6364 = vrot.lane.b32.xlu0 %v6289, 112
  %v6365 = vpop.permute.xlu0 %6364
  %6366 = vrot.lane.b32.xlu0 %v6290, 112
  %v6367 = vpop.permute.xlu0 %6366
  %6368 = vrot.lane.b32.xlu0 %v6291, 112
  %v6369 = vpop.permute.xlu0 %6368
  %6370 = vrot.lane.b32.xlu0 %v6292, 112
  %v6371 = vpop.permute.xlu0 %6370
  %6372 = vrot.lane.b32.xlu0 %v6293, 112
  %v6373 = vpop.permute.xlu0 %6372
  %6374 = vrot.lane.b32.xlu0 %v6294, 112
  %v6375 = vpop.permute.xlu0 %6374
  %6376 = vrot.lane.b32.xlu0 %v6295, 112
  %v6377 = vpop.permute.xlu0 %6376
  %6378 = vrot.lane.b32.xlu0 %v6296, 112
  %v6379 = vpop.permute.xlu0 %6378
  %6380 = vrot.lane.b32.xlu0 %v6297, 112
  %v6381 = vpop.permute.xlu0 %6380
  %6382 = vrot.lane.b32.xlu0 %v6298, 112
  %v6383 = vpop.permute.xlu0 %6382
  %6384 = vrot.lane.b32.xlu0 %v6299, 112
  %v6385 = vpop.permute.xlu0 %6384
  %6386 = vrot.lane.b32.xlu0 %v6300, 112
  %v6387 = vpop.permute.xlu0 %6386
  %6388 = vrot.lane.b32.xlu0 %v6301, 112
  %v6389 = vpop.permute.xlu0 %6388
  %6390 = vrot.lane.b32.xlu0 %v6302, 112
  %v6391 = vpop.permute.xlu0 %6390
  %6392 = vrot.lane.b32.xlu0 %v6303, 112
  %v6393 = vpop.permute.xlu0 %6392
  %6394 = vrot.lane.b32.xlu0 %v6304, 112
  %v6395 = vpop.permute.xlu0 %6394
  %6396 = vrot.lane.b32.xlu0 %v6305, 112
  %v6397 = vpop.permute.xlu0 %6396
  %6398 = vrot.lane.b32.xlu0 %v6306, 112
  %v6399 = vpop.permute.xlu0 %6398
  %6400 = vrot.lane.b32.xlu0 %v6307, 112
  %v6401 = vpop.permute.xlu0 %6400
  %6402 = vrot.lane.b32.xlu0 %v6308, 112
  %v6403 = vpop.permute.xlu0 %6402
  %6404 = vrot.lane.b32.xlu0 %v6309, 112
  %v6405 = vpop.permute.xlu0 %6404
  %v6438 = vadd.f32 %v6022, %v6343
  %v6439 = vadd.f32 %v6023, %v6345
  %v6440 = vadd.f32 %v6024, %v6347
  %v6441 = vadd.f32 %v6025, %v6349
  %v6442 = vadd.f32 %v6026, %v6351
  %v6443 = vadd.f32 %v6027, %v6353
  %v6444 = vadd.f32 %v6028, %v6355
  %v6445 = vadd.f32 %v6029, %v6357
  %v6446 = vadd.f32 %v6030, %v6359
  %v6447 = vadd.f32 %v6031, %v6361
  %v6448 = vadd.f32 %v6032, %v6363
  %v6449 = vadd.f32 %v6033, %v6365
  %v6450 = vadd.f32 %v6034, %v6367
  %v6451 = vadd.f32 %v6035, %v6369
  %v6452 = vadd.f32 %v6036, %v6371
  %v6453 = vadd.f32 %v6037, %v6373
  %v6454 = vadd.f32 %v6038, %v6375
  %v6455 = vadd.f32 %v6039, %v6377
  %v6456 = vadd.f32 %v6040, %v6379
  %v6457 = vadd.f32 %v6041, %v6381
  %v6458 = vadd.f32 %v6042, %v6383
  %v6459 = vadd.f32 %v6043, %v6385
  %v6460 = vadd.f32 %v6044, %v6387
  %v6461 = vadd.f32 %v6045, %v6389
  %v6462 = vadd.f32 %v6046, %v6391
  %v6463 = vadd.f32 %v6047, %v6393
  %v6464 = vadd.f32 %v6048, %v6395
  %v6465 = vadd.f32 %v6049, %v6397
  %v6466 = vadd.f32 %v6050, %v6399
  %v6467 = vadd.f32 %v6051, %v6401
  %v6468 = vadd.f32 %v6052, %v6403
  %v6469 = vadd.f32 %v6053, %v6405
  %v6470 = vpack.c.bf16 %v6439, %v6438
  %v6471 = vpack.c.bf16 %v6441, %v6440
  %v6472 = vpack.c.bf16 %v6443, %v6442
  %v6473 = vpack.c.bf16 %v6445, %v6444
  %v6474 = vpack.c.bf16 %v6447, %v6446
  %v6475 = vpack.c.bf16 %v6449, %v6448
  %v6476 = vpack.c.bf16 %v6451, %v6450
  %v6477 = vpack.c.bf16 %v6453, %v6452
  %v6478 = vpack.c.bf16 %v6455, %v6454
  %v6479 = vpack.c.bf16 %v6457, %v6456
  %v6480 = vpack.c.bf16 %v6459, %v6458
  %v6481 = vpack.c.bf16 %v6461, %v6460
  %v6482 = vpack.c.bf16 %v6463, %v6462
  %v6483 = vpack.c.bf16 %v6465, %v6464
  %v6484 = vpack.c.bf16 %v6467, %v6466
  %v6485 = vpack.c.bf16 %v6469, %v6468
  %v6486 = vld [vmem:[%s7 + $0x13] sm:$0x1]
  %v6488 = vlaneseq
  %v6489 = vshrl.u32 %v6488, 7
  %v6490 = vsub.s32 0, %v6489
  %v6491 = vrot.slane %v6486, %v6490
  %v6495 = vunpack.c.l.b16 %v68
  %v6496 = vunpack.c.l.b16 %v69
  %v6497 = vpack.c.b16 %v6496, %v6495
  %vm6499 = vcmask 130048
  %v6501 = vsel %vm6499, %v6470, 0
  %v6504 = vsel %vm6499, %v6471, 0
  %v6507 = vsel %vm6499, %v6472, 0
  %v6510 = vsel %vm6499, %v6473, 0
  %v6513 = vsel %vm6499, %v6474, 0
  %v6516 = vsel %vm6499, %v6475, 0
  %v6519 = vsel %vm6499, %v6476, 0
  %v6522 = vsel %vm6499, %v6477, 0
  %v6525 = vsel %vm6499, %v6478, 0
  %v6528 = vsel %vm6499, %v6479, 0
  %v6531 = vsel %vm6499, %v6480, 0
  %v6534 = vsel %vm6499, %v6481, 0
  %v6537 = vsel %vm6499, %v6482, 0
  %v6540 = vsel %vm6499, %v6483, 0
  %v6543 = vsel %vm6499, %v6484, 0
  %v6546 = vsel %vm6499, %v6485, 0
  %6548 = vmatprep.subr.bf16.mxu0 0
  %6549 = vmatpush1.bf16.msra.mxu0 %v6497
  %6550 = vmatprep.subr.bf16.mxu0 0
  %6551 = vmatpush1.bf16.msra.mxu0 0
  %6552 = vmatprep.subr.bf16.mxu0 0
  %6553 = vmatpush1.bf16.msra.mxu0 0
  %6554 = vmatprep.subr.bf16.mxu0 0
  %6555 = vmatpush1.bf16.msra.mxu0 0
  %6556 = vmatprep.subr.bf16.mxu0 0
  %6557 = vmatpush1.bf16.msra.mxu0 0
  %6558 = vmatprep.subr.bf16.mxu0 0
  %6559 = vmatpush1.bf16.msra.mxu0 0
  %6560 = vmatprep.subr.bf16.mxu0 0
  %6561 = vmatpush1.bf16.msra.mxu0 0
  %6562 = vmatprep.subr.bf16.mxu0 0
  %6563 = vmatpush1.bf16.msra.mxu0 0
  %6564 = vmatprep.subr.bf16.mxu0 0
  %6565 = vmatpush1.bf16.msra.mxu0 0
  %6566 = vmatprep.subr.bf16.mxu0 0
  %6567 = vmatpush1.bf16.msra.mxu0 0
  %6568 = vmatprep.subr.bf16.mxu0 0
  %6569 = vmatpush1.bf16.msra.mxu0 0
  %6570 = vmatprep.subr.bf16.mxu0 0
  %6571 = vmatpush1.bf16.msra.mxu0 0
  %6572 = vmatprep.subr.bf16.mxu0 0
  %6573 = vmatpush1.bf16.msra.mxu0 0
  %6574 = vmatprep.subr.bf16.mxu0 0
  %6575 = vmatpush1.bf16.msra.mxu0 0
  %6576 = vmatprep.subr.bf16.mxu0 0
  %6577 = vmatpush1.bf16.msra.mxu0 0
  %6578 = vmatprep.subr.bf16.mxu0 0
  %6579 = vmatpush1.bf16.msra.mxu0 0
  %6580 = vmatprep.mubr.bf16.mxu0 0
  %6581 = vmatmul.mubr.bf16.gmra.mrb[0].mxu0 %v6501
  %v6582 = vpop.f32.mrb[0].mxu0
  %v6583 = vadd.f32 %v6491, %v6582
  %v6584 = vpop.f32.mrb[0].mxu0
  %v6585 = vpop.f32.mrb[0].mxu0
  %v6586 = vadd.f32 %v6491, %v6585
  %v6587 = vpop.f32.mrb[0].mxu0
  %6588 = vmatprep.mubr.bf16.mxu0 0
  %6589 = vmatmul.mubr.bf16.gmra.mrb[0].mxu0 %v6504
  %v6590 = vpop.f32.mrb[0].mxu0
  %v6591 = vadd.f32 %v6491, %v6590
  %v6592 = vpop.f32.mrb[0].mxu0
  %v6593 = vpop.f32.mrb[0].mxu0
  %v6594 = vadd.f32 %v6491, %v6593
  %v6595 = vpop.f32.mrb[0].mxu0
  %6596 = vmatprep.mubr.bf16.mxu0 0
  %6597 = vmatmul.mubr.bf16.gmra.mrb[0].mxu0 %v6507
  %v6598 = vpop.f32.mrb[0].mxu0
  %v6599 = vadd.f32 %v6491, %v6598
  %v6600 = vpop.f32.mrb[0].mxu0
  %v6601 = vpop.f32.mrb[0].mxu0
  %v6602 = vadd.f32 %v6491, %v6601
  %v6603 = vpop.f32.mrb[0].mxu0
  %6604 = vmatprep.mubr.bf16.mxu0 0
  %6605 = vmatmul.mubr.bf16.gmra.mrb[0].mxu0 %v6510
  %v6606 = vpop.f32.mrb[0].mxu0
  %v6607 = vadd.f32 %v6491, %v6606
  %v6608 = vpop.f32.mrb[0].mxu0
  %v6609 = vpop.f32.mrb[0].mxu0
  %v6610 = vadd.f32 %v6491, %v6609
  %v6611 = vpop.f32.mrb[0].mxu0
  %6612 = vmatprep.mubr.bf16.mxu0 0
  %6613 = vmatmul.mubr.bf16.gmra.mrb[0].mxu0 %v6513
  %v6614 = vpop.f32.mrb[0].mxu0
  %v6615 = vadd.f32 %v6491, %v6614
  %v6616 = vpop.f32.mrb[0].mxu0
  %v6617 = vpop.f32.mrb[0].mxu0
  %v6618 = vadd.f32 %v6491, %v6617
  %v6619 = vpop.f32.mrb[0].mxu0
  %6620 = vmatprep.mubr.bf16.mxu0 0
  %6621 = vmatmul.mubr.bf16.gmra.mrb[0].mxu0 %v6516
  %v6622 = vpop.f32.mrb[0].mxu0
  %v6623 = vadd.f32 %v6491, %v6622
  %v6624 = vpop.f32.mrb[0].mxu0
  %v6625 = vpop.f32.mrb[0].mxu0
  %v6626 = vadd.f32 %v6491, %v6625
  %v6627 = vpop.f32.mrb[0].mxu0
  %6628 = vmatprep.mubr.bf16.mxu0 0
  %6629 = vmatmul.mubr.bf16.gmra.mrb[0].mxu0 %v6519
  %v6630 = vpop.f32.mrb[0].mxu0
  %v6631 = vadd.f32 %v6491, %v6630
  %v6632 = vpop.f32.mrb[0].mxu0
  %v6633 = vpop.f32.mrb[0].mxu0
  %v6634 = vadd.f32 %v6491, %v6633
  %v6635 = vpop.f32.mrb[0].mxu0
  %6636 = vmatprep.mubr.bf16.mxu0 0
  %6637 = vmatmul.mubr.bf16.gmra.mrb[0].mxu0 %v6522
  %v6638 = vpop.f32.mrb[0].mxu0
  %v6639 = vadd.f32 %v6491, %v6638
  %v6640 = vpop.f32.mrb[0].mxu0
  %v6641 = vpop.f32.mrb[0].mxu0
  %v6642 = vadd.f32 %v6491, %v6641
  %v6643 = vpop.f32.mrb[0].mxu0
  %6644 = vmatprep.mubr.bf16.mxu0 0
  %6645 = vmatmul.mubr.bf16.gmra.mrb[0].mxu0 %v6525
  %v6646 = vpop.f32.mrb[0].mxu0
  %v6647 = vadd.f32 %v6491, %v6646
  %v6648 = vpop.f32.mrb[0].mxu0
  %v6649 = vpop.f32.mrb[0].mxu0
  %v6650 = vadd.f32 %v6491, %v6649
  %v6651 = vpop.f32.mrb[0].mxu0
  %6652 = vmatprep.mubr.bf16.mxu0 0
  %6653 = vmatmul.mubr.bf16.gmra.mrb[0].mxu0 %v6528
  %v6654 = vpop.f32.mrb[0].mxu0
  %v6655 = vadd.f32 %v6491, %v6654
  %v6656 = vpop.f32.mrb[0].mxu0
  %v6657 = vpop.f32.mrb[0].mxu0
  %v6658 = vadd.f32 %v6491, %v6657
  %v6659 = vpop.f32.mrb[0].mxu0
  %6660 = vmatprep.mubr.bf16.mxu0 0
  %6661 = vmatmul.mubr.bf16.gmra.mrb[0].mxu0 %v6531
  %v6662 = vpop.f32.mrb[0].mxu0
  %v6663 = vadd.f32 %v6491, %v6662
  %v6664 = vpop.f32.mrb[0].mxu0
  %v6665 = vpop.f32.mrb[0].mxu0
  %v6666 = vadd.f32 %v6491, %v6665
  %v6667 = vpop.f32.mrb[0].mxu0
  %6668 = vmatprep.mubr.bf16.mxu0 0
  %6669 = vmatmul.mubr.bf16.gmra.mrb[0].mxu0 %v6534
  %v6670 = vpop.f32.mrb[0].mxu0
  %v6671 = vadd.f32 %v6491, %v6670
  %v6672 = vpop.f32.mrb[0].mxu0
  %v6673 = vpop.f32.mrb[0].mxu0
  %v6674 = vadd.f32 %v6491, %v6673
  %v6675 = vpop.f32.mrb[0].mxu0
  %6676 = vmatprep.mubr.bf16.mxu0 0
  %6677 = vmatmul.mubr.bf16.gmra.mrb[0].mxu0 %v6537
  %v6678 = vpop.f32.mrb[0].mxu0
  %v6679 = vadd.f32 %v6491, %v6678
  %v6680 = vpop.f32.mrb[0].mxu0
  %v6681 = vpop.f32.mrb[0].mxu0
  %v6682 = vadd.f32 %v6491, %v6681
  %v6683 = vpop.f32.mrb[0].mxu0
  %6684 = vmatprep.mubr.bf16.mxu0 0
  %6685 = vmatmul.mubr.bf16.gmra.mrb[0].mxu0 %v6540
  %v6686 = vpop.f32.mrb[0].mxu0
  %v6687 = vadd.f32 %v6491, %v6686
  %v6688 = vpop.f32.mrb[0].mxu0
  %v6689 = vpop.f32.mrb[0].mxu0
  %v6690 = vadd.f32 %v6491, %v6689
  %v6691 = vpop.f32.mrb[0].mxu0
  %6692 = vmatprep.mubr.bf16.mxu0 0
  %6693 = vmatmul.mubr.bf16.gmra.mrb[0].mxu0 %v6543
  %v6694 = vpop.f32.mrb[0].mxu0
  %v6695 = vadd.f32 %v6491, %v6694
  %v6696 = vpop.f32.mrb[0].mxu0
  %v6697 = vpop.f32.mrb[0].mxu0
  %v6698 = vadd.f32 %v6491, %v6697
  %v6699 = vpop.f32.mrb[0].mxu0
  %6700 = vmatprep.mubr.bf16.mxu0 0
  %6701 = vmatmul.mubr.bf16.gmra.mrb[0].mxu0 %v6546
  %v6702 = vpop.f32.mrb[0].mxu0
  %v6703 = vadd.f32 %v6491, %v6702
  %v6704 = vpop.f32.mrb[0].mxu0
  %v6705 = vpop.f32.mrb[0].mxu0
  %v6706 = vadd.f32 %v6491, %v6705
  %v6707 = vpop.f32.mrb[0].mxu0
  %6708 = vdwg.mxu0
  %6709 = vadd.xlane.f32.xlu0 %v6583
  %v6710 = vpop.xlane.xlu0 %6709
  %6711 = vadd.xlane.f32.xlu0 %v6586
  %v6712 = vpop.xlane.xlu0 %6711
  %6713 = vadd.xlane.f32.xlu0 %v6591
  %v6714 = vpop.xlane.xlu0 %6713
  %6715 = vadd.xlane.f32.xlu0 %v6594
  %v6716 = vpop.xlane.xlu0 %6715
  %6717 = vadd.xlane.f32.xlu0 %v6599
  %v6718 = vpop.xlane.xlu0 %6717
  %6719 = vadd.xlane.f32.xlu0 %v6602
  %v6720 = vpop.xlane.xlu0 %6719
  %6721 = vadd.xlane.f32.xlu0 %v6607
  %v6722 = vpop.xlane.xlu0 %6721
  %6723 = vadd.xlane.f32.xlu0 %v6610
  %v6724 = vpop.xlane.xlu0 %6723
  %6725 = vadd.xlane.f32.xlu0 %v6615
  %v6726 = vpop.xlane.xlu0 %6725
  %6727 = vadd.xlane.f32.xlu0 %v6618
  %v6728 = vpop.xlane.xlu0 %6727
  %6729 = vadd.xlane.f32.xlu0 %v6623
  %v6730 = vpop.xlane.xlu0 %6729
  %6731 = vadd.xlane.f32.xlu0 %v6626
  %v6732 = vpop.xlane.xlu0 %6731
  %6733 = vadd.xlane.f32.xlu0 %v6631
  %v6734 = vpop.xlane.xlu0 %6733
  %6735 = vadd.xlane.f32.xlu0 %v6634
  %v6736 = vpop.xlane.xlu0 %6735
  %6737 = vadd.xlane.f32.xlu0 %v6639
  %v6738 = vpop.xlane.xlu0 %6737
  %6739 = vadd.xlane.f32.xlu0 %v6642
  %v6740 = vpop.xlane.xlu0 %6739
  %6741 = vadd.xlane.f32.xlu0 %v6647
  %v6742 = vpop.xlane.xlu0 %6741
  %6743 = vadd.xlane.f32.xlu0 %v6650
  %v6744 = vpop.xlane.xlu0 %6743
  %6745 = vadd.xlane.f32.xlu0 %v6655
  %v6746 = vpop.xlane.xlu0 %6745
  %6747 = vadd.xlane.f32.xlu0 %v6658
  %v6748 = vpop.xlane.xlu0 %6747
  %6749 = vadd.xlane.f32.xlu0 %v6663
  %v6750 = vpop.xlane.xlu0 %6749
  %6751 = vadd.xlane.f32.xlu0 %v6666
  %v6752 = vpop.xlane.xlu0 %6751
  %6753 = vadd.xlane.f32.xlu0 %v6671
  %v6754 = vpop.xlane.xlu0 %6753
  %6755 = vadd.xlane.f32.xlu0 %v6674
  %v6756 = vpop.xlane.xlu0 %6755
  %6757 = vadd.xlane.f32.xlu0 %v6679
  %v6758 = vpop.xlane.xlu0 %6757
  %6759 = vadd.xlane.f32.xlu0 %v6682
  %v6760 = vpop.xlane.xlu0 %6759
  %6761 = vadd.xlane.f32.xlu0 %v6687
  %v6762 = vpop.xlane.xlu0 %6761
  %6763 = vadd.xlane.f32.xlu0 %v6690
  %v6764 = vpop.xlane.xlu0 %6763
  %6765 = vadd.xlane.f32.xlu0 %v6695
  %v6766 = vpop.xlane.xlu0 %6765
  %6767 = vadd.xlane.f32.xlu0 %v6698
  %v6768 = vpop.xlane.xlu0 %6767
  %6769 = vadd.xlane.f32.xlu0 %v6703
  %v6770 = vpop.xlane.xlu0 %6769
  %6771 = vadd.xlane.f32.xlu0 %v6706
  %v6772 = vpop.xlane.xlu0 %6771
  %v6773 = vrcp.pop 128.0
  %v6774 = vmul.f32 %v6710, %v6773
  %v6775 = vmul.f32 %v6712, %v6773
  %v6776 = vmul.f32 %v6714, %v6773
  %v6777 = vmul.f32 %v6716, %v6773
  %v6778 = vmul.f32 %v6718, %v6773
  %v6779 = vmul.f32 %v6720, %v6773
  %v6780 = vmul.f32 %v6722, %v6773
  %v6781 = vmul.f32 %v6724, %v6773
  %v6782 = vmul.f32 %v6726, %v6773
  %v6783 = vmul.f32 %v6728, %v6773
  %v6784 = vmul.f32 %v6730, %v6773
  %v6785 = vmul.f32 %v6732, %v6773
  %v6786 = vmul.f32 %v6734, %v6773
  %v6787 = vmul.f32 %v6736, %v6773
  %v6788 = vmul.f32 %v6738, %v6773
  %v6789 = vmul.f32 %v6740, %v6773
  %v6790 = vmul.f32 %v6742, %v6773
  %v6791 = vmul.f32 %v6744, %v6773
  %v6792 = vmul.f32 %v6746, %v6773
  %v6793 = vmul.f32 %v6748, %v6773
  %v6794 = vmul.f32 %v6750, %v6773
  %v6795 = vmul.f32 %v6752, %v6773
  %v6796 = vmul.f32 %v6754, %v6773
  %v6797 = vmul.f32 %v6756, %v6773
  %v6798 = vmul.f32 %v6758, %v6773
  %v6799 = vmul.f32 %v6760, %v6773
  %v6800 = vmul.f32 %v6762, %v6773
  %v6801 = vmul.f32 %v6764, %v6773
  %v6802 = vmul.f32 %v6766, %v6773
  %v6803 = vmul.f32 %v6768, %v6773
  %v6804 = vmul.f32 %v6770, %v6773
  %v6805 = vmul.f32 %v6772, %v6773
  %v6806 = vsub.f32 %v6583, %v6774
  %v6807 = vsub.f32 %v6586, %v6775
  %v6808 = vsub.f32 %v6591, %v6776
  %v6809 = vsub.f32 %v6594, %v6777
  %v6810 = vsub.f32 %v6599, %v6778
  %v6811 = vsub.f32 %v6602, %v6779
  %v6812 = vsub.f32 %v6607, %v6780
  %v6813 = vsub.f32 %v6610, %v6781
  %v6814 = vsub.f32 %v6615, %v6782
  %v6815 = vsub.f32 %v6618, %v6783
  %v6816 = vsub.f32 %v6623, %v6784
  %v6817 = vsub.f32 %v6626, %v6785
  %v6818 = vsub.f32 %v6631, %v6786
  %v6819 = vsub.f32 %v6634, %v6787
  %v6820 = vsub.f32 %v6639, %v6788
  %v6821 = vsub.f32 %v6642, %v6789
  %v6822 = vsub.f32 %v6647, %v6790
  %v6823 = vsub.f32 %v6650, %v6791
  %v6824 = vsub.f32 %v6655, %v6792
  %v6825 = vsub.f32 %v6658, %v6793
  %v6826 = vsub.f32 %v6663, %v6794
  %v6827 = vsub.f32 %v6666, %v6795
  %v6828 = vsub.f32 %v6671, %v6796
  %v6829 = vsub.f32 %v6674, %v6797
  %v6830 = vsub.f32 %v6679, %v6798
  %v6831 = vsub.f32 %v6682, %v6799
  %v6832 = vsub.f32 %v6687, %v6800
  %v6833 = vsub.f32 %v6690, %v6801
  %v6834 = vsub.f32 %v6695, %v6802
  %v6835 = vsub.f32 %v6698, %v6803
  %v6836 = vsub.f32 %v6703, %v6804
  %v6837 = vsub.f32 %v6706, %v6805
  %v6838 = vmul.f32 %v6806, %v6806
  %v6839 = vmul.f32 %v6807, %v6807
  %v6840 = vmul.f32 %v6808, %v6808
  %v6841 = vmul.f32 %v6809, %v6809
  %v6842 = vmul.f32 %v6810, %v6810
  %v6843 = vmul.f32 %v6811, %v6811
  %v6844 = vmul.f32 %v6812, %v6812
  %v6845 = vmul.f32 %v6813, %v6813
  %v6846 = vmul.f32 %v6814, %v6814
  %v6847 = vmul.f32 %v6815, %v6815
  %v6848 = vmul.f32 %v6816, %v6816
  %v6849 = vmul.f32 %v6817, %v6817
  %v6850 = vmul.f32 %v6818, %v6818
  %v6851 = vmul.f32 %v6819, %v6819
  %v6852 = vmul.f32 %v6820, %v6820
  %v6853 = vmul.f32 %v6821, %v6821
  %v6854 = vmul.f32 %v6822, %v6822
  %v6855 = vmul.f32 %v6823, %v6823
  %v6856 = vmul.f32 %v6824, %v6824
  %v6857 = vmul.f32 %v6825, %v6825
  %v6858 = vmul.f32 %v6826, %v6826
  %v6859 = vmul.f32 %v6827, %v6827
  %v6860 = vmul.f32 %v6828, %v6828
  %v6861 = vmul.f32 %v6829, %v6829
  %v6862 = vmul.f32 %v6830, %v6830
  %v6863 = vmul.f32 %v6831, %v6831
  %v6864 = vmul.f32 %v6832, %v6832
  %v6865 = vmul.f32 %v6833, %v6833
  %v6866 = vmul.f32 %v6834, %v6834
  %v6867 = vmul.f32 %v6835, %v6835
  %v6868 = vmul.f32 %v6836, %v6836
  %v6869 = vmul.f32 %v6837, %v6837
  %6870 = vadd.xlane.f32.xlu0 %v6838
  %v6871 = vpop.xlane.xlu0 %6870
  %6872 = vadd.xlane.f32.xlu0 %v6839
  %v6873 = vpop.xlane.xlu0 %6872
  %6874 = vadd.xlane.f32.xlu0 %v6840
  %v6875 = vpop.xlane.xlu0 %6874
  %6876 = vadd.xlane.f32.xlu0 %v6841
  %v6877 = vpop.xlane.xlu0 %6876
  %6878 = vadd.xlane.f32.xlu0 %v6842
  %v6879 = vpop.xlane.xlu0 %6878
  %6880 = vadd.xlane.f32.xlu0 %v6843
  %v6881 = vpop.xlane.xlu0 %6880
  %6882 = vadd.xlane.f32.xlu0 %v6844
  %v6883 = vpop.xlane.xlu0 %6882
  %6884 = vadd.xlane.f32.xlu0 %v6845
  %v6885 = vpop.xlane.xlu0 %6884
  %6886 = vadd.xlane.f32.xlu0 %v6846
  %v6887 = vpop.xlane.xlu0 %6886
  %6888 = vadd.xlane.f32.xlu0 %v6847
  %v6889 = vpop.xlane.xlu0 %6888
  %6890 = vadd.xlane.f32.xlu0 %v6848
  %v6891 = vpop.xlane.xlu0 %6890
  %6892 = vadd.xlane.f32.xlu0 %v6849
  %v6893 = vpop.xlane.xlu0 %6892
  %6894 = vadd.xlane.f32.xlu0 %v6850
  %v6895 = vpop.xlane.xlu0 %6894
  %6896 = vadd.xlane.f32.xlu0 %v6851
  %v6897 = vpop.xlane.xlu0 %6896
  %6898 = vadd.xlane.f32.xlu0 %v6852
  %v6899 = vpop.xlane.xlu0 %6898
  %6900 = vadd.xlane.f32.xlu0 %v6853
  %v6901 = vpop.xlane.xlu0 %6900
  %6902 = vadd.xlane.f32.xlu0 %v6854
  %v6903 = vpop.xlane.xlu0 %6902
  %6904 = vadd.xlane.f32.xlu0 %v6855
  %v6905 = vpop.xlane.xlu0 %6904
  %6906 = vadd.xlane.f32.xlu0 %v6856
  %v6907 = vpop.xlane.xlu0 %6906
  %6908 = vadd.xlane.f32.xlu0 %v6857
  %v6909 = vpop.xlane.xlu0 %6908
  %6910 = vadd.xlane.f32.xlu0 %v6858
  %v6911 = vpop.xlane.xlu0 %6910
  %6912 = vadd.xlane.f32.xlu0 %v6859
  %v6913 = vpop.xlane.xlu0 %6912
  %6914 = vadd.xlane.f32.xlu0 %v6860
  %v6915 = vpop.xlane.xlu0 %6914
  %6916 = vadd.xlane.f32.xlu0 %v6861
  %v6917 = vpop.xlane.xlu0 %6916
  %6918 = vadd.xlane.f32.xlu0 %v6862
  %v6919 = vpop.xlane.xlu0 %6918
  %6920 = vadd.xlane.f32.xlu0 %v6863
  %v6921 = vpop.xlane.xlu0 %6920
  %6922 = vadd.xlane.f32.xlu0 %v6864
  %v6923 = vpop.xlane.xlu0 %6922
  %6924 = vadd.xlane.f32.xlu0 %v6865
  %v6925 = vpop.xlane.xlu0 %6924
  %6926 = vadd.xlane.f32.xlu0 %v6866
  %v6927 = vpop.xlane.xlu0 %6926
  %6928 = vadd.xlane.f32.xlu0 %v6867
  %v6929 = vpop.xlane.xlu0 %6928
  %6930 = vadd.xlane.f32.xlu0 %v6868
  %v6931 = vpop.xlane.xlu0 %6930
  %6932 = vadd.xlane.f32.xlu0 %v6869
  %v6933 = vpop.xlane.xlu0 %6932
  %v6934 = vmul.f32 %v6871, %v6773
  %v6935 = vmul.f32 %v6873, %v6773
  %v6936 = vmul.f32 %v6875, %v6773
  %v6937 = vmul.f32 %v6877, %v6773
  %v6938 = vmul.f32 %v6879, %v6773
  %v6939 = vmul.f32 %v6881, %v6773
  %v6940 = vmul.f32 %v6883, %v6773
  %v6941 = vmul.f32 %v6885, %v6773
  %v6942 = vmul.f32 %v6887, %v6773
  %v6943 = vmul.f32 %v6889, %v6773
  %v6944 = vmul.f32 %v6891, %v6773
  %v6945 = vmul.f32 %v6893, %v6773
  %v6946 = vmul.f32 %v6895, %v6773
  %v6947 = vmul.f32 %v6897, %v6773
  %v6948 = vmul.f32 %v6899, %v6773
  %v6949 = vmul.f32 %v6901, %v6773
  %v6950 = vmul.f32 %v6903, %v6773
  %v6951 = vmul.f32 %v6905, %v6773
  %v6952 = vmul.f32 %v6907, %v6773
  %v6953 = vmul.f32 %v6909, %v6773
  %v6954 = vmul.f32 %v6911, %v6773
  %v6955 = vmul.f32 %v6913, %v6773
  %v6956 = vmul.f32 %v6915, %v6773
  %v6957 = vmul.f32 %v6917, %v6773
  %v6958 = vmul.f32 %v6919, %v6773
  %v6959 = vmul.f32 %v6921, %v6773
  %v6960 = vmul.f32 %v6923, %v6773
  %v6961 = vmul.f32 %v6925, %v6773
  %v6962 = vmul.f32 %v6927, %v6773
  %v6963 = vmul.f32 %v6929, %v6773
  %v6964 = vmul.f32 %v6931, %v6773
  %v6965 = vmul.f32 %v6933, %v6773
  %v6966 = vadd.f32 %v6934, 1e-05
  %v6967 = vadd.f32 %v6935, 1e-05
  %v6968 = vadd.f32 %v6936, 1e-05
  %v6969 = vadd.f32 %v6937, 1e-05
  %v6970 = vadd.f32 %v6938, 1e-05
  %v6971 = vadd.f32 %v6939, 1e-05
  %v6972 = vadd.f32 %v6940, 1e-05
  %v6973 = vadd.f32 %v6941, 1e-05
  %v6974 = vadd.f32 %v6942, 1e-05
  %v6975 = vadd.f32 %v6943, 1e-05
  %v6976 = vadd.f32 %v6944, 1e-05
  %v6977 = vadd.f32 %v6945, 1e-05
  %v6978 = vadd.f32 %v6946, 1e-05
  %v6979 = vadd.f32 %v6947, 1e-05
  %v6980 = vadd.f32 %v6948, 1e-05
  %v6981 = vadd.f32 %v6949, 1e-05
  %v6982 = vadd.f32 %v6950, 1e-05
  %v6983 = vadd.f32 %v6951, 1e-05
  %v6984 = vadd.f32 %v6952, 1e-05
  %v6985 = vadd.f32 %v6953, 1e-05
  %v6986 = vadd.f32 %v6954, 1e-05
  %v6987 = vadd.f32 %v6955, 1e-05
  %v6988 = vadd.f32 %v6956, 1e-05
  %v6989 = vadd.f32 %v6957, 1e-05
  %v6990 = vadd.f32 %v6958, 1e-05
  %v6991 = vadd.f32 %v6959, 1e-05
  %v6992 = vadd.f32 %v6960, 1e-05
  %v6993 = vadd.f32 %v6961, 1e-05
  %v6994 = vadd.f32 %v6962, 1e-05
  %v6995 = vadd.f32 %v6963, 1e-05
  %v6996 = vadd.f32 %v6964, 1e-05
  %v6997 = vadd.f32 %v6965, 1e-05
  %v6998 = vrsqrt.pop %v6966
  %v6999 = vrsqrt.pop %v6967
  %v7000 = vrsqrt.pop %v6968
  %v7001 = vrsqrt.pop %v6969
  %v7002 = vrsqrt.pop %v6970
  %v7003 = vrsqrt.pop %v6971
  %v7004 = vrsqrt.pop %v6972
  %v7005 = vrsqrt.pop %v6973
  %v7006 = vrsqrt.pop %v6974
  %v7007 = vrsqrt.pop %v6975
  %v7008 = vrsqrt.pop %v6976
  %v7009 = vrsqrt.pop %v6977
  %v7010 = vrsqrt.pop %v6978
  %v7011 = vrsqrt.pop %v6979
  %v7012 = vrsqrt.pop %v6980
  %v7013 = vrsqrt.pop %v6981
  %v7014 = vrsqrt.pop %v6982
  %v7015 = vrsqrt.pop %v6983
  %v7016 = vrsqrt.pop %v6984
  %v7017 = vrsqrt.pop %v6985
  %v7018 = vrsqrt.pop %v6986
  %v7019 = vrsqrt.pop %v6987
  %v7020 = vrsqrt.pop %v6988
  %v7021 = vrsqrt.pop %v6989
  %v7022 = vrsqrt.pop %v6990
  %v7023 = vrsqrt.pop %v6991
  %v7024 = vrsqrt.pop %v6992
  %v7025 = vrsqrt.pop %v6993
  %v7026 = vrsqrt.pop %v6994
  %v7027 = vrsqrt.pop %v6995
  %v7028 = vrsqrt.pop %v6996
  %v7029 = vrsqrt.pop %v6997
  %v7030 = vmul.f32 %v6806, %v6998
  %v7031 = vmul.f32 %v6807, %v6999
  %v7032 = vmul.f32 %v6808, %v7000
  %v7033 = vmul.f32 %v6809, %v7001
  %v7034 = vmul.f32 %v6810, %v7002
  %v7035 = vmul.f32 %v6811, %v7003
  %v7036 = vmul.f32 %v6812, %v7004
  %v7037 = vmul.f32 %v6813, %v7005
  %v7038 = vmul.f32 %v6814, %v7006
  %v7039 = vmul.f32 %v6815, %v7007
  %v7040 = vmul.f32 %v6816, %v7008
  %v7041 = vmul.f32 %v6817, %v7009
  %v7042 = vmul.f32 %v6818, %v7010
  %v7043 = vmul.f32 %v6819, %v7011
  %v7044 = vmul.f32 %v6820, %v7012
  %v7045 = vmul.f32 %v6821, %v7013
  %v7046 = vmul.f32 %v6822, %v7014
  %v7047 = vmul.f32 %v6823, %v7015
  %v7048 = vmul.f32 %v6824, %v7016
  %v7049 = vmul.f32 %v6825, %v7017
  %v7050 = vmul.f32 %v6826, %v7018
  %v7051 = vmul.f32 %v6827, %v7019
  %v7052 = vmul.f32 %v6828, %v7020
  %v7053 = vmul.f32 %v6829, %v7021
  %v7054 = vmul.f32 %v6830, %v7022
  %v7055 = vmul.f32 %v6831, %v7023
  %v7056 = vmul.f32 %v6832, %v7024
  %v7057 = vmul.f32 %v6833, %v7025
  %v7058 = vmul.f32 %v6834, %v7026
  %v7059 = vmul.f32 %v6835, %v7027
  %v7060 = vmul.f32 %v6836, %v7028
  %v7061 = vmul.f32 %v6837, %v7029
  %v7062 = vld [vmem:[%s7 + $0x14] sm:$0x1]
  %v7064 = vlaneseq
  %v7065 = vshrl.u32 %v7064, 7
  %v7066 = vsub.s32 0, %v7065
  %v7067 = vrot.slane %v7062, %v7066
  %v7069 = vmul.f32 %v7030, %v7067
  %v7070 = vmul.f32 %v7031, %v7067
  %v7071 = vmul.f32 %v7032, %v7067
  %v7072 = vmul.f32 %v7033, %v7067
  %v7073 = vmul.f32 %v7034, %v7067
  %v7074 = vmul.f32 %v7035, %v7067
  %v7075 = vmul.f32 %v7036, %v7067
  %v7076 = vmul.f32 %v7037, %v7067
  %v7077 = vmul.f32 %v7038, %v7067
  %v7078 = vmul.f32 %v7039, %v7067
  %v7079 = vmul.f32 %v7040, %v7067
  %v7080 = vmul.f32 %v7041, %v7067
  %v7081 = vmul.f32 %v7042, %v7067
  %v7082 = vmul.f32 %v7043, %v7067
  %v7083 = vmul.f32 %v7044, %v7067
  %v7084 = vmul.f32 %v7045, %v7067
  %v7085 = vmul.f32 %v7046, %v7067
  %v7086 = vmul.f32 %v7047, %v7067
  %v7087 = vmul.f32 %v7048, %v7067
  %v7088 = vmul.f32 %v7049, %v7067
  %v7089 = vmul.f32 %v7050, %v7067
  %v7090 = vmul.f32 %v7051, %v7067
  %v7091 = vmul.f32 %v7052, %v7067
  %v7092 = vmul.f32 %v7053, %v7067
  %v7093 = vmul.f32 %v7054, %v7067
  %v7094 = vmul.f32 %v7055, %v7067
  %v7095 = vmul.f32 %v7056, %v7067
  %v7096 = vmul.f32 %v7057, %v7067
  %v7097 = vmul.f32 %v7058, %v7067
  %v7098 = vmul.f32 %v7059, %v7067
  %v7099 = vmul.f32 %v7060, %v7067
  %v7100 = vmul.f32 %v7061, %v7067
  %v7101 = vld [vmem:[%s7 + $0x15] sm:$0x1]
  %v7103 = vlaneseq
  %v7104 = vshrl.u32 %v7103, 7
  %v7105 = vsub.s32 0, %v7104
  %v7106 = vrot.slane %v7101, %v7105
  %v7108 = vadd.f32 %v7069, %v7106
  %v7109 = vadd.f32 %v7070, %v7106
  %v7110 = vadd.f32 %v7071, %v7106
  %v7111 = vadd.f32 %v7072, %v7106
  %v7112 = vadd.f32 %v7073, %v7106
  %v7113 = vadd.f32 %v7074, %v7106
  %v7114 = vadd.f32 %v7075, %v7106
  %v7115 = vadd.f32 %v7076, %v7106
  %v7116 = vadd.f32 %v7077, %v7106
  %v7117 = vadd.f32 %v7078, %v7106
  %v7118 = vadd.f32 %v7079, %v7106
  %v7119 = vadd.f32 %v7080, %v7106
  %v7120 = vadd.f32 %v7081, %v7106
  %v7121 = vadd.f32 %v7082, %v7106
  %v7122 = vadd.f32 %v7083, %v7106
  %v7123 = vadd.f32 %v7084, %v7106
  %v7124 = vadd.f32 %v7085, %v7106
  %v7125 = vadd.f32 %v7086, %v7106
  %v7126 = vadd.f32 %v7087, %v7106
  %v7127 = vadd.f32 %v7088, %v7106
  %v7128 = vadd.f32 %v7089, %v7106
  %v7129 = vadd.f32 %v7090, %v7106
  %v7130 = vadd.f32 %v7091, %v7106
  %v7131 = vadd.f32 %v7092, %v7106
  %v7132 = vadd.f32 %v7093, %v7106
  %v7133 = vadd.f32 %v7094, %v7106
  %v7134 = vadd.f32 %v7095, %v7106
  %v7135 = vadd.f32 %v7096, %v7106
  %v7136 = vadd.f32 %v7097, %v7106
  %v7137 = vadd.f32 %v7098, %v7106
  %v7138 = vadd.f32 %v7099, %v7106
  %v7139 = vadd.f32 %v7100, %v7106
  %v7140 = vmin.f32 %v7108, 20.0
  %v7141 = vmin.f32 %v7109, 20.0
  %v7142 = vmin.f32 %v7110, 20.0
  %v7143 = vmin.f32 %v7111, 20.0
  %v7144 = vmin.f32 %v7112, 20.0
  %v7145 = vmin.f32 %v7113, 20.0
  %v7146 = vmin.f32 %v7114, 20.0
  %v7147 = vmin.f32 %v7115, 20.0
  %v7148 = vmin.f32 %v7116, 20.0
  %v7149 = vmin.f32 %v7117, 20.0
  %v7150 = vmin.f32 %v7118, 20.0
  %v7151 = vmin.f32 %v7119, 20.0
  %v7152 = vmin.f32 %v7120, 20.0
  %v7153 = vmin.f32 %v7121, 20.0
  %v7154 = vmin.f32 %v7122, 20.0
  %v7155 = vmin.f32 %v7123, 20.0
  %v7156 = vmin.f32 %v7124, 20.0
  %v7157 = vmin.f32 %v7125, 20.0
  %v7158 = vmin.f32 %v7126, 20.0
  %v7159 = vmin.f32 %v7127, 20.0
  %v7160 = vmin.f32 %v7128, 20.0
  %v7161 = vmin.f32 %v7129, 20.0
  %v7162 = vmin.f32 %v7130, 20.0
  %v7163 = vmin.f32 %v7131, 20.0
  %v7164 = vmin.f32 %v7132, 20.0
  %v7165 = vmin.f32 %v7133, 20.0
  %v7166 = vmin.f32 %v7134, 20.0
  %v7167 = vmin.f32 %v7135, 20.0
  %v7168 = vmin.f32 %v7136, 20.0
  %v7169 = vmin.f32 %v7137, 20.0
  %v7170 = vmin.f32 %v7138, 20.0
  %v7171 = vmin.f32 %v7139, 20.0
  %v7172 = vmul.f32 %v7140, 1.442695
  %v7173 = vpow.pop %v7172
  %v7174 = vmul.f32 %v7141, 1.442695
  %v7175 = vpow.pop %v7174
  %v7176 = vmul.f32 %v7142, 1.442695
  %v7177 = vpow.pop %v7176
  %v7178 = vmul.f32 %v7143, 1.442695
  %v7179 = vpow.pop %v7178
  %v7180 = vmul.f32 %v7144, 1.442695
  %v7181 = vpow.pop %v7180
  %v7182 = vmul.f32 %v7145, 1.442695
  %v7183 = vpow.pop %v7182
  %v7184 = vmul.f32 %v7146, 1.442695
  %v7185 = vpow.pop %v7184
  %v7186 = vmul.f32 %v7147, 1.442695
  %v7187 = vpow.pop %v7186
  %v7188 = vmul.f32 %v7148, 1.442695
  %v7189 = vpow.pop %v7188
  %v7190 = vmul.f32 %v7149, 1.442695
  %v7191 = vpow.pop %v7190
  %v7192 = vmul.f32 %v7150, 1.442695
  %v7193 = vpow.pop %v7192
  %v7194 = vmul.f32 %v7151, 1.442695
  %v7195 = vpow.pop %v7194
  %v7196 = vmul.f32 %v7152, 1.442695
  %v7197 = vpow.pop %v7196
  %v7198 = vmul.f32 %v7153, 1.442695
  %v7199 = vpow.pop %v7198
  %v7200 = vmul.f32 %v7154, 1.442695
  %v7201 = vpow.pop %v7200
  %v7202 = vmul.f32 %v7155, 1.442695
  %v7203 = vpow.pop %v7202
  %v7204 = vmul.f32 %v7156, 1.442695
  %v7205 = vpow.pop %v7204
  %v7206 = vmul.f32 %v7157, 1.442695
  %v7207 = vpow.pop %v7206
  %v7208 = vmul.f32 %v7158, 1.442695
  %v7209 = vpow.pop %v7208
  %v7210 = vmul.f32 %v7159, 1.442695
  %v7211 = vpow.pop %v7210
  %v7212 = vmul.f32 %v7160, 1.442695
  %v7213 = vpow.pop %v7212
  %v7214 = vmul.f32 %v7161, 1.442695
  %v7215 = vpow.pop %v7214
  %v7216 = vmul.f32 %v7162, 1.442695
  %v7217 = vpow.pop %v7216
  %v7218 = vmul.f32 %v7163, 1.442695
  %v7219 = vpow.pop %v7218
  %v7220 = vmul.f32 %v7164, 1.442695
  %v7221 = vpow.pop %v7220
  %v7222 = vmul.f32 %v7165, 1.442695
  %v7223 = vpow.pop %v7222
  %v7224 = vmul.f32 %v7166, 1.442695
  %v7225 = vpow.pop %v7224
  %v7226 = vmul.f32 %v7167, 1.442695
  %v7227 = vpow.pop %v7226
  %v7228 = vmul.f32 %v7168, 1.442695
  %v7229 = vpow.pop %v7228
  %v7230 = vmul.f32 %v7169, 1.442695
  %v7231 = vpow.pop %v7230
  %v7232 = vmul.f32 %v7170, 1.442695
  %v7233 = vpow.pop %v7232
  %v7234 = vmul.f32 %v7171, 1.442695
  %v7235 = vpow.pop %v7234
  %v7236 = vadd.f32 %v7173, 1.0
  %v7237 = vadd.f32 %v7175, 1.0
  %v7238 = vadd.f32 %v7177, 1.0
  %v7239 = vadd.f32 %v7179, 1.0
  %v7240 = vadd.f32 %v7181, 1.0
  %v7241 = vadd.f32 %v7183, 1.0
  %v7242 = vadd.f32 %v7185, 1.0
  %v7243 = vadd.f32 %v7187, 1.0
  %v7244 = vadd.f32 %v7189, 1.0
  %v7245 = vadd.f32 %v7191, 1.0
  %v7246 = vadd.f32 %v7193, 1.0
  %v7247 = vadd.f32 %v7195, 1.0
  %v7248 = vadd.f32 %v7197, 1.0
  %v7249 = vadd.f32 %v7199, 1.0
  %v7250 = vadd.f32 %v7201, 1.0
  %v7251 = vadd.f32 %v7203, 1.0
  %v7252 = vadd.f32 %v7205, 1.0
  %v7253 = vadd.f32 %v7207, 1.0
  %v7254 = vadd.f32 %v7209, 1.0
  %v7255 = vadd.f32 %v7211, 1.0
  %v7256 = vadd.f32 %v7213, 1.0
  %v7257 = vadd.f32 %v7215, 1.0
  %v7258 = vadd.f32 %v7217, 1.0
  %v7259 = vadd.f32 %v7219, 1.0
  %v7260 = vadd.f32 %v7221, 1.0
  %v7261 = vadd.f32 %v7223, 1.0
  %v7262 = vadd.f32 %v7225, 1.0
  %v7263 = vadd.f32 %v7227, 1.0
  %v7264 = vadd.f32 %v7229, 1.0
  %v7265 = vadd.f32 %v7231, 1.0
  %v7266 = vadd.f32 %v7233, 1.0
  %v7267 = vadd.f32 %v7235, 1.0
  %v7268 = vmul.f32 %v7236, %v7236
  %v7269 = vmul.f32 %v7237, %v7237
  %v7270 = vmul.f32 %v7238, %v7238
  %v7271 = vmul.f32 %v7239, %v7239
  %v7272 = vmul.f32 %v7240, %v7240
  %v7273 = vmul.f32 %v7241, %v7241
  %v7274 = vmul.f32 %v7242, %v7242
  %v7275 = vmul.f32 %v7243, %v7243
  %v7276 = vmul.f32 %v7244, %v7244
  %v7277 = vmul.f32 %v7245, %v7245
  %v7278 = vmul.f32 %v7246, %v7246
  %v7279 = vmul.f32 %v7247, %v7247
  %v7280 = vmul.f32 %v7248, %v7248
  %v7281 = vmul.f32 %v7249, %v7249
  %v7282 = vmul.f32 %v7250, %v7250
  %v7283 = vmul.f32 %v7251, %v7251
  %v7284 = vmul.f32 %v7252, %v7252
  %v7285 = vmul.f32 %v7253, %v7253
  %v7286 = vmul.f32 %v7254, %v7254
  %v7287 = vmul.f32 %v7255, %v7255
  %v7288 = vmul.f32 %v7256, %v7256
  %v7289 = vmul.f32 %v7257, %v7257
  %v7290 = vmul.f32 %v7258, %v7258
  %v7291 = vmul.f32 %v7259, %v7259
  %v7292 = vmul.f32 %v7260, %v7260
  %v7293 = vmul.f32 %v7261, %v7261
  %v7294 = vmul.f32 %v7262, %v7262
  %v7295 = vmul.f32 %v7263, %v7263
  %v7296 = vmul.f32 %v7264, %v7264
  %v7297 = vmul.f32 %v7265, %v7265
  %v7298 = vmul.f32 %v7266, %v7266
  %v7299 = vmul.f32 %v7267, %v7267
  %v7300 = vsub.f32 %v7268, 1.0
  %v7301 = vsub.f32 %v7269, 1.0
  %v7302 = vsub.f32 %v7270, 1.0
  %v7303 = vsub.f32 %v7271, 1.0
  %v7304 = vsub.f32 %v7272, 1.0
  %v7305 = vsub.f32 %v7273, 1.0
  %v7306 = vsub.f32 %v7274, 1.0
  %v7307 = vsub.f32 %v7275, 1.0
  %v7308 = vsub.f32 %v7276, 1.0
  %v7309 = vsub.f32 %v7277, 1.0
  %v7310 = vsub.f32 %v7278, 1.0
  %v7311 = vsub.f32 %v7279, 1.0
  %v7312 = vsub.f32 %v7280, 1.0
  %v7313 = vsub.f32 %v7281, 1.0
  %v7314 = vsub.f32 %v7282, 1.0
  %v7315 = vsub.f32 %v7283, 1.0
  %v7316 = vsub.f32 %v7284, 1.0
  %v7317 = vsub.f32 %v7285, 1.0
  %v7318 = vsub.f32 %v7286, 1.0
  %v7319 = vsub.f32 %v7287, 1.0
  %v7320 = vsub.f32 %v7288, 1.0
  %v7321 = vsub.f32 %v7289, 1.0
  %v7322 = vsub.f32 %v7290, 1.0
  %v7323 = vsub.f32 %v7291, 1.0
  %v7324 = vsub.f32 %v7292, 1.0
  %v7325 = vsub.f32 %v7293, 1.0
  %v7326 = vsub.f32 %v7294, 1.0
  %v7327 = vsub.f32 %v7295, 1.0
  %v7328 = vsub.f32 %v7296, 1.0
  %v7329 = vsub.f32 %v7297, 1.0
  %v7330 = vsub.f32 %v7298, 1.0
  %v7331 = vsub.f32 %v7299, 1.0
  %v7332 = vmul.f32 %v7108, %v7300
  %v7333 = vmul.f32 %v7109, %v7301
  %v7334 = vmul.f32 %v7110, %v7302
  %v7335 = vmul.f32 %v7111, %v7303
  %v7336 = vmul.f32 %v7112, %v7304
  %v7337 = vmul.f32 %v7113, %v7305
  %v7338 = vmul.f32 %v7114, %v7306
  %v7339 = vmul.f32 %v7115, %v7307
  %v7340 = vmul.f32 %v7116, %v7308
  %v7341 = vmul.f32 %v7117, %v7309
  %v7342 = vmul.f32 %v7118, %v7310
  %v7343 = vmul.f32 %v7119, %v7311
  %v7344 = vmul.f32 %v7120, %v7312
  %v7345 = vmul.f32 %v7121, %v7313
  %v7346 = vmul.f32 %v7122, %v7314
  %v7347 = vmul.f32 %v7123, %v7315
  %v7348 = vmul.f32 %v7124, %v7316
  %v7349 = vmul.f32 %v7125, %v7317
  %v7350 = vmul.f32 %v7126, %v7318
  %v7351 = vmul.f32 %v7127, %v7319
  %v7352 = vmul.f32 %v7128, %v7320
  %v7353 = vmul.f32 %v7129, %v7321
  %v7354 = vmul.f32 %v7130, %v7322
  %v7355 = vmul.f32 %v7131, %v7323
  %v7356 = vmul.f32 %v7132, %v7324
  %v7357 = vmul.f32 %v7133, %v7325
  %v7358 = vmul.f32 %v7134, %v7326
  %v7359 = vmul.f32 %v7135, %v7327
  %v7360 = vmul.f32 %v7136, %v7328
  %v7361 = vmul.f32 %v7137, %v7329
  %v7362 = vmul.f32 %v7138, %v7330
  %v7363 = vmul.f32 %v7139, %v7331
  %v7364 = vadd.f32 %v7268, 1.0
  %v7365 = vadd.f32 %v7269, 1.0
  %v7366 = vadd.f32 %v7270, 1.0
  %v7367 = vadd.f32 %v7271, 1.0
  %v7368 = vadd.f32 %v7272, 1.0
  %v7369 = vadd.f32 %v7273, 1.0
  %v7370 = vadd.f32 %v7274, 1.0
  %v7371 = vadd.f32 %v7275, 1.0
  %v7372 = vadd.f32 %v7276, 1.0
  %v7373 = vadd.f32 %v7277, 1.0
  %v7374 = vadd.f32 %v7278, 1.0
  %v7375 = vadd.f32 %v7279, 1.0
  %v7376 = vadd.f32 %v7280, 1.0
  %v7377 = vadd.f32 %v7281, 1.0
  %v7378 = vadd.f32 %v7282, 1.0
  %v7379 = vadd.f32 %v7283, 1.0
  %v7380 = vadd.f32 %v7284, 1.0
  %v7381 = vadd.f32 %v7285, 1.0
  %v7382 = vadd.f32 %v7286, 1.0
  %v7383 = vadd.f32 %v7287, 1.0
  %v7384 = vadd.f32 %v7288, 1.0
  %v7385 = vadd.f32 %v7289, 1.0
  %v7386 = vadd.f32 %v7290, 1.0
  %v7387 = vadd.f32 %v7291, 1.0
  %v7388 = vadd.f32 %v7292, 1.0
  %v7389 = vadd.f32 %v7293, 1.0
  %v7390 = vadd.f32 %v7294, 1.0
  %v7391 = vadd.f32 %v7295, 1.0
  %v7392 = vadd.f32 %v7296, 1.0
  %v7393 = vadd.f32 %v7297, 1.0
  %v7394 = vadd.f32 %v7298, 1.0
  %v7395 = vadd.f32 %v7299, 1.0
  %v7396 = vrcp.pop %v7364
  %v7397 = vrcp.pop %v7365
  %v7398 = vrcp.pop %v7366
  %v7399 = vrcp.pop %v7367
  %v7400 = vrcp.pop %v7368
  %v7401 = vrcp.pop %v7369
  %v7402 = vrcp.pop %v7370
  %v7403 = vrcp.pop %v7371
  %v7404 = vrcp.pop %v7372
  %v7405 = vrcp.pop %v7373
  %v7406 = vrcp.pop %v7374
  %v7407 = vrcp.pop %v7375
  %v7408 = vrcp.pop %v7376
  %v7409 = vrcp.pop %v7377
  %v7410 = vrcp.pop %v7378
  %v7411 = vrcp.pop %v7379
  %v7412 = vrcp.pop %v7380
  %v7413 = vrcp.pop %v7381
  %v7414 = vrcp.pop %v7382
  %v7415 = vrcp.pop %v7383
  %v7416 = vrcp.pop %v7384
  %v7417 = vrcp.pop %v7385
  %v7418 = vrcp.pop %v7386
  %v7419 = vrcp.pop %v7387
  %v7420 = vrcp.pop %v7388
  %v7421 = vrcp.pop %v7389
  %v7422 = vrcp.pop %v7390
  %v7423 = vrcp.pop %v7391
  %v7424 = vrcp.pop %v7392
  %v7425 = vrcp.pop %v7393
  %v7426 = vrcp.pop %v7394
  %v7427 = vrcp.pop %v7395
  %v7428 = vmul.f32 %v7332, %v7396
  %v7429 = vmul.f32 %v7333, %v7397
  %v7430 = vmul.f32 %v7334, %v7398
  %v7431 = vmul.f32 %v7335, %v7399
  %v7432 = vmul.f32 %v7336, %v7400
  %v7433 = vmul.f32 %v7337, %v7401
  %v7434 = vmul.f32 %v7338, %v7402
  %v7435 = vmul.f32 %v7339, %v7403
  %v7436 = vmul.f32 %v7340, %v7404
  %v7437 = vmul.f32 %v7341, %v7405
  %v7438 = vmul.f32 %v7342, %v7406
  %v7439 = vmul.f32 %v7343, %v7407
  %v7440 = vmul.f32 %v7344, %v7408
  %v7441 = vmul.f32 %v7345, %v7409
  %v7442 = vmul.f32 %v7346, %v7410
  %v7443 = vmul.f32 %v7347, %v7411
  %v7444 = vmul.f32 %v7348, %v7412
  %v7445 = vmul.f32 %v7349, %v7413
  %v7446 = vmul.f32 %v7350, %v7414
  %v7447 = vmul.f32 %v7351, %v7415
  %v7448 = vmul.f32 %v7352, %v7416
  %v7449 = vmul.f32 %v7353, %v7417
  %v7450 = vmul.f32 %v7354, %v7418
  %v7451 = vmul.f32 %v7355, %v7419
  %v7452 = vmul.f32 %v7356, %v7420
  %v7453 = vmul.f32 %v7357, %v7421
  %v7454 = vmul.f32 %v7358, %v7422
  %v7455 = vmul.f32 %v7359, %v7423
  %v7456 = vmul.f32 %v7360, %v7424
  %v7457 = vmul.f32 %v7361, %v7425
  %v7458 = vmul.f32 %v7362, %v7426
  %v7459 = vmul.f32 %v7363, %v7427
  %v7460 = vpack.c.bf16 %v7429, %v7428
  %v7461 = vpack.c.bf16 %v7431, %v7430
  %v7462 = vpack.c.bf16 %v7433, %v7432
  %v7463 = vpack.c.bf16 %v7435, %v7434
  %v7464 = vpack.c.bf16 %v7437, %v7436
  %v7465 = vpack.c.bf16 %v7439, %v7438
  %v7466 = vpack.c.bf16 %v7441, %v7440
  %v7467 = vpack.c.bf16 %v7443, %v7442
  %v7468 = vpack.c.bf16 %v7445, %v7444
  %v7469 = vpack.c.bf16 %v7447, %v7446
  %v7470 = vpack.c.bf16 %v7449, %v7448
  %v7471 = vpack.c.bf16 %v7451, %v7450
  %v7472 = vpack.c.bf16 %v7453, %v7452
  %v7473 = vpack.c.bf16 %v7455, %v7454
  %v7474 = vpack.c.bf16 %v7457, %v7456
  %v7475 = vpack.c.bf16 %v7459, %v7458
  %v7476 = vld [vmem:[%s7 + $0x16] sm:$0x1]
  %v7478 = vlaneseq
  %v7479 = vshrl.u32 %v7478, 7
  %v7480 = vsub.s32 0, %v7479
  %v7481 = vrot.slane %v7476, %v7480
  %v7499 = vunpack.c.l.b16 %v70
  %v7500 = vunpack.c.l.b16 %v71
  %v7501 = vunpack.c.l.b16 %v72
  %v7502 = vunpack.c.l.b16 %v73
  %v7503 = vunpack.c.l.b16 %v74
  %v7504 = vunpack.c.l.b16 %v75
  %v7505 = vunpack.c.l.b16 %v76
  %v7506 = vunpack.c.l.b16 %v77
  %v7507 = vunpack.c.l.b16 %v78
  %v7508 = vunpack.c.l.b16 %v79
  %v7509 = vunpack.c.l.b16 %v80
  %v7510 = vunpack.c.l.b16 %v81
  %v7511 = vunpack.c.l.b16 %v82
  %v7512 = vunpack.c.l.b16 %v83
  %v7513 = vunpack.c.l.b16 %v84
  %v7514 = vunpack.c.l.b16 %v85
  %v7515 = vpack.c.b16 %v7500, %v7499
  %v7516 = vpack.c.b16 %v7502, %v7501
  %v7517 = vpack.c.b16 %v7504, %v7503
  %v7518 = vpack.c.b16 %v7506, %v7505
  %v7519 = vpack.c.b16 %v7508, %v7507
  %v7520 = vpack.c.b16 %v7510, %v7509
  %v7521 = vpack.c.b16 %v7512, %v7511
  %v7522 = vpack.c.b16 %v7514, %v7513
  %7531 = vmatprep.subr.bf16.mxu0 0
  %7532 = vmatpush1.bf16.msra.mxu0 %v7515
  %7533 = vmatprep.subr.bf16.mxu0 0
  %7534 = vmatpush1.bf16.msra.mxu0 %v7516
  %7535 = vmatprep.subr.bf16.mxu0 0
  %7536 = vmatpush1.bf16.msra.mxu0 %v7517
  %7537 = vmatprep.subr.bf16.mxu0 0
  %7538 = vmatpush1.bf16.msra.mxu0 %v7518
  %7539 = vmatprep.subr.bf16.mxu0 0
  %7540 = vmatpush1.bf16.msra.mxu0 %v7519
  %7541 = vmatprep.subr.bf16.mxu0 0
  %7542 = vmatpush1.bf16.msra.mxu0 %v7520
  %7543 = vmatprep.subr.bf16.mxu0 0
  %7544 = vmatpush1.bf16.msra.mxu0 %v7521
  %7545 = vmatprep.subr.bf16.mxu0 0
  %7546 = vmatpush1.bf16.msra.mxu0 %v7522
  %7547 = vmatprep.subr.bf16.mxu0 0
  %7548 = vmatpush1.bf16.msra.mxu0 0
  %7549 = vmatprep.subr.bf16.mxu0 0
  %7550 = vmatpush1.bf16.msra.mxu0 0
  %7551 = vmatprep.subr.bf16.mxu0 0
  %7552 = vmatpush1.bf16.msra.mxu0 0
  %7553 = vmatprep.subr.bf16.mxu0 0
  %7554 = vmatpush1.bf16.msra.mxu0 0
  %7555 = vmatprep.subr.bf16.mxu0 0
  %7556 = vmatpush1.bf16.msra.mxu0 0
  %7557 = vmatprep.subr.bf16.mxu0 0
  %7558 = vmatpush1.bf16.msra.mxu0 0
  %7559 = vmatprep.subr.bf16.mxu0 0
  %7560 = vmatpush1.bf16.msra.mxu0 0
  %7561 = vmatprep.subr.bf16.mxu0 0
  %7562 = vmatpush1.bf16.msra.mxu0 0
  %7563 = vmatprep.mubr.bf16.mxu0 0
  %7564 = vmatmul.mubr.bf16.gmra.mrb[0].mxu0 %v7460
  %v7565 = vpop.f32.mrb[0].mxu0
  %v7566 = vadd.f32 %v7481, %v7565
  %v7567 = vpop.f32.mrb[0].mxu0
  %v7568 = vpop.f32.mrb[0].mxu0
  %v7569 = vadd.f32 %v7481, %v7568
  %v7570 = vpop.f32.mrb[0].mxu0
  %7571 = vmatprep.mubr.bf16.mxu0 0
  %7572 = vmatmul.mubr.bf16.gmra.mrb[0].mxu0 %v7461
  %v7573 = vpop.f32.mrb[0].mxu0
  %v7574 = vadd.f32 %v7481, %v7573
  %v7575 = vpop.f32.mrb[0].mxu0
  %v7576 = vpop.f32.mrb[0].mxu0
  %v7577 = vadd.f32 %v7481, %v7576
  %v7578 = vpop.f32.mrb[0].mxu0
  %7579 = vmatprep.mubr.bf16.mxu0 0
  %7580 = vmatmul.mubr.bf16.gmra.mrb[0].mxu0 %v7462
  %v7581 = vpop.f32.mrb[0].mxu0
  %v7582 = vadd.f32 %v7481, %v7581
  %v7583 = vpop.f32.mrb[0].mxu0
  %v7584 = vpop.f32.mrb[0].mxu0
  %v7585 = vadd.f32 %v7481, %v7584
  %v7586 = vpop.f32.mrb[0].mxu0
  %7587 = vmatprep.mubr.bf16.mxu0 0
  %7588 = vmatmul.mubr.bf16.gmra.mrb[0].mxu0 %v7463
  %v7589 = vpop.f32.mrb[0].mxu0
  %v7590 = vadd.f32 %v7481, %v7589
  %v7591 = vpop.f32.mrb[0].mxu0
  %v7592 = vpop.f32.mrb[0].mxu0
  %v7593 = vadd.f32 %v7481, %v7592
  %v7594 = vpop.f32.mrb[0].mxu0
  %7595 = vmatprep.mubr.bf16.mxu0 0
  %7596 = vmatmul.mubr.bf16.gmra.mrb[0].mxu0 %v7464
  %v7597 = vpop.f32.mrb[0].mxu0
  %v7598 = vadd.f32 %v7481, %v7597
  %v7599 = vpop.f32.mrb[0].mxu0
  %v7600 = vpop.f32.mrb[0].mxu0
  %v7601 = vadd.f32 %v7481, %v7600
  %v7602 = vpop.f32.mrb[0].mxu0
  %7603 = vmatprep.mubr.bf16.mxu0 0
  %7604 = vmatmul.mubr.bf16.gmra.mrb[0].mxu0 %v7465
  %v7605 = vpop.f32.mrb[0].mxu0
  %v7606 = vadd.f32 %v7481, %v7605
  %v7607 = vpop.f32.mrb[0].mxu0
  %v7608 = vpop.f32.mrb[0].mxu0
  %v7609 = vadd.f32 %v7481, %v7608
  %v7610 = vpop.f32.mrb[0].mxu0
  %7611 = vmatprep.mubr.bf16.mxu0 0
  %7612 = vmatmul.mubr.bf16.gmra.mrb[0].mxu0 %v7466
  %v7613 = vpop.f32.mrb[0].mxu0
  %v7614 = vadd.f32 %v7481, %v7613
  %v7615 = vpop.f32.mrb[0].mxu0
  %v7616 = vpop.f32.mrb[0].mxu0
  %v7617 = vadd.f32 %v7481, %v7616
  %v7618 = vpop.f32.mrb[0].mxu0
  %7619 = vmatprep.mubr.bf16.mxu0 0
  %7620 = vmatmul.mubr.bf16.gmra.mrb[0].mxu0 %v7467
  %v7621 = vpop.f32.mrb[0].mxu0
  %v7622 = vadd.f32 %v7481, %v7621
  %v7623 = vpop.f32.mrb[0].mxu0
  %v7624 = vpop.f32.mrb[0].mxu0
  %v7625 = vadd.f32 %v7481, %v7624
  %v7626 = vpop.f32.mrb[0].mxu0
  %7627 = vmatprep.mubr.bf16.mxu0 0
  %7628 = vmatmul.mubr.bf16.gmra.mrb[0].mxu0 %v7468
  %v7629 = vpop.f32.mrb[0].mxu0
  %v7630 = vadd.f32 %v7481, %v7629
  %v7631 = vpop.f32.mrb[0].mxu0
  %v7632 = vpop.f32.mrb[0].mxu0
  %v7633 = vadd.f32 %v7481, %v7632
  %v7634 = vpop.f32.mrb[0].mxu0
  %7635 = vmatprep.mubr.bf16.mxu0 0
  %7636 = vmatmul.mubr.bf16.gmra.mrb[0].mxu0 %v7469
  %v7637 = vpop.f32.mrb[0].mxu0
  %v7638 = vadd.f32 %v7481, %v7637
  %v7639 = vpop.f32.mrb[0].mxu0
  %v7640 = vpop.f32.mrb[0].mxu0
  %v7641 = vadd.f32 %v7481, %v7640
  %v7642 = vpop.f32.mrb[0].mxu0
  %7643 = vmatprep.mubr.bf16.mxu0 0
  %7644 = vmatmul.mubr.bf16.gmra.mrb[0].mxu0 %v7470
  %v7645 = vpop.f32.mrb[0].mxu0
  %v7646 = vadd.f32 %v7481, %v7645
  %v7647 = vpop.f32.mrb[0].mxu0
  %v7648 = vpop.f32.mrb[0].mxu0
  %v7649 = vadd.f32 %v7481, %v7648
  %v7650 = vpop.f32.mrb[0].mxu0
  %7651 = vmatprep.mubr.bf16.mxu0 0
  %7652 = vmatmul.mubr.bf16.gmra.mrb[0].mxu0 %v7471
  %v7653 = vpop.f32.mrb[0].mxu0
  %v7654 = vadd.f32 %v7481, %v7653
  %v7655 = vpop.f32.mrb[0].mxu0
  %v7656 = vpop.f32.mrb[0].mxu0
  %v7657 = vadd.f32 %v7481, %v7656
  %v7658 = vpop.f32.mrb[0].mxu0
  %7659 = vmatprep.mubr.bf16.mxu0 0
  %7660 = vmatmul.mubr.bf16.gmra.mrb[0].mxu0 %v7472
  %v7661 = vpop.f32.mrb[0].mxu0
  %v7662 = vadd.f32 %v7481, %v7661
  %v7663 = vpop.f32.mrb[0].mxu0
  %v7664 = vpop.f32.mrb[0].mxu0
  %v7665 = vadd.f32 %v7481, %v7664
  %v7666 = vpop.f32.mrb[0].mxu0
  %7667 = vmatprep.mubr.bf16.mxu0 0
  %7668 = vmatmul.mubr.bf16.gmra.mrb[0].mxu0 %v7473
  %v7669 = vpop.f32.mrb[0].mxu0
  %v7670 = vadd.f32 %v7481, %v7669
  %v7671 = vpop.f32.mrb[0].mxu0
  %v7672 = vpop.f32.mrb[0].mxu0
  %v7673 = vadd.f32 %v7481, %v7672
  %v7674 = vpop.f32.mrb[0].mxu0
  %7675 = vmatprep.mubr.bf16.mxu0 0
  %7676 = vmatmul.mubr.bf16.gmra.mrb[0].mxu0 %v7474
  %v7677 = vpop.f32.mrb[0].mxu0
  %v7678 = vadd.f32 %v7481, %v7677
  %v7679 = vpop.f32.mrb[0].mxu0
  %v7680 = vpop.f32.mrb[0].mxu0
  %v7681 = vadd.f32 %v7481, %v7680
  %v7682 = vpop.f32.mrb[0].mxu0
  %7683 = vmatprep.mubr.bf16.mxu0 0
  %7684 = vmatmul.mubr.bf16.gmra.mrb[0].mxu0 %v7475
  %v7685 = vpop.f32.mrb[0].mxu0
  %v7686 = vadd.f32 %v7481, %v7685
  %v7687 = vpop.f32.mrb[0].mxu0
  %v7688 = vpop.f32.mrb[0].mxu0
  %v7689 = vadd.f32 %v7481, %v7688
  %v7690 = vpop.f32.mrb[0].mxu0
  %7691 = vdwg.mxu0
  %7692 = vadd.xlane.f32.xlu0 %v7566
  %v7693 = vpop.xlane.xlu0 %7692
  %7694 = vadd.xlane.f32.xlu0 %v7569
  %v7695 = vpop.xlane.xlu0 %7694
  %7696 = vadd.xlane.f32.xlu0 %v7574
  %v7697 = vpop.xlane.xlu0 %7696
  %7698 = vadd.xlane.f32.xlu0 %v7577
  %v7699 = vpop.xlane.xlu0 %7698
  %7700 = vadd.xlane.f32.xlu0 %v7582
  %v7701 = vpop.xlane.xlu0 %7700
  %7702 = vadd.xlane.f32.xlu0 %v7585
  %v7703 = vpop.xlane.xlu0 %7702
  %7704 = vadd.xlane.f32.xlu0 %v7590
  %v7705 = vpop.xlane.xlu0 %7704
  %7706 = vadd.xlane.f32.xlu0 %v7593
  %v7707 = vpop.xlane.xlu0 %7706
  %7708 = vadd.xlane.f32.xlu0 %v7598
  %v7709 = vpop.xlane.xlu0 %7708
  %7710 = vadd.xlane.f32.xlu0 %v7601
  %v7711 = vpop.xlane.xlu0 %7710
  %7712 = vadd.xlane.f32.xlu0 %v7606
  %v7713 = vpop.xlane.xlu0 %7712
  %7714 = vadd.xlane.f32.xlu0 %v7609
  %v7715 = vpop.xlane.xlu0 %7714
  %7716 = vadd.xlane.f32.xlu0 %v7614
  %v7717 = vpop.xlane.xlu0 %7716
  %7718 = vadd.xlane.f32.xlu0 %v7617
  %v7719 = vpop.xlane.xlu0 %7718
  %7720 = vadd.xlane.f32.xlu0 %v7622
  %v7721 = vpop.xlane.xlu0 %7720
  %7722 = vadd.xlane.f32.xlu0 %v7625
  %v7723 = vpop.xlane.xlu0 %7722
  %7724 = vadd.xlane.f32.xlu0 %v7630
  %v7725 = vpop.xlane.xlu0 %7724
  %7726 = vadd.xlane.f32.xlu0 %v7633
  %v7727 = vpop.xlane.xlu0 %7726
  %7728 = vadd.xlane.f32.xlu0 %v7638
  %v7729 = vpop.xlane.xlu0 %7728
  %7730 = vadd.xlane.f32.xlu0 %v7641
  %v7731 = vpop.xlane.xlu0 %7730
  %7732 = vadd.xlane.f32.xlu0 %v7646
  %v7733 = vpop.xlane.xlu0 %7732
  %7734 = vadd.xlane.f32.xlu0 %v7649
  %v7735 = vpop.xlane.xlu0 %7734
  %7736 = vadd.xlane.f32.xlu0 %v7654
  %v7737 = vpop.xlane.xlu0 %7736
  %7738 = vadd.xlane.f32.xlu0 %v7657
  %v7739 = vpop.xlane.xlu0 %7738
  %7740 = vadd.xlane.f32.xlu0 %v7662
  %v7741 = vpop.xlane.xlu0 %7740
  %7742 = vadd.xlane.f32.xlu0 %v7665
  %v7743 = vpop.xlane.xlu0 %7742
  %7744 = vadd.xlane.f32.xlu0 %v7670
  %v7745 = vpop.xlane.xlu0 %7744
  %7746 = vadd.xlane.f32.xlu0 %v7673
  %v7747 = vpop.xlane.xlu0 %7746
  %7748 = vadd.xlane.f32.xlu0 %v7678
  %v7749 = vpop.xlane.xlu0 %7748
  %7750 = vadd.xlane.f32.xlu0 %v7681
  %v7751 = vpop.xlane.xlu0 %7750
  %7752 = vadd.xlane.f32.xlu0 %v7686
  %v7753 = vpop.xlane.xlu0 %7752
  %7754 = vadd.xlane.f32.xlu0 %v7689
  %v7755 = vpop.xlane.xlu0 %7754
  %v7756 = vmul.f32 %v7693, %v6773
  %v7757 = vmul.f32 %v7695, %v6773
  %v7758 = vmul.f32 %v7697, %v6773
  %v7759 = vmul.f32 %v7699, %v6773
  %v7760 = vmul.f32 %v7701, %v6773
  %v7761 = vmul.f32 %v7703, %v6773
  %v7762 = vmul.f32 %v7705, %v6773
  %v7763 = vmul.f32 %v7707, %v6773
  %v7764 = vmul.f32 %v7709, %v6773
  %v7765 = vmul.f32 %v7711, %v6773
  %v7766 = vmul.f32 %v7713, %v6773
  %v7767 = vmul.f32 %v7715, %v6773
  %v7768 = vmul.f32 %v7717, %v6773
  %v7769 = vmul.f32 %v7719, %v6773
  %v7770 = vmul.f32 %v7721, %v6773
  %v7771 = vmul.f32 %v7723, %v6773
  %v7772 = vmul.f32 %v7725, %v6773
  %v7773 = vmul.f32 %v7727, %v6773
  %v7774 = vmul.f32 %v7729, %v6773
  %v7775 = vmul.f32 %v7731, %v6773
  %v7776 = vmul.f32 %v7733, %v6773
  %v7777 = vmul.f32 %v7735, %v6773
  %v7778 = vmul.f32 %v7737, %v6773
  %v7779 = vmul.f32 %v7739, %v6773
  %v7780 = vmul.f32 %v7741, %v6773
  %v7781 = vmul.f32 %v7743, %v6773
  %v7782 = vmul.f32 %v7745, %v6773
  %v7783 = vmul.f32 %v7747, %v6773
  %v7784 = vmul.f32 %v7749, %v6773
  %v7785 = vmul.f32 %v7751, %v6773
  %v7786 = vmul.f32 %v7753, %v6773
  %v7787 = vmul.f32 %v7755, %v6773
  %v7788 = vsub.f32 %v7566, %v7756
  %v7789 = vsub.f32 %v7569, %v7757
  %v7790 = vsub.f32 %v7574, %v7758
  %v7791 = vsub.f32 %v7577, %v7759
  %v7792 = vsub.f32 %v7582, %v7760
  %v7793 = vsub.f32 %v7585, %v7761
  %v7794 = vsub.f32 %v7590, %v7762
  %v7795 = vsub.f32 %v7593, %v7763
  %v7796 = vsub.f32 %v7598, %v7764
  %v7797 = vsub.f32 %v7601, %v7765
  %v7798 = vsub.f32 %v7606, %v7766
  %v7799 = vsub.f32 %v7609, %v7767
  %v7800 = vsub.f32 %v7614, %v7768
  %v7801 = vsub.f32 %v7617, %v7769
  %v7802 = vsub.f32 %v7622, %v7770
  %v7803 = vsub.f32 %v7625, %v7771
  %v7804 = vsub.f32 %v7630, %v7772
  %v7805 = vsub.f32 %v7633, %v7773
  %v7806 = vsub.f32 %v7638, %v7774
  %v7807 = vsub.f32 %v7641, %v7775
  %v7808 = vsub.f32 %v7646, %v7776
  %v7809 = vsub.f32 %v7649, %v7777
  %v7810 = vsub.f32 %v7654, %v7778
  %v7811 = vsub.f32 %v7657, %v7779
  %v7812 = vsub.f32 %v7662, %v7780
  %v7813 = vsub.f32 %v7665, %v7781
  %v7814 = vsub.f32 %v7670, %v7782
  %v7815 = vsub.f32 %v7673, %v7783
  %v7816 = vsub.f32 %v7678, %v7784
  %v7817 = vsub.f32 %v7681, %v7785
  %v7818 = vsub.f32 %v7686, %v7786
  %v7819 = vsub.f32 %v7689, %v7787
  %v7820 = vmul.f32 %v7788, %v7788
  %v7821 = vmul.f32 %v7789, %v7789
  %v7822 = vmul.f32 %v7790, %v7790
  %v7823 = vmul.f32 %v7791, %v7791
  %v7824 = vmul.f32 %v7792, %v7792
  %v7825 = vmul.f32 %v7793, %v7793
  %v7826 = vmul.f32 %v7794, %v7794
  %v7827 = vmul.f32 %v7795, %v7795
  %v7828 = vmul.f32 %v7796, %v7796
  %v7829 = vmul.f32 %v7797, %v7797
  %v7830 = vmul.f32 %v7798, %v7798
  %v7831 = vmul.f32 %v7799, %v7799
  %v7832 = vmul.f32 %v7800, %v7800
  %v7833 = vmul.f32 %v7801, %v7801
  %v7834 = vmul.f32 %v7802, %v7802
  %v7835 = vmul.f32 %v7803, %v7803
  %v7836 = vmul.f32 %v7804, %v7804
  %v7837 = vmul.f32 %v7805, %v7805
  %v7838 = vmul.f32 %v7806, %v7806
  %v7839 = vmul.f32 %v7807, %v7807
  %v7840 = vmul.f32 %v7808, %v7808
  %v7841 = vmul.f32 %v7809, %v7809
  %v7842 = vmul.f32 %v7810, %v7810
  %v7843 = vmul.f32 %v7811, %v7811
  %v7844 = vmul.f32 %v7812, %v7812
  %v7845 = vmul.f32 %v7813, %v7813
  %v7846 = vmul.f32 %v7814, %v7814
  %v7847 = vmul.f32 %v7815, %v7815
  %v7848 = vmul.f32 %v7816, %v7816
  %v7849 = vmul.f32 %v7817, %v7817
  %v7850 = vmul.f32 %v7818, %v7818
  %v7851 = vmul.f32 %v7819, %v7819
  %7852 = vadd.xlane.f32.xlu0 %v7820
  %v7853 = vpop.xlane.xlu0 %7852
  %7854 = vadd.xlane.f32.xlu0 %v7821
  %v7855 = vpop.xlane.xlu0 %7854
  %7856 = vadd.xlane.f32.xlu0 %v7822
  %v7857 = vpop.xlane.xlu0 %7856
  %7858 = vadd.xlane.f32.xlu0 %v7823
  %v7859 = vpop.xlane.xlu0 %7858
  %7860 = vadd.xlane.f32.xlu0 %v7824
  %v7861 = vpop.xlane.xlu0 %7860
  %7862 = vadd.xlane.f32.xlu0 %v7825
  %v7863 = vpop.xlane.xlu0 %7862
  %7864 = vadd.xlane.f32.xlu0 %v7826
  %v7865 = vpop.xlane.xlu0 %7864
  %7866 = vadd.xlane.f32.xlu0 %v7827
  %v7867 = vpop.xlane.xlu0 %7866
  %7868 = vadd.xlane.f32.xlu0 %v7828
  %v7869 = vpop.xlane.xlu0 %7868
  %7870 = vadd.xlane.f32.xlu0 %v7829
  %v7871 = vpop.xlane.xlu0 %7870
  %7872 = vadd.xlane.f32.xlu0 %v7830
  %v7873 = vpop.xlane.xlu0 %7872
  %7874 = vadd.xlane.f32.xlu0 %v7831
  %v7875 = vpop.xlane.xlu0 %7874
  %7876 = vadd.xlane.f32.xlu0 %v7832
  %v7877 = vpop.xlane.xlu0 %7876
  %7878 = vadd.xlane.f32.xlu0 %v7833
  %v7879 = vpop.xlane.xlu0 %7878
  %7880 = vadd.xlane.f32.xlu0 %v7834
  %v7881 = vpop.xlane.xlu0 %7880
  %7882 = vadd.xlane.f32.xlu0 %v7835
  %v7883 = vpop.xlane.xlu0 %7882
  %7884 = vadd.xlane.f32.xlu0 %v7836
  %v7885 = vpop.xlane.xlu0 %7884
  %7886 = vadd.xlane.f32.xlu0 %v7837
  %v7887 = vpop.xlane.xlu0 %7886
  %7888 = vadd.xlane.f32.xlu0 %v7838
  %v7889 = vpop.xlane.xlu0 %7888
  %7890 = vadd.xlane.f32.xlu0 %v7839
  %v7891 = vpop.xlane.xlu0 %7890
  %7892 = vadd.xlane.f32.xlu0 %v7840
  %v7893 = vpop.xlane.xlu0 %7892
  %7894 = vadd.xlane.f32.xlu0 %v7841
  %v7895 = vpop.xlane.xlu0 %7894
  %7896 = vadd.xlane.f32.xlu0 %v7842
  %v7897 = vpop.xlane.xlu0 %7896
  %7898 = vadd.xlane.f32.xlu0 %v7843
  %v7899 = vpop.xlane.xlu0 %7898
  %7900 = vadd.xlane.f32.xlu0 %v7844
  %v7901 = vpop.xlane.xlu0 %7900
  %7902 = vadd.xlane.f32.xlu0 %v7845
  %v7903 = vpop.xlane.xlu0 %7902
  %7904 = vadd.xlane.f32.xlu0 %v7846
  %v7905 = vpop.xlane.xlu0 %7904
  %7906 = vadd.xlane.f32.xlu0 %v7847
  %v7907 = vpop.xlane.xlu0 %7906
  %7908 = vadd.xlane.f32.xlu0 %v7848
  %v7909 = vpop.xlane.xlu0 %7908
  %7910 = vadd.xlane.f32.xlu0 %v7849
  %v7911 = vpop.xlane.xlu0 %7910
  %7912 = vadd.xlane.f32.xlu0 %v7850
  %v7913 = vpop.xlane.xlu0 %7912
  %7914 = vadd.xlane.f32.xlu0 %v7851
  %v7915 = vpop.xlane.xlu0 %7914
  %v7916 = vmul.f32 %v7853, %v6773
  %v7917 = vmul.f32 %v7855, %v6773
  %v7918 = vmul.f32 %v7857, %v6773
  %v7919 = vmul.f32 %v7859, %v6773
  %v7920 = vmul.f32 %v7861, %v6773
  %v7921 = vmul.f32 %v7863, %v6773
  %v7922 = vmul.f32 %v7865, %v6773
  %v7923 = vmul.f32 %v7867, %v6773
  %v7924 = vmul.f32 %v7869, %v6773
  %v7925 = vmul.f32 %v7871, %v6773
  %v7926 = vmul.f32 %v7873, %v6773
  %v7927 = vmul.f32 %v7875, %v6773
  %v7928 = vmul.f32 %v7877, %v6773
  %v7929 = vmul.f32 %v7879, %v6773
  %v7930 = vmul.f32 %v7881, %v6773
  %v7931 = vmul.f32 %v7883, %v6773
  %v7932 = vmul.f32 %v7885, %v6773
  %v7933 = vmul.f32 %v7887, %v6773
  %v7934 = vmul.f32 %v7889, %v6773
  %v7935 = vmul.f32 %v7891, %v6773
  %v7936 = vmul.f32 %v7893, %v6773
  %v7937 = vmul.f32 %v7895, %v6773
  %v7938 = vmul.f32 %v7897, %v6773
  %v7939 = vmul.f32 %v7899, %v6773
  %v7940 = vmul.f32 %v7901, %v6773
  %v7941 = vmul.f32 %v7903, %v6773
  %v7942 = vmul.f32 %v7905, %v6773
  %v7943 = vmul.f32 %v7907, %v6773
  %v7944 = vmul.f32 %v7909, %v6773
  %v7945 = vmul.f32 %v7911, %v6773
  %v7946 = vmul.f32 %v7913, %v6773
  %v7947 = vmul.f32 %v7915, %v6773
  %v7948 = vadd.f32 %v7916, 1e-05
  %v7949 = vadd.f32 %v7917, 1e-05
  %v7950 = vadd.f32 %v7918, 1e-05
  %v7951 = vadd.f32 %v7919, 1e-05
  %v7952 = vadd.f32 %v7920, 1e-05
  %v7953 = vadd.f32 %v7921, 1e-05
  %v7954 = vadd.f32 %v7922, 1e-05
  %v7955 = vadd.f32 %v7923, 1e-05
  %v7956 = vadd.f32 %v7924, 1e-05
  %v7957 = vadd.f32 %v7925, 1e-05
  %v7958 = vadd.f32 %v7926, 1e-05
  %v7959 = vadd.f32 %v7927, 1e-05
  %v7960 = vadd.f32 %v7928, 1e-05
  %v7961 = vadd.f32 %v7929, 1e-05
  %v7962 = vadd.f32 %v7930, 1e-05
  %v7963 = vadd.f32 %v7931, 1e-05
  %v7964 = vadd.f32 %v7932, 1e-05
  %v7965 = vadd.f32 %v7933, 1e-05
  %v7966 = vadd.f32 %v7934, 1e-05
  %v7967 = vadd.f32 %v7935, 1e-05
  %v7968 = vadd.f32 %v7936, 1e-05
  %v7969 = vadd.f32 %v7937, 1e-05
  %v7970 = vadd.f32 %v7938, 1e-05
  %v7971 = vadd.f32 %v7939, 1e-05
  %v7972 = vadd.f32 %v7940, 1e-05
  %v7973 = vadd.f32 %v7941, 1e-05
  %v7974 = vadd.f32 %v7942, 1e-05
  %v7975 = vadd.f32 %v7943, 1e-05
  %v7976 = vadd.f32 %v7944, 1e-05
  %v7977 = vadd.f32 %v7945, 1e-05
  %v7978 = vadd.f32 %v7946, 1e-05
  %v7979 = vadd.f32 %v7947, 1e-05
  %v7980 = vrsqrt.pop %v7948
  %v7981 = vrsqrt.pop %v7949
  %v7982 = vrsqrt.pop %v7950
  %v7983 = vrsqrt.pop %v7951
  %v7984 = vrsqrt.pop %v7952
  %v7985 = vrsqrt.pop %v7953
  %v7986 = vrsqrt.pop %v7954
  %v7987 = vrsqrt.pop %v7955
  %v7988 = vrsqrt.pop %v7956
  %v7989 = vrsqrt.pop %v7957
  %v7990 = vrsqrt.pop %v7958
  %v7991 = vrsqrt.pop %v7959
  %v7992 = vrsqrt.pop %v7960
  %v7993 = vrsqrt.pop %v7961
  %v7994 = vrsqrt.pop %v7962
  %v7995 = vrsqrt.pop %v7963
  %v7996 = vrsqrt.pop %v7964
  %v7997 = vrsqrt.pop %v7965
  %v7998 = vrsqrt.pop %v7966
  %v7999 = vrsqrt.pop %v7967
  %v8000 = vrsqrt.pop %v7968
  %v8001 = vrsqrt.pop %v7969
  %v8002 = vrsqrt.pop %v7970
  %v8003 = vrsqrt.pop %v7971
  %v8004 = vrsqrt.pop %v7972
  %v8005 = vrsqrt.pop %v7973
  %v8006 = vrsqrt.pop %v7974
  %v8007 = vrsqrt.pop %v7975
  %v8008 = vrsqrt.pop %v7976
  %v8009 = vrsqrt.pop %v7977
  %v8010 = vrsqrt.pop %v7978
  %v8011 = vrsqrt.pop %v7979
  %v8012 = vmul.f32 %v7788, %v7980
  %v8013 = vmul.f32 %v7789, %v7981
  %v8014 = vmul.f32 %v7790, %v7982
  %v8015 = vmul.f32 %v7791, %v7983
  %v8016 = vmul.f32 %v7792, %v7984
  %v8017 = vmul.f32 %v7793, %v7985
  %v8018 = vmul.f32 %v7794, %v7986
  %v8019 = vmul.f32 %v7795, %v7987
  %v8020 = vmul.f32 %v7796, %v7988
  %v8021 = vmul.f32 %v7797, %v7989
  %v8022 = vmul.f32 %v7798, %v7990
  %v8023 = vmul.f32 %v7799, %v7991
  %v8024 = vmul.f32 %v7800, %v7992
  %v8025 = vmul.f32 %v7801, %v7993
  %v8026 = vmul.f32 %v7802, %v7994
  %v8027 = vmul.f32 %v7803, %v7995
  %v8028 = vmul.f32 %v7804, %v7996
  %v8029 = vmul.f32 %v7805, %v7997
  %v8030 = vmul.f32 %v7806, %v7998
  %v8031 = vmul.f32 %v7807, %v7999
  %v8032 = vmul.f32 %v7808, %v8000
  %v8033 = vmul.f32 %v7809, %v8001
  %v8034 = vmul.f32 %v7810, %v8002
  %v8035 = vmul.f32 %v7811, %v8003
  %v8036 = vmul.f32 %v7812, %v8004
  %v8037 = vmul.f32 %v7813, %v8005
  %v8038 = vmul.f32 %v7814, %v8006
  %v8039 = vmul.f32 %v7815, %v8007
  %v8040 = vmul.f32 %v7816, %v8008
  %v8041 = vmul.f32 %v7817, %v8009
  %v8042 = vmul.f32 %v7818, %v8010
  %v8043 = vmul.f32 %v7819, %v8011
  %v8044 = vld [vmem:[%s7 + $0x17] sm:$0x1]
  %v8046 = vlaneseq
  %v8047 = vshrl.u32 %v8046, 7
  %v8048 = vsub.s32 0, %v8047
  %v8049 = vrot.slane %v8044, %v8048
  %v8051 = vmul.f32 %v8012, %v8049
  %v8052 = vmul.f32 %v8013, %v8049
  %v8053 = vmul.f32 %v8014, %v8049
  %v8054 = vmul.f32 %v8015, %v8049
  %v8055 = vmul.f32 %v8016, %v8049
  %v8056 = vmul.f32 %v8017, %v8049
  %v8057 = vmul.f32 %v8018, %v8049
  %v8058 = vmul.f32 %v8019, %v8049
  %v8059 = vmul.f32 %v8020, %v8049
  %v8060 = vmul.f32 %v8021, %v8049
  %v8061 = vmul.f32 %v8022, %v8049
  %v8062 = vmul.f32 %v8023, %v8049
  %v8063 = vmul.f32 %v8024, %v8049
  %v8064 = vmul.f32 %v8025, %v8049
  %v8065 = vmul.f32 %v8026, %v8049
  %v8066 = vmul.f32 %v8027, %v8049
  %v8067 = vmul.f32 %v8028, %v8049
  %v8068 = vmul.f32 %v8029, %v8049
  %v8069 = vmul.f32 %v8030, %v8049
  %v8070 = vmul.f32 %v8031, %v8049
  %v8071 = vmul.f32 %v8032, %v8049
  %v8072 = vmul.f32 %v8033, %v8049
  %v8073 = vmul.f32 %v8034, %v8049
  %v8074 = vmul.f32 %v8035, %v8049
  %v8075 = vmul.f32 %v8036, %v8049
  %v8076 = vmul.f32 %v8037, %v8049
  %v8077 = vmul.f32 %v8038, %v8049
  %v8078 = vmul.f32 %v8039, %v8049
  %v8079 = vmul.f32 %v8040, %v8049
  %v8080 = vmul.f32 %v8041, %v8049
  %v8081 = vmul.f32 %v8042, %v8049
  %v8082 = vmul.f32 %v8043, %v8049
  %v8083 = vld [vmem:[%s7 + $0x18] sm:$0x1]
  %v8085 = vlaneseq
  %v8086 = vshrl.u32 %v8085, 7
  %v8087 = vsub.s32 0, %v8086
  %v8088 = vrot.slane %v8083, %v8087
  %v8090 = vadd.f32 %v8051, %v8088
  %v8091 = vadd.f32 %v8052, %v8088
  %v8092 = vadd.f32 %v8053, %v8088
  %v8093 = vadd.f32 %v8054, %v8088
  %v8094 = vadd.f32 %v8055, %v8088
  %v8095 = vadd.f32 %v8056, %v8088
  %v8096 = vadd.f32 %v8057, %v8088
  %v8097 = vadd.f32 %v8058, %v8088
  %v8098 = vadd.f32 %v8059, %v8088
  %v8099 = vadd.f32 %v8060, %v8088
  %v8100 = vadd.f32 %v8061, %v8088
  %v8101 = vadd.f32 %v8062, %v8088
  %v8102 = vadd.f32 %v8063, %v8088
  %v8103 = vadd.f32 %v8064, %v8088
  %v8104 = vadd.f32 %v8065, %v8088
  %v8105 = vadd.f32 %v8066, %v8088
  %v8106 = vadd.f32 %v8067, %v8088
  %v8107 = vadd.f32 %v8068, %v8088
  %v8108 = vadd.f32 %v8069, %v8088
  %v8109 = vadd.f32 %v8070, %v8088
  %v8110 = vadd.f32 %v8071, %v8088
  %v8111 = vadd.f32 %v8072, %v8088
  %v8112 = vadd.f32 %v8073, %v8088
  %v8113 = vadd.f32 %v8074, %v8088
  %v8114 = vadd.f32 %v8075, %v8088
  %v8115 = vadd.f32 %v8076, %v8088
  %v8116 = vadd.f32 %v8077, %v8088
  %v8117 = vadd.f32 %v8078, %v8088
  %v8118 = vadd.f32 %v8079, %v8088
  %v8119 = vadd.f32 %v8080, %v8088
  %v8120 = vadd.f32 %v8081, %v8088
  %v8121 = vadd.f32 %v8082, %v8088
  %v8122 = vmin.f32 %v8090, 20.0
  %v8123 = vmin.f32 %v8091, 20.0
  %v8124 = vmin.f32 %v8092, 20.0
  %v8125 = vmin.f32 %v8093, 20.0
  %v8126 = vmin.f32 %v8094, 20.0
  %v8127 = vmin.f32 %v8095, 20.0
  %v8128 = vmin.f32 %v8096, 20.0
  %v8129 = vmin.f32 %v8097, 20.0
  %v8130 = vmin.f32 %v8098, 20.0
  %v8131 = vmin.f32 %v8099, 20.0
  %v8132 = vmin.f32 %v8100, 20.0
  %v8133 = vmin.f32 %v8101, 20.0
  %v8134 = vmin.f32 %v8102, 20.0
  %v8135 = vmin.f32 %v8103, 20.0
  %v8136 = vmin.f32 %v8104, 20.0
  %v8137 = vmin.f32 %v8105, 20.0
  %v8138 = vmin.f32 %v8106, 20.0
  %v8139 = vmin.f32 %v8107, 20.0
  %v8140 = vmin.f32 %v8108, 20.0
  %v8141 = vmin.f32 %v8109, 20.0
  %v8142 = vmin.f32 %v8110, 20.0
  %v8143 = vmin.f32 %v8111, 20.0
  %v8144 = vmin.f32 %v8112, 20.0
  %v8145 = vmin.f32 %v8113, 20.0
  %v8146 = vmin.f32 %v8114, 20.0
  %v8147 = vmin.f32 %v8115, 20.0
  %v8148 = vmin.f32 %v8116, 20.0
  %v8149 = vmin.f32 %v8117, 20.0
  %v8150 = vmin.f32 %v8118, 20.0
  %v8151 = vmin.f32 %v8119, 20.0
  %v8152 = vmin.f32 %v8120, 20.0
  %v8153 = vmin.f32 %v8121, 20.0
  %v8154 = vmul.f32 %v8122, 1.442695
  %v8155 = vpow.pop %v8154
  %v8156 = vmul.f32 %v8123, 1.442695
  %v8157 = vpow.pop %v8156
  %v8158 = vmul.f32 %v8124, 1.442695
  %v8159 = vpow.pop %v8158
  %v8160 = vmul.f32 %v8125, 1.442695
  %v8161 = vpow.pop %v8160
  %v8162 = vmul.f32 %v8126, 1.442695
  %v8163 = vpow.pop %v8162
  %v8164 = vmul.f32 %v8127, 1.442695
  %v8165 = vpow.pop %v8164
  %v8166 = vmul.f32 %v8128, 1.442695
  %v8167 = vpow.pop %v8166
  %v8168 = vmul.f32 %v8129, 1.442695
  %v8169 = vpow.pop %v8168
  %v8170 = vmul.f32 %v8130, 1.442695
  %v8171 = vpow.pop %v8170
  %v8172 = vmul.f32 %v8131, 1.442695
  %v8173 = vpow.pop %v8172
  %v8174 = vmul.f32 %v8132, 1.442695
  %v8175 = vpow.pop %v8174
  %v8176 = vmul.f32 %v8133, 1.442695
  %v8177 = vpow.pop %v8176
  %v8178 = vmul.f32 %v8134, 1.442695
  %v8179 = vpow.pop %v8178
  %v8180 = vmul.f32 %v8135, 1.442695
  %v8181 = vpow.pop %v8180
  %v8182 = vmul.f32 %v8136, 1.442695
  %v8183 = vpow.pop %v8182
  %v8184 = vmul.f32 %v8137, 1.442695
  %v8185 = vpow.pop %v8184
  %v8186 = vmul.f32 %v8138, 1.442695
  %v8187 = vpow.pop %v8186
  %v8188 = vmul.f32 %v8139, 1.442695
  %v8189 = vpow.pop %v8188
  %v8190 = vmul.f32 %v8140, 1.442695
  %v8191 = vpow.pop %v8190
  %v8192 = vmul.f32 %v8141, 1.442695
  %v8193 = vpow.pop %v8192
  %v8194 = vmul.f32 %v8142, 1.442695
  %v8195 = vpow.pop %v8194
  %v8196 = vmul.f32 %v8143, 1.442695
  %v8197 = vpow.pop %v8196
  %v8198 = vmul.f32 %v8144, 1.442695
  %v8199 = vpow.pop %v8198
  %v8200 = vmul.f32 %v8145, 1.442695
  %v8201 = vpow.pop %v8200
  %v8202 = vmul.f32 %v8146, 1.442695
  %v8203 = vpow.pop %v8202
  %v8204 = vmul.f32 %v8147, 1.442695
  %v8205 = vpow.pop %v8204
  %v8206 = vmul.f32 %v8148, 1.442695
  %v8207 = vpow.pop %v8206
  %v8208 = vmul.f32 %v8149, 1.442695
  %v8209 = vpow.pop %v8208
  %v8210 = vmul.f32 %v8150, 1.442695
  %v8211 = vpow.pop %v8210
  %v8212 = vmul.f32 %v8151, 1.442695
  %v8213 = vpow.pop %v8212
  %v8214 = vmul.f32 %v8152, 1.442695
  %v8215 = vpow.pop %v8214
  %v8216 = vmul.f32 %v8153, 1.442695
  %v8217 = vpow.pop %v8216
  %v8218 = vadd.f32 %v8155, 1.0
  %v8219 = vadd.f32 %v8157, 1.0
  %v8220 = vadd.f32 %v8159, 1.0
  %v8221 = vadd.f32 %v8161, 1.0
  %v8222 = vadd.f32 %v8163, 1.0
  %v8223 = vadd.f32 %v8165, 1.0
  %v8224 = vadd.f32 %v8167, 1.0
  %v8225 = vadd.f32 %v8169, 1.0
  %v8226 = vadd.f32 %v8171, 1.0
  %v8227 = vadd.f32 %v8173, 1.0
  %v8228 = vadd.f32 %v8175, 1.0
  %v8229 = vadd.f32 %v8177, 1.0
  %v8230 = vadd.f32 %v8179, 1.0
  %v8231 = vadd.f32 %v8181, 1.0
  %v8232 = vadd.f32 %v8183, 1.0
  %v8233 = vadd.f32 %v8185, 1.0
  %v8234 = vadd.f32 %v8187, 1.0
  %v8235 = vadd.f32 %v8189, 1.0
  %v8236 = vadd.f32 %v8191, 1.0
  %v8237 = vadd.f32 %v8193, 1.0
  %v8238 = vadd.f32 %v8195, 1.0
  %v8239 = vadd.f32 %v8197, 1.0
  %v8240 = vadd.f32 %v8199, 1.0
  %v8241 = vadd.f32 %v8201, 1.0
  %v8242 = vadd.f32 %v8203, 1.0
  %v8243 = vadd.f32 %v8205, 1.0
  %v8244 = vadd.f32 %v8207, 1.0
  %v8245 = vadd.f32 %v8209, 1.0
  %v8246 = vadd.f32 %v8211, 1.0
  %v8247 = vadd.f32 %v8213, 1.0
  %v8248 = vadd.f32 %v8215, 1.0
  %v8249 = vadd.f32 %v8217, 1.0
  %v8250 = vmul.f32 %v8218, %v8218
  %v8251 = vmul.f32 %v8219, %v8219
  %v8252 = vmul.f32 %v8220, %v8220
  %v8253 = vmul.f32 %v8221, %v8221
  %v8254 = vmul.f32 %v8222, %v8222
  %v8255 = vmul.f32 %v8223, %v8223
  %v8256 = vmul.f32 %v8224, %v8224
  %v8257 = vmul.f32 %v8225, %v8225
  %v8258 = vmul.f32 %v8226, %v8226
  %v8259 = vmul.f32 %v8227, %v8227
  %v8260 = vmul.f32 %v8228, %v8228
  %v8261 = vmul.f32 %v8229, %v8229
  %v8262 = vmul.f32 %v8230, %v8230
  %v8263 = vmul.f32 %v8231, %v8231
  %v8264 = vmul.f32 %v8232, %v8232
  %v8265 = vmul.f32 %v8233, %v8233
  %v8266 = vmul.f32 %v8234, %v8234
  %v8267 = vmul.f32 %v8235, %v8235
  %v8268 = vmul.f32 %v8236, %v8236
  %v8269 = vmul.f32 %v8237, %v8237
  %v8270 = vmul.f32 %v8238, %v8238
  %v8271 = vmul.f32 %v8239, %v8239
  %v8272 = vmul.f32 %v8240, %v8240
  %v8273 = vmul.f32 %v8241, %v8241
  %v8274 = vmul.f32 %v8242, %v8242
  %v8275 = vmul.f32 %v8243, %v8243
  %v8276 = vmul.f32 %v8244, %v8244
  %v8277 = vmul.f32 %v8245, %v8245
  %v8278 = vmul.f32 %v8246, %v8246
  %v8279 = vmul.f32 %v8247, %v8247
  %v8280 = vmul.f32 %v8248, %v8248
  %v8281 = vmul.f32 %v8249, %v8249
  %v8282 = vsub.f32 %v8250, 1.0
  %v8283 = vsub.f32 %v8251, 1.0
  %v8284 = vsub.f32 %v8252, 1.0
  %v8285 = vsub.f32 %v8253, 1.0
  %v8286 = vsub.f32 %v8254, 1.0
  %v8287 = vsub.f32 %v8255, 1.0
  %v8288 = vsub.f32 %v8256, 1.0
  %v8289 = vsub.f32 %v8257, 1.0
  %v8290 = vsub.f32 %v8258, 1.0
  %v8291 = vsub.f32 %v8259, 1.0
  %v8292 = vsub.f32 %v8260, 1.0
  %v8293 = vsub.f32 %v8261, 1.0
  %v8294 = vsub.f32 %v8262, 1.0
  %v8295 = vsub.f32 %v8263, 1.0
  %v8296 = vsub.f32 %v8264, 1.0
  %v8297 = vsub.f32 %v8265, 1.0
  %v8298 = vsub.f32 %v8266, 1.0
  %v8299 = vsub.f32 %v8267, 1.0
  %v8300 = vsub.f32 %v8268, 1.0
  %v8301 = vsub.f32 %v8269, 1.0
  %v8302 = vsub.f32 %v8270, 1.0
  %v8303 = vsub.f32 %v8271, 1.0
  %v8304 = vsub.f32 %v8272, 1.0
  %v8305 = vsub.f32 %v8273, 1.0
  %v8306 = vsub.f32 %v8274, 1.0
  %v8307 = vsub.f32 %v8275, 1.0
  %v8308 = vsub.f32 %v8276, 1.0
  %v8309 = vsub.f32 %v8277, 1.0
  %v8310 = vsub.f32 %v8278, 1.0
  %v8311 = vsub.f32 %v8279, 1.0
  %v8312 = vsub.f32 %v8280, 1.0
  %v8313 = vsub.f32 %v8281, 1.0
  %v8314 = vmul.f32 %v8090, %v8282
  %v8315 = vmul.f32 %v8091, %v8283
  %v8316 = vmul.f32 %v8092, %v8284
  %v8317 = vmul.f32 %v8093, %v8285
  %v8318 = vmul.f32 %v8094, %v8286
  %v8319 = vmul.f32 %v8095, %v8287
  %v8320 = vmul.f32 %v8096, %v8288
  %v8321 = vmul.f32 %v8097, %v8289
  %v8322 = vmul.f32 %v8098, %v8290
  %v8323 = vmul.f32 %v8099, %v8291
  %v8324 = vmul.f32 %v8100, %v8292
  %v8325 = vmul.f32 %v8101, %v8293
  %v8326 = vmul.f32 %v8102, %v8294
  %v8327 = vmul.f32 %v8103, %v8295
  %v8328 = vmul.f32 %v8104, %v8296
  %v8329 = vmul.f32 %v8105, %v8297
  %v8330 = vmul.f32 %v8106, %v8298
  %v8331 = vmul.f32 %v8107, %v8299
  %v8332 = vmul.f32 %v8108, %v8300
  %v8333 = vmul.f32 %v8109, %v8301
  %v8334 = vmul.f32 %v8110, %v8302
  %v8335 = vmul.f32 %v8111, %v8303
  %v8336 = vmul.f32 %v8112, %v8304
  %v8337 = vmul.f32 %v8113, %v8305
  %v8338 = vmul.f32 %v8114, %v8306
  %v8339 = vmul.f32 %v8115, %v8307
  %v8340 = vmul.f32 %v8116, %v8308
  %v8341 = vmul.f32 %v8117, %v8309
  %v8342 = vmul.f32 %v8118, %v8310
  %v8343 = vmul.f32 %v8119, %v8311
  %v8344 = vmul.f32 %v8120, %v8312
  %v8345 = vmul.f32 %v8121, %v8313
  %v8346 = vadd.f32 %v8250, 1.0
  %v8347 = vadd.f32 %v8251, 1.0
  %v8348 = vadd.f32 %v8252, 1.0
  %v8349 = vadd.f32 %v8253, 1.0
  %v8350 = vadd.f32 %v8254, 1.0
  %v8351 = vadd.f32 %v8255, 1.0
  %v8352 = vadd.f32 %v8256, 1.0
  %v8353 = vadd.f32 %v8257, 1.0
  %v8354 = vadd.f32 %v8258, 1.0
  %v8355 = vadd.f32 %v8259, 1.0
  %v8356 = vadd.f32 %v8260, 1.0
  %v8357 = vadd.f32 %v8261, 1.0
  %v8358 = vadd.f32 %v8262, 1.0
  %v8359 = vadd.f32 %v8263, 1.0
  %v8360 = vadd.f32 %v8264, 1.0
  %v8361 = vadd.f32 %v8265, 1.0
  %v8362 = vadd.f32 %v8266, 1.0
  %v8363 = vadd.f32 %v8267, 1.0
  %v8364 = vadd.f32 %v8268, 1.0
  %v8365 = vadd.f32 %v8269, 1.0
  %v8366 = vadd.f32 %v8270, 1.0
  %v8367 = vadd.f32 %v8271, 1.0
  %v8368 = vadd.f32 %v8272, 1.0
  %v8369 = vadd.f32 %v8273, 1.0
  %v8370 = vadd.f32 %v8274, 1.0
  %v8371 = vadd.f32 %v8275, 1.0
  %v8372 = vadd.f32 %v8276, 1.0
  %v8373 = vadd.f32 %v8277, 1.0
  %v8374 = vadd.f32 %v8278, 1.0
  %v8375 = vadd.f32 %v8279, 1.0
  %v8376 = vadd.f32 %v8280, 1.0
  %v8377 = vadd.f32 %v8281, 1.0
  %v8378 = vrcp.pop %v8346
  %v8379 = vrcp.pop %v8347
  %v8380 = vrcp.pop %v8348
  %v8381 = vrcp.pop %v8349
  %v8382 = vrcp.pop %v8350
  %v8383 = vrcp.pop %v8351
  %v8384 = vrcp.pop %v8352
  %v8385 = vrcp.pop %v8353
  %v8386 = vrcp.pop %v8354
  %v8387 = vrcp.pop %v8355
  %v8388 = vrcp.pop %v8356
  %v8389 = vrcp.pop %v8357
  %v8390 = vrcp.pop %v8358
  %v8391 = vrcp.pop %v8359
  %v8392 = vrcp.pop %v8360
  %v8393 = vrcp.pop %v8361
  %v8394 = vrcp.pop %v8362
  %v8395 = vrcp.pop %v8363
  %v8396 = vrcp.pop %v8364
  %v8397 = vrcp.pop %v8365
  %v8398 = vrcp.pop %v8366
  %v8399 = vrcp.pop %v8367
  %v8400 = vrcp.pop %v8368
  %v8401 = vrcp.pop %v8369
  %v8402 = vrcp.pop %v8370
  %v8403 = vrcp.pop %v8371
  %v8404 = vrcp.pop %v8372
  %v8405 = vrcp.pop %v8373
  %v8406 = vrcp.pop %v8374
  %v8407 = vrcp.pop %v8375
  %v8408 = vrcp.pop %v8376
  %v8409 = vrcp.pop %v8377
  %v8410 = vmul.f32 %v8314, %v8378
  %v8411 = vmul.f32 %v8315, %v8379
  %v8412 = vmul.f32 %v8316, %v8380
  %v8413 = vmul.f32 %v8317, %v8381
  %v8414 = vmul.f32 %v8318, %v8382
  %v8415 = vmul.f32 %v8319, %v8383
  %v8416 = vmul.f32 %v8320, %v8384
  %v8417 = vmul.f32 %v8321, %v8385
  %v8418 = vmul.f32 %v8322, %v8386
  %v8419 = vmul.f32 %v8323, %v8387
  %v8420 = vmul.f32 %v8324, %v8388
  %v8421 = vmul.f32 %v8325, %v8389
  %v8422 = vmul.f32 %v8326, %v8390
  %v8423 = vmul.f32 %v8327, %v8391
  %v8424 = vmul.f32 %v8328, %v8392
  %v8425 = vmul.f32 %v8329, %v8393
  %v8426 = vmul.f32 %v8330, %v8394
  %v8427 = vmul.f32 %v8331, %v8395
  %v8428 = vmul.f32 %v8332, %v8396
  %v8429 = vmul.f32 %v8333, %v8397
  %v8430 = vmul.f32 %v8334, %v8398
  %v8431 = vmul.f32 %v8335, %v8399
  %v8432 = vmul.f32 %v8336, %v8400
  %v8433 = vmul.f32 %v8337, %v8401
  %v8434 = vmul.f32 %v8338, %v8402
  %v8435 = vmul.f32 %v8339, %v8403
  %v8436 = vmul.f32 %v8340, %v8404
  %v8437 = vmul.f32 %v8341, %v8405
  %v8438 = vmul.f32 %v8342, %v8406
  %v8439 = vmul.f32 %v8343, %v8407
  %v8440 = vmul.f32 %v8344, %v8408
  %v8441 = vmul.f32 %v8345, %v8409
  %v8442 = vpack.c.bf16 %v8411, %v8410
  %v8443 = vpack.c.bf16 %v8413, %v8412
  %v8444 = vpack.c.bf16 %v8415, %v8414
  %v8445 = vpack.c.bf16 %v8417, %v8416
  %v8446 = vpack.c.bf16 %v8419, %v8418
  %v8447 = vpack.c.bf16 %v8421, %v8420
  %v8448 = vpack.c.bf16 %v8423, %v8422
  %v8449 = vpack.c.bf16 %v8425, %v8424
  %v8450 = vpack.c.bf16 %v8427, %v8426
  %v8451 = vpack.c.bf16 %v8429, %v8428
  %v8452 = vpack.c.bf16 %v8431, %v8430
  %v8453 = vpack.c.bf16 %v8433, %v8432
  %v8454 = vpack.c.bf16 %v8435, %v8434
  %v8455 = vpack.c.bf16 %v8437, %v8436
  %v8456 = vpack.c.bf16 %v8439, %v8438
  %v8457 = vpack.c.bf16 %v8441, %v8440
  %v8458 = vld [vmem:[%s7 + $0x19] sm:$0x1]
  %v8460 = vlaneseq
  %v8461 = vshrl.u32 %v8460, 7
  %v8462 = vsub.s32 0, %v8461
  %v8463 = vrot.slane %v8458, %v8462
  %v8481 = vunpack.c.l.b16 %v86
  %v8482 = vunpack.c.l.b16 %v87
  %v8483 = vunpack.c.l.b16 %v88
  %v8484 = vunpack.c.l.b16 %v89
  %v8485 = vunpack.c.l.b16 %v90
  %v8486 = vunpack.c.l.b16 %v91
  %v8487 = vunpack.c.l.b16 %v92
  %v8488 = vunpack.c.l.b16 %v93
  %v8489 = vunpack.c.l.b16 %v94
  %v8490 = vunpack.c.l.b16 %v95
  %v8491 = vunpack.c.l.b16 %v96
  %v8492 = vunpack.c.l.b16 %v97
  %v8493 = vunpack.c.l.b16 %v98
  %v8494 = vunpack.c.l.b16 %v99
  %v8495 = vunpack.c.l.b16 %v100
  %v8496 = vunpack.c.l.b16 %v101
  %v8497 = vpack.c.b16 %v8482, %v8481
  %v8498 = vpack.c.b16 %v8484, %v8483
  %v8499 = vpack.c.b16 %v8486, %v8485
  %v8500 = vpack.c.b16 %v8488, %v8487
  %v8501 = vpack.c.b16 %v8490, %v8489
  %v8502 = vpack.c.b16 %v8492, %v8491
  %v8503 = vpack.c.b16 %v8494, %v8493
  %v8504 = vpack.c.b16 %v8496, %v8495
  %8513 = vmatprep.subr.bf16.mxu0 0
  %8514 = vmatpush1.bf16.msra.mxu0 %v8497
  %8515 = vmatprep.subr.bf16.mxu0 0
  %8516 = vmatpush1.bf16.msra.mxu0 %v8498
  %8517 = vmatprep.subr.bf16.mxu0 0
  %8518 = vmatpush1.bf16.msra.mxu0 %v8499
  %8519 = vmatprep.subr.bf16.mxu0 0
  %8520 = vmatpush1.bf16.msra.mxu0 %v8500
  %8521 = vmatprep.subr.bf16.mxu0 0
  %8522 = vmatpush1.bf16.msra.mxu0 %v8501
  %8523 = vmatprep.subr.bf16.mxu0 0
  %8524 = vmatpush1.bf16.msra.mxu0 %v8502
  %8525 = vmatprep.subr.bf16.mxu0 0
  %8526 = vmatpush1.bf16.msra.mxu0 %v8503
  %8527 = vmatprep.subr.bf16.mxu0 0
  %8528 = vmatpush1.bf16.msra.mxu0 %v8504
  %8529 = vmatprep.subr.bf16.mxu0 0
  %8530 = vmatpush1.bf16.msra.mxu0 0
  %8531 = vmatprep.subr.bf16.mxu0 0
  %8532 = vmatpush1.bf16.msra.mxu0 0
  %8533 = vmatprep.subr.bf16.mxu0 0
  %8534 = vmatpush1.bf16.msra.mxu0 0
  %8535 = vmatprep.subr.bf16.mxu0 0
  %8536 = vmatpush1.bf16.msra.mxu0 0
  %8537 = vmatprep.subr.bf16.mxu0 0
  %8538 = vmatpush1.bf16.msra.mxu0 0
  %8539 = vmatprep.subr.bf16.mxu0 0
  %8540 = vmatpush1.bf16.msra.mxu0 0
  %8541 = vmatprep.subr.bf16.mxu0 0
  %8542 = vmatpush1.bf16.msra.mxu0 0
  %8543 = vmatprep.subr.bf16.mxu0 0
  %8544 = vmatpush1.bf16.msra.mxu0 0
  %8545 = vmatprep.mubr.bf16.mxu0 0
  %8546 = vmatmul.mubr.bf16.gmra.mrb[0].mxu0 %v8442
  %v8547 = vpop.f32.mrb[0].mxu0
  %v8548 = vadd.f32 %v8463, %v8547
  %v8549 = vpop.f32.mrb[0].mxu0
  %v8550 = vpop.f32.mrb[0].mxu0
  %v8551 = vadd.f32 %v8463, %v8550
  %v8552 = vpop.f32.mrb[0].mxu0
  %8553 = vmatprep.mubr.bf16.mxu0 0
  %8554 = vmatmul.mubr.bf16.gmra.mrb[0].mxu0 %v8443
  %v8555 = vpop.f32.mrb[0].mxu0
  %v8556 = vadd.f32 %v8463, %v8555
  %v8557 = vpop.f32.mrb[0].mxu0
  %v8558 = vpop.f32.mrb[0].mxu0
  %v8559 = vadd.f32 %v8463, %v8558
  %v8560 = vpop.f32.mrb[0].mxu0
  %8561 = vmatprep.mubr.bf16.mxu0 0
  %8562 = vmatmul.mubr.bf16.gmra.mrb[0].mxu0 %v8444
  %v8563 = vpop.f32.mrb[0].mxu0
  %v8564 = vadd.f32 %v8463, %v8563
  %v8565 = vpop.f32.mrb[0].mxu0
  %v8566 = vpop.f32.mrb[0].mxu0
  %v8567 = vadd.f32 %v8463, %v8566
  %v8568 = vpop.f32.mrb[0].mxu0
  %8569 = vmatprep.mubr.bf16.mxu0 0
  %8570 = vmatmul.mubr.bf16.gmra.mrb[0].mxu0 %v8445
  %v8571 = vpop.f32.mrb[0].mxu0
  %v8572 = vadd.f32 %v8463, %v8571
  %v8573 = vpop.f32.mrb[0].mxu0
  %v8574 = vpop.f32.mrb[0].mxu0
  %v8575 = vadd.f32 %v8463, %v8574
  %v8576 = vpop.f32.mrb[0].mxu0
  %8577 = vmatprep.mubr.bf16.mxu0 0
  %8578 = vmatmul.mubr.bf16.gmra.mrb[0].mxu0 %v8446
  %v8579 = vpop.f32.mrb[0].mxu0
  %v8580 = vadd.f32 %v8463, %v8579
  %v8581 = vpop.f32.mrb[0].mxu0
  %v8582 = vpop.f32.mrb[0].mxu0
  %v8583 = vadd.f32 %v8463, %v8582
  %v8584 = vpop.f32.mrb[0].mxu0
  %8585 = vmatprep.mubr.bf16.mxu0 0
  %8586 = vmatmul.mubr.bf16.gmra.mrb[0].mxu0 %v8447
  %v8587 = vpop.f32.mrb[0].mxu0
  %v8588 = vadd.f32 %v8463, %v8587
  %v8589 = vpop.f32.mrb[0].mxu0
  %v8590 = vpop.f32.mrb[0].mxu0
  %v8591 = vadd.f32 %v8463, %v8590
  %v8592 = vpop.f32.mrb[0].mxu0
  %8593 = vmatprep.mubr.bf16.mxu0 0
  %8594 = vmatmul.mubr.bf16.gmra.mrb[0].mxu0 %v8448
  %v8595 = vpop.f32.mrb[0].mxu0
  %v8596 = vadd.f32 %v8463, %v8595
  %v8597 = vpop.f32.mrb[0].mxu0
  %v8598 = vpop.f32.mrb[0].mxu0
  %v8599 = vadd.f32 %v8463, %v8598
  %v8600 = vpop.f32.mrb[0].mxu0
  %8601 = vmatprep.mubr.bf16.mxu0 0
  %8602 = vmatmul.mubr.bf16.gmra.mrb[0].mxu0 %v8449
  %v8603 = vpop.f32.mrb[0].mxu0
  %v8604 = vadd.f32 %v8463, %v8603
  %v8605 = vpop.f32.mrb[0].mxu0
  %v8606 = vpop.f32.mrb[0].mxu0
  %v8607 = vadd.f32 %v8463, %v8606
  %v8608 = vpop.f32.mrb[0].mxu0
  %8609 = vmatprep.mubr.bf16.mxu0 0
  %8610 = vmatmul.mubr.bf16.gmra.mrb[0].mxu0 %v8450
  %v8611 = vpop.f32.mrb[0].mxu0
  %v8612 = vadd.f32 %v8463, %v8611
  %v8613 = vpop.f32.mrb[0].mxu0
  %v8614 = vpop.f32.mrb[0].mxu0
  %v8615 = vadd.f32 %v8463, %v8614
  %v8616 = vpop.f32.mrb[0].mxu0
  %8617 = vmatprep.mubr.bf16.mxu0 0
  %8618 = vmatmul.mubr.bf16.gmra.mrb[0].mxu0 %v8451
  %v8619 = vpop.f32.mrb[0].mxu0
  %v8620 = vadd.f32 %v8463, %v8619
  %v8621 = vpop.f32.mrb[0].mxu0
  %v8622 = vpop.f32.mrb[0].mxu0
  %v8623 = vadd.f32 %v8463, %v8622
  %v8624 = vpop.f32.mrb[0].mxu0
  %8625 = vmatprep.mubr.bf16.mxu0 0
  %8626 = vmatmul.mubr.bf16.gmra.mrb[0].mxu0 %v8452
  %v8627 = vpop.f32.mrb[0].mxu0
  %v8628 = vadd.f32 %v8463, %v8627
  %v8629 = vpop.f32.mrb[0].mxu0
  %v8630 = vpop.f32.mrb[0].mxu0
  %v8631 = vadd.f32 %v8463, %v8630
  %v8632 = vpop.f32.mrb[0].mxu0
  %8633 = vmatprep.mubr.bf16.mxu0 0
  %8634 = vmatmul.mubr.bf16.gmra.mrb[0].mxu0 %v8453
  %v8635 = vpop.f32.mrb[0].mxu0
  %v8636 = vadd.f32 %v8463, %v8635
  %v8637 = vpop.f32.mrb[0].mxu0
  %v8638 = vpop.f32.mrb[0].mxu0
  %v8639 = vadd.f32 %v8463, %v8638
  %v8640 = vpop.f32.mrb[0].mxu0
  %8641 = vmatprep.mubr.bf16.mxu0 0
  %8642 = vmatmul.mubr.bf16.gmra.mrb[0].mxu0 %v8454
  %v8643 = vpop.f32.mrb[0].mxu0
  %v8644 = vadd.f32 %v8463, %v8643
  %v8645 = vpop.f32.mrb[0].mxu0
  %v8646 = vpop.f32.mrb[0].mxu0
  %v8647 = vadd.f32 %v8463, %v8646
  %v8648 = vpop.f32.mrb[0].mxu0
  %8649 = vmatprep.mubr.bf16.mxu0 0
  %8650 = vmatmul.mubr.bf16.gmra.mrb[0].mxu0 %v8455
  %v8651 = vpop.f32.mrb[0].mxu0
  %v8652 = vadd.f32 %v8463, %v8651
  %v8653 = vpop.f32.mrb[0].mxu0
  %v8654 = vpop.f32.mrb[0].mxu0
  %v8655 = vadd.f32 %v8463, %v8654
  %v8656 = vpop.f32.mrb[0].mxu0
  %8657 = vmatprep.mubr.bf16.mxu0 0
  %8658 = vmatmul.mubr.bf16.gmra.mrb[0].mxu0 %v8456
  %v8659 = vpop.f32.mrb[0].mxu0
  %v8660 = vadd.f32 %v8463, %v8659
  %v8661 = vpop.f32.mrb[0].mxu0
  %v8662 = vpop.f32.mrb[0].mxu0
  %v8663 = vadd.f32 %v8463, %v8662
  %v8664 = vpop.f32.mrb[0].mxu0
  %8665 = vmatprep.mubr.bf16.mxu0 0
  %8666 = vmatmul.mubr.bf16.gmra.mrb[0].mxu0 %v8457
  %v8667 = vpop.f32.mrb[0].mxu0
  %v8668 = vadd.f32 %v8463, %v8667
  %v8669 = vpop.f32.mrb[0].mxu0
  %v8670 = vpop.f32.mrb[0].mxu0
  %v8671 = vadd.f32 %v8463, %v8670
  %v8672 = vpop.f32.mrb[0].mxu0
  %8673 = vdwg.mxu0
  %8674 = vst [vmem:[%s8] sm:$0xff] %v8548
  %8675 = vst [vmem:[%s8 + $0x8] sm:$0xff] %v8551
  %8676 = vst [vmem:[%s8 + $0x10] sm:$0xff] %v8556
  %8677 = vst [vmem:[%s8 + $0x18] sm:$0xff] %v8559
  %8678 = vst [vmem:[%s8 + $0x20] sm:$0xff] %v8564
  %8679 = vst [vmem:[%s8 + $0x28] sm:$0xff] %v8567
  %8680 = vst [vmem:[%s8 + $0x30] sm:$0xff] %v8572
  %8681 = vst [vmem:[%s8 + $0x38] sm:$0xff] %v8575
  %8682 = vst [vmem:[%s8 + $0x40] sm:$0xff] %v8580
  %8683 = vst [vmem:[%s8 + $0x48] sm:$0xff] %v8583
  %8684 = vst [vmem:[%s8 + $0x50] sm:$0xff] %v8588
  %8685 = vst [vmem:[%s8 + $0x58] sm:$0xff] %v8591
  %8686 = vst [vmem:[%s8 + $0x60] sm:$0xff] %v8596
  %8687 = vst [vmem:[%s8 + $0x68] sm:$0xff] %v8599
  %8688 = vst [vmem:[%s8 + $0x70] sm:$0xff] %v8604
  %8689 = vst [vmem:[%s8 + $0x78] sm:$0xff] %v8607
  %8690 = vst [vmem:[%s8 + $0x80] sm:$0xff] %v8612
  %8691 = vst [vmem:[%s8 + $0x88] sm:$0xff] %v8615
  %8692 = vst [vmem:[%s8 + $0x90] sm:$0xff] %v8620
  %8693 = vst [vmem:[%s8 + $0x98] sm:$0xff] %v8623
  %8694 = vst [vmem:[%s8 + $0xa0] sm:$0xff] %v8628
  %8695 = vst [vmem:[%s8 + $0xa8] sm:$0xff] %v8631
  %8696 = vst [vmem:[%s8 + $0xb0] sm:$0xff] %v8636
  %8697 = vst [vmem:[%s8 + $0xb8] sm:$0xff] %v8639
  %8698 = vst [vmem:[%s8 + $0xc0] sm:$0xff] %v8644
  %8699 = vst [vmem:[%s8 + $0xc8] sm:$0xff] %v8647
  %8700 = vst [vmem:[%s8 + $0xd0] sm:$0xff] %v8652
  %8701 = vst [vmem:[%s8 + $0xd8] sm:$0xff] %v8655
  %8702 = vst [vmem:[%s8 + $0xe0] sm:$0xff] %v8660
  %8703 = vst [vmem:[%s8 + $0xe8] sm:$0xff] %v8663
  %8704 = vst [vmem:[%s8 + $0xf0] sm:$0xff] %v8668
  %8705 = vst [vmem:[%s8 + $0xf8] sm:$0xff] %v8671
  // Predicated region
  $region34: #{autoencoder_forward.1} parent=0 // pred_check
    _
  $region35: #{autoencoder_forward.1} parent=0 // pred_check_branch
    %8707 = sbr.rel (0) target = $region37
  $region36: #{autoencoder_forward.1} parent=0 // pred_region
    _
  $region37: #{autoencoder_forward.1} parent=0 // pred_fallthru
    _
  // Predicated region
  $region38: #{autoencoder_forward.1} parent=0 // pred_check
    _
  $region39: #{autoencoder_forward.1} parent=0 // pred_check_branch
    %8709 = sbr.rel (0) target = $region41
  $region40: #{autoencoder_forward.1} parent=0 // pred_region
    _
  $region41: #{autoencoder_forward.1} parent=0 // pred_fallthru
    _

</llo_original>
